<compile_context>
chip_gen: v7x
topology: tpu7x:2x2x1
jax: 0.10.0
libtpu: 0.0.40
codegen_flags: <defaults>
</compile_context>

<pallas_src>
import functools

import jax
import jax.numpy as jnp
from jax.experimental import pallas as pl
from jax.experimental.pallas import tpu as pltpu


# ----------------------------------------------------------------------------
# Tile selection helpers
# ----------------------------------------------------------------------------
def _pick_tile(dim, max_tile, align):
    """Largest multiple of `align` that divides `dim` and is <= max_tile, else `dim`."""
    if dim <= max_tile:
        return dim
    t = (max_tile // align) * align
    while t >= align:
        if dim % t == 0:
            return t
        t -= align
    return dim


_MM_PARAMS = dict(vmem_limit_bytes=32 * 1024 * 1024)


# ----------------------------------------------------------------------------
# Tiled linear:  out = x @ w + b        (x: (M, K), w: (K, N), b: (N,))
# ----------------------------------------------------------------------------
def _linear_kernel(x_ref, w_ref, b_ref, o_ref, acc_ref):
    k = pl.program_id(2)

    @pl.when(k == 0)
    def _():
        acc_ref[...] = jnp.zeros_like(acc_ref)

    acc_ref[...] += jnp.dot(x_ref[...], w_ref[...],
                            preferred_element_type=jnp.float32)

    @pl.when(k == pl.num_programs(2) - 1)
    def _():
        y = acc_ref[...] + b_ref[...].astype(jnp.float32)
        o_ref[...] = y.astype(o_ref.dtype)


def linear(x, w, b):
    M, K = x.shape
    Nout = w.shape[1]
    tm = _pick_tile(M, 512, 8)
    tn = _pick_tile(Nout, 512, 128)
    tk = _pick_tile(K, 512, 128)
    grid = (M // tm, Nout // tn, K // tk)
    return pl.pallas_call(
        _linear_kernel,
        out_shape=jax.ShapeDtypeStruct((M, Nout), x.dtype),
        grid=grid,
        in_specs=[
            pl.BlockSpec((tm, tk), lambda i, j, k: (i, k)),
            pl.BlockSpec((tk, tn), lambda i, j, k: (k, j)),
            pl.BlockSpec((1, tn), lambda i, j, k: (0, j)),
        ],
        out_specs=pl.BlockSpec((tm, tn), lambda i, j, k: (i, j)),
        scratch_shapes=[pltpu.VMEM((tm, tn), jnp.float32)],
        compiler_params=pltpu.CompilerParams(
            dimension_semantics=("parallel", "parallel", "arbitrary"),
            **_MM_PARAMS),
    )(x, w, b.reshape(1, Nout))


# ----------------------------------------------------------------------------
# Fused linear + residual add + LayerNorm:  out = LN(x @ w + b + residual)
# ----------------------------------------------------------------------------
def _linear_add_ln_kernel(x_ref, w_ref, b_ref, r_ref, g_ref, bt_ref, o_ref,
                          acc_ref, *, eps):
    k = pl.program_id(1)

    @pl.when(k == 0)
    def _():
        acc_ref[...] = jnp.zeros_like(acc_ref)

    acc_ref[...] += jnp.dot(x_ref[...], w_ref[...],
                            preferred_element_type=jnp.float32)

    @pl.when(k == pl.num_programs(1) - 1)
    def _():
        y = acc_ref[...] + b_ref[...].astype(jnp.float32) + r_ref[...].astype(jnp.float32)
        mean = jnp.mean(y, axis=-1, keepdims=True)
        yc = y - mean
        var = jnp.mean(yc * yc, axis=-1, keepdims=True)
        y = yc * jax.lax.rsqrt(var + eps)
        y = y * g_ref[...].astype(jnp.float32) + bt_ref[...].astype(jnp.float32)
        o_ref[...] = y.astype(o_ref.dtype)


def linear_add_layernorm(x, w, b, residual, gamma, beta, eps=1e-5):
    M, K = x.shape
    E = w.shape[1]
    tm = _pick_tile(M, 512, 8)
    tk = _pick_tile(K, 512, 128)
    grid = (M // tm, K // tk)
    return pl.pallas_call(
        functools.partial(_linear_add_ln_kernel, eps=eps),
        out_shape=jax.ShapeDtypeStruct((M, E), x.dtype),
        grid=grid,
        in_specs=[
            pl.BlockSpec((tm, tk), lambda i, k: (i, k)),
            pl.BlockSpec((tk, E), lambda i, k: (k, 0)),
            pl.BlockSpec((1, E), lambda i, k: (0, 0)),
            pl.BlockSpec((tm, E), lambda i, k: (i, 0)),
            pl.BlockSpec((1, E), lambda i, k: (0, 0)),
            pl.BlockSpec((1, E), lambda i, k: (0, 0)),
        ],
        out_specs=pl.BlockSpec((tm, E), lambda i, k: (i, 0)),
        scratch_shapes=[pltpu.VMEM((tm, E), jnp.float32)],
        compiler_params=pltpu.CompilerParams(
            dimension_semantics=("parallel", "arbitrary"), **_MM_PARAMS),
    )(x, w, b.reshape(1, E), residual, gamma.reshape(1, E), beta.reshape(1, E))


# ----------------------------------------------------------------------------
# Fused FFN + residual + LayerNorm:
#   out = LN( relu(x @ w1 + b1) @ w2 + b2 + x )
# FF dimension is looped in VMEM chunks; fp32 accumulator of shape (tm, E).
# ----------------------------------------------------------------------------
def _ffn_ln_kernel(x_ref, w1_ref, b1_ref, w2_ref, b2_ref, g_ref, bt_ref, o_ref,
                   acc_ref, *, eps):
    j = pl.program_id(1)

    @pl.when(j == 0)
    def _():
        acc_ref[...] = jnp.zeros_like(acc_ref)

    x = x_ref[...].astype(jnp.float32)
    h = jnp.dot(x, w1_ref[...], preferred_element_type=jnp.float32)
    h = jnp.maximum(h + b1_ref[...].astype(jnp.float32), 0.0)
    acc_ref[...] += jnp.dot(h, w2_ref[...], preferred_element_type=jnp.float32)

    @pl.when(j == pl.num_programs(1) - 1)
    def _():
        y = acc_ref[...] + b2_ref[...].astype(jnp.float32) + x
        mean = jnp.mean(y, axis=-1, keepdims=True)
        yc = y - mean
        var = jnp.mean(yc * yc, axis=-1, keepdims=True)
        y = yc * jax.lax.rsqrt(var + eps)
        y = y * g_ref[...].astype(jnp.float32) + bt_ref[...].astype(jnp.float32)
        o_ref[...] = y.astype(o_ref.dtype)


def ffn_add_layernorm(x, w1, b1, w2, b2, gamma, beta, eps=1e-5):
    M, E = x.shape
    FF = w1.shape[1]
    tm = _pick_tile(M, 256, 8)
    tf = _pick_tile(FF, 512, 128)
    grid = (M // tm, FF // tf)
    return pl.pallas_call(
        functools.partial(_ffn_ln_kernel, eps=eps),
        out_shape=jax.ShapeDtypeStruct((M, E), x.dtype),
        grid=grid,
        in_specs=[
            pl.BlockSpec((tm, E), lambda i, j: (i, 0)),
            pl.BlockSpec((E, tf), lambda i, j: (0, j)),
            pl.BlockSpec((1, tf), lambda i, j: (0, j)),
            pl.BlockSpec((tf, E), lambda i, j: (j, 0)),
            pl.BlockSpec((1, E), lambda i, j: (0, 0)),
            pl.BlockSpec((1, E), lambda i, j: (0, 0)),
            pl.BlockSpec((1, E), lambda i, j: (0, 0)),
        ],
        out_specs=pl.BlockSpec((tm, E), lambda i, j: (i, 0)),
        scratch_shapes=[pltpu.VMEM((tm, E), jnp.float32)],
        compiler_params=pltpu.CompilerParams(
            dimension_semantics=("parallel", "arbitrary"), **_MM_PARAMS),
    )(x, w1, b1.reshape(1, FF), w2, b2.reshape(1, E),
      gamma.reshape(1, E), beta.reshape(1, E))


# ----------------------------------------------------------------------------
# Plain LayerNorm (no residual) for the final encoder/decoder norms.
# ----------------------------------------------------------------------------
def _ln_kernel(x_ref, g_ref, b_ref, o_ref, *, eps):
    x = x_ref[...].astype(jnp.float32)
    mean = jnp.mean(x, axis=-1, keepdims=True)
    xc = x - mean
    var = jnp.mean(xc * xc, axis=-1, keepdims=True)
    y = xc * jax.lax.rsqrt(var + eps)
    y = y * g_ref[...].astype(jnp.float32) + b_ref[...].astype(jnp.float32)
    o_ref[...] = y.astype(o_ref.dtype)


def layernorm(x, gamma, beta, eps=1e-5):
    M, E = x.shape
    tm = _pick_tile(M, 512, 8)
    return pl.pallas_call(
        functools.partial(_ln_kernel, eps=eps),
        out_shape=jax.ShapeDtypeStruct((M, E), x.dtype),
        grid=(M // tm,),
        in_specs=[
            pl.BlockSpec((tm, E), lambda i: (i, 0)),
            pl.BlockSpec((1, E), lambda i: (0, 0)),
            pl.BlockSpec((1, E), lambda i: (0, 0)),
        ],
        out_specs=pl.BlockSpec((tm, E), lambda i: (i, 0)),
        compiler_params=pltpu.CompilerParams(dimension_semantics=("parallel",)),
    )(x, gamma.reshape(1, E), beta.reshape(1, E))


# ----------------------------------------------------------------------------
# Attention: grid over batch, all heads of a batch in one block.
# q/k/v are column slabs of the packed projection output (no extra HBM splits).
# ----------------------------------------------------------------------------
def _attn_heads(q, k, v, o_ref, num_heads, scale):
    """q: (Sq, E), k/v: (Sk, E) fp32; writes (Sq, E) into o_ref[0]."""
    Sq, E = q.shape
    Dh = E // num_heads
    q = q * scale                       # fold 1/sqrt(Dh) into q (cheaper than scores)
    for h in range(num_heads):
        sl = slice(h * Dh, (h + 1) * Dh)
        qh, kh, vh = q[:, sl], k[:, sl], v[:, sl]
        s = jax.lax.dot_general(qh, kh, (((1,), (1,)), ((), ())),
                                preferred_element_type=jnp.float32)   # (Sq, Sk)
        m = jnp.max(s, axis=-1, keepdims=True)
        p = jnp.exp(s - m)
        denom = jnp.sum(p, axis=-1, keepdims=True)
        p = p * pl.reciprocal(denom, approx=True)
        oh = jnp.dot(p, vh, preferred_element_type=jnp.float32)       # (Sq, Dh)
        o_ref[0, :, sl] = oh.astype(o_ref.dtype)


def _self_attn_kernel(qkv_ref, o_ref, *, num_heads, scale):
    E = o_ref.shape[-1]
    qkv = qkv_ref[0].astype(jnp.float32)            # (S, 3E)
    _attn_heads(qkv[:, :E], qkv[:, E:2 * E], qkv[:, 2 * E:], o_ref, num_heads, scale)


def _cross_attn_kernel(q_ref, kv_ref, o_ref, *, num_heads, scale):
    E = o_ref.shape[-1]
    q = q_ref[0].astype(jnp.float32)                # (Sq, E)
    kv = kv_ref[0].astype(jnp.float32)              # (Sk, 2E)
    _attn_heads(q, kv[:, :E], kv[:, E:], o_ref, num_heads, scale)


def self_attention(qkv, num_heads):
    """qkv: (Nb, S, 3E) packed [q | k | v] -> (Nb, S, E)."""
    Nb, S, E3 = qkv.shape
    E = E3 // 3
    scale = 1.0 / float(E // num_heads) ** 0.5
    return pl.pallas_call(
        functools.partial(_self_attn_kernel, num_heads=num_heads, scale=scale),
        out_shape=jax.ShapeDtypeStruct((Nb, S, E), qkv.dtype),
        grid=(Nb,),
        in_specs=[pl.BlockSpec((1, S, E3), lambda n: (n, 0, 0))],
        out_specs=pl.BlockSpec((1, S, E), lambda n: (n, 0, 0)),
        compiler_params=pltpu.CompilerParams(dimension_semantics=("parallel",)),
    )(qkv)


def cross_attention(q, kv, num_heads):
    """q: (Nb, Sq, E); kv: (Nb, Sk, 2E) packed [k | v] -> (Nb, Sq, E)."""
    Nb, Sq, E = q.shape
    Sk = kv.shape[1]
    scale = 1.0 / float(E // num_heads) ** 0.5
    return pl.pallas_call(
        functools.partial(_cross_attn_kernel, num_heads=num_heads, scale=scale),
        out_shape=jax.ShapeDtypeStruct((Nb, Sq, E), q.dtype),
        grid=(Nb,),
        in_specs=[
            pl.BlockSpec((1, Sq, E), lambda n: (n, 0, 0)),
            pl.BlockSpec((1, Sk, 2 * E), lambda n: (n, 0, 0)),
        ],
        out_specs=pl.BlockSpec((1, Sq, E), lambda n: (n, 0, 0)),
        compiler_params=pltpu.CompilerParams(dimension_semantics=("parallel",)),
    )(q, kv)


# ----------------------------------------------------------------------------
# Transformer layers (batch-major (N, S, E) activations; weights pre-transposed)
# ----------------------------------------------------------------------------
def encoder_layer(x, p, num_heads, eps):
    Nb, S, E = x.shape
    M = Nb * S
    x_flat = x.reshape(M, E)
    qkv = linear(x_flat, p["self_in_w"], p["self_in_b"])            # (M, 3E)
    attn = self_attention(qkv.reshape(Nb, S, 3 * E), num_heads)     # (Nb, S, E)
    x1 = linear_add_layernorm(attn.reshape(M, E), p["self_out_w"], p["self_out_b"],
                              x_flat, p["norm1_w"], p["norm1_b"], eps)
    x2 = ffn_add_layernorm(x1, p["linear1_w"], p["linear1_b"],
                           p["linear2_w"], p["linear2_b"],
                           p["norm2_w"], p["norm2_b"], eps)
    return x2.reshape(Nb, S, E)


def decoder_layer(x, mem, p, num_heads, eps):
    Nb, T, E = x.shape
    S = mem.shape[1]
    M = Nb * T
    x_flat = x.reshape(M, E)

    # Self-attention block
    qkv = linear(x_flat, p["self_in_w"], p["self_in_b"])
    sa = self_attention(qkv.reshape(Nb, T, 3 * E), num_heads)
    x1 = linear_add_layernorm(sa.reshape(M, E), p["self_out_w"], p["self_out_b"],
                              x_flat, p["norm1_w"], p["norm1_b"], eps)

    # Cross-attention block (q from decoder stream, k/v from encoder memory)
    q = linear(x1, p["cross_q_w"], p["cross_q_b"])                          # (M, E)
    kv = linear(mem.reshape(Nb * S, E), p["cross_kv_w"], p["cross_kv_b"])   # (Nb*S, 2E)
    ca = cross_attention(q.reshape(Nb, T, E), kv.reshape(Nb, S, 2 * E), num_heads)
    x2 = linear_add_layernorm(ca.reshape(M, E), p["cross_out_w"], p["cross_out_b"],
                              x1, p["norm2_w"], p["norm2_b"], eps)

    # Feed-forward block
    x3 = ffn_add_layernorm(x2, p["linear1_w"], p["linear1_b"],
                           p["linear2_w"], p["linear2_b"],
                           p["norm3_w"], p["norm3_b"], eps)
    return x3.reshape(Nb, T, E)


def transformer_forward(params, x, memory, *, num_heads, eps=1e-5):
    """Equivalent of TransformerDecoder.forward(x, memory):
    nn.Transformer(src=x, tgt=memory) -> output shaped like `memory`."""
    S, N, E = x.shape
    T = memory.shape[0]

    # Go batch-major once; all per-layer kernels then run transpose-free.
    src = jnp.transpose(x, (1, 0, 2))        # (N, S, E)
    tgt = jnp.transpose(memory, (1, 0, 2))   # (N, T, E)

    enc = src
    for lp in params["encoder_layers"]:
        enc = encoder_layer(enc, lp, num_heads, eps)
    enc = layernorm(enc.reshape(N * S, E),
                    params["encoder_norm_w"], params["encoder_norm_b"], eps
                    ).reshape(N, S, E)

    out = tgt
    for lp in params["decoder_layers"]:
        out = decoder_layer(out, enc, lp, num_heads, eps)
    out = layernorm(out.reshape(N * T, E),
                    params["decoder_norm_w"], params["decoder_norm_b"], eps
                    ).reshape(N, T, E)
    return jnp.transpose(out, (1, 0, 2))     # back to (T, N, E)


# ----------------------------------------------------------------------------
# Deterministic parameter initialization (PyTorch nn.Transformer shapes),
# stored pre-transposed for direct (K, N) consumption by the matmul kernels.
# ----------------------------------------------------------------------------
def _xavier_uniform(key, shape):
    fan_out, fan_in = shape
    limit = (6.0 / (fan_in + fan_out)) ** 0.5
    return jax.random.uniform(key, shape, jnp.float32, -limit, limit)


def _init_enc_layer(key, E, FF):
    ks = jax.random.split(key, 4)
    in_w = _xavier_uniform(ks[0], (3 * E, E))       # PyTorch in_proj_weight
    out_w = _xavier_uniform(ks[1], (E, E))          # PyTorch out_proj.weight
    return dict(
        self_in_w=in_w.T, self_in_b=jnp.zeros((3 * E,), jnp.float32),
        self_out_w=out_w.T, self_out_b=jnp.zeros((E,), jnp.float32),
        linear1_w=_xavier_uniform(ks[2], (FF, E)).T, linear1_b=jnp.zeros((FF,), jnp.float32),
        linear2_w=_xavier_uniform(ks[3], (E, FF)).T, linear2_b=jnp.zeros((E,), jnp.float32),
        norm1_w=jnp.ones((E,), jnp.float32), norm1_b=jnp.zeros((E,), jnp.float32),
        norm2_w=jnp.ones((E,), jnp.float32), norm2_b=jnp.zeros((E,), jnp.float32),
    )


def _init_dec_layer(key, E, FF):
    ks = jax.random.split(key, 6)
    self_in = _xavier_uniform(ks[0], (3 * E, E))
    self_out = _xavier_uniform(ks[1], (E, E))
    cross_in = _xavier_uniform(ks[2], (3 * E, E))
    cross_out = _xavier_uniform(ks[3], (E, E))
    return dict(
        self_in_w=self_in.T, self_in_b=jnp.zeros((3 * E,), jnp.float32),
        self_out_w=self_out.T, self_out_b=jnp.zeros((E,), jnp.float32),
        cross_q_w=cross_in[:E].T, cross_q_b=jnp.zeros((E,), jnp.float32),
        cross_kv_w=cross_in[E:].T, cross_kv_b=jnp.zeros((2 * E,), jnp.float32),
        cross_out_w=cross_out.T, cross_out_b=jnp.zeros((E,), jnp.float32),
        linear1_w=_xavier_uniform(ks[4], (FF, E)).T, linear1_b=jnp.zeros((FF,), jnp.float32),
        linear2_w=_xavier_uniform(ks[5], (E, FF)).T, linear2_b=jnp.zeros((E,), jnp.float32),
        norm1_w=jnp.ones((E,), jnp.float32), norm1_b=jnp.zeros((E,), jnp.float32),
        norm2_w=jnp.ones((E,), jnp.float32), norm2_b=jnp.zeros((E,), jnp.float32),
        norm3_w=jnp.ones((E,), jnp.float32), norm3_b=jnp.zeros((E,), jnp.float32),
    )


def init_transformer_params(key, hidden_dim, num_encoder_layers,
                            num_decoder_layers=6, dim_feedforward=2048):
    E, FF = hidden_dim, dim_feedforward
    keys = jax.random.split(key, num_encoder_layers + num_decoder_layers)
    return dict(
        encoder_layers=[_init_enc_layer(keys[i], E, FF)
                        for i in range(num_encoder_layers)],
        decoder_layers=[_init_dec_layer(keys[num_encoder_layers + i], E, FF)
                        for i in range(num_decoder_layers)],
        encoder_norm_w=jnp.ones((E,), jnp.float32),
        encoder_norm_b=jnp.zeros((E,), jnp.float32),
        decoder_norm_w=jnp.ones((E,), jnp.float32),
        decoder_norm_b=jnp.zeros((E,), jnp.float32),
    )


# ----------------------------------------------------------------------------
if __name__ == "__main__":
    num_heads = 8
    num_layers = 2          # encoder layers (module global is 12; kept small here)
    hidden_dim = 32         # divisible by num_heads
    S, T, N = 8, 6, 2       # src seq, tgt seq, batch  (batch_first=False layout)

    key = jax.random.PRNGKey(0)
    kp, kx, km = jax.random.split(key, 3)
    params = init_transformer_params(kp, hidden_dim, num_layers)

    x = jax.random.normal(kx, (S, N, hidden_dim), jnp.float32)        # src
    memory = jax.random.normal(km, (T, N, hidden_dim), jnp.float32)   # tgt

    fwd = jax.jit(functools.partial(transformer_forward, num_heads=num_heads))
    out = fwd(params, x, memory)
    out = jax.block_until_ready(out)

    assert out.shape == memory.shape, out.shape
    assert bool(jnp.all(jnp.isfinite(out)))
    print("KERNEL_OK")
</pallas_src>

<mosaic_0001>
module attributes {stable_mosaic.version = 11 : i64} {
  func.func @_linear_kernel(%arg0: i32, %arg1: i32, %arg2: i32, %arg3: memref<16x32xf32, #tpu.memory_space<vmem>>, %arg4: memref<32x96xf32, #tpu.memory_space<vmem>>, %arg5: memref<1x96xf32, #tpu.memory_space<vmem>>, %arg6: memref<16x96xf32, #tpu.memory_space<vmem>>, %arg7: memref<16x96xf32, #tpu.memory_space<vmem>>) attributes {dimension_semantics = [#tpu.dimension_semantics<parallel>, #tpu.dimension_semantics<parallel>, #tpu.dimension_semantics<arbitrary>], iteration_bounds = array<i64: 1, 1, 1>, scalar_prefetch = 0 : i64, scratch_operands = 1 : i64, tpu.core_type = #tpu.core_type<tc>, window_params = [{transform_indices = @transform_0, window_bounds = array<i64: 16, 32>}, {transform_indices = @transform_1, window_bounds = array<i64: 32, 96>}, {transform_indices = @transform_2, window_bounds = array<i64: 1, 96>}, {transform_indices = @transform_3, window_bounds = array<i64: 16, 96>}]} {
    %c0_i32 = arith.constant 0 : i32
    %0 = arith.cmpi eq, %arg2, %c0_i32 : i32
    %1 = arith.extui %0 : i1 to i32
    %c0_i32_0 = arith.constant 0 : i32
    %2 = arith.cmpi ne, %1, %c0_i32_0 : i32
    scf.if %2 {
      %cst_10 = arith.constant 0.000000e+00 : f32
      %12 = vector.broadcast %cst_10 : f32 to vector<16x96xf32>
      %c0_11 = arith.constant 0 : index
      %c0_12 = arith.constant 0 : index
      %13 = vector.load %arg7[%c0_11, %c0_12] : memref<16x96xf32, #tpu.memory_space<vmem>>, vector<16x96xf32>
      tpu.vector_store %arg7[%c0_11, %c0_12], %12 {strides = array<i32>} : memref<16x96xf32, #tpu.memory_space<vmem>>, vector<16x96xf32>,
    } else {
    }
    %c0 = arith.constant 0 : index
    %c0_1 = arith.constant 0 : index
    %3 = vector.load %arg7[%c0, %c0_1] : memref<16x96xf32, #tpu.memory_space<vmem>>, vector<16x96xf32>
    %c0_2 = arith.constant 0 : index
    %c0_3 = arith.constant 0 : index
    %4 = vector.load %arg3[%c0_2, %c0_3] : memref<16x32xf32, #tpu.memory_space<vmem>>, vector<16x32xf32>
    %c0_4 = arith.constant 0 : index
    %c0_5 = arith.constant 0 : index
    %5 = vector.load %arg4[%c0_4, %c0_5] : memref<32x96xf32, #tpu.memory_space<vmem>>, vector<32x96xf32>
    %cst = arith.constant dense<0.000000e+00> : vector<16x96xf32>
    %6 = tpu.matmul %4, %5, %cst {dimension_numbers = #tpu.dot_dimension_numbers<[1], [0], [0], [1], [0, 0, 1, 1], [], []>} : vector<16x32xf32>, vector<32x96xf32>, vector<16x96xf32> -> vector<16x96xf32>
    %7 = arith.addf %3, %6 : vector<16x96xf32>
    %c0_6 = arith.constant 0 : index
    %c0_7 = arith.constant 0 : index
    %8 = vector.load %arg7[%c0_6, %c0_7] : memref<16x96xf32, #tpu.memory_space<vmem>>, vector<16x96xf32>
    tpu.vector_store %arg7[%c0_6, %c0_7], %7 {strides = array<i32>} : memref<16x96xf32, #tpu.memory_space<vmem>>, vector<16x96xf32>,
    %c0_i32_8 = arith.constant 0 : i32
    %9 = arith.cmpi eq, %arg2, %c0_i32_8 : i32
    %10 = arith.extui %9 : i1 to i32
    %c0_i32_9 = arith.constant 0 : i32
    %11 = arith.cmpi ne, %10, %c0_i32_9 : i32
    scf.if %11 {
      %c0_10 = arith.constant 0 : index
      %c0_11 = arith.constant 0 : index
      %12 = vector.load %arg7[%c0_10, %c0_11] : memref<16x96xf32, #tpu.memory_space<vmem>>, vector<16x96xf32>
      %c0_12 = arith.constant 0 : index
      %c0_13 = arith.constant 0 : index
      %13 = vector.load %arg5[%c0_12, %c0_13] : memref<1x96xf32, #tpu.memory_space<vmem>>, vector<1x96xf32>
      %14 = vector.broadcast %13 : vector<1x96xf32> to vector<16x96xf32>
      %15 = arith.addf %12, %14 : vector<16x96xf32>
      %c0_14 = arith.constant 0 : index
      %c0_15 = arith.constant 0 : index
      %16 = vector.load %arg6[%c0_14, %c0_15] : memref<16x96xf32, #tpu.memory_space<vmem>>, vector<16x96xf32>
      tpu.vector_store %arg6[%c0_14, %c0_15], %15 {strides = array<i32>} : memref<16x96xf32, #tpu.memory_space<vmem>>, vector<16x96xf32>,
    } else {
    }
    return
  }
  func.func @transform_0(%arg0: i32, %arg1: i32, %arg2: i32) -> (i32, i32) {
    %c0_i32 = arith.constant 0 : i32
    return %arg0, %arg2 : i32, i32
  }
  func.func @transform_1(%arg0: i32, %arg1: i32, %arg2: i32) -> (i32, i32) {
    %c0_i32 = arith.constant 0 : i32
    return %arg2, %arg1 : i32, i32
  }
  func.func @transform_2(%arg0: i32, %arg1: i32, %arg2: i32) -> (i32, i32) {
    %c0_i32 = arith.constant 0 : i32
    %c0_i32_0 = arith.constant 0 : i32
    return %c0_i32, %arg1 : i32, i32
  }
  func.func @transform_3(%arg0: i32, %arg1: i32, %arg2: i32) -> (i32, i32) {
    %c0_i32 = arith.constant 0 : i32
    return %arg0, %arg1 : i32, i32
  }
}

module attributes {stable_mosaic.version = 11 : i64} {
  func.func @_self_attn_kernel(%arg0: i32, %arg1: memref<1x8x96xf32, #tpu.memory_space<vmem>>, %arg2: memref<1x8x32xf32, #tpu.memory_space<vmem>>) attributes {dimension_semantics = [#tpu.dimension_semantics<parallel>], iteration_bounds = array<i64: 2>, scalar_prefetch = 0 : i64, scratch_operands = 0 : i64, tpu.core_type = #tpu.core_type<tc>, window_params = [{transform_indices = @transform_0, window_bounds = array<i64: 1, 8, 96>}, {transform_indices = @transform_1, window_bounds = array<i64: 1, 8, 32>}]} {
    %c0 = arith.constant 0 : index
    %c0_0 = arith.constant 0 : index
    %c0_1 = arith.constant 0 : index
    %0 = vector.load %arg1[%c0, %c0_0, %c0_1] : memref<1x8x96xf32, #tpu.memory_space<vmem>>, vector<1x8x96xf32>
    %1 = vector.shape_cast %0 : vector<1x8x96xf32> to vector<8x96xf32>
    %2 = vector.extract_strided_slice %1 {offsets = [0, 0], sizes = [8, 32], strides = [1, 1]} : vector<8x96xf32> to vector<8x32xf32>
    %3 = vector.extract_strided_slice %1 {offsets = [0, 32], sizes = [8, 32], strides = [1, 1]} : vector<8x96xf32> to vector<8x32xf32>
    %4 = vector.extract_strided_slice %1 {offsets = [0, 64], sizes = [8, 32], strides = [1, 1]} : vector<8x96xf32> to vector<8x32xf32>
    %cst = arith.constant 5.000000e-01 : f32
    %5 = vector.broadcast %cst : f32 to vector<8x32xf32>
    %6 = arith.mulf %2, %5 : vector<8x32xf32>
    %7 = vector.extract_strided_slice %6 {offsets = [0, 0], sizes = [8, 4], strides = [1, 1]} : vector<8x32xf32> to vector<8x4xf32>
    %8 = vector.extract_strided_slice %3 {offsets = [0, 0], sizes = [8, 4], strides = [1, 1]} : vector<8x32xf32> to vector<8x4xf32>
    %9 = vector.extract_strided_slice %4 {offsets = [0, 0], sizes = [8, 4], strides = [1, 1]} : vector<8x32xf32> to vector<8x4xf32>
    %cst_2 = arith.constant dense<0.000000e+00> : vector<8x8xf32>
    %10 = tpu.matmul %7, %8, %cst_2 {dimension_numbers = #tpu.dot_dimension_numbers<[1], [1], [0], [0], [0, 0, 1, 0], [], []>} : vector<8x4xf32>, vector<8x4xf32>, vector<8x8xf32> -> vector<8x8xf32>
    %cst_3 = arith.constant dense<0xFF800000> : vector<8xf32>
    %11 = vector.multi_reduction <maximumf>, %10, %cst_3 [1] : vector<8x8xf32> to vector<8xf32>
    %12 = vector.shape_cast %11 : vector<8xf32> to vector<8x1xf32>
    %13 = vector.broadcast %12 : vector<8x1xf32> to vector<8x8xf32>
    %14 = arith.subf %10, %13 : vector<8x8xf32>
    %15 = math.exp %14 : vector<8x8xf32>
    %cst_4 = arith.constant dense<0.000000e+00> : vector<8xf32>
    %16 = vector.multi_reduction <add>, %15, %cst_4 [1] : vector<8x8xf32> to vector<8xf32>
    %17 = vector.shape_cast %16 : vector<8xf32> to vector<8x1xf32>
    %18 = tpu.reciprocal %17 {approx = true} : vector<8x1xf32> -> vector<8x1xf32>
    %19 = vector.broadcast %18 : vector<8x1xf32> to vector<8x8xf32>
    %20 = arith.mulf %15, %19 : vector<8x8xf32>
    %cst_5 = arith.constant dense<0.000000e+00> : vector<8x4xf32>
    %21 = tpu.matmul %20, %9, %cst_5 {dimension_numbers = #tpu.dot_dimension_numbers<[1], [0], [0], [1], [0, 0, 1, 1], [], []>} : vector<8x8xf32>, vector<8x4xf32>, vector<8x4xf32> -> vector<8x4xf32>
    %c0_6 = arith.constant 0 : index
    %c0_7 = arith.constant 0 : index
    %c0_8 = arith.constant 0 : index
    %22 = vector.load %arg2[%c0_6, %c0_7, %c0_8] : memref<1x8x32xf32, #tpu.memory_space<vmem>>, vector<1x8x4xf32>
    %23 = vector.shape_cast %22 : vector<1x8x4xf32> to vector<8x4xf32>
    %24 = vector.shape_cast %21 : vector<8x4xf32> to vector<1x8x4xf32>
    tpu.vector_store %arg2[%c0_6, %c0_7, %c0_8], %24 {strides = array<i32>} : memref<1x8x32xf32, #tpu.memory_space<vmem>>, vector<1x8x4xf32>,
    %25 = vector.extract_strided_slice %6 {offsets = [0, 4], sizes = [8, 4], strides = [1, 1]} : vector<8x32xf32> to vector<8x4xf32>
    %26 = vector.extract_strided_slice %3 {offsets = [0, 4], sizes = [8, 4], strides = [1, 1]} : vector<8x32xf32> to vector<8x4xf32>
    %27 = vector.extract_strided_slice %4 {offsets = [0, 4], sizes = [8, 4], strides = [1, 1]} : vector<8x32xf32> to vector<8x4xf32>
    %cst_9 = arith.constant dense<0.000000e+00> : vector<8x8xf32>
    %28 = tpu.matmul %25, %26, %cst_9 {dimension_numbers = #tpu.dot_dimension_numbers<[1], [1], [0], [0], [0, 0, 1, 0], [], []>} : vector<8x4xf32>, vector<8x4xf32>, vector<8x8xf32> -> vector<8x8xf32>
    %cst_10 = arith.constant dense<0xFF800000> : vector<8xf32>
    %29 = vector.multi_reduction <maximumf>, %28, %cst_10 [1] : vector<8x8xf32> to vector<8xf32>
    %30 = vector.shape_cast %29 : vector<8xf32> to vector<8x1xf32>
    %31 = vector.broadcast %30 : vector<8x1xf32> to vector<8x8xf32>
    %32 = arith.subf %28, %31 : vector<8x8xf32>
    %33 = math.exp %32 : vector<8x8xf32>
    %cst_11 = arith.constant dense<0.000000e+00> : vector<8xf32>
    %34 = vector.multi_reduction <add>, %33, %cst_11 [1] : vector<8x8xf32> to vector<8xf32>
    %35 = vector.shape_cast %34 : vector<8xf32> to vector<8x1xf32>
    %36 = tpu.reciprocal %35 {approx = true} : vector<8x1xf32> -> vector<8x1xf32>
    %37 = vector.broadcast %36 : vector<8x1xf32> to vector<8x8xf32>
    %38 = arith.mulf %33, %37 : vector<8x8xf32>
    %cst_12 = arith.constant dense<0.000000e+00> : vector<8x4xf32>
    %39 = tpu.matmul %38, %27, %cst_12 {dimension_numbers = #tpu.dot_dimension_numbers<[1], [0], [0], [1], [0, 0, 1, 1], [], []>} : vector<8x8xf32>, vector<8x4xf32>, vector<8x4xf32> -> vector<8x4xf32>
    %c0_13 = arith.constant 0 : index
    %c0_14 = arith.constant 0 : index
    %c4 = arith.constant 4 : index
    %40 = vector.load %arg2[%c0_13, %c0_14, %c4] : memref<1x8x32xf32, #tpu.memory_space<vmem>>, vector<1x8x4xf32>
    %41 = vector.shape_cast %40 : vector<1x8x4xf32> to vector<8x4xf32>
    %42 = vector.shape_cast %39 : vector<8x4xf32> to vector<1x8x4xf32>
    tpu.vector_store %arg2[%c0_13, %c0_14, %c4], %42 {strides = array<i32>} : memref<1x8x32xf32, #tpu.memory_space<vmem>>, vector<1x8x4xf32>,
    %43 = vector.extract_strided_slice %6 {offsets = [0, 8], sizes = [8, 4], strides = [1, 1]} : vector<8x32xf32> to vector<8x4xf32>
    %44 = vector.extract_strided_slice %3 {offsets = [0, 8], sizes = [8, 4], strides = [1, 1]} : vector<8x32xf32> to vector<8x4xf32>
    %45 = vector.extract_strided_slice %4 {offsets = [0, 8], sizes = [8, 4], strides = [1, 1]} : vector<8x32xf32> to vector<8x4xf32>
    %cst_15 = arith.constant dense<0.000000e+00> : vector<8x8xf32>
    %46 = tpu.matmul %43, %44, %cst_15 {dimension_numbers = #tpu.dot_dimension_numbers<[1], [1], [0], [0], [0, 0, 1, 0], [], []>} : vector<8x4xf32>, vector<8x4xf32>, vector<8x8xf32> -> vector<8x8xf32>
    %cst_16 = arith.constant dense<0xFF800000> : vector<8xf32>
    %47 = vector.multi_reduction <maximumf>, %46, %cst_16 [1] : vector<8x8xf32> to vector<8xf32>
    %48 = vector.shape_cast %47 : vector<8xf32> to vector<8x1xf32>
    %49 = vector.broadcast %48 : vector<8x1xf32> to vector<8x8xf32>
    %50 = arith.subf %46, %49 : vector<8x8xf32>
    %51 = math.exp %50 : vector<8x8xf32>
    %cst_17 = arith.constant dense<0.000000e+00> : vector<8xf32>
    %52 = vector.multi_reduction <add>, %51, %cst_17 [1] : vector<8x8xf32> to vector<8xf32>
    %53 = vector.shape_cast %52 : vector<8xf32> to vector<8x1xf32>
    %54 = tpu.reciprocal %53 {approx = true} : vector<8x1xf32> -> vector<8x1xf32>
    %55 = vector.broadcast %54 : vector<8x1xf32> to vector<8x8xf32>
    %56 = arith.mulf %51, %55 : vector<8x8xf32>
    %cst_18 = arith.constant dense<0.000000e+00> : vector<8x4xf32>
    %57 = tpu.matmul %56, %45, %cst_18 {dimension_numbers = #tpu.dot_dimension_numbers<[1], [0], [0], [1], [0, 0, 1, 1], [], []>} : vector<8x8xf32>, vector<8x4xf32>, vector<8x4xf32> -> vector<8x4xf32>
    %c0_19 = arith.constant 0 : index
    %c0_20 = arith.constant 0 : index
    %c8 = arith.constant 8 : index
    %58 = vector.load %arg2[%c0_19, %c0_20, %c8] : memref<1x8x32xf32, #tpu.memory_space<vmem>>, vector<1x8x4xf32>
    %59 = vector.shape_cast %58 : vector<1x8x4xf32> to vector<8x4xf32>
    %60 = vector.shape_cast %57 : vector<8x4xf32> to vector<1x8x4xf32>
    tpu.vector_store %arg2[%c0_19, %c0_20, %c8], %60 {strides = array<i32>} : memref<1x8x32xf32, #tpu.memory_space<vmem>>, vector<1x8x4xf32>,
    %61 = vector.extract_strided_slice %6 {offsets = [0, 12], sizes = [8, 4], strides = [1, 1]} : vector<8x32xf32> to vector<8x4xf32>
    %62 = vector.extract_strided_slice %3 {offsets = [0, 12], sizes = [8, 4], strides = [1, 1]} : vector<8x32xf32> to vector<8x4xf32>
    %63 = vector.extract_strided_slice %4 {offsets = [0, 12], sizes = [8, 4], strides = [1, 1]} : vector<8x32xf32> to vector<8x4xf32>
    %cst_21 = arith.constant dense<0.000000e+00> : vector<8x8xf32>
    %64 = tpu.matmul %61, %62, %cst_21 {dimension_numbers = #tpu.dot_dimension_numbers<[1], [1], [0], [0], [0, 0, 1, 0], [], []>} : vector<8x4xf32>, vector<8x4xf32>, vector<8x8xf32> -> vector<8x8xf32>
    %cst_22 = arith.constant dense<0xFF800000> : vector<8xf32>
    %65 = vector.multi_reduction <maximumf>, %64, %cst_22 [1] : vector<8x8xf32> to vector<8xf32>
    %66 = vector.shape_cast %65 : vector<8xf32> to vector<8x1xf32>
    %67 = vector.broadcast %66 : vector<8x1xf32> to vector<8x8xf32>
    %68 = arith.subf %64, %67 : vector<8x8xf32>
    %69 = math.exp %68 : vector<8x8xf32>
    %cst_23 = arith.constant dense<0.000000e+00> : vector<8xf32>
    %70 = vector.multi_reduction <add>, %69, %cst_23 [1] : vector<8x8xf32> to vector<8xf32>
    %71 = vector.shape_cast %70 : vector<8xf32> to vector<8x1xf32>
    %72 = tpu.reciprocal %71 {approx = true} : vector<8x1xf32> -> vector<8x1xf32>
    %73 = vector.broadcast %72 : vector<8x1xf32> to vector<8x8xf32>
    %74 = arith.mulf %69, %73 : vector<8x8xf32>
    %cst_24 = arith.constant dense<0.000000e+00> : vector<8x4xf32>
    %75 = tpu.matmul %74, %63, %cst_24 {dimension_numbers = #tpu.dot_dimension_numbers<[1], [0], [0], [1], [0, 0, 1, 1], [], []>} : vector<8x8xf32>, vector<8x4xf32>, vector<8x4xf32> -> vector<8x4xf32>
    %c0_25 = arith.constant 0 : index
    %c0_26 = arith.constant 0 : index
    %c12 = arith.constant 12 : index
    %76 = vector.load %arg2[%c0_25, %c0_26, %c12] : memref<1x8x32xf32, #tpu.memory_space<vmem>>, vector<1x8x4xf32>
    %77 = vector.shape_cast %76 : vector<1x8x4xf32> to vector<8x4xf32>
    %78 = vector.shape_cast %75 : vector<8x4xf32> to vector<1x8x4xf32>
    tpu.vector_store %arg2[%c0_25, %c0_26, %c12], %78 {strides = array<i32>} : memref<1x8x32xf32, #tpu.memory_space<vmem>>, vector<1x8x4xf32>,
    %79 = vector.extract_strided_slice %6 {offsets = [0, 16], sizes = [8, 4], strides = [1, 1]} : vector<8x32xf32> to vector<8x4xf32>
    %80 = vector.extract_strided_slice %3 {offsets = [0, 16], sizes = [8, 4], strides = [1, 1]} : vector<8x32xf32> to vector<8x4xf32>
    %81 = vector.extract_strided_slice %4 {offsets = [0, 16], sizes = [8, 4], strides = [1, 1]} : vector<8x32xf32> to vector<8x4xf32>
    %cst_27 = arith.constant dense<0.000000e+00> : vector<8x8xf32>
    %82 = tpu.matmul %79, %80, %cst_27 {dimension_numbers = #tpu.dot_dimension_numbers<[1], [1], [0], [0], [0, 0, 1, 0], [], []>} : vector<8x4xf32>, vector<8x4xf32>, vector<8x8xf32> -> vector<8x8xf32>
    %cst_28 = arith.constant dense<0xFF800000> : vector<8xf32>
    %83 = vector.multi_reduction <maximumf>, %82, %cst_28 [1] : vector<8x8xf32> to vector<8xf32>
    %84 = vector.shape_cast %83 : vector<8xf32> to vector<8x1xf32>
    %85 = vector.broadcast %84 : vector<8x1xf32> to vector<8x8xf32>
    %86 = arith.subf %82, %85 : vector<8x8xf32>
    %87 = math.exp %86 : vector<8x8xf32>
    %cst_29 = arith.constant dense<0.000000e+00> : vector<8xf32>
    %88 = vector.multi_reduction <add>, %87, %cst_29 [1] : vector<8x8xf32> to vector<8xf32>
    %89 = vector.shape_cast %88 : vector<8xf32> to vector<8x1xf32>
    %90 = tpu.reciprocal %89 {approx = true} : vector<8x1xf32> -> vector<8x1xf32>
    %91 = vector.broadcast %90 : vector<8x1xf32> to vector<8x8xf32>
    %92 = arith.mulf %87, %91 : vector<8x8xf32>
    %cst_30 = arith.constant dense<0.000000e+00> : vector<8x4xf32>
    %93 = tpu.matmul %92, %81, %cst_30 {dimension_numbers = #tpu.dot_dimension_numbers<[1], [0], [0], [1], [0, 0, 1, 1], [], []>} : vector<8x8xf32>, vector<8x4xf32>, vector<8x4xf32> -> vector<8x4xf32>
    %c0_31 = arith.constant 0 : index
    %c0_32 = arith.constant 0 : index
    %c16 = arith.constant 16 : index
    %94 = vector.load %arg2[%c0_31, %c0_32, %c16] : memref<1x8x32xf32, #tpu.memory_space<vmem>>, vector<1x8x4xf32>
    %95 = vector.shape_cast %94 : vector<1x8x4xf32> to vector<8x4xf32>
    %96 = vector.shape_cast %93 : vector<8x4xf32> to vector<1x8x4xf32>
    tpu.vector_store %arg2[%c0_31, %c0_32, %c16], %96 {strides = array<i32>} : memref<1x8x32xf32, #tpu.memory_space<vmem>>, vector<1x8x4xf32>,
    %97 = vector.extract_strided_slice %6 {offsets = [0, 20], sizes = [8, 4], strides = [1, 1]} : vector<8x32xf32> to vector<8x4xf32>
    %98 = vector.extract_strided_slice %3 {offsets = [0, 20], sizes = [8, 4], strides = [1, 1]} : vector<8x32xf32> to vector<8x4xf32>
    %99 = vector.extract_strided_slice %4 {offsets = [0, 20], sizes = [8, 4], strides = [1, 1]} : vector<8x32xf32> to vector<8x4xf32>
    %cst_33 = arith.constant dense<0.000000e+00> : vector<8x8xf32>
    %100 = tpu.matmul %97, %98, %cst_33 {dimension_numbers = #tpu.dot_dimension_numbers<[1], [1], [0], [0], [0, 0, 1, 0], [], []>} : vector<8x4xf32>, vector<8x4xf32>, vector<8x8xf32> -> vector<8x8xf32>
    %cst_34 = arith.constant dense<0xFF800000> : vector<8xf32>
    %101 = vector.multi_reduction <maximumf>, %100, %cst_34 [1] : vector<8x8xf32> to vector<8xf32>
    %102 = vector.shape_cast %101 : vector<8xf32> to vector<8x1xf32>
    %103 = vector.broadcast %102 : vector<8x1xf32> to vector<8x8xf32>
    %104 = arith.subf %100, %103 : vector<8x8xf32>
    %105 = math.exp %104 : vector<8x8xf32>
    %cst_35 = arith.constant dense<0.000000e+00> : vector<8xf32>
    %106 = vector.multi_reduction <add>, %105, %cst_35 [1] : vector<8x8xf32> to vector<8xf32>
    %107 = vector.shape_cast %106 : vector<8xf32> to vector<8x1xf32>
    %108 = tpu.reciprocal %107 {approx = true} : vector<8x1xf32> -> vector<8x1xf32>
    %109 = vector.broadcast %108 : vector<8x1xf32> to vector<8x8xf32>
    %110 = arith.mulf %105, %109 : vector<8x8xf32>
    %cst_36 = arith.constant dense<0.000000e+00> : vector<8x4xf32>
    %111 = tpu.matmul %110, %99, %cst_36 {dimension_numbers = #tpu.dot_dimension_numbers<[1], [0], [0], [1], [0, 0, 1, 1], [], []>} : vector<8x8xf32>, vector<8x4xf32>, vector<8x4xf32> -> vector<8x4xf32>
    %c0_37 = arith.constant 0 : index
    %c0_38 = arith.constant 0 : index
    %c20 = arith.constant 20 : index
    %112 = vector.load %arg2[%c0_37, %c0_38, %c20] : memref<1x8x32xf32, #tpu.memory_space<vmem>>, vector<1x8x4xf32>
    %113 = vector.shape_cast %112 : vector<1x8x4xf32> to vector<8x4xf32>
    %114 = vector.shape_cast %111 : vector<8x4xf32> to vector<1x8x4xf32>
    tpu.vector_store %arg2[%c0_37, %c0_38, %c20], %114 {strides = array<i32>} : memref<1x8x32xf32, #tpu.memory_space<vmem>>, vector<1x8x4xf32>,
    %115 = vector.extract_strided_slice %6 {offsets = [0, 24], sizes = [8, 4], strides = [1, 1]} : vector<8x32xf32> to vector<8x4xf32>
    %116 = vector.extract_strided_slice %3 {offsets = [0, 24], sizes = [8, 4], strides = [1, 1]} : vector<8x32xf32> to vector<8x4xf32>
    %117 = vector.extract_strided_slice %4 {offsets = [0, 24], sizes = [8, 4], strides = [1, 1]} : vector<8x32xf32> to vector<8x4xf32>
    %cst_39 = arith.constant dense<0.000000e+00> : vector<8x8xf32>
    %118 = tpu.matmul %115, %116, %cst_39 {dimension_numbers = #tpu.dot_dimension_numbers<[1], [1], [0], [0], [0, 0, 1, 0], [], []>} : vector<8x4xf32>, vector<8x4xf32>, vector<8x8xf32> -> vector<8x8xf32>
    %cst_40 = arith.constant dense<0xFF800000> : vector<8xf32>
    %119 = vector.multi_reduction <maximumf>, %118, %cst_40 [1] : vector<8x8xf32> to vector<8xf32>
    %120 = vector.shape_cast %119 : vector<8xf32> to vector<8x1xf32>
    %121 = vector.broadcast %120 : vector<8x1xf32> to vector<8x8xf32>
    %122 = arith.subf %118, %121 : vector<8x8xf32>
    %123 = math.exp %122 : vector<8x8xf32>
    %cst_41 = arith.constant dense<0.000000e+00> : vector<8xf32>
    %124 = vector.multi_reduction <add>, %123, %cst_41 [1] : vector<8x8xf32> to vector<8xf32>
    %125 = vector.shape_cast %124 : vector<8xf32> to vector<8x1xf32>
    %126 = tpu.reciprocal %125 {approx = true} : vector<8x1xf32> -> vector<8x1xf32>
    %127 = vector.broadcast %126 : vector<8x1xf32> to vector<8x8xf32>
    %128 = arith.mulf %123, %127 : vector<8x8xf32>
    %cst_42 = arith.constant dense<0.000000e+00> : vector<8x4xf32>
    %129 = tpu.matmul %128, %117, %cst_42 {dimension_numbers = #tpu.dot_dimension_numbers<[1], [0], [0], [1], [0, 0, 1, 1], [], []>} : vector<8x8xf32>, vector<8x4xf32>, vector<8x4xf32> -> vector<8x4xf32>
    %c0_43 = arith.constant 0 : index
    %c0_44 = arith.constant 0 : index
    %c24 = arith.constant 24 : index
    %130 = vector.load %arg2[%c0_43, %c0_44, %c24] : memref<1x8x32xf32, #tpu.memory_space<vmem>>, vector<1x8x4xf32>
    %131 = vector.shape_cast %130 : vector<1x8x4xf32> to vector<8x4xf32>
    %132 = vector.shape_cast %129 : vector<8x4xf32> to vector<1x8x4xf32>
    tpu.vector_store %arg2[%c0_43, %c0_44, %c24], %132 {strides = array<i32>} : memref<1x8x32xf32, #tpu.memory_space<vmem>>, vector<1x8x4xf32>,
    %133 = vector.extract_strided_slice %6 {offsets = [0, 28], sizes = [8, 4], strides = [1, 1]} : vector<8x32xf32> to vector<8x4xf32>
    %134 = vector.extract_strided_slice %3 {offsets = [0, 28], sizes = [8, 4], strides = [1, 1]} : vector<8x32xf32> to vector<8x4xf32>
    %135 = vector.extract_strided_slice %4 {offsets = [0, 28], sizes = [8, 4], strides = [1, 1]} : vector<8x32xf32> to vector<8x4xf32>
    %cst_45 = arith.constant dense<0.000000e+00> : vector<8x8xf32>
    %136 = tpu.matmul %133, %134, %cst_45 {dimension_numbers = #tpu.dot_dimension_numbers<[1], [1], [0], [0], [0, 0, 1, 0], [], []>} : vector<8x4xf32>, vector<8x4xf32>, vector<8x8xf32> -> vector<8x8xf32>
    %cst_46 = arith.constant dense<0xFF800000> : vector<8xf32>
    %137 = vector.multi_reduction <maximumf>, %136, %cst_46 [1] : vector<8x8xf32> to vector<8xf32>
    %138 = vector.shape_cast %137 : vector<8xf32> to vector<8x1xf32>
    %139 = vector.broadcast %138 : vector<8x1xf32> to vector<8x8xf32>
    %140 = arith.subf %136, %139 : vector<8x8xf32>
    %141 = math.exp %140 : vector<8x8xf32>
    %cst_47 = arith.constant dense<0.000000e+00> : vector<8xf32>
    %142 = vector.multi_reduction <add>, %141, %cst_47 [1] : vector<8x8xf32> to vector<8xf32>
    %143 = vector.shape_cast %142 : vector<8xf32> to vector<8x1xf32>
    %144 = tpu.reciprocal %143 {approx = true} : vector<8x1xf32> -> vector<8x1xf32>
    %145 = vector.broadcast %144 : vector<8x1xf32> to vector<8x8xf32>
    %146 = arith.mulf %141, %145 : vector<8x8xf32>
    %cst_48 = arith.constant dense<0.000000e+00> : vector<8x4xf32>
    %147 = tpu.matmul %146, %135, %cst_48 {dimension_numbers = #tpu.dot_dimension_numbers<[1], [0], [0], [1], [0, 0, 1, 1], [], []>} : vector<8x8xf32>, vector<8x4xf32>, vector<8x4xf32> -> vector<8x4xf32>
    %c0_49 = arith.constant 0 : index
    %c0_50 = arith.constant 0 : index
    %c28 = arith.constant 28 : index
    %148 = vector.load %arg2[%c0_49, %c0_50, %c28] : memref<1x8x32xf32, #tpu.memory_space<vmem>>, vector<1x8x4xf32>
    %149 = vector.shape_cast %148 : vector<1x8x4xf32> to vector<8x4xf32>
    %150 = vector.shape_cast %147 : vector<8x4xf32> to vector<1x8x4xf32>
    tpu.vector_store %arg2[%c0_49, %c0_50, %c28], %150 {strides = array<i32>} : memref<1x8x32xf32, #tpu.memory_space<vmem>>, vector<1x8x4xf32>,
    return
  }
  func.func @transform_0(%arg0: i32) -> (i32, i32, i32) {
    %c0_i32 = arith.constant 0 : i32
    %c0_i32_0 = arith.constant 0 : i32
    %c0_i32_1 = arith.constant 0 : i32
    return %arg0, %c0_i32, %c0_i32_0 : i32, i32, i32
  }
  func.func @transform_1(%arg0: i32) -> (i32, i32, i32) {
    %c0_i32 = arith.constant 0 : i32
    %c0_i32_0 = arith.constant 0 : i32
    %c0_i32_1 = arith.constant 0 : i32
    return %arg0, %c0_i32, %c0_i32_0 : i32, i32, i32
  }
}

module attributes {stable_mosaic.version = 11 : i64} {
  func.func @_linear_add_ln_kernel(%arg0: i32, %arg1: i32, %arg2: memref<16x32xf32, #tpu.memory_space<vmem>>, %arg3: memref<32x32xf32, #tpu.memory_space<vmem>>, %arg4: memref<1x32xf32, #tpu.memory_space<vmem>>, %arg5: memref<16x32xf32, #tpu.memory_space<vmem>>, %arg6: memref<1x32xf32, #tpu.memory_space<vmem>>, %arg7: memref<1x32xf32, #tpu.memory_space<vmem>>, %arg8: memref<16x32xf32, #tpu.memory_space<vmem>>, %arg9: memref<16x32xf32, #tpu.memory_space<vmem>>) attributes {dimension_semantics = [#tpu.dimension_semantics<parallel>, #tpu.dimension_semantics<arbitrary>], iteration_bounds = array<i64: 1, 1>, scalar_prefetch = 0 : i64, scratch_operands = 1 : i64, tpu.core_type = #tpu.core_type<tc>, window_params = [{transform_indices = @transform_0, window_bounds = array<i64: 16, 32>}, {transform_indices = @transform_1, window_bounds = array<i64: 32, 32>}, {pipeline_mode = #tpu.pipeline_mode<synchronous>, transform_indices = @transform_2, window_bounds = array<i64: 1, 32>}, {transform_indices = @transform_3, window_bounds = array<i64: 16, 32>}, {pipeline_mode = #tpu.pipeline_mode<synchronous>, transform_indices = @transform_4, window_bounds = array<i64: 1, 32>}, {pipeline_mode = #tpu.pipeline_mode<synchronous>, transform_indices = @transform_5, window_bounds = array<i64: 1, 32>}, {transform_indices = @transform_6, window_bounds = array<i64: 16, 32>}]} {
    %c0_i32 = arith.constant 0 : i32
    %0 = arith.cmpi eq, %arg1, %c0_i32 : i32
    %1 = arith.extui %0 : i1 to i32
    %c0_i32_0 = arith.constant 0 : i32
    %2 = arith.cmpi ne, %1, %c0_i32_0 : i32
    scf.if %2 {
      %cst_10 = arith.constant 0.000000e+00 : f32
      %12 = vector.broadcast %cst_10 : f32 to vector<16x32xf32>
      %c0_11 = arith.constant 0 : index
      %c0_12 = arith.constant 0 : index
      %13 = vector.load %arg9[%c0_11, %c0_12] : memref<16x32xf32, #tpu.memory_space<vmem>>, vector<16x32xf32>
      tpu.vector_store %arg9[%c0_11, %c0_12], %12 {strides = array<i32>} : memref<16x32xf32, #tpu.memory_space<vmem>>, vector<16x32xf32>,
    } else {
    }
    %c0 = arith.constant 0 : index
    %c0_1 = arith.constant 0 : index
    %3 = vector.load %arg9[%c0, %c0_1] : memref<16x32xf32, #tpu.memory_space<vmem>>, vector<16x32xf32>
    %c0_2 = arith.constant 0 : index
    %c0_3 = arith.constant 0 : index
    %4 = vector.load %arg2[%c0_2, %c0_3] : memref<16x32xf32, #tpu.memory_space<vmem>>, vector<16x32xf32>
    %c0_4 = arith.constant 0 : index
    %c0_5 = arith.constant 0 : index
    %5 = vector.load %arg3[%c0_4, %c0_5] : memref<32x32xf32, #tpu.memory_space<vmem>>, vector<32x32xf32>
    %cst = arith.constant dense<0.000000e+00> : vector<16x32xf32>
    %6 = tpu.matmul %4, %5, %cst {dimension_numbers = #tpu.dot_dimension_numbers<[1], [0], [0], [1], [0, 0, 1, 1], [], []>} : vector<16x32xf32>, vector<32x32xf32>, vector<16x32xf32> -> vector<16x32xf32>
    %7 = arith.addf %3, %6 : vector<16x32xf32>
    %c0_6 = arith.constant 0 : index
    %c0_7 = arith.constant 0 : index
    %8 = vector.load %arg9[%c0_6, %c0_7] : memref<16x32xf32, #tpu.memory_space<vmem>>, vector<16x32xf32>
    tpu.vector_store %arg9[%c0_6, %c0_7], %7 {strides = array<i32>} : memref<16x32xf32, #tpu.memory_space<vmem>>, vector<16x32xf32>,
    %c0_i32_8 = arith.constant 0 : i32
    %9 = arith.cmpi eq, %arg1, %c0_i32_8 : i32
    %10 = arith.extui %9 : i1 to i32
    %c0_i32_9 = arith.constant 0 : i32
    %11 = arith.cmpi ne, %10, %c0_i32_9 : i32
    scf.if %11 {
      %c0_10 = arith.constant 0 : index
      %c0_11 = arith.constant 0 : index
      %12 = vector.load %arg9[%c0_10, %c0_11] : memref<16x32xf32, #tpu.memory_space<vmem>>, vector<16x32xf32>
      %c0_12 = arith.constant 0 : index
      %c0_13 = arith.constant 0 : index
      %13 = vector.load %arg4[%c0_12, %c0_13] : memref<1x32xf32, #tpu.memory_space<vmem>>, vector<1x32xf32>
      %14 = vector.broadcast %13 : vector<1x32xf32> to vector<16x32xf32>
      %15 = arith.addf %12, %14 : vector<16x32xf32>
      %c0_14 = arith.constant 0 : index
      %c0_15 = arith.constant 0 : index
      %16 = vector.load %arg5[%c0_14, %c0_15] : memref<16x32xf32, #tpu.memory_space<vmem>>, vector<16x32xf32>
      %17 = arith.addf %15, %16 : vector<16x32xf32>
      %cst_16 = arith.constant dense<0.000000e+00> : vector<16xf32>
      %18 = vector.multi_reduction <add>, %17, %cst_16 [1] : vector<16x32xf32> to vector<16xf32>
      %19 = vector.shape_cast %18 : vector<16xf32> to vector<16x1xf32>
      %cst_17 = arith.constant 3.200000e+01 : f32
      %20 = vector.broadcast %cst_17 : f32 to vector<16x1xf32>
      %21 = arith.divf %19, %20 : vector<16x1xf32>
      %22 = vector.broadcast %21 : vector<16x1xf32> to vector<16x32xf32>
      %23 = arith.subf %17, %22 : vector<16x32xf32>
      %24 = arith.mulf %23, %23 : vector<16x32xf32>
      %cst_18 = arith.constant dense<0.000000e+00> : vector<16xf32>
      %25 = vector.multi_reduction <add>, %24, %cst_18 [1] : vector<16x32xf32> to vector<16xf32>
      %26 = vector.shape_cast %25 : vector<16xf32> to vector<16x1xf32>
      %cst_19 = arith.constant 3.200000e+01 : f32
      %27 = vector.broadcast %cst_19 : f32 to vector<16x1xf32>
      %28 = arith.divf %26, %27 : vector<16x1xf32>
      %cst_20 = arith.constant 9.99999974E-6 : f32
      %29 = vector.broadcast %cst_20 : f32 to vector<16x1xf32>
      %30 = arith.addf %28, %29 : vector<16x1xf32>
      %31 = math.rsqrt %30 : vector<16x1xf32>
      %32 = vector.broadcast %31 : vector<16x1xf32> to vector<16x32xf32>
      %33 = arith.mulf %23, %32 : vector<16x32xf32>
      %c0_21 = arith.constant 0 : index
      %c0_22 = arith.constant 0 : index
      %34 = vector.load %arg6[%c0_21, %c0_22] : memref<1x32xf32, #tpu.memory_space<vmem>>, vector<1x32xf32>
      %35 = vector.broadcast %34 : vector<1x32xf32> to vector<16x32xf32>
      %36 = arith.mulf %33, %35 : vector<16x32xf32>
      %c0_23 = arith.constant 0 : index
      %c0_24 = arith.constant 0 : index
      %37 = vector.load %arg7[%c0_23, %c0_24] : memref<1x32xf32, #tpu.memory_space<vmem>>, vector<1x32xf32>
      %38 = vector.broadcast %37 : vector<1x32xf32> to vector<16x32xf32>
      %39 = arith.addf %36, %38 : vector<16x32xf32>
      %c0_25 = arith.constant 0 : index
      %c0_26 = arith.constant 0 : index
      %40 = vector.load %arg8[%c0_25, %c0_26] : memref<16x32xf32, #tpu.memory_space<vmem>>, vector<16x32xf32>
      tpu.vector_store %arg8[%c0_25, %c0_26], %39 {strides = array<i32>} : memref<16x32xf32, #tpu.memory_space<vmem>>, vector<16x32xf32>,
    } else {
    }
    return
  }
  func.func @transform_0(%arg0: i32, %arg1: i32) -> (i32, i32) {
    %c0_i32 = arith.constant 0 : i32
    return %arg0, %arg1 : i32, i32
  }
  func.func @transform_1(%arg0: i32, %arg1: i32) -> (i32, i32) {
    %c0_i32 = arith.constant 0 : i32
    %c0_i32_0 = arith.constant 0 : i32
    return %arg1, %c0_i32 : i32, i32
  }
  func.func @transform_2(%arg0: i32, %arg1: i32) -> (i32, i32) {
    %c0_i32 = arith.constant 0 : i32
    %c0_i32_0 = arith.constant 0 : i32
    %c0_i32_1 = arith.constant 0 : i32
    return %c0_i32, %c0_i32_0 : i32, i32
  }
  func.func @transform_3(%arg0: i32, %arg1: i32) -> (i32, i32) {
    %c0_i32 = arith.constant 0 : i32
    %c0_i32_0 = arith.constant 0 : i32
    return %arg0, %c0_i32 : i32, i32
  }
  func.func @transform_4(%arg0: i32, %arg1: i32) -> (i32, i32) {
    %c0_i32 = arith.constant 0 : i32
    %c0_i32_0 = arith.constant 0 : i32
    %c0_i32_1 = arith.constant 0 : i32
    return %c0_i32, %c0_i32_0 : i32, i32
  }
  func.func @transform_5(%arg0: i32, %arg1: i32) -> (i32, i32) {
    %c0_i32 = arith.constant 0 : i32
    %c0_i32_0 = arith.constant 0 : i32
    %c0_i32_1 = arith.constant 0 : i32
    return %c0_i32, %c0_i32_0 : i32, i32
  }
  func.func @transform_6(%arg0: i32, %arg1: i32) -> (i32, i32) {
    %c0_i32 = arith.constant 0 : i32
    %c0_i32_0 = arith.constant 0 : i32
    return %arg0, %c0_i32 : i32, i32
  }
}

module attributes {stable_mosaic.version = 11 : i64} {
  func.func @_ffn_ln_kernel(%arg0: i32, %arg1: i32, %arg2: memref<16x32xf32, #tpu.memory_space<vmem>>, %arg3: memref<32x512xf32, #tpu.memory_space<vmem>>, %arg4: memref<1x512xf32, #tpu.memory_space<vmem>>, %arg5: memref<512x32xf32, #tpu.memory_space<vmem>>, %arg6: memref<1x32xf32, #tpu.memory_space<vmem>>, %arg7: memref<1x32xf32, #tpu.memory_space<vmem>>, %arg8: memref<1x32xf32, #tpu.memory_space<vmem>>, %arg9: memref<16x32xf32, #tpu.memory_space<vmem>>, %arg10: memref<16x32xf32, #tpu.memory_space<vmem>>) attributes {dimension_semantics = [#tpu.dimension_semantics<parallel>, #tpu.dimension_semantics<arbitrary>], iteration_bounds = array<i64: 1, 4>, scalar_prefetch = 0 : i64, scratch_operands = 1 : i64, tpu.core_type = #tpu.core_type<tc>, window_params = [{transform_indices = @transform_0, window_bounds = array<i64: 16, 32>}, {transform_indices = @transform_1, window_bounds = array<i64: 32, 512>}, {transform_indices = @transform_2, window_bounds = array<i64: 1, 512>}, {transform_indices = @transform_3, window_bounds = array<i64: 512, 32>}, {pipeline_mode = #tpu.pipeline_mode<synchronous>, transform_indices = @transform_4, window_bounds = array<i64: 1, 32>}, {pipeline_mode = #tpu.pipeline_mode<synchronous>, transform_indices = @transform_5, window_bounds = array<i64: 1, 32>}, {pipeline_mode = #tpu.pipeline_mode<synchronous>, transform_indices = @transform_6, window_bounds = array<i64: 1, 32>}, {transform_indices = @transform_7, window_bounds = array<i64: 16, 32>}]} {
    %c0_i32 = arith.constant 0 : i32
    %0 = arith.cmpi eq, %arg1, %c0_i32 : i32
    %1 = arith.extui %0 : i1 to i32
    %c0_i32_0 = arith.constant 0 : i32
    %2 = arith.cmpi ne, %1, %c0_i32_0 : i32
    scf.if %2 {
      %cst_15 = arith.constant 0.000000e+00 : f32
      %19 = vector.broadcast %cst_15 : f32 to vector<16x32xf32>
      %c0_16 = arith.constant 0 : index
      %c0_17 = arith.constant 0 : index
      %20 = vector.load %arg10[%c0_16, %c0_17] : memref<16x32xf32, #tpu.memory_space<vmem>>, vector<16x32xf32>
      tpu.vector_store %arg10[%c0_16, %c0_17], %19 {strides = array<i32>} : memref<16x32xf32, #tpu.memory_space<vmem>>, vector<16x32xf32>,
    } else {
    }
    %c0 = arith.constant 0 : index
    %c0_1 = arith.constant 0 : index
    %3 = vector.load %arg2[%c0, %c0_1] : memref<16x32xf32, #tpu.memory_space<vmem>>, vector<16x32xf32>
    %c0_2 = arith.constant 0 : index
    %c0_3 = arith.constant 0 : index
    %4 = vector.load %arg3[%c0_2, %c0_3] : memref<32x512xf32, #tpu.memory_space<vmem>>, vector<32x512xf32>
    %cst = arith.constant dense<0.000000e+00> : vector<16x512xf32>
    %5 = tpu.matmul %3, %4, %cst {dimension_numbers = #tpu.dot_dimension_numbers<[1], [0], [0], [1], [0, 0, 1, 1], [], []>} : vector<16x32xf32>, vector<32x512xf32>, vector<16x512xf32> -> vector<16x512xf32>
    %c0_4 = arith.constant 0 : index
    %c0_5 = arith.constant 0 : index
    %6 = vector.load %arg4[%c0_4, %c0_5] : memref<1x512xf32, #tpu.memory_space<vmem>>, vector<1x512xf32>
    %7 = vector.broadcast %6 : vector<1x512xf32> to vector<16x512xf32>
    %8 = arith.addf %5, %7 : vector<16x512xf32>
    %cst_6 = arith.constant 0.000000e+00 : f32
    %9 = vector.broadcast %cst_6 : f32 to vector<16x512xf32>
    %10 = arith.maximumf %8, %9 : vector<16x512xf32>
    %c0_7 = arith.constant 0 : index
    %c0_8 = arith.constant 0 : index
    %11 = vector.load %arg10[%c0_7, %c0_8] : memref<16x32xf32, #tpu.memory_space<vmem>>, vector<16x32xf32>
    %c0_9 = arith.constant 0 : index
    %c0_10 = arith.constant 0 : index
    %12 = vector.load %arg5[%c0_9, %c0_10] : memref<512x32xf32, #tpu.memory_space<vmem>>, vector<512x32xf32>
    %cst_11 = arith.constant dense<0.000000e+00> : vector<16x32xf32>
    %13 = tpu.matmul %10, %12, %cst_11 {dimension_numbers = #tpu.dot_dimension_numbers<[1], [0], [0], [1], [0, 0, 1, 1], [], []>} : vector<16x512xf32>, vector<512x32xf32>, vector<16x32xf32> -> vector<16x32xf32>
    %14 = arith.addf %11, %13 : vector<16x32xf32>
    %c0_12 = arith.constant 0 : index
    %c0_13 = arith.constant 0 : index
    %15 = vector.load %arg10[%c0_12, %c0_13] : memref<16x32xf32, #tpu.memory_space<vmem>>, vector<16x32xf32>
    tpu.vector_store %arg10[%c0_12, %c0_13], %14 {strides = array<i32>} : memref<16x32xf32, #tpu.memory_space<vmem>>, vector<16x32xf32>,
    %c3_i32 = arith.constant 3 : i32
    %16 = arith.cmpi eq, %arg1, %c3_i32 : i32
    %17 = arith.extui %16 : i1 to i32
    %c0_i32_14 = arith.constant 0 : i32
    %18 = arith.cmpi ne, %17, %c0_i32_14 : i32
    scf.if %18 {
      %c0_15 = arith.constant 0 : index
      %c0_16 = arith.constant 0 : index
      %19 = vector.load %arg10[%c0_15, %c0_16] : memref<16x32xf32, #tpu.memory_space<vmem>>, vector<16x32xf32>
      %c0_17 = arith.constant 0 : index
      %c0_18 = arith.constant 0 : index
      %20 = vector.load %arg6[%c0_17, %c0_18] : memref<1x32xf32, #tpu.memory_space<vmem>>, vector<1x32xf32>
      %21 = vector.broadcast %20 : vector<1x32xf32> to vector<16x32xf32>
      %22 = arith.addf %19, %21 : vector<16x32xf32>
      %23 = arith.addf %22, %3 : vector<16x32xf32>
      %cst_19 = arith.constant dense<0.000000e+00> : vector<16xf32>
      %24 = vector.multi_reduction <add>, %23, %cst_19 [1] : vector<16x32xf32> to vector<16xf32>
      %25 = vector.shape_cast %24 : vector<16xf32> to vector<16x1xf32>
      %cst_20 = arith.constant 3.200000e+01 : f32
      %26 = vector.broadcast %cst_20 : f32 to vector<16x1xf32>
      %27 = arith.divf %25, %26 : vector<16x1xf32>
      %28 = vector.broadcast %27 : vector<16x1xf32> to vector<16x32xf32>
      %29 = arith.subf %23, %28 : vector<16x32xf32>
      %30 = arith.mulf %29, %29 : vector<16x32xf32>
      %cst_21 = arith.constant dense<0.000000e+00> : vector<16xf32>
      %31 = vector.multi_reduction <add>, %30, %cst_21 [1] : vector<16x32xf32> to vector<16xf32>
      %32 = vector.shape_cast %31 : vector<16xf32> to vector<16x1xf32>
      %cst_22 = arith.constant 3.200000e+01 : f32
      %33 = vector.broadcast %cst_22 : f32 to vector<16x1xf32>
      %34 = arith.divf %32, %33 : vector<16x1xf32>
      %cst_23 = arith.constant 9.99999974E-6 : f32
      %35 = vector.broadcast %cst_23 : f32 to vector<16x1xf32>
      %36 = arith.addf %34, %35 : vector<16x1xf32>
      %37 = math.rsqrt %36 : vector<16x1xf32>
      %38 = vector.broadcast %37 : vector<16x1xf32> to vector<16x32xf32>
      %39 = arith.mulf %29, %38 : vector<16x32xf32>
      %c0_24 = arith.constant 0 : index
      %c0_25 = arith.constant 0 : index
      %40 = vector.load %arg7[%c0_24, %c0_25] : memref<1x32xf32, #tpu.memory_space<vmem>>, vector<1x32xf32>
      %41 = vector.broadcast %40 : vector<1x32xf32> to vector<16x32xf32>
      %42 = arith.mulf %39, %41 : vector<16x32xf32>
      %c0_26 = arith.constant 0 : index
      %c0_27 = arith.constant 0 : index
      %43 = vector.load %arg8[%c0_26, %c0_27] : memref<1x32xf32, #tpu.memory_space<vmem>>, vector<1x32xf32>
      %44 = vector.broadcast %43 : vector<1x32xf32> to vector<16x32xf32>
      %45 = arith.addf %42, %44 : vector<16x32xf32>
      %c0_28 = arith.constant 0 : index
      %c0_29 = arith.constant 0 : index
      %46 = vector.load %arg9[%c0_28, %c0_29] : memref<16x32xf32, #tpu.memory_space<vmem>>, vector<16x32xf32>
      tpu.vector_store %arg9[%c0_28, %c0_29], %45 {strides = array<i32>} : memref<16x32xf32, #tpu.memory_space<vmem>>, vector<16x32xf32>,
    } else {
    }
    return
  }
  func.func @transform_0(%arg0: i32, %arg1: i32) -> (i32, i32) {
    %c0_i32 = arith.constant 0 : i32
    %c0_i32_0 = arith.constant 0 : i32
    return %arg0, %c0_i32 : i32, i32
  }
  func.func @transform_1(%arg0: i32, %arg1: i32) -> (i32, i32) {
    %c0_i32 = arith.constant 0 : i32
    %c0_i32_0 = arith.constant 0 : i32
    return %c0_i32, %arg1 : i32, i32
  }
  func.func @transform_2(%arg0: i32, %arg1: i32) -> (i32, i32) {
    %c0_i32 = arith.constant 0 : i32
    %c0_i32_0 = arith.constant 0 : i32
    return %c0_i32, %arg1 : i32, i32
  }
  func.func @transform_3(%arg0: i32, %arg1: i32) -> (i32, i32) {
    %c0_i32 = arith.constant 0 : i32
    %c0_i32_0 = arith.constant 0 : i32
    return %arg1, %c0_i32 : i32, i32
  }
  func.func @transform_4(%arg0: i32, %arg1: i32) -> (i32, i32) {
    %c0_i32 = arith.constant 0 : i32
    %c0_i32_0 = arith.constant 0 : i32
    %c0_i32_1 = arith.constant 0 : i32
    return %c0_i32, %c0_i32_0 : i32, i32
  }
  func.func @transform_5(%arg0: i32, %arg1: i32) -> (i32, i32) {
    %c0_i32 = arith.constant 0 : i32
    %c0_i32_0 = arith.constant 0 : i32
    %c0_i32_1 = arith.constant 0 : i32
    return %c0_i32, %c0_i32_0 : i32, i32
  }
  func.func @transform_6(%arg0: i32, %arg1: i32) -> (i32, i32) {
    %c0_i32 = arith.constant 0 : i32
    %c0_i32_0 = arith.constant 0 : i32
    %c0_i32_1 = arith.constant 0 : i32
    return %c0_i32, %c0_i32_0 : i32, i32
  }
  func.func @transform_7(%arg0: i32, %arg1: i32) -> (i32, i32) {
    %c0_i32 = arith.constant 0 : i32
    %c0_i32_0 = arith.constant 0 : i32
    return %arg0, %c0_i32 : i32, i32
  }
}

module attributes {stable_mosaic.version = 11 : i64} {
  func.func @_ln_kernel(%arg0: i32, %arg1: memref<16x32xf32, #tpu.memory_space<vmem>>, %arg2: memref<1x32xf32, #tpu.memory_space<vmem>>, %arg3: memref<1x32xf32, #tpu.memory_space<vmem>>, %arg4: memref<16x32xf32, #tpu.memory_space<vmem>>) attributes {dimension_semantics = [#tpu.dimension_semantics<parallel>], iteration_bounds = array<i64: 1>, scalar_prefetch = 0 : i64, scratch_operands = 0 : i64, tpu.core_type = #tpu.core_type<tc>, window_params = [{transform_indices = @transform_0, window_bounds = array<i64: 16, 32>}, {pipeline_mode = #tpu.pipeline_mode<synchronous>, transform_indices = @transform_1, window_bounds = array<i64: 1, 32>}, {pipeline_mode = #tpu.pipeline_mode<synchronous>, transform_indices = @transform_2, window_bounds = array<i64: 1, 32>}, {transform_indices = @transform_3, window_bounds = array<i64: 16, 32>}]} {
    %c0 = arith.constant 0 : index
    %c0_0 = arith.constant 0 : index
    %0 = vector.load %arg1[%c0, %c0_0] : memref<16x32xf32, #tpu.memory_space<vmem>>, vector<16x32xf32>
    %cst = arith.constant dense<0.000000e+00> : vector<16xf32>
    %1 = vector.multi_reduction <add>, %0, %cst [1] : vector<16x32xf32> to vector<16xf32>
    %2 = vector.shape_cast %1 : vector<16xf32> to vector<16x1xf32>
    %cst_1 = arith.constant 3.200000e+01 : f32
    %3 = vector.broadcast %cst_1 : f32 to vector<16x1xf32>
    %4 = arith.divf %2, %3 : vector<16x1xf32>
    %5 = vector.broadcast %4 : vector<16x1xf32> to vector<16x32xf32>
    %6 = arith.subf %0, %5 : vector<16x32xf32>
    %7 = arith.mulf %6, %6 : vector<16x32xf32>
    %cst_2 = arith.constant dense<0.000000e+00> : vector<16xf32>
    %8 = vector.multi_reduction <add>, %7, %cst_2 [1] : vector<16x32xf32> to vector<16xf32>
    %9 = vector.shape_cast %8 : vector<16xf32> to vector<16x1xf32>
    %cst_3 = arith.constant 3.200000e+01 : f32
    %10 = vector.broadcast %cst_3 : f32 to vector<16x1xf32>
    %11 = arith.divf %9, %10 : vector<16x1xf32>
    %cst_4 = arith.constant 9.99999974E-6 : f32
    %12 = vector.broadcast %cst_4 : f32 to vector<16x1xf32>
    %13 = arith.addf %11, %12 : vector<16x1xf32>
    %14 = math.rsqrt %13 : vector<16x1xf32>
    %15 = vector.broadcast %14 : vector<16x1xf32> to vector<16x32xf32>
    %16 = arith.mulf %6, %15 : vector<16x32xf32>
    %c0_5 = arith.constant 0 : index
    %c0_6 = arith.constant 0 : index
    %17 = vector.load %arg2[%c0_5, %c0_6] : memref<1x32xf32, #tpu.memory_space<vmem>>, vector<1x32xf32>
    %18 = vector.broadcast %17 : vector<1x32xf32> to vector<16x32xf32>
    %19 = arith.mulf %16, %18 : vector<16x32xf32>
    %c0_7 = arith.constant 0 : index
    %c0_8 = arith.constant 0 : index
    %20 = vector.load %arg3[%c0_7, %c0_8] : memref<1x32xf32, #tpu.memory_space<vmem>>, vector<1x32xf32>
    %21 = vector.broadcast %20 : vector<1x32xf32> to vector<16x32xf32>
    %22 = arith.addf %19, %21 : vector<16x32xf32>
    %c0_9 = arith.constant 0 : index
    %c0_10 = arith.constant 0 : index
    %23 = vector.load %arg4[%c0_9, %c0_10] : memref<16x32xf32, #tpu.memory_space<vmem>>, vector<16x32xf32>
    tpu.vector_store %arg4[%c0_9, %c0_10], %22 {strides = array<i32>} : memref<16x32xf32, #tpu.memory_space<vmem>>, vector<16x32xf32>,
    return
  }
  func.func @transform_0(%arg0: i32) -> (i32, i32) {
    %c0_i32 = arith.constant 0 : i32
    %c0_i32_0 = arith.constant 0 : i32
    return %arg0, %c0_i32 : i32, i32
  }
  func.func @transform_1(%arg0: i32) -> (i32, i32) {
    %c0_i32 = arith.constant 0 : i32
    %c0_i32_0 = arith.constant 0 : i32
    %c0_i32_1 = arith.constant 0 : i32
    return %c0_i32, %c0_i32_0 : i32, i32
  }
  func.func @transform_2(%arg0: i32) -> (i32, i32) {
    %c0_i32 = arith.constant 0 : i32
    %c0_i32_0 = arith.constant 0 : i32
    %c0_i32_1 = arith.constant 0 : i32
    return %c0_i32, %c0_i32_0 : i32, i32
  }
  func.func @transform_3(%arg0: i32) -> (i32, i32) {
    %c0_i32 = arith.constant 0 : i32
    %c0_i32_0 = arith.constant 0 : i32
    return %arg0, %c0_i32 : i32, i32
  }
}

module attributes {stable_mosaic.version = 11 : i64} {
  func.func @_linear_kernel(%arg0: i32, %arg1: i32, %arg2: i32, %arg3: memref<16x32xf32, #tpu.memory_space<vmem>>, %arg4: memref<32x64xf32, #tpu.memory_space<vmem>>, %arg5: memref<1x64xf32, #tpu.memory_space<vmem>>, %arg6: memref<16x64xf32, #tpu.memory_space<vmem>>, %arg7: memref<16x64xf32, #tpu.memory_space<vmem>>) attributes {dimension_semantics = [#tpu.dimension_semantics<parallel>, #tpu.dimension_semantics<parallel>, #tpu.dimension_semantics<arbitrary>], iteration_bounds = array<i64: 1, 1, 1>, scalar_prefetch = 0 : i64, scratch_operands = 1 : i64, tpu.core_type = #tpu.core_type<tc>, window_params = [{transform_indices = @transform_0, window_bounds = array<i64: 16, 32>}, {transform_indices = @transform_1, window_bounds = array<i64: 32, 64>}, {transform_indices = @transform_2, window_bounds = array<i64: 1, 64>}, {transform_indices = @transform_3, window_bounds = array<i64: 16, 64>}]} {
    %c0_i32 = arith.constant 0 : i32
    %0 = arith.cmpi eq, %arg2, %c0_i32 : i32
    %1 = arith.extui %0 : i1 to i32
    %c0_i32_0 = arith.constant 0 : i32
    %2 = arith.cmpi ne, %1, %c0_i32_0 : i32
    scf.if %2 {
      %cst_10 = arith.constant 0.000000e+00 : f32
      %12 = vector.broadcast %cst_10 : f32 to vector<16x64xf32>
      %c0_11 = arith.constant 0 : index
      %c0_12 = arith.constant 0 : index
      %13 = vector.load %arg7[%c0_11, %c0_12] : memref<16x64xf32, #tpu.memory_space<vmem>>, vector<16x64xf32>
      tpu.vector_store %arg7[%c0_11, %c0_12], %12 {strides = array<i32>} : memref<16x64xf32, #tpu.memory_space<vmem>>, vector<16x64xf32>,
    } else {
    }
    %c0 = arith.constant 0 : index
    %c0_1 = arith.constant 0 : index
    %3 = vector.load %arg7[%c0, %c0_1] : memref<16x64xf32, #tpu.memory_space<vmem>>, vector<16x64xf32>
    %c0_2 = arith.constant 0 : index
    %c0_3 = arith.constant 0 : index
    %4 = vector.load %arg3[%c0_2, %c0_3] : memref<16x32xf32, #tpu.memory_space<vmem>>, vector<16x32xf32>
    %c0_4 = arith.constant 0 : index
    %c0_5 = arith.constant 0 : index
    %5 = vector.load %arg4[%c0_4, %c0_5] : memref<32x64xf32, #tpu.memory_space<vmem>>, vector<32x64xf32>
    %cst = arith.constant dense<0.000000e+00> : vector<16x64xf32>
    %6 = tpu.matmul %4, %5, %cst {dimension_numbers = #tpu.dot_dimension_numbers<[1], [0], [0], [1], [0, 0, 1, 1], [], []>} : vector<16x32xf32>, vector<32x64xf32>, vector<16x64xf32> -> vector<16x64xf32>
    %7 = arith.addf %3, %6 : vector<16x64xf32>
    %c0_6 = arith.constant 0 : index
    %c0_7 = arith.constant 0 : index
    %8 = vector.load %arg7[%c0_6, %c0_7] : memref<16x64xf32, #tpu.memory_space<vmem>>, vector<16x64xf32>
    tpu.vector_store %arg7[%c0_6, %c0_7], %7 {strides = array<i32>} : memref<16x64xf32, #tpu.memory_space<vmem>>, vector<16x64xf32>,
    %c0_i32_8 = arith.constant 0 : i32
    %9 = arith.cmpi eq, %arg2, %c0_i32_8 : i32
    %10 = arith.extui %9 : i1 to i32
    %c0_i32_9 = arith.constant 0 : i32
    %11 = arith.cmpi ne, %10, %c0_i32_9 : i32
    scf.if %11 {
      %c0_10 = arith.constant 0 : index
      %c0_11 = arith.constant 0 : index
      %12 = vector.load %arg7[%c0_10, %c0_11] : memref<16x64xf32, #tpu.memory_space<vmem>>, vector<16x64xf32>
      %c0_12 = arith.constant 0 : index
      %c0_13 = arith.constant 0 : index
      %13 = vector.load %arg5[%c0_12, %c0_13] : memref<1x64xf32, #tpu.memory_space<vmem>>, vector<1x64xf32>
      %14 = vector.broadcast %13 : vector<1x64xf32> to vector<16x64xf32>
      %15 = arith.addf %12, %14 : vector<16x64xf32>
      %c0_14 = arith.constant 0 : index
      %c0_15 = arith.constant 0 : index
      %16 = vector.load %arg6[%c0_14, %c0_15] : memref<16x64xf32, #tpu.memory_space<vmem>>, vector<16x64xf32>
      tpu.vector_store %arg6[%c0_14, %c0_15], %15 {strides = array<i32>} : memref<16x64xf32, #tpu.memory_space<vmem>>, vector<16x64xf32>,
    } else {
    }
    return
  }
  func.func @transform_0(%arg0: i32, %arg1: i32, %arg2: i32) -> (i32, i32) {
    %c0_i32 = arith.constant 0 : i32
    return %arg0, %arg2 : i32, i32
  }
  func.func @transform_1(%arg0: i32, %arg1: i32, %arg2: i32) -> (i32, i32) {
    %c0_i32 = arith.constant 0 : i32
    return %arg2, %arg1 : i32, i32
  }
  func.func @transform_2(%arg0: i32, %arg1: i32, %arg2: i32) -> (i32, i32) {
    %c0_i32 = arith.constant 0 : i32
    %c0_i32_0 = arith.constant 0 : i32
    return %c0_i32, %arg1 : i32, i32
  }
  func.func @transform_3(%arg0: i32, %arg1: i32, %arg2: i32) -> (i32, i32) {
    %c0_i32 = arith.constant 0 : i32
    return %arg0, %arg1 : i32, i32
  }
}

module attributes {stable_mosaic.version = 11 : i64} {
  func.func @_linear_kernel(%arg0: i32, %arg1: i32, %arg2: i32, %arg3: memref<12x32xf32, #tpu.memory_space<vmem>>, %arg4: memref<32x96xf32, #tpu.memory_space<vmem>>, %arg5: memref<1x96xf32, #tpu.memory_space<vmem>>, %arg6: memref<12x96xf32, #tpu.memory_space<vmem>>, %arg7: memref<12x96xf32, #tpu.memory_space<vmem>>) attributes {dimension_semantics = [#tpu.dimension_semantics<parallel>, #tpu.dimension_semantics<parallel>, #tpu.dimension_semantics<arbitrary>], iteration_bounds = array<i64: 1, 1, 1>, scalar_prefetch = 0 : i64, scratch_operands = 1 : i64, tpu.core_type = #tpu.core_type<tc>, window_params = [{transform_indices = @transform_0, window_bounds = array<i64: 12, 32>}, {transform_indices = @transform_1, window_bounds = array<i64: 32, 96>}, {transform_indices = @transform_2, window_bounds = array<i64: 1, 96>}, {transform_indices = @transform_3, window_bounds = array<i64: 12, 96>}]} {
    %c0_i32 = arith.constant 0 : i32
    %0 = arith.cmpi eq, %arg2, %c0_i32 : i32
    %1 = arith.extui %0 : i1 to i32
    %c0_i32_0 = arith.constant 0 : i32
    %2 = arith.cmpi ne, %1, %c0_i32_0 : i32
    scf.if %2 {
      %cst_10 = arith.constant 0.000000e+00 : f32
      %12 = vector.broadcast %cst_10 : f32 to vector<12x96xf32>
      %c0_11 = arith.constant 0 : index
      %c0_12 = arith.constant 0 : index
      %13 = vector.load %arg7[%c0_11, %c0_12] : memref<12x96xf32, #tpu.memory_space<vmem>>, vector<12x96xf32>
      tpu.vector_store %arg7[%c0_11, %c0_12], %12 {strides = array<i32>} : memref<12x96xf32, #tpu.memory_space<vmem>>, vector<12x96xf32>,
    } else {
    }
    %c0 = arith.constant 0 : index
    %c0_1 = arith.constant 0 : index
    %3 = vector.load %arg7[%c0, %c0_1] : memref<12x96xf32, #tpu.memory_space<vmem>>, vector<12x96xf32>
    %c0_2 = arith.constant 0 : index
    %c0_3 = arith.constant 0 : index
    %4 = vector.load %arg3[%c0_2, %c0_3] : memref<12x32xf32, #tpu.memory_space<vmem>>, vector<12x32xf32>
    %c0_4 = arith.constant 0 : index
    %c0_5 = arith.constant 0 : index
    %5 = vector.load %arg4[%c0_4, %c0_5] : memref<32x96xf32, #tpu.memory_space<vmem>>, vector<32x96xf32>
    %cst = arith.constant dense<0.000000e+00> : vector<12x96xf32>
    %6 = tpu.matmul %4, %5, %cst {dimension_numbers = #tpu.dot_dimension_numbers<[1], [0], [0], [1], [0, 0, 1, 1], [], []>} : vector<12x32xf32>, vector<32x96xf32>, vector<12x96xf32> -> vector<12x96xf32>
    %7 = arith.addf %3, %6 : vector<12x96xf32>
    %c0_6 = arith.constant 0 : index
    %c0_7 = arith.constant 0 : index
    %8 = vector.load %arg7[%c0_6, %c0_7] : memref<12x96xf32, #tpu.memory_space<vmem>>, vector<12x96xf32>
    tpu.vector_store %arg7[%c0_6, %c0_7], %7 {strides = array<i32>} : memref<12x96xf32, #tpu.memory_space<vmem>>, vector<12x96xf32>,
    %c0_i32_8 = arith.constant 0 : i32
    %9 = arith.cmpi eq, %arg2, %c0_i32_8 : i32
    %10 = arith.extui %9 : i1 to i32
    %c0_i32_9 = arith.constant 0 : i32
    %11 = arith.cmpi ne, %10, %c0_i32_9 : i32
    scf.if %11 {
      %c0_10 = arith.constant 0 : index
      %c0_11 = arith.constant 0 : index
      %12 = vector.load %arg7[%c0_10, %c0_11] : memref<12x96xf32, #tpu.memory_space<vmem>>, vector<12x96xf32>
      %c0_12 = arith.constant 0 : index
      %c0_13 = arith.constant 0 : index
      %13 = vector.load %arg5[%c0_12, %c0_13] : memref<1x96xf32, #tpu.memory_space<vmem>>, vector<1x96xf32>
      %14 = vector.broadcast %13 : vector<1x96xf32> to vector<12x96xf32>
      %15 = arith.addf %12, %14 : vector<12x96xf32>
      %c0_14 = arith.constant 0 : index
      %c0_15 = arith.constant 0 : index
      %16 = vector.load %arg6[%c0_14, %c0_15] : memref<12x96xf32, #tpu.memory_space<vmem>>, vector<12x96xf32>
      tpu.vector_store %arg6[%c0_14, %c0_15], %15 {strides = array<i32>} : memref<12x96xf32, #tpu.memory_space<vmem>>, vector<12x96xf32>,
    } else {
    }
    return
  }
  func.func @transform_0(%arg0: i32, %arg1: i32, %arg2: i32) -> (i32, i32) {
    %c0_i32 = arith.constant 0 : i32
    return %arg0, %arg2 : i32, i32
  }
  func.func @transform_1(%arg0: i32, %arg1: i32, %arg2: i32) -> (i32, i32) {
    %c0_i32 = arith.constant 0 : i32
    return %arg2, %arg1 : i32, i32
  }
  func.func @transform_2(%arg0: i32, %arg1: i32, %arg2: i32) -> (i32, i32) {
    %c0_i32 = arith.constant 0 : i32
    %c0_i32_0 = arith.constant 0 : i32
    return %c0_i32, %arg1 : i32, i32
  }
  func.func @transform_3(%arg0: i32, %arg1: i32, %arg2: i32) -> (i32, i32) {
    %c0_i32 = arith.constant 0 : i32
    return %arg0, %arg1 : i32, i32
  }
}

module attributes {stable_mosaic.version = 11 : i64} {
  func.func @_self_attn_kernel(%arg0: i32, %arg1: memref<1x6x96xf32, #tpu.memory_space<vmem>>, %arg2: memref<1x6x32xf32, #tpu.memory_space<vmem>>) attributes {dimension_semantics = [#tpu.dimension_semantics<parallel>], iteration_bounds = array<i64: 2>, scalar_prefetch = 0 : i64, scratch_operands = 0 : i64, tpu.core_type = #tpu.core_type<tc>, window_params = [{transform_indices = @transform_0, window_bounds = array<i64: 1, 6, 96>}, {transform_indices = @transform_1, window_bounds = array<i64: 1, 6, 32>}]} {
    %c0 = arith.constant 0 : index
    %c0_0 = arith.constant 0 : index
    %c0_1 = arith.constant 0 : index
    %0 = vector.load %arg1[%c0, %c0_0, %c0_1] : memref<1x6x96xf32, #tpu.memory_space<vmem>>, vector<1x6x96xf32>
    %1 = vector.shape_cast %0 : vector<1x6x96xf32> to vector<6x96xf32>
    %2 = vector.extract_strided_slice %1 {offsets = [0, 0], sizes = [6, 32], strides = [1, 1]} : vector<6x96xf32> to vector<6x32xf32>
    %3 = vector.extract_strided_slice %1 {offsets = [0, 32], sizes = [6, 32], strides = [1, 1]} : vector<6x96xf32> to vector<6x32xf32>
    %4 = vector.extract_strided_slice %1 {offsets = [0, 64], sizes = [6, 32], strides = [1, 1]} : vector<6x96xf32> to vector<6x32xf32>
    %cst = arith.constant 5.000000e-01 : f32
    %5 = vector.broadcast %cst : f32 to vector<6x32xf32>
    %6 = arith.mulf %2, %5 : vector<6x32xf32>
    %7 = vector.extract_strided_slice %6 {offsets = [0, 0], sizes = [6, 4], strides = [1, 1]} : vector<6x32xf32> to vector<6x4xf32>
    %8 = vector.extract_strided_slice %3 {offsets = [0, 0], sizes = [6, 4], strides = [1, 1]} : vector<6x32xf32> to vector<6x4xf32>
    %9 = vector.extract_strided_slice %4 {offsets = [0, 0], sizes = [6, 4], strides = [1, 1]} : vector<6x32xf32> to vector<6x4xf32>
    %cst_2 = arith.constant dense<0.000000e+00> : vector<6x6xf32>
    %10 = tpu.matmul %7, %8, %cst_2 {dimension_numbers = #tpu.dot_dimension_numbers<[1], [1], [0], [0], [0, 0, 1, 0], [], []>} : vector<6x4xf32>, vector<6x4xf32>, vector<6x6xf32> -> vector<6x6xf32>
    %cst_3 = arith.constant dense<0xFF800000> : vector<6xf32>
    %11 = vector.multi_reduction <maximumf>, %10, %cst_3 [1] : vector<6x6xf32> to vector<6xf32>
    %12 = vector.shape_cast %11 : vector<6xf32> to vector<6x1xf32>
    %13 = vector.broadcast %12 : vector<6x1xf32> to vector<6x6xf32>
    %14 = arith.subf %10, %13 : vector<6x6xf32>
    %15 = math.exp %14 : vector<6x6xf32>
    %cst_4 = arith.constant dense<0.000000e+00> : vector<6xf32>
    %16 = vector.multi_reduction <add>, %15, %cst_4 [1] : vector<6x6xf32> to vector<6xf32>
    %17 = vector.shape_cast %16 : vector<6xf32> to vector<6x1xf32>
    %18 = tpu.reciprocal %17 {approx = true} : vector<6x1xf32> -> vector<6x1xf32>
    %19 = vector.broadcast %18 : vector<6x1xf32> to vector<6x6xf32>
    %20 = arith.mulf %15, %19 : vector<6x6xf32>
    %cst_5 = arith.constant dense<0.000000e+00> : vector<6x4xf32>
    %21 = tpu.matmul %20, %9, %cst_5 {dimension_numbers = #tpu.dot_dimension_numbers<[1], [0], [0], [1], [0, 0, 1, 1], [], []>} : vector<6x6xf32>, vector<6x4xf32>, vector<6x4xf32> -> vector<6x4xf32>
    %c0_6 = arith.constant 0 : index
    %c0_7 = arith.constant 0 : index
    %c0_8 = arith.constant 0 : index
    %22 = vector.load %arg2[%c0_6, %c0_7, %c0_8] : memref<1x6x32xf32, #tpu.memory_space<vmem>>, vector<1x6x4xf32>
    %23 = vector.shape_cast %22 : vector<1x6x4xf32> to vector<6x4xf32>
    %24 = vector.shape_cast %21 : vector<6x4xf32> to vector<1x6x4xf32>
    tpu.vector_store %arg2[%c0_6, %c0_7, %c0_8], %24 {strides = array<i32>} : memref<1x6x32xf32, #tpu.memory_space<vmem>>, vector<1x6x4xf32>,
    %25 = vector.extract_strided_slice %6 {offsets = [0, 4], sizes = [6, 4], strides = [1, 1]} : vector<6x32xf32> to vector<6x4xf32>
    %26 = vector.extract_strided_slice %3 {offsets = [0, 4], sizes = [6, 4], strides = [1, 1]} : vector<6x32xf32> to vector<6x4xf32>
    %27 = vector.extract_strided_slice %4 {offsets = [0, 4], sizes = [6, 4], strides = [1, 1]} : vector<6x32xf32> to vector<6x4xf32>
    %cst_9 = arith.constant dense<0.000000e+00> : vector<6x6xf32>
    %28 = tpu.matmul %25, %26, %cst_9 {dimension_numbers = #tpu.dot_dimension_numbers<[1], [1], [0], [0], [0, 0, 1, 0], [], []>} : vector<6x4xf32>, vector<6x4xf32>, vector<6x6xf32> -> vector<6x6xf32>
    %cst_10 = arith.constant dense<0xFF800000> : vector<6xf32>
    %29 = vector.multi_reduction <maximumf>, %28, %cst_10 [1] : vector<6x6xf32> to vector<6xf32>
    %30 = vector.shape_cast %29 : vector<6xf32> to vector<6x1xf32>
    %31 = vector.broadcast %30 : vector<6x1xf32> to vector<6x6xf32>
    %32 = arith.subf %28, %31 : vector<6x6xf32>
    %33 = math.exp %32 : vector<6x6xf32>
    %cst_11 = arith.constant dense<0.000000e+00> : vector<6xf32>
    %34 = vector.multi_reduction <add>, %33, %cst_11 [1] : vector<6x6xf32> to vector<6xf32>
    %35 = vector.shape_cast %34 : vector<6xf32> to vector<6x1xf32>
    %36 = tpu.reciprocal %35 {approx = true} : vector<6x1xf32> -> vector<6x1xf32>
    %37 = vector.broadcast %36 : vector<6x1xf32> to vector<6x6xf32>
    %38 = arith.mulf %33, %37 : vector<6x6xf32>
    %cst_12 = arith.constant dense<0.000000e+00> : vector<6x4xf32>
    %39 = tpu.matmul %38, %27, %cst_12 {dimension_numbers = #tpu.dot_dimension_numbers<[1], [0], [0], [1], [0, 0, 1, 1], [], []>} : vector<6x6xf32>, vector<6x4xf32>, vector<6x4xf32> -> vector<6x4xf32>
    %c0_13 = arith.constant 0 : index
    %c0_14 = arith.constant 0 : index
    %c4 = arith.constant 4 : index
    %40 = vector.load %arg2[%c0_13, %c0_14, %c4] : memref<1x6x32xf32, #tpu.memory_space<vmem>>, vector<1x6x4xf32>
    %41 = vector.shape_cast %40 : vector<1x6x4xf32> to vector<6x4xf32>
    %42 = vector.shape_cast %39 : vector<6x4xf32> to vector<1x6x4xf32>
    tpu.vector_store %arg2[%c0_13, %c0_14, %c4], %42 {strides = array<i32>} : memref<1x6x32xf32, #tpu.memory_space<vmem>>, vector<1x6x4xf32>,
    %43 = vector.extract_strided_slice %6 {offsets = [0, 8], sizes = [6, 4], strides = [1, 1]} : vector<6x32xf32> to vector<6x4xf32>
    %44 = vector.extract_strided_slice %3 {offsets = [0, 8], sizes = [6, 4], strides = [1, 1]} : vector<6x32xf32> to vector<6x4xf32>
    %45 = vector.extract_strided_slice %4 {offsets = [0, 8], sizes = [6, 4], strides = [1, 1]} : vector<6x32xf32> to vector<6x4xf32>
    %cst_15 = arith.constant dense<0.000000e+00> : vector<6x6xf32>
    %46 = tpu.matmul %43, %44, %cst_15 {dimension_numbers = #tpu.dot_dimension_numbers<[1], [1], [0], [0], [0, 0, 1, 0], [], []>} : vector<6x4xf32>, vector<6x4xf32>, vector<6x6xf32> -> vector<6x6xf32>
    %cst_16 = arith.constant dense<0xFF800000> : vector<6xf32>
    %47 = vector.multi_reduction <maximumf>, %46, %cst_16 [1] : vector<6x6xf32> to vector<6xf32>
    %48 = vector.shape_cast %47 : vector<6xf32> to vector<6x1xf32>
    %49 = vector.broadcast %48 : vector<6x1xf32> to vector<6x6xf32>
    %50 = arith.subf %46, %49 : vector<6x6xf32>
    %51 = math.exp %50 : vector<6x6xf32>
    %cst_17 = arith.constant dense<0.000000e+00> : vector<6xf32>
    %52 = vector.multi_reduction <add>, %51, %cst_17 [1] : vector<6x6xf32> to vector<6xf32>
    %53 = vector.shape_cast %52 : vector<6xf32> to vector<6x1xf32>
    %54 = tpu.reciprocal %53 {approx = true} : vector<6x1xf32> -> vector<6x1xf32>
    %55 = vector.broadcast %54 : vector<6x1xf32> to vector<6x6xf32>
    %56 = arith.mulf %51, %55 : vector<6x6xf32>
    %cst_18 = arith.constant dense<0.000000e+00> : vector<6x4xf32>
    %57 = tpu.matmul %56, %45, %cst_18 {dimension_numbers = #tpu.dot_dimension_numbers<[1], [0], [0], [1], [0, 0, 1, 1], [], []>} : vector<6x6xf32>, vector<6x4xf32>, vector<6x4xf32> -> vector<6x4xf32>
    %c0_19 = arith.constant 0 : index
    %c0_20 = arith.constant 0 : index
    %c8 = arith.constant 8 : index
    %58 = vector.load %arg2[%c0_19, %c0_20, %c8] : memref<1x6x32xf32, #tpu.memory_space<vmem>>, vector<1x6x4xf32>
    %59 = vector.shape_cast %58 : vector<1x6x4xf32> to vector<6x4xf32>
    %60 = vector.shape_cast %57 : vector<6x4xf32> to vector<1x6x4xf32>
    tpu.vector_store %arg2[%c0_19, %c0_20, %c8], %60 {strides = array<i32>} : memref<1x6x32xf32, #tpu.memory_space<vmem>>, vector<1x6x4xf32>,
    %61 = vector.extract_strided_slice %6 {offsets = [0, 12], sizes = [6, 4], strides = [1, 1]} : vector<6x32xf32> to vector<6x4xf32>
    %62 = vector.extract_strided_slice %3 {offsets = [0, 12], sizes = [6, 4], strides = [1, 1]} : vector<6x32xf32> to vector<6x4xf32>
    %63 = vector.extract_strided_slice %4 {offsets = [0, 12], sizes = [6, 4], strides = [1, 1]} : vector<6x32xf32> to vector<6x4xf32>
    %cst_21 = arith.constant dense<0.000000e+00> : vector<6x6xf32>
    %64 = tpu.matmul %61, %62, %cst_21 {dimension_numbers = #tpu.dot_dimension_numbers<[1], [1], [0], [0], [0, 0, 1, 0], [], []>} : vector<6x4xf32>, vector<6x4xf32>, vector<6x6xf32> -> vector<6x6xf32>
    %cst_22 = arith.constant dense<0xFF800000> : vector<6xf32>
    %65 = vector.multi_reduction <maximumf>, %64, %cst_22 [1] : vector<6x6xf32> to vector<6xf32>
    %66 = vector.shape_cast %65 : vector<6xf32> to vector<6x1xf32>
    %67 = vector.broadcast %66 : vector<6x1xf32> to vector<6x6xf32>
    %68 = arith.subf %64, %67 : vector<6x6xf32>
    %69 = math.exp %68 : vector<6x6xf32>
    %cst_23 = arith.constant dense<0.000000e+00> : vector<6xf32>
    %70 = vector.multi_reduction <add>, %69, %cst_23 [1] : vector<6x6xf32> to vector<6xf32>
    %71 = vector.shape_cast %70 : vector<6xf32> to vector<6x1xf32>
    %72 = tpu.reciprocal %71 {approx = true} : vector<6x1xf32> -> vector<6x1xf32>
    %73 = vector.broadcast %72 : vector<6x1xf32> to vector<6x6xf32>
    %74 = arith.mulf %69, %73 : vector<6x6xf32>
    %cst_24 = arith.constant dense<0.000000e+00> : vector<6x4xf32>
    %75 = tpu.matmul %74, %63, %cst_24 {dimension_numbers = #tpu.dot_dimension_numbers<[1], [0], [0], [1], [0, 0, 1, 1], [], []>} : vector<6x6xf32>, vector<6x4xf32>, vector<6x4xf32> -> vector<6x4xf32>
    %c0_25 = arith.constant 0 : index
    %c0_26 = arith.constant 0 : index
    %c12 = arith.constant 12 : index
    %76 = vector.load %arg2[%c0_25, %c0_26, %c12] : memref<1x6x32xf32, #tpu.memory_space<vmem>>, vector<1x6x4xf32>
    %77 = vector.shape_cast %76 : vector<1x6x4xf32> to vector<6x4xf32>
    %78 = vector.shape_cast %75 : vector<6x4xf32> to vector<1x6x4xf32>
    tpu.vector_store %arg2[%c0_25, %c0_26, %c12], %78 {strides = array<i32>} : memref<1x6x32xf32, #tpu.memory_space<vmem>>, vector<1x6x4xf32>,
    %79 = vector.extract_strided_slice %6 {offsets = [0, 16], sizes = [6, 4], strides = [1, 1]} : vector<6x32xf32> to vector<6x4xf32>
    %80 = vector.extract_strided_slice %3 {offsets = [0, 16], sizes = [6, 4], strides = [1, 1]} : vector<6x32xf32> to vector<6x4xf32>
    %81 = vector.extract_strided_slice %4 {offsets = [0, 16], sizes = [6, 4], strides = [1, 1]} : vector<6x32xf32> to vector<6x4xf32>
    %cst_27 = arith.constant dense<0.000000e+00> : vector<6x6xf32>
    %82 = tpu.matmul %79, %80, %cst_27 {dimension_numbers = #tpu.dot_dimension_numbers<[1], [1], [0], [0], [0, 0, 1, 0], [], []>} : vector<6x4xf32>, vector<6x4xf32>, vector<6x6xf32> -> vector<6x6xf32>
    %cst_28 = arith.constant dense<0xFF800000> : vector<6xf32>
    %83 = vector.multi_reduction <maximumf>, %82, %cst_28 [1] : vector<6x6xf32> to vector<6xf32>
    %84 = vector.shape_cast %83 : vector<6xf32> to vector<6x1xf32>
    %85 = vector.broadcast %84 : vector<6x1xf32> to vector<6x6xf32>
    %86 = arith.subf %82, %85 : vector<6x6xf32>
    %87 = math.exp %86 : vector<6x6xf32>
    %cst_29 = arith.constant dense<0.000000e+00> : vector<6xf32>
    %88 = vector.multi_reduction <add>, %87, %cst_29 [1] : vector<6x6xf32> to vector<6xf32>
    %89 = vector.shape_cast %88 : vector<6xf32> to vector<6x1xf32>
    %90 = tpu.reciprocal %89 {approx = true} : vector<6x1xf32> -> vector<6x1xf32>
    %91 = vector.broadcast %90 : vector<6x1xf32> to vector<6x6xf32>
    %92 = arith.mulf %87, %91 : vector<6x6xf32>
    %cst_30 = arith.constant dense<0.000000e+00> : vector<6x4xf32>
    %93 = tpu.matmul %92, %81, %cst_30 {dimension_numbers = #tpu.dot_dimension_numbers<[1], [0], [0], [1], [0, 0, 1, 1], [], []>} : vector<6x6xf32>, vector<6x4xf32>, vector<6x4xf32> -> vector<6x4xf32>
    %c0_31 = arith.constant 0 : index
    %c0_32 = arith.constant 0 : index
    %c16 = arith.constant 16 : index
    %94 = vector.load %arg2[%c0_31, %c0_32, %c16] : memref<1x6x32xf32, #tpu.memory_space<vmem>>, vector<1x6x4xf32>
    %95 = vector.shape_cast %94 : vector<1x6x4xf32> to vector<6x4xf32>
    %96 = vector.shape_cast %93 : vector<6x4xf32> to vector<1x6x4xf32>
    tpu.vector_store %arg2[%c0_31, %c0_32, %c16], %96 {strides = array<i32>} : memref<1x6x32xf32, #tpu.memory_space<vmem>>, vector<1x6x4xf32>,
    %97 = vector.extract_strided_slice %6 {offsets = [0, 20], sizes = [6, 4], strides = [1, 1]} : vector<6x32xf32> to vector<6x4xf32>
    %98 = vector.extract_strided_slice %3 {offsets = [0, 20], sizes = [6, 4], strides = [1, 1]} : vector<6x32xf32> to vector<6x4xf32>
    %99 = vector.extract_strided_slice %4 {offsets = [0, 20], sizes = [6, 4], strides = [1, 1]} : vector<6x32xf32> to vector<6x4xf32>
    %cst_33 = arith.constant dense<0.000000e+00> : vector<6x6xf32>
    %100 = tpu.matmul %97, %98, %cst_33 {dimension_numbers = #tpu.dot_dimension_numbers<[1], [1], [0], [0], [0, 0, 1, 0], [], []>} : vector<6x4xf32>, vector<6x4xf32>, vector<6x6xf32> -> vector<6x6xf32>
    %cst_34 = arith.constant dense<0xFF800000> : vector<6xf32>
    %101 = vector.multi_reduction <maximumf>, %100, %cst_34 [1] : vector<6x6xf32> to vector<6xf32>
    %102 = vector.shape_cast %101 : vector<6xf32> to vector<6x1xf32>
    %103 = vector.broadcast %102 : vector<6x1xf32> to vector<6x6xf32>
    %104 = arith.subf %100, %103 : vector<6x6xf32>
    %105 = math.exp %104 : vector<6x6xf32>
    %cst_35 = arith.constant dense<0.000000e+00> : vector<6xf32>
    %106 = vector.multi_reduction <add>, %105, %cst_35 [1] : vector<6x6xf32> to vector<6xf32>
    %107 = vector.shape_cast %106 : vector<6xf32> to vector<6x1xf32>
    %108 = tpu.reciprocal %107 {approx = true} : vector<6x1xf32> -> vector<6x1xf32>
    %109 = vector.broadcast %108 : vector<6x1xf32> to vector<6x6xf32>
    %110 = arith.mulf %105, %109 : vector<6x6xf32>
    %cst_36 = arith.constant dense<0.000000e+00> : vector<6x4xf32>
    %111 = tpu.matmul %110, %99, %cst_36 {dimension_numbers = #tpu.dot_dimension_numbers<[1], [0], [0], [1], [0, 0, 1, 1], [], []>} : vector<6x6xf32>, vector<6x4xf32>, vector<6x4xf32> -> vector<6x4xf32>
    %c0_37 = arith.constant 0 : index
    %c0_38 = arith.constant 0 : index
    %c20 = arith.constant 20 : index
    %112 = vector.load %arg2[%c0_37, %c0_38, %c20] : memref<1x6x32xf32, #tpu.memory_space<vmem>>, vector<1x6x4xf32>
    %113 = vector.shape_cast %112 : vector<1x6x4xf32> to vector<6x4xf32>
    %114 = vector.shape_cast %111 : vector<6x4xf32> to vector<1x6x4xf32>
    tpu.vector_store %arg2[%c0_37, %c0_38, %c20], %114 {strides = array<i32>} : memref<1x6x32xf32, #tpu.memory_space<vmem>>, vector<1x6x4xf32>,
    %115 = vector.extract_strided_slice %6 {offsets = [0, 24], sizes = [6, 4], strides = [1, 1]} : vector<6x32xf32> to vector<6x4xf32>
    %116 = vector.extract_strided_slice %3 {offsets = [0, 24], sizes = [6, 4], strides = [1, 1]} : vector<6x32xf32> to vector<6x4xf32>
    %117 = vector.extract_strided_slice %4 {offsets = [0, 24], sizes = [6, 4], strides = [1, 1]} : vector<6x32xf32> to vector<6x4xf32>
    %cst_39 = arith.constant dense<0.000000e+00> : vector<6x6xf32>
    %118 = tpu.matmul %115, %116, %cst_39 {dimension_numbers = #tpu.dot_dimension_numbers<[1], [1], [0], [0], [0, 0, 1, 0], [], []>} : vector<6x4xf32>, vector<6x4xf32>, vector<6x6xf32> -> vector<6x6xf32>
    %cst_40 = arith.constant dense<0xFF800000> : vector<6xf32>
    %119 = vector.multi_reduction <maximumf>, %118, %cst_40 [1] : vector<6x6xf32> to vector<6xf32>
    %120 = vector.shape_cast %119 : vector<6xf32> to vector<6x1xf32>
    %121 = vector.broadcast %120 : vector<6x1xf32> to vector<6x6xf32>
    %122 = arith.subf %118, %121 : vector<6x6xf32>
    %123 = math.exp %122 : vector<6x6xf32>
    %cst_41 = arith.constant dense<0.000000e+00> : vector<6xf32>
    %124 = vector.multi_reduction <add>, %123, %cst_41 [1] : vector<6x6xf32> to vector<6xf32>
    %125 = vector.shape_cast %124 : vector<6xf32> to vector<6x1xf32>
    %126 = tpu.reciprocal %125 {approx = true} : vector<6x1xf32> -> vector<6x1xf32>
    %127 = vector.broadcast %126 : vector<6x1xf32> to vector<6x6xf32>
    %128 = arith.mulf %123, %127 : vector<6x6xf32>
    %cst_42 = arith.constant dense<0.000000e+00> : vector<6x4xf32>
    %129 = tpu.matmul %128, %117, %cst_42 {dimension_numbers = #tpu.dot_dimension_numbers<[1], [0], [0], [1], [0, 0, 1, 1], [], []>} : vector<6x6xf32>, vector<6x4xf32>, vector<6x4xf32> -> vector<6x4xf32>
    %c0_43 = arith.constant 0 : index
    %c0_44 = arith.constant 0 : index
    %c24 = arith.constant 24 : index
    %130 = vector.load %arg2[%c0_43, %c0_44, %c24] : memref<1x6x32xf32, #tpu.memory_space<vmem>>, vector<1x6x4xf32>
    %131 = vector.shape_cast %130 : vector<1x6x4xf32> to vector<6x4xf32>
    %132 = vector.shape_cast %129 : vector<6x4xf32> to vector<1x6x4xf32>
    tpu.vector_store %arg2[%c0_43, %c0_44, %c24], %132 {strides = array<i32>} : memref<1x6x32xf32, #tpu.memory_space<vmem>>, vector<1x6x4xf32>,
    %133 = vector.extract_strided_slice %6 {offsets = [0, 28], sizes = [6, 4], strides = [1, 1]} : vector<6x32xf32> to vector<6x4xf32>
    %134 = vector.extract_strided_slice %3 {offsets = [0, 28], sizes = [6, 4], strides = [1, 1]} : vector<6x32xf32> to vector<6x4xf32>
    %135 = vector.extract_strided_slice %4 {offsets = [0, 28], sizes = [6, 4], strides = [1, 1]} : vector<6x32xf32> to vector<6x4xf32>
    %cst_45 = arith.constant dense<0.000000e+00> : vector<6x6xf32>
    %136 = tpu.matmul %133, %134, %cst_45 {dimension_numbers = #tpu.dot_dimension_numbers<[1], [1], [0], [0], [0, 0, 1, 0], [], []>} : vector<6x4xf32>, vector<6x4xf32>, vector<6x6xf32> -> vector<6x6xf32>
    %cst_46 = arith.constant dense<0xFF800000> : vector<6xf32>
    %137 = vector.multi_reduction <maximumf>, %136, %cst_46 [1] : vector<6x6xf32> to vector<6xf32>
    %138 = vector.shape_cast %137 : vector<6xf32> to vector<6x1xf32>
    %139 = vector.broadcast %138 : vector<6x1xf32> to vector<6x6xf32>
    %140 = arith.subf %136, %139 : vector<6x6xf32>
    %141 = math.exp %140 : vector<6x6xf32>
    %cst_47 = arith.constant dense<0.000000e+00> : vector<6xf32>
    %142 = vector.multi_reduction <add>, %141, %cst_47 [1] : vector<6x6xf32> to vector<6xf32>
    %143 = vector.shape_cast %142 : vector<6xf32> to vector<6x1xf32>
    %144 = tpu.reciprocal %143 {approx = true} : vector<6x1xf32> -> vector<6x1xf32>
    %145 = vector.broadcast %144 : vector<6x1xf32> to vector<6x6xf32>
    %146 = arith.mulf %141, %145 : vector<6x6xf32>
    %cst_48 = arith.constant dense<0.000000e+00> : vector<6x4xf32>
    %147 = tpu.matmul %146, %135, %cst_48 {dimension_numbers = #tpu.dot_dimension_numbers<[1], [0], [0], [1], [0, 0, 1, 1], [], []>} : vector<6x6xf32>, vector<6x4xf32>, vector<6x4xf32> -> vector<6x4xf32>
    %c0_49 = arith.constant 0 : index
    %c0_50 = arith.constant 0 : index
    %c28 = arith.constant 28 : index
    %148 = vector.load %arg2[%c0_49, %c0_50, %c28] : memref<1x6x32xf32, #tpu.memory_space<vmem>>, vector<1x6x4xf32>
    %149 = vector.shape_cast %148 : vector<1x6x4xf32> to vector<6x4xf32>
    %150 = vector.shape_cast %147 : vector<6x4xf32> to vector<1x6x4xf32>
    tpu.vector_store %arg2[%c0_49, %c0_50, %c28], %150 {strides = array<i32>} : memref<1x6x32xf32, #tpu.memory_space<vmem>>, vector<1x6x4xf32>,
    return
  }
  func.func @transform_0(%arg0: i32) -> (i32, i32, i32) {
    %c0_i32 = arith.constant 0 : i32
    %c0_i32_0 = arith.constant 0 : i32
    %c0_i32_1 = arith.constant 0 : i32
    return %arg0, %c0_i32, %c0_i32_0 : i32, i32, i32
  }
  func.func @transform_1(%arg0: i32) -> (i32, i32, i32) {
    %c0_i32 = arith.constant 0 : i32
    %c0_i32_0 = arith.constant 0 : i32
    %c0_i32_1 = arith.constant 0 : i32
    return %arg0, %c0_i32, %c0_i32_0 : i32, i32, i32
  }
}

module attributes {stable_mosaic.version = 11 : i64} {
  func.func @_linear_add_ln_kernel(%arg0: i32, %arg1: i32, %arg2: memref<12x32xf32, #tpu.memory_space<vmem>>, %arg3: memref<32x32xf32, #tpu.memory_space<vmem>>, %arg4: memref<1x32xf32, #tpu.memory_space<vmem>>, %arg5: memref<12x32xf32, #tpu.memory_space<vmem>>, %arg6: memref<1x32xf32, #tpu.memory_space<vmem>>, %arg7: memref<1x32xf32, #tpu.memory_space<vmem>>, %arg8: memref<12x32xf32, #tpu.memory_space<vmem>>, %arg9: memref<12x32xf32, #tpu.memory_space<vmem>>) attributes {dimension_semantics = [#tpu.dimension_semantics<parallel>, #tpu.dimension_semantics<arbitrary>], iteration_bounds = array<i64: 1, 1>, scalar_prefetch = 0 : i64, scratch_operands = 1 : i64, tpu.core_type = #tpu.core_type<tc>, window_params = [{transform_indices = @transform_0, window_bounds = array<i64: 12, 32>}, {transform_indices = @transform_1, window_bounds = array<i64: 32, 32>}, {pipeline_mode = #tpu.pipeline_mode<synchronous>, transform_indices = @transform_2, window_bounds = array<i64: 1, 32>}, {transform_indices = @transform_3, window_bounds = array<i64: 12, 32>}, {pipeline_mode = #tpu.pipeline_mode<synchronous>, transform_indices = @transform_4, window_bounds = array<i64: 1, 32>}, {pipeline_mode = #tpu.pipeline_mode<synchronous>, transform_indices = @transform_5, window_bounds = array<i64: 1, 32>}, {transform_indices = @transform_6, window_bounds = array<i64: 12, 32>}]} {
    %c0_i32 = arith.constant 0 : i32
    %0 = arith.cmpi eq, %arg1, %c0_i32 : i32
    %1 = arith.extui %0 : i1 to i32
    %c0_i32_0 = arith.constant 0 : i32
    %2 = arith.cmpi ne, %1, %c0_i32_0 : i32
    scf.if %2 {
      %cst_10 = arith.constant 0.000000e+00 : f32
      %12 = vector.broadcast %cst_10 : f32 to vector<12x32xf32>
      %c0_11 = arith.constant 0 : index
      %c0_12 = arith.constant 0 : index
      %13 = vector.load %arg9[%c0_11, %c0_12] : memref<12x32xf32, #tpu.memory_space<vmem>>, vector<12x32xf32>
      tpu.vector_store %arg9[%c0_11, %c0_12], %12 {strides = array<i32>} : memref<12x32xf32, #tpu.memory_space<vmem>>, vector<12x32xf32>,
    } else {
    }
    %c0 = arith.constant 0 : index
    %c0_1 = arith.constant 0 : index
    %3 = vector.load %arg9[%c0, %c0_1] : memref<12x32xf32, #tpu.memory_space<vmem>>, vector<12x32xf32>
    %c0_2 = arith.constant 0 : index
    %c0_3 = arith.constant 0 : index
    %4 = vector.load %arg2[%c0_2, %c0_3] : memref<12x32xf32, #tpu.memory_space<vmem>>, vector<12x32xf32>
    %c0_4 = arith.constant 0 : index
    %c0_5 = arith.constant 0 : index
    %5 = vector.load %arg3[%c0_4, %c0_5] : memref<32x32xf32, #tpu.memory_space<vmem>>, vector<32x32xf32>
    %cst = arith.constant dense<0.000000e+00> : vector<12x32xf32>
    %6 = tpu.matmul %4, %5, %cst {dimension_numbers = #tpu.dot_dimension_numbers<[1], [0], [0], [1], [0, 0, 1, 1], [], []>} : vector<12x32xf32>, vector<32x32xf32>, vector<12x32xf32> -> vector<12x32xf32>
    %7 = arith.addf %3, %6 : vector<12x32xf32>
    %c0_6 = arith.constant 0 : index
    %c0_7 = arith.constant 0 : index
    %8 = vector.load %arg9[%c0_6, %c0_7] : memref<12x32xf32, #tpu.memory_space<vmem>>, vector<12x32xf32>
    tpu.vector_store %arg9[%c0_6, %c0_7], %7 {strides = array<i32>} : memref<12x32xf32, #tpu.memory_space<vmem>>, vector<12x32xf32>,
    %c0_i32_8 = arith.constant 0 : i32
    %9 = arith.cmpi eq, %arg1, %c0_i32_8 : i32
    %10 = arith.extui %9 : i1 to i32
    %c0_i32_9 = arith.constant 0 : i32
    %11 = arith.cmpi ne, %10, %c0_i32_9 : i32
    scf.if %11 {
      %c0_10 = arith.constant 0 : index
      %c0_11 = arith.constant 0 : index
      %12 = vector.load %arg9[%c0_10, %c0_11] : memref<12x32xf32, #tpu.memory_space<vmem>>, vector<12x32xf32>
      %c0_12 = arith.constant 0 : index
      %c0_13 = arith.constant 0 : index
      %13 = vector.load %arg4[%c0_12, %c0_13] : memref<1x32xf32, #tpu.memory_space<vmem>>, vector<1x32xf32>
      %14 = vector.broadcast %13 : vector<1x32xf32> to vector<12x32xf32>
      %15 = arith.addf %12, %14 : vector<12x32xf32>
      %c0_14 = arith.constant 0 : index
      %c0_15 = arith.constant 0 : index
      %16 = vector.load %arg5[%c0_14, %c0_15] : memref<12x32xf32, #tpu.memory_space<vmem>>, vector<12x32xf32>
      %17 = arith.addf %15, %16 : vector<12x32xf32>
      %cst_16 = arith.constant dense<0.000000e+00> : vector<12xf32>
      %18 = vector.multi_reduction <add>, %17, %cst_16 [1] : vector<12x32xf32> to vector<12xf32>
      %19 = vector.shape_cast %18 : vector<12xf32> to vector<12x1xf32>
      %cst_17 = arith.constant 3.200000e+01 : f32
      %20 = vector.broadcast %cst_17 : f32 to vector<12x1xf32>
      %21 = arith.divf %19, %20 : vector<12x1xf32>
      %22 = vector.broadcast %21 : vector<12x1xf32> to vector<12x32xf32>
      %23 = arith.subf %17, %22 : vector<12x32xf32>
      %24 = arith.mulf %23, %23 : vector<12x32xf32>
      %cst_18 = arith.constant dense<0.000000e+00> : vector<12xf32>
      %25 = vector.multi_reduction <add>, %24, %cst_18 [1] : vector<12x32xf32> to vector<12xf32>
      %26 = vector.shape_cast %25 : vector<12xf32> to vector<12x1xf32>
      %cst_19 = arith.constant 3.200000e+01 : f32
      %27 = vector.broadcast %cst_19 : f32 to vector<12x1xf32>
      %28 = arith.divf %26, %27 : vector<12x1xf32>
      %cst_20 = arith.constant 9.99999974E-6 : f32
      %29 = vector.broadcast %cst_20 : f32 to vector<12x1xf32>
      %30 = arith.addf %28, %29 : vector<12x1xf32>
      %31 = math.rsqrt %30 : vector<12x1xf32>
      %32 = vector.broadcast %31 : vector<12x1xf32> to vector<12x32xf32>
      %33 = arith.mulf %23, %32 : vector<12x32xf32>
      %c0_21 = arith.constant 0 : index
      %c0_22 = arith.constant 0 : index
      %34 = vector.load %arg6[%c0_21, %c0_22] : memref<1x32xf32, #tpu.memory_space<vmem>>, vector<1x32xf32>
      %35 = vector.broadcast %34 : vector<1x32xf32> to vector<12x32xf32>
      %36 = arith.mulf %33, %35 : vector<12x32xf32>
      %c0_23 = arith.constant 0 : index
      %c0_24 = arith.constant 0 : index
      %37 = vector.load %arg7[%c0_23, %c0_24] : memref<1x32xf32, #tpu.memory_space<vmem>>, vector<1x32xf32>
      %38 = vector.broadcast %37 : vector<1x32xf32> to vector<12x32xf32>
      %39 = arith.addf %36, %38 : vector<12x32xf32>
      %c0_25 = arith.constant 0 : index
      %c0_26 = arith.constant 0 : index
      %40 = vector.load %arg8[%c0_25, %c0_26] : memref<12x32xf32, #tpu.memory_space<vmem>>, vector<12x32xf32>
      tpu.vector_store %arg8[%c0_25, %c0_26], %39 {strides = array<i32>} : memref<12x32xf32, #tpu.memory_space<vmem>>, vector<12x32xf32>,
    } else {
    }
    return
  }
  func.func @transform_0(%arg0: i32, %arg1: i32) -> (i32, i32) {
    %c0_i32 = arith.constant 0 : i32
    return %arg0, %arg1 : i32, i32
  }
  func.func @transform_1(%arg0: i32, %arg1: i32) -> (i32, i32) {
    %c0_i32 = arith.constant 0 : i32
    %c0_i32_0 = arith.constant 0 : i32
    return %arg1, %c0_i32 : i32, i32
  }
  func.func @transform_2(%arg0: i32, %arg1: i32) -> (i32, i32) {
    %c0_i32 = arith.constant 0 : i32
    %c0_i32_0 = arith.constant 0 : i32
    %c0_i32_1 = arith.constant 0 : i32
    return %c0_i32, %c0_i32_0 : i32, i32
  }
  func.func @transform_3(%arg0: i32, %arg1: i32) -> (i32, i32) {
    %c0_i32 = arith.constant 0 : i32
    %c0_i32_0 = arith.constant 0 : i32
    return %arg0, %c0_i32 : i32, i32
  }
  func.func @transform_4(%arg0: i32, %arg1: i32) -> (i32, i32) {
    %c0_i32 = arith.constant 0 : i32
    %c0_i32_0 = arith.constant 0 : i32
    %c0_i32_1 = arith.constant 0 : i32
    return %c0_i32, %c0_i32_0 : i32, i32
  }
  func.func @transform_5(%arg0: i32, %arg1: i32) -> (i32, i32) {
    %c0_i32 = arith.constant 0 : i32
    %c0_i32_0 = arith.constant 0 : i32
    %c0_i32_1 = arith.constant 0 : i32
    return %c0_i32, %c0_i32_0 : i32, i32
  }
  func.func @transform_6(%arg0: i32, %arg1: i32) -> (i32, i32) {
    %c0_i32 = arith.constant 0 : i32
    %c0_i32_0 = arith.constant 0 : i32
    return %arg0, %c0_i32 : i32, i32
  }
}

module attributes {stable_mosaic.version = 11 : i64} {
  func.func @_linear_kernel(%arg0: i32, %arg1: i32, %arg2: i32, %arg3: memref<12x32xf32, #tpu.memory_space<vmem>>, %arg4: memref<32x32xf32, #tpu.memory_space<vmem>>, %arg5: memref<1x32xf32, #tpu.memory_space<vmem>>, %arg6: memref<12x32xf32, #tpu.memory_space<vmem>>, %arg7: memref<12x32xf32, #tpu.memory_space<vmem>>) attributes {dimension_semantics = [#tpu.dimension_semantics<parallel>, #tpu.dimension_semantics<parallel>, #tpu.dimension_semantics<arbitrary>], iteration_bounds = array<i64: 1, 1, 1>, scalar_prefetch = 0 : i64, scratch_operands = 1 : i64, tpu.core_type = #tpu.core_type<tc>, window_params = [{transform_indices = @transform_0, window_bounds = array<i64: 12, 32>}, {transform_indices = @transform_1, window_bounds = array<i64: 32, 32>}, {transform_indices = @transform_2, window_bounds = array<i64: 1, 32>}, {transform_indices = @transform_3, window_bounds = array<i64: 12, 32>}]} {
    %c0_i32 = arith.constant 0 : i32
    %0 = arith.cmpi eq, %arg2, %c0_i32 : i32
    %1 = arith.extui %0 : i1 to i32
    %c0_i32_0 = arith.constant 0 : i32
    %2 = arith.cmpi ne, %1, %c0_i32_0 : i32
    scf.if %2 {
      %cst_10 = arith.constant 0.000000e+00 : f32
      %12 = vector.broadcast %cst_10 : f32 to vector<12x32xf32>
      %c0_11 = arith.constant 0 : index
      %c0_12 = arith.constant 0 : index
      %13 = vector.load %arg7[%c0_11, %c0_12] : memref<12x32xf32, #tpu.memory_space<vmem>>, vector<12x32xf32>
      tpu.vector_store %arg7[%c0_11, %c0_12], %12 {strides = array<i32>} : memref<12x32xf32, #tpu.memory_space<vmem>>, vector<12x32xf32>,
    } else {
    }
    %c0 = arith.constant 0 : index
    %c0_1 = arith.constant 0 : index
    %3 = vector.load %arg7[%c0, %c0_1] : memref<12x32xf32, #tpu.memory_space<vmem>>, vector<12x32xf32>
    %c0_2 = arith.constant 0 : index
    %c0_3 = arith.constant 0 : index
    %4 = vector.load %arg3[%c0_2, %c0_3] : memref<12x32xf32, #tpu.memory_space<vmem>>, vector<12x32xf32>
    %c0_4 = arith.constant 0 : index
    %c0_5 = arith.constant 0 : index
    %5 = vector.load %arg4[%c0_4, %c0_5] : memref<32x32xf32, #tpu.memory_space<vmem>>, vector<32x32xf32>
    %cst = arith.constant dense<0.000000e+00> : vector<12x32xf32>
    %6 = tpu.matmul %4, %5, %cst {dimension_numbers = #tpu.dot_dimension_numbers<[1], [0], [0], [1], [0, 0, 1, 1], [], []>} : vector<12x32xf32>, vector<32x32xf32>, vector<12x32xf32> -> vector<12x32xf32>
    %7 = arith.addf %3, %6 : vector<12x32xf32>
    %c0_6 = arith.constant 0 : index
    %c0_7 = arith.constant 0 : index
    %8 = vector.load %arg7[%c0_6, %c0_7] : memref<12x32xf32, #tpu.memory_space<vmem>>, vector<12x32xf32>
    tpu.vector_store %arg7[%c0_6, %c0_7], %7 {strides = array<i32>} : memref<12x32xf32, #tpu.memory_space<vmem>>, vector<12x32xf32>,
    %c0_i32_8 = arith.constant 0 : i32
    %9 = arith.cmpi eq, %arg2, %c0_i32_8 : i32
    %10 = arith.extui %9 : i1 to i32
    %c0_i32_9 = arith.constant 0 : i32
    %11 = arith.cmpi ne, %10, %c0_i32_9 : i32
    scf.if %11 {
      %c0_10 = arith.constant 0 : index
      %c0_11 = arith.constant 0 : index
      %12 = vector.load %arg7[%c0_10, %c0_11] : memref<12x32xf32, #tpu.memory_space<vmem>>, vector<12x32xf32>
      %c0_12 = arith.constant 0 : index
      %c0_13 = arith.constant 0 : index
      %13 = vector.load %arg5[%c0_12, %c0_13] : memref<1x32xf32, #tpu.memory_space<vmem>>, vector<1x32xf32>
      %14 = vector.broadcast %13 : vector<1x32xf32> to vector<12x32xf32>
      %15 = arith.addf %12, %14 : vector<12x32xf32>
      %c0_14 = arith.constant 0 : index
      %c0_15 = arith.constant 0 : index
      %16 = vector.load %arg6[%c0_14, %c0_15] : memref<12x32xf32, #tpu.memory_space<vmem>>, vector<12x32xf32>
      tpu.vector_store %arg6[%c0_14, %c0_15], %15 {strides = array<i32>} : memref<12x32xf32, #tpu.memory_space<vmem>>, vector<12x32xf32>,
    } else {
    }
    return
  }
  func.func @transform_0(%arg0: i32, %arg1: i32, %arg2: i32) -> (i32, i32) {
    %c0_i32 = arith.constant 0 : i32
    return %arg0, %arg2 : i32, i32
  }
  func.func @transform_1(%arg0: i32, %arg1: i32, %arg2: i32) -> (i32, i32) {
    %c0_i32 = arith.constant 0 : i32
    return %arg2, %arg1 : i32, i32
  }
  func.func @transform_2(%arg0: i32, %arg1: i32, %arg2: i32) -> (i32, i32) {
    %c0_i32 = arith.constant 0 : i32
    %c0_i32_0 = arith.constant 0 : i32
    return %c0_i32, %arg1 : i32, i32
  }
  func.func @transform_3(%arg0: i32, %arg1: i32, %arg2: i32) -> (i32, i32) {
    %c0_i32 = arith.constant 0 : i32
    return %arg0, %arg1 : i32, i32
  }
}

module attributes {stable_mosaic.version = 11 : i64} {
  func.func @_cross_attn_kernel(%arg0: i32, %arg1: memref<1x6x32xf32, #tpu.memory_space<vmem>>, %arg2: memref<1x8x64xf32, #tpu.memory_space<vmem>>, %arg3: memref<1x6x32xf32, #tpu.memory_space<vmem>>) attributes {dimension_semantics = [#tpu.dimension_semantics<parallel>], iteration_bounds = array<i64: 2>, scalar_prefetch = 0 : i64, scratch_operands = 0 : i64, tpu.core_type = #tpu.core_type<tc>, window_params = [{transform_indices = @transform_0, window_bounds = array<i64: 1, 6, 32>}, {transform_indices = @transform_1, window_bounds = array<i64: 1, 8, 64>}, {transform_indices = @transform_2, window_bounds = array<i64: 1, 6, 32>}]} {
    %c0 = arith.constant 0 : index
    %c0_0 = arith.constant 0 : index
    %c0_1 = arith.constant 0 : index
    %0 = vector.load %arg1[%c0, %c0_0, %c0_1] : memref<1x6x32xf32, #tpu.memory_space<vmem>>, vector<1x6x32xf32>
    %1 = vector.shape_cast %0 : vector<1x6x32xf32> to vector<6x32xf32>
    %c0_2 = arith.constant 0 : index
    %c0_3 = arith.constant 0 : index
    %c0_4 = arith.constant 0 : index
    %2 = vector.load %arg2[%c0_2, %c0_3, %c0_4] : memref<1x8x64xf32, #tpu.memory_space<vmem>>, vector<1x8x64xf32>
    %3 = vector.shape_cast %2 : vector<1x8x64xf32> to vector<8x64xf32>
    %4 = vector.extract_strided_slice %3 {offsets = [0, 0], sizes = [8, 32], strides = [1, 1]} : vector<8x64xf32> to vector<8x32xf32>
    %5 = vector.extract_strided_slice %3 {offsets = [0, 32], sizes = [8, 32], strides = [1, 1]} : vector<8x64xf32> to vector<8x32xf32>
    %cst = arith.constant 5.000000e-01 : f32
    %6 = vector.broadcast %cst : f32 to vector<6x32xf32>
    %7 = arith.mulf %1, %6 : vector<6x32xf32>
    %8 = vector.extract_strided_slice %7 {offsets = [0, 0], sizes = [6, 4], strides = [1, 1]} : vector<6x32xf32> to vector<6x4xf32>
    %9 = vector.extract_strided_slice %4 {offsets = [0, 0], sizes = [8, 4], strides = [1, 1]} : vector<8x32xf32> to vector<8x4xf32>
    %10 = vector.extract_strided_slice %5 {offsets = [0, 0], sizes = [8, 4], strides = [1, 1]} : vector<8x32xf32> to vector<8x4xf32>
    %cst_5 = arith.constant dense<0.000000e+00> : vector<6x8xf32>
    %11 = tpu.matmul %8, %9, %cst_5 {dimension_numbers = #tpu.dot_dimension_numbers<[1], [1], [0], [0], [0, 0, 1, 0], [], []>} : vector<6x4xf32>, vector<8x4xf32>, vector<6x8xf32> -> vector<6x8xf32>
    %cst_6 = arith.constant dense<0xFF800000> : vector<6xf32>
    %12 = vector.multi_reduction <maximumf>, %11, %cst_6 [1] : vector<6x8xf32> to vector<6xf32>
    %13 = vector.shape_cast %12 : vector<6xf32> to vector<6x1xf32>
    %14 = vector.broadcast %13 : vector<6x1xf32> to vector<6x8xf32>
    %15 = arith.subf %11, %14 : vector<6x8xf32>
    %16 = math.exp %15 : vector<6x8xf32>
    %cst_7 = arith.constant dense<0.000000e+00> : vector<6xf32>
    %17 = vector.multi_reduction <add>, %16, %cst_7 [1] : vector<6x8xf32> to vector<6xf32>
    %18 = vector.shape_cast %17 : vector<6xf32> to vector<6x1xf32>
    %19 = tpu.reciprocal %18 {approx = true} : vector<6x1xf32> -> vector<6x1xf32>
    %20 = vector.broadcast %19 : vector<6x1xf32> to vector<6x8xf32>
    %21 = arith.mulf %16, %20 : vector<6x8xf32>
    %cst_8 = arith.constant dense<0.000000e+00> : vector<6x4xf32>
    %22 = tpu.matmul %21, %10, %cst_8 {dimension_numbers = #tpu.dot_dimension_numbers<[1], [0], [0], [1], [0, 0, 1, 1], [], []>} : vector<6x8xf32>, vector<8x4xf32>, vector<6x4xf32> -> vector<6x4xf32>
    %c0_9 = arith.constant 0 : index
    %c0_10 = arith.constant 0 : index
    %c0_11 = arith.constant 0 : index
    %23 = vector.load %arg3[%c0_9, %c0_10, %c0_11] : memref<1x6x32xf32, #tpu.memory_space<vmem>>, vector<1x6x4xf32>
    %24 = vector.shape_cast %23 : vector<1x6x4xf32> to vector<6x4xf32>
    %25 = vector.shape_cast %22 : vector<6x4xf32> to vector<1x6x4xf32>
    tpu.vector_store %arg3[%c0_9, %c0_10, %c0_11], %25 {strides = array<i32>} : memref<1x6x32xf32, #tpu.memory_space<vmem>>, vector<1x6x4xf32>,
    %26 = vector.extract_strided_slice %7 {offsets = [0, 4], sizes = [6, 4], strides = [1, 1]} : vector<6x32xf32> to vector<6x4xf32>
    %27 = vector.extract_strided_slice %4 {offsets = [0, 4], sizes = [8, 4], strides = [1, 1]} : vector<8x32xf32> to vector<8x4xf32>
    %28 = vector.extract_strided_slice %5 {offsets = [0, 4], sizes = [8, 4], strides = [1, 1]} : vector<8x32xf32> to vector<8x4xf32>
    %cst_12 = arith.constant dense<0.000000e+00> : vector<6x8xf32>
    %29 = tpu.matmul %26, %27, %cst_12 {dimension_numbers = #tpu.dot_dimension_numbers<[1], [1], [0], [0], [0, 0, 1, 0], [], []>} : vector<6x4xf32>, vector<8x4xf32>, vector<6x8xf32> -> vector<6x8xf32>
    %cst_13 = arith.constant dense<0xFF800000> : vector<6xf32>
    %30 = vector.multi_reduction <maximumf>, %29, %cst_13 [1] : vector<6x8xf32> to vector<6xf32>
    %31 = vector.shape_cast %30 : vector<6xf32> to vector<6x1xf32>
    %32 = vector.broadcast %31 : vector<6x1xf32> to vector<6x8xf32>
    %33 = arith.subf %29, %32 : vector<6x8xf32>
    %34 = math.exp %33 : vector<6x8xf32>
    %cst_14 = arith.constant dense<0.000000e+00> : vector<6xf32>
    %35 = vector.multi_reduction <add>, %34, %cst_14 [1] : vector<6x8xf32> to vector<6xf32>
    %36 = vector.shape_cast %35 : vector<6xf32> to vector<6x1xf32>
    %37 = tpu.reciprocal %36 {approx = true} : vector<6x1xf32> -> vector<6x1xf32>
    %38 = vector.broadcast %37 : vector<6x1xf32> to vector<6x8xf32>
    %39 = arith.mulf %34, %38 : vector<6x8xf32>
    %cst_15 = arith.constant dense<0.000000e+00> : vector<6x4xf32>
    %40 = tpu.matmul %39, %28, %cst_15 {dimension_numbers = #tpu.dot_dimension_numbers<[1], [0], [0], [1], [0, 0, 1, 1], [], []>} : vector<6x8xf32>, vector<8x4xf32>, vector<6x4xf32> -> vector<6x4xf32>
    %c0_16 = arith.constant 0 : index
    %c0_17 = arith.constant 0 : index
    %c4 = arith.constant 4 : index
    %41 = vector.load %arg3[%c0_16, %c0_17, %c4] : memref<1x6x32xf32, #tpu.memory_space<vmem>>, vector<1x6x4xf32>
    %42 = vector.shape_cast %41 : vector<1x6x4xf32> to vector<6x4xf32>
    %43 = vector.shape_cast %40 : vector<6x4xf32> to vector<1x6x4xf32>
    tpu.vector_store %arg3[%c0_16, %c0_17, %c4], %43 {strides = array<i32>} : memref<1x6x32xf32, #tpu.memory_space<vmem>>, vector<1x6x4xf32>,
    %44 = vector.extract_strided_slice %7 {offsets = [0, 8], sizes = [6, 4], strides = [1, 1]} : vector<6x32xf32> to vector<6x4xf32>
    %45 = vector.extract_strided_slice %4 {offsets = [0, 8], sizes = [8, 4], strides = [1, 1]} : vector<8x32xf32> to vector<8x4xf32>
    %46 = vector.extract_strided_slice %5 {offsets = [0, 8], sizes = [8, 4], strides = [1, 1]} : vector<8x32xf32> to vector<8x4xf32>
    %cst_18 = arith.constant dense<0.000000e+00> : vector<6x8xf32>
    %47 = tpu.matmul %44, %45, %cst_18 {dimension_numbers = #tpu.dot_dimension_numbers<[1], [1], [0], [0], [0, 0, 1, 0], [], []>} : vector<6x4xf32>, vector<8x4xf32>, vector<6x8xf32> -> vector<6x8xf32>
    %cst_19 = arith.constant dense<0xFF800000> : vector<6xf32>
    %48 = vector.multi_reduction <maximumf>, %47, %cst_19 [1] : vector<6x8xf32> to vector<6xf32>
    %49 = vector.shape_cast %48 : vector<6xf32> to vector<6x1xf32>
    %50 = vector.broadcast %49 : vector<6x1xf32> to vector<6x8xf32>
    %51 = arith.subf %47, %50 : vector<6x8xf32>
    %52 = math.exp %51 : vector<6x8xf32>
    %cst_20 = arith.constant dense<0.000000e+00> : vector<6xf32>
    %53 = vector.multi_reduction <add>, %52, %cst_20 [1] : vector<6x8xf32> to vector<6xf32>
    %54 = vector.shape_cast %53 : vector<6xf32> to vector<6x1xf32>
    %55 = tpu.reciprocal %54 {approx = true} : vector<6x1xf32> -> vector<6x1xf32>
    %56 = vector.broadcast %55 : vector<6x1xf32> to vector<6x8xf32>
    %57 = arith.mulf %52, %56 : vector<6x8xf32>
    %cst_21 = arith.constant dense<0.000000e+00> : vector<6x4xf32>
    %58 = tpu.matmul %57, %46, %cst_21 {dimension_numbers = #tpu.dot_dimension_numbers<[1], [0], [0], [1], [0, 0, 1, 1], [], []>} : vector<6x8xf32>, vector<8x4xf32>, vector<6x4xf32> -> vector<6x4xf32>
    %c0_22 = arith.constant 0 : index
    %c0_23 = arith.constant 0 : index
    %c8 = arith.constant 8 : index
    %59 = vector.load %arg3[%c0_22, %c0_23, %c8] : memref<1x6x32xf32, #tpu.memory_space<vmem>>, vector<1x6x4xf32>
    %60 = vector.shape_cast %59 : vector<1x6x4xf32> to vector<6x4xf32>
    %61 = vector.shape_cast %58 : vector<6x4xf32> to vector<1x6x4xf32>
    tpu.vector_store %arg3[%c0_22, %c0_23, %c8], %61 {strides = array<i32>} : memref<1x6x32xf32, #tpu.memory_space<vmem>>, vector<1x6x4xf32>,
    %62 = vector.extract_strided_slice %7 {offsets = [0, 12], sizes = [6, 4], strides = [1, 1]} : vector<6x32xf32> to vector<6x4xf32>
    %63 = vector.extract_strided_slice %4 {offsets = [0, 12], sizes = [8, 4], strides = [1, 1]} : vector<8x32xf32> to vector<8x4xf32>
    %64 = vector.extract_strided_slice %5 {offsets = [0, 12], sizes = [8, 4], strides = [1, 1]} : vector<8x32xf32> to vector<8x4xf32>
    %cst_24 = arith.constant dense<0.000000e+00> : vector<6x8xf32>
    %65 = tpu.matmul %62, %63, %cst_24 {dimension_numbers = #tpu.dot_dimension_numbers<[1], [1], [0], [0], [0, 0, 1, 0], [], []>} : vector<6x4xf32>, vector<8x4xf32>, vector<6x8xf32> -> vector<6x8xf32>
    %cst_25 = arith.constant dense<0xFF800000> : vector<6xf32>
    %66 = vector.multi_reduction <maximumf>, %65, %cst_25 [1] : vector<6x8xf32> to vector<6xf32>
    %67 = vector.shape_cast %66 : vector<6xf32> to vector<6x1xf32>
    %68 = vector.broadcast %67 : vector<6x1xf32> to vector<6x8xf32>
    %69 = arith.subf %65, %68 : vector<6x8xf32>
    %70 = math.exp %69 : vector<6x8xf32>
    %cst_26 = arith.constant dense<0.000000e+00> : vector<6xf32>
    %71 = vector.multi_reduction <add>, %70, %cst_26 [1] : vector<6x8xf32> to vector<6xf32>
    %72 = vector.shape_cast %71 : vector<6xf32> to vector<6x1xf32>
    %73 = tpu.reciprocal %72 {approx = true} : vector<6x1xf32> -> vector<6x1xf32>
    %74 = vector.broadcast %73 : vector<6x1xf32> to vector<6x8xf32>
    %75 = arith.mulf %70, %74 : vector<6x8xf32>
    %cst_27 = arith.constant dense<0.000000e+00> : vector<6x4xf32>
    %76 = tpu.matmul %75, %64, %cst_27 {dimension_numbers = #tpu.dot_dimension_numbers<[1], [0], [0], [1], [0, 0, 1, 1], [], []>} : vector<6x8xf32>, vector<8x4xf32>, vector<6x4xf32> -> vector<6x4xf32>
    %c0_28 = arith.constant 0 : index
    %c0_29 = arith.constant 0 : index
    %c12 = arith.constant 12 : index
    %77 = vector.load %arg3[%c0_28, %c0_29, %c12] : memref<1x6x32xf32, #tpu.memory_space<vmem>>, vector<1x6x4xf32>
    %78 = vector.shape_cast %77 : vector<1x6x4xf32> to vector<6x4xf32>
    %79 = vector.shape_cast %76 : vector<6x4xf32> to vector<1x6x4xf32>
    tpu.vector_store %arg3[%c0_28, %c0_29, %c12], %79 {strides = array<i32>} : memref<1x6x32xf32, #tpu.memory_space<vmem>>, vector<1x6x4xf32>,
    %80 = vector.extract_strided_slice %7 {offsets = [0, 16], sizes = [6, 4], strides = [1, 1]} : vector<6x32xf32> to vector<6x4xf32>
    %81 = vector.extract_strided_slice %4 {offsets = [0, 16], sizes = [8, 4], strides = [1, 1]} : vector<8x32xf32> to vector<8x4xf32>
    %82 = vector.extract_strided_slice %5 {offsets = [0, 16], sizes = [8, 4], strides = [1, 1]} : vector<8x32xf32> to vector<8x4xf32>
    %cst_30 = arith.constant dense<0.000000e+00> : vector<6x8xf32>
    %83 = tpu.matmul %80, %81, %cst_30 {dimension_numbers = #tpu.dot_dimension_numbers<[1], [1], [0], [0], [0, 0, 1, 0], [], []>} : vector<6x4xf32>, vector<8x4xf32>, vector<6x8xf32> -> vector<6x8xf32>
    %cst_31 = arith.constant dense<0xFF800000> : vector<6xf32>
    %84 = vector.multi_reduction <maximumf>, %83, %cst_31 [1] : vector<6x8xf32> to vector<6xf32>
    %85 = vector.shape_cast %84 : vector<6xf32> to vector<6x1xf32>
    %86 = vector.broadcast %85 : vector<6x1xf32> to vector<6x8xf32>
    %87 = arith.subf %83, %86 : vector<6x8xf32>
    %88 = math.exp %87 : vector<6x8xf32>
    %cst_32 = arith.constant dense<0.000000e+00> : vector<6xf32>
    %89 = vector.multi_reduction <add>, %88, %cst_32 [1] : vector<6x8xf32> to vector<6xf32>
    %90 = vector.shape_cast %89 : vector<6xf32> to vector<6x1xf32>
    %91 = tpu.reciprocal %90 {approx = true} : vector<6x1xf32> -> vector<6x1xf32>
    %92 = vector.broadcast %91 : vector<6x1xf32> to vector<6x8xf32>
    %93 = arith.mulf %88, %92 : vector<6x8xf32>
    %cst_33 = arith.constant dense<0.000000e+00> : vector<6x4xf32>
    %94 = tpu.matmul %93, %82, %cst_33 {dimension_numbers = #tpu.dot_dimension_numbers<[1], [0], [0], [1], [0, 0, 1, 1], [], []>} : vector<6x8xf32>, vector<8x4xf32>, vector<6x4xf32> -> vector<6x4xf32>
    %c0_34 = arith.constant 0 : index
    %c0_35 = arith.constant 0 : index
    %c16 = arith.constant 16 : index
    %95 = vector.load %arg3[%c0_34, %c0_35, %c16] : memref<1x6x32xf32, #tpu.memory_space<vmem>>, vector<1x6x4xf32>
    %96 = vector.shape_cast %95 : vector<1x6x4xf32> to vector<6x4xf32>
    %97 = vector.shape_cast %94 : vector<6x4xf32> to vector<1x6x4xf32>
    tpu.vector_store %arg3[%c0_34, %c0_35, %c16], %97 {strides = array<i32>} : memref<1x6x32xf32, #tpu.memory_space<vmem>>, vector<1x6x4xf32>,
    %98 = vector.extract_strided_slice %7 {offsets = [0, 20], sizes = [6, 4], strides = [1, 1]} : vector<6x32xf32> to vector<6x4xf32>
    %99 = vector.extract_strided_slice %4 {offsets = [0, 20], sizes = [8, 4], strides = [1, 1]} : vector<8x32xf32> to vector<8x4xf32>
    %100 = vector.extract_strided_slice %5 {offsets = [0, 20], sizes = [8, 4], strides = [1, 1]} : vector<8x32xf32> to vector<8x4xf32>
    %cst_36 = arith.constant dense<0.000000e+00> : vector<6x8xf32>
    %101 = tpu.matmul %98, %99, %cst_36 {dimension_numbers = #tpu.dot_dimension_numbers<[1], [1], [0], [0], [0, 0, 1, 0], [], []>} : vector<6x4xf32>, vector<8x4xf32>, vector<6x8xf32> -> vector<6x8xf32>
    %cst_37 = arith.constant dense<0xFF800000> : vector<6xf32>
    %102 = vector.multi_reduction <maximumf>, %101, %cst_37 [1] : vector<6x8xf32> to vector<6xf32>
    %103 = vector.shape_cast %102 : vector<6xf32> to vector<6x1xf32>
    %104 = vector.broadcast %103 : vector<6x1xf32> to vector<6x8xf32>
    %105 = arith.subf %101, %104 : vector<6x8xf32>
    %106 = math.exp %105 : vector<6x8xf32>
    %cst_38 = arith.constant dense<0.000000e+00> : vector<6xf32>
    %107 = vector.multi_reduction <add>, %106, %cst_38 [1] : vector<6x8xf32> to vector<6xf32>
    %108 = vector.shape_cast %107 : vector<6xf32> to vector<6x1xf32>
    %109 = tpu.reciprocal %108 {approx = true} : vector<6x1xf32> -> vector<6x1xf32>
    %110 = vector.broadcast %109 : vector<6x1xf32> to vector<6x8xf32>
    %111 = arith.mulf %106, %110 : vector<6x8xf32>
    %cst_39 = arith.constant dense<0.000000e+00> : vector<6x4xf32>
    %112 = tpu.matmul %111, %100, %cst_39 {dimension_numbers = #tpu.dot_dimension_numbers<[1], [0], [0], [1], [0, 0, 1, 1], [], []>} : vector<6x8xf32>, vector<8x4xf32>, vector<6x4xf32> -> vector<6x4xf32>
    %c0_40 = arith.constant 0 : index
    %c0_41 = arith.constant 0 : index
    %c20 = arith.constant 20 : index
    %113 = vector.load %arg3[%c0_40, %c0_41, %c20] : memref<1x6x32xf32, #tpu.memory_space<vmem>>, vector<1x6x4xf32>
    %114 = vector.shape_cast %113 : vector<1x6x4xf32> to vector<6x4xf32>
    %115 = vector.shape_cast %112 : vector<6x4xf32> to vector<1x6x4xf32>
    tpu.vector_store %arg3[%c0_40, %c0_41, %c20], %115 {strides = array<i32>} : memref<1x6x32xf32, #tpu.memory_space<vmem>>, vector<1x6x4xf32>,
    %116 = vector.extract_strided_slice %7 {offsets = [0, 24], sizes = [6, 4], strides = [1, 1]} : vector<6x32xf32> to vector<6x4xf32>
    %117 = vector.extract_strided_slice %4 {offsets = [0, 24], sizes = [8, 4], strides = [1, 1]} : vector<8x32xf32> to vector<8x4xf32>
    %118 = vector.extract_strided_slice %5 {offsets = [0, 24], sizes = [8, 4], strides = [1, 1]} : vector<8x32xf32> to vector<8x4xf32>
    %cst_42 = arith.constant dense<0.000000e+00> : vector<6x8xf32>
    %119 = tpu.matmul %116, %117, %cst_42 {dimension_numbers = #tpu.dot_dimension_numbers<[1], [1], [0], [0], [0, 0, 1, 0], [], []>} : vector<6x4xf32>, vector<8x4xf32>, vector<6x8xf32> -> vector<6x8xf32>
    %cst_43 = arith.constant dense<0xFF800000> : vector<6xf32>
    %120 = vector.multi_reduction <maximumf>, %119, %cst_43 [1] : vector<6x8xf32> to vector<6xf32>
    %121 = vector.shape_cast %120 : vector<6xf32> to vector<6x1xf32>
    %122 = vector.broadcast %121 : vector<6x1xf32> to vector<6x8xf32>
    %123 = arith.subf %119, %122 : vector<6x8xf32>
    %124 = math.exp %123 : vector<6x8xf32>
    %cst_44 = arith.constant dense<0.000000e+00> : vector<6xf32>
    %125 = vector.multi_reduction <add>, %124, %cst_44 [1] : vector<6x8xf32> to vector<6xf32>
    %126 = vector.shape_cast %125 : vector<6xf32> to vector<6x1xf32>
    %127 = tpu.reciprocal %126 {approx = true} : vector<6x1xf32> -> vector<6x1xf32>
    %128 = vector.broadcast %127 : vector<6x1xf32> to vector<6x8xf32>
    %129 = arith.mulf %124, %128 : vector<6x8xf32>
    %cst_45 = arith.constant dense<0.000000e+00> : vector<6x4xf32>
    %130 = tpu.matmul %129, %118, %cst_45 {dimension_numbers = #tpu.dot_dimension_numbers<[1], [0], [0], [1], [0, 0, 1, 1], [], []>} : vector<6x8xf32>, vector<8x4xf32>, vector<6x4xf32> -> vector<6x4xf32>
    %c0_46 = arith.constant 0 : index
    %c0_47 = arith.constant 0 : index
    %c24 = arith.constant 24 : index
    %131 = vector.load %arg3[%c0_46, %c0_47, %c24] : memref<1x6x32xf32, #tpu.memory_space<vmem>>, vector<1x6x4xf32>
    %132 = vector.shape_cast %131 : vector<1x6x4xf32> to vector<6x4xf32>
    %133 = vector.shape_cast %130 : vector<6x4xf32> to vector<1x6x4xf32>
    tpu.vector_store %arg3[%c0_46, %c0_47, %c24], %133 {strides = array<i32>} : memref<1x6x32xf32, #tpu.memory_space<vmem>>, vector<1x6x4xf32>,
    %134 = vector.extract_strided_slice %7 {offsets = [0, 28], sizes = [6, 4], strides = [1, 1]} : vector<6x32xf32> to vector<6x4xf32>
    %135 = vector.extract_strided_slice %4 {offsets = [0, 28], sizes = [8, 4], strides = [1, 1]} : vector<8x32xf32> to vector<8x4xf32>
    %136 = vector.extract_strided_slice %5 {offsets = [0, 28], sizes = [8, 4], strides = [1, 1]} : vector<8x32xf32> to vector<8x4xf32>
    %cst_48 = arith.constant dense<0.000000e+00> : vector<6x8xf32>
    %137 = tpu.matmul %134, %135, %cst_48 {dimension_numbers = #tpu.dot_dimension_numbers<[1], [1], [0], [0], [0, 0, 1, 0], [], []>} : vector<6x4xf32>, vector<8x4xf32>, vector<6x8xf32> -> vector<6x8xf32>
    %cst_49 = arith.constant dense<0xFF800000> : vector<6xf32>
    %138 = vector.multi_reduction <maximumf>, %137, %cst_49 [1] : vector<6x8xf32> to vector<6xf32>
    %139 = vector.shape_cast %138 : vector<6xf32> to vector<6x1xf32>
    %140 = vector.broadcast %139 : vector<6x1xf32> to vector<6x8xf32>
    %141 = arith.subf %137, %140 : vector<6x8xf32>
    %142 = math.exp %141 : vector<6x8xf32>
    %cst_50 = arith.constant dense<0.000000e+00> : vector<6xf32>
    %143 = vector.multi_reduction <add>, %142, %cst_50 [1] : vector<6x8xf32> to vector<6xf32>
    %144 = vector.shape_cast %143 : vector<6xf32> to vector<6x1xf32>
    %145 = tpu.reciprocal %144 {approx = true} : vector<6x1xf32> -> vector<6x1xf32>
    %146 = vector.broadcast %145 : vector<6x1xf32> to vector<6x8xf32>
    %147 = arith.mulf %142, %146 : vector<6x8xf32>
    %cst_51 = arith.constant dense<0.000000e+00> : vector<6x4xf32>
    %148 = tpu.matmul %147, %136, %cst_51 {dimension_numbers = #tpu.dot_dimension_numbers<[1], [0], [0], [1], [0, 0, 1, 1], [], []>} : vector<6x8xf32>, vector<8x4xf32>, vector<6x4xf32> -> vector<6x4xf32>
    %c0_52 = arith.constant 0 : index
    %c0_53 = arith.constant 0 : index
    %c28 = arith.constant 28 : index
    %149 = vector.load %arg3[%c0_52, %c0_53, %c28] : memref<1x6x32xf32, #tpu.memory_space<vmem>>, vector<1x6x4xf32>
    %150 = vector.shape_cast %149 : vector<1x6x4xf32> to vector<6x4xf32>
    %151 = vector.shape_cast %148 : vector<6x4xf32> to vector<1x6x4xf32>
    tpu.vector_store %arg3[%c0_52, %c0_53, %c28], %151 {strides = array<i32>} : memref<1x6x32xf32, #tpu.memory_space<vmem>>, vector<1x6x4xf32>,
    return
  }
  func.func @transform_0(%arg0: i32) -> (i32, i32, i32) {
    %c0_i32 = arith.constant 0 : i32
    %c0_i32_0 = arith.constant 0 : i32
    %c0_i32_1 = arith.constant 0 : i32
    return %arg0, %c0_i32, %c0_i32_0 : i32, i32, i32
  }
  func.func @transform_1(%arg0: i32) -> (i32, i32, i32) {
    %c0_i32 = arith.constant 0 : i32
    %c0_i32_0 = arith.constant 0 : i32
    %c0_i32_1 = arith.constant 0 : i32
    return %arg0, %c0_i32, %c0_i32_0 : i32, i32, i32
  }
  func.func @transform_2(%arg0: i32) -> (i32, i32, i32) {
    %c0_i32 = arith.constant 0 : i32
    %c0_i32_0 = arith.constant 0 : i32
    %c0_i32_1 = arith.constant 0 : i32
    return %arg0, %c0_i32, %c0_i32_0 : i32, i32, i32
  }
}

module attributes {stable_mosaic.version = 11 : i64} {
  func.func @_ffn_ln_kernel(%arg0: i32, %arg1: i32, %arg2: memref<12x32xf32, #tpu.memory_space<vmem>>, %arg3: memref<32x512xf32, #tpu.memory_space<vmem>>, %arg4: memref<1x512xf32, #tpu.memory_space<vmem>>, %arg5: memref<512x32xf32, #tpu.memory_space<vmem>>, %arg6: memref<1x32xf32, #tpu.memory_space<vmem>>, %arg7: memref<1x32xf32, #tpu.memory_space<vmem>>, %arg8: memref<1x32xf32, #tpu.memory_space<vmem>>, %arg9: memref<12x32xf32, #tpu.memory_space<vmem>>, %arg10: memref<12x32xf32, #tpu.memory_space<vmem>>) attributes {dimension_semantics = [#tpu.dimension_semantics<parallel>, #tpu.dimension_semantics<arbitrary>], iteration_bounds = array<i64: 1, 4>, scalar_prefetch = 0 : i64, scratch_operands = 1 : i64, tpu.core_type = #tpu.core_type<tc>, window_params = [{transform_indices = @transform_0, window_bounds = array<i64: 12, 32>}, {transform_indices = @transform_1, window_bounds = array<i64: 32, 512>}, {transform_indices = @transform_2, window_bounds = array<i64: 1, 512>}, {transform_indices = @transform_3, window_bounds = array<i64: 512, 32>}, {pipeline_mode = #tpu.pipeline_mode<synchronous>, transform_indices = @transform_4, window_bounds = array<i64: 1, 32>}, {pipeline_mode = #tpu.pipeline_mode<synchronous>, transform_indices = @transform_5, window_bounds = array<i64: 1, 32>}, {pipeline_mode = #tpu.pipeline_mode<synchronous>, transform_indices = @transform_6, window_bounds = array<i64: 1, 32>}, {transform_indices = @transform_7, window_bounds = array<i64: 12, 32>}]} {
    %c0_i32 = arith.constant 0 : i32
    %0 = arith.cmpi eq, %arg1, %c0_i32 : i32
    %1 = arith.extui %0 : i1 to i32
    %c0_i32_0 = arith.constant 0 : i32
    %2 = arith.cmpi ne, %1, %c0_i32_0 : i32
    scf.if %2 {
      %cst_15 = arith.constant 0.000000e+00 : f32
      %19 = vector.broadcast %cst_15 : f32 to vector<12x32xf32>
      %c0_16 = arith.constant 0 : index
      %c0_17 = arith.constant 0 : index
      %20 = vector.load %arg10[%c0_16, %c0_17] : memref<12x32xf32, #tpu.memory_space<vmem>>, vector<12x32xf32>
      tpu.vector_store %arg10[%c0_16, %c0_17], %19 {strides = array<i32>} : memref<12x32xf32, #tpu.memory_space<vmem>>, vector<12x32xf32>,
    } else {
    }
    %c0 = arith.constant 0 : index
    %c0_1 = arith.constant 0 : index
    %3 = vector.load %arg2[%c0, %c0_1] : memref<12x32xf32, #tpu.memory_space<vmem>>, vector<12x32xf32>
    %c0_2 = arith.constant 0 : index
    %c0_3 = arith.constant 0 : index
    %4 = vector.load %arg3[%c0_2, %c0_3] : memref<32x512xf32, #tpu.memory_space<vmem>>, vector<32x512xf32>
    %cst = arith.constant dense<0.000000e+00> : vector<12x512xf32>
    %5 = tpu.matmul %3, %4, %cst {dimension_numbers = #tpu.dot_dimension_numbers<[1], [0], [0], [1], [0, 0, 1, 1], [], []>} : vector<12x32xf32>, vector<32x512xf32>, vector<12x512xf32> -> vector<12x512xf32>
    %c0_4 = arith.constant 0 : index
    %c0_5 = arith.constant 0 : index
    %6 = vector.load %arg4[%c0_4, %c0_5] : memref<1x512xf32, #tpu.memory_space<vmem>>, vector<1x512xf32>
    %7 = vector.broadcast %6 : vector<1x512xf32> to vector<12x512xf32>
    %8 = arith.addf %5, %7 : vector<12x512xf32>
    %cst_6 = arith.constant 0.000000e+00 : f32
    %9 = vector.broadcast %cst_6 : f32 to vector<12x512xf32>
    %10 = arith.maximumf %8, %9 : vector<12x512xf32>
    %c0_7 = arith.constant 0 : index
    %c0_8 = arith.constant 0 : index
    %11 = vector.load %arg10[%c0_7, %c0_8] : memref<12x32xf32, #tpu.memory_space<vmem>>, vector<12x32xf32>
    %c0_9 = arith.constant 0 : index
    %c0_10 = arith.constant 0 : index
    %12 = vector.load %arg5[%c0_9, %c0_10] : memref<512x32xf32, #tpu.memory_space<vmem>>, vector<512x32xf32>
    %cst_11 = arith.constant dense<0.000000e+00> : vector<12x32xf32>
    %13 = tpu.matmul %10, %12, %cst_11 {dimension_numbers = #tpu.dot_dimension_numbers<[1], [0], [0], [1], [0, 0, 1, 1], [], []>} : vector<12x512xf32>, vector<512x32xf32>, vector<12x32xf32> -> vector<12x32xf32>
    %14 = arith.addf %11, %13 : vector<12x32xf32>
    %c0_12 = arith.constant 0 : index
    %c0_13 = arith.constant 0 : index
    %15 = vector.load %arg10[%c0_12, %c0_13] : memref<12x32xf32, #tpu.memory_space<vmem>>, vector<12x32xf32>
    tpu.vector_store %arg10[%c0_12, %c0_13], %14 {strides = array<i32>} : memref<12x32xf32, #tpu.memory_space<vmem>>, vector<12x32xf32>,
    %c3_i32 = arith.constant 3 : i32
    %16 = arith.cmpi eq, %arg1, %c3_i32 : i32
    %17 = arith.extui %16 : i1 to i32
    %c0_i32_14 = arith.constant 0 : i32
    %18 = arith.cmpi ne, %17, %c0_i32_14 : i32
    scf.if %18 {
      %c0_15 = arith.constant 0 : index
      %c0_16 = arith.constant 0 : index
      %19 = vector.load %arg10[%c0_15, %c0_16] : memref<12x32xf32, #tpu.memory_space<vmem>>, vector<12x32xf32>
      %c0_17 = arith.constant 0 : index
      %c0_18 = arith.constant 0 : index
      %20 = vector.load %arg6[%c0_17, %c0_18] : memref<1x32xf32, #tpu.memory_space<vmem>>, vector<1x32xf32>
      %21 = vector.broadcast %20 : vector<1x32xf32> to vector<12x32xf32>
      %22 = arith.addf %19, %21 : vector<12x32xf32>
      %23 = arith.addf %22, %3 : vector<12x32xf32>
      %cst_19 = arith.constant dense<0.000000e+00> : vector<12xf32>
      %24 = vector.multi_reduction <add>, %23, %cst_19 [1] : vector<12x32xf32> to vector<12xf32>
      %25 = vector.shape_cast %24 : vector<12xf32> to vector<12x1xf32>
      %cst_20 = arith.constant 3.200000e+01 : f32
      %26 = vector.broadcast %cst_20 : f32 to vector<12x1xf32>
      %27 = arith.divf %25, %26 : vector<12x1xf32>
      %28 = vector.broadcast %27 : vector<12x1xf32> to vector<12x32xf32>
      %29 = arith.subf %23, %28 : vector<12x32xf32>
      %30 = arith.mulf %29, %29 : vector<12x32xf32>
      %cst_21 = arith.constant dense<0.000000e+00> : vector<12xf32>
      %31 = vector.multi_reduction <add>, %30, %cst_21 [1] : vector<12x32xf32> to vector<12xf32>
      %32 = vector.shape_cast %31 : vector<12xf32> to vector<12x1xf32>
      %cst_22 = arith.constant 3.200000e+01 : f32
      %33 = vector.broadcast %cst_22 : f32 to vector<12x1xf32>
      %34 = arith.divf %32, %33 : vector<12x1xf32>
      %cst_23 = arith.constant 9.99999974E-6 : f32
      %35 = vector.broadcast %cst_23 : f32 to vector<12x1xf32>
      %36 = arith.addf %34, %35 : vector<12x1xf32>
      %37 = math.rsqrt %36 : vector<12x1xf32>
      %38 = vector.broadcast %37 : vector<12x1xf32> to vector<12x32xf32>
      %39 = arith.mulf %29, %38 : vector<12x32xf32>
      %c0_24 = arith.constant 0 : index
      %c0_25 = arith.constant 0 : index
      %40 = vector.load %arg7[%c0_24, %c0_25] : memref<1x32xf32, #tpu.memory_space<vmem>>, vector<1x32xf32>
      %41 = vector.broadcast %40 : vector<1x32xf32> to vector<12x32xf32>
      %42 = arith.mulf %39, %41 : vector<12x32xf32>
      %c0_26 = arith.constant 0 : index
      %c0_27 = arith.constant 0 : index
      %43 = vector.load %arg8[%c0_26, %c0_27] : memref<1x32xf32, #tpu.memory_space<vmem>>, vector<1x32xf32>
      %44 = vector.broadcast %43 : vector<1x32xf32> to vector<12x32xf32>
      %45 = arith.addf %42, %44 : vector<12x32xf32>
      %c0_28 = arith.constant 0 : index
      %c0_29 = arith.constant 0 : index
      %46 = vector.load %arg9[%c0_28, %c0_29] : memref<12x32xf32, #tpu.memory_space<vmem>>, vector<12x32xf32>
      tpu.vector_store %arg9[%c0_28, %c0_29], %45 {strides = array<i32>} : memref<12x32xf32, #tpu.memory_space<vmem>>, vector<12x32xf32>,
    } else {
    }
    return
  }
  func.func @transform_0(%arg0: i32, %arg1: i32) -> (i32, i32) {
    %c0_i32 = arith.constant 0 : i32
    %c0_i32_0 = arith.constant 0 : i32
    return %arg0, %c0_i32 : i32, i32
  }
  func.func @transform_1(%arg0: i32, %arg1: i32) -> (i32, i32) {
    %c0_i32 = arith.constant 0 : i32
    %c0_i32_0 = arith.constant 0 : i32
    return %c0_i32, %arg1 : i32, i32
  }
  func.func @transform_2(%arg0: i32, %arg1: i32) -> (i32, i32) {
    %c0_i32 = arith.constant 0 : i32
    %c0_i32_0 = arith.constant 0 : i32
    return %c0_i32, %arg1 : i32, i32
  }
  func.func @transform_3(%arg0: i32, %arg1: i32) -> (i32, i32) {
    %c0_i32 = arith.constant 0 : i32
    %c0_i32_0 = arith.constant 0 : i32
    return %arg1, %c0_i32 : i32, i32
  }
  func.func @transform_4(%arg0: i32, %arg1: i32) -> (i32, i32) {
    %c0_i32 = arith.constant 0 : i32
    %c0_i32_0 = arith.constant 0 : i32
    %c0_i32_1 = arith.constant 0 : i32
    return %c0_i32, %c0_i32_0 : i32, i32
  }
  func.func @transform_5(%arg0: i32, %arg1: i32) -> (i32, i32) {
    %c0_i32 = arith.constant 0 : i32
    %c0_i32_0 = arith.constant 0 : i32
    %c0_i32_1 = arith.constant 0 : i32
    return %c0_i32, %c0_i32_0 : i32, i32
  }
  func.func @transform_6(%arg0: i32, %arg1: i32) -> (i32, i32) {
    %c0_i32 = arith.constant 0 : i32
    %c0_i32_0 = arith.constant 0 : i32
    %c0_i32_1 = arith.constant 0 : i32
    return %c0_i32, %c0_i32_0 : i32, i32
  }
  func.func @transform_7(%arg0: i32, %arg1: i32) -> (i32, i32) {
    %c0_i32 = arith.constant 0 : i32
    %c0_i32_0 = arith.constant 0 : i32
    return %arg0, %c0_i32 : i32, i32
  }
}

module attributes {stable_mosaic.version = 11 : i64} {
  func.func @_ln_kernel(%arg0: i32, %arg1: memref<12x32xf32, #tpu.memory_space<vmem>>, %arg2: memref<1x32xf32, #tpu.memory_space<vmem>>, %arg3: memref<1x32xf32, #tpu.memory_space<vmem>>, %arg4: memref<12x32xf32, #tpu.memory_space<vmem>>) attributes {dimension_semantics = [#tpu.dimension_semantics<parallel>], iteration_bounds = array<i64: 1>, scalar_prefetch = 0 : i64, scratch_operands = 0 : i64, tpu.core_type = #tpu.core_type<tc>, window_params = [{transform_indices = @transform_0, window_bounds = array<i64: 12, 32>}, {pipeline_mode = #tpu.pipeline_mode<synchronous>, transform_indices = @transform_1, window_bounds = array<i64: 1, 32>}, {pipeline_mode = #tpu.pipeline_mode<synchronous>, transform_indices = @transform_2, window_bounds = array<i64: 1, 32>}, {transform_indices = @transform_3, window_bounds = array<i64: 12, 32>}]} {
    %c0 = arith.constant 0 : index
    %c0_0 = arith.constant 0 : index
    %0 = vector.load %arg1[%c0, %c0_0] : memref<12x32xf32, #tpu.memory_space<vmem>>, vector<12x32xf32>
    %cst = arith.constant dense<0.000000e+00> : vector<12xf32>
    %1 = vector.multi_reduction <add>, %0, %cst [1] : vector<12x32xf32> to vector<12xf32>
    %2 = vector.shape_cast %1 : vector<12xf32> to vector<12x1xf32>
    %cst_1 = arith.constant 3.200000e+01 : f32
    %3 = vector.broadcast %cst_1 : f32 to vector<12x1xf32>
    %4 = arith.divf %2, %3 : vector<12x1xf32>
    %5 = vector.broadcast %4 : vector<12x1xf32> to vector<12x32xf32>
    %6 = arith.subf %0, %5 : vector<12x32xf32>
    %7 = arith.mulf %6, %6 : vector<12x32xf32>
    %cst_2 = arith.constant dense<0.000000e+00> : vector<12xf32>
    %8 = vector.multi_reduction <add>, %7, %cst_2 [1] : vector<12x32xf32> to vector<12xf32>
    %9 = vector.shape_cast %8 : vector<12xf32> to vector<12x1xf32>
    %cst_3 = arith.constant 3.200000e+01 : f32
    %10 = vector.broadcast %cst_3 : f32 to vector<12x1xf32>
    %11 = arith.divf %9, %10 : vector<12x1xf32>
    %cst_4 = arith.constant 9.99999974E-6 : f32
    %12 = vector.broadcast %cst_4 : f32 to vector<12x1xf32>
    %13 = arith.addf %11, %12 : vector<12x1xf32>
    %14 = math.rsqrt %13 : vector<12x1xf32>
    %15 = vector.broadcast %14 : vector<12x1xf32> to vector<12x32xf32>
    %16 = arith.mulf %6, %15 : vector<12x32xf32>
    %c0_5 = arith.constant 0 : index
    %c0_6 = arith.constant 0 : index
    %17 = vector.load %arg2[%c0_5, %c0_6] : memref<1x32xf32, #tpu.memory_space<vmem>>, vector<1x32xf32>
    %18 = vector.broadcast %17 : vector<1x32xf32> to vector<12x32xf32>
    %19 = arith.mulf %16, %18 : vector<12x32xf32>
    %c0_7 = arith.constant 0 : index
    %c0_8 = arith.constant 0 : index
    %20 = vector.load %arg3[%c0_7, %c0_8] : memref<1x32xf32, #tpu.memory_space<vmem>>, vector<1x32xf32>
    %21 = vector.broadcast %20 : vector<1x32xf32> to vector<12x32xf32>
    %22 = arith.addf %19, %21 : vector<12x32xf32>
    %c0_9 = arith.constant 0 : index
    %c0_10 = arith.constant 0 : index
    %23 = vector.load %arg4[%c0_9, %c0_10] : memref<12x32xf32, #tpu.memory_space<vmem>>, vector<12x32xf32>
    tpu.vector_store %arg4[%c0_9, %c0_10], %22 {strides = array<i32>} : memref<12x32xf32, #tpu.memory_space<vmem>>, vector<12x32xf32>,
    return
  }
  func.func @transform_0(%arg0: i32) -> (i32, i32) {
    %c0_i32 = arith.constant 0 : i32
    %c0_i32_0 = arith.constant 0 : i32
    return %arg0, %c0_i32 : i32, i32
  }
  func.func @transform_1(%arg0: i32) -> (i32, i32) {
    %c0_i32 = arith.constant 0 : i32
    %c0_i32_0 = arith.constant 0 : i32
    %c0_i32_1 = arith.constant 0 : i32
    return %c0_i32, %c0_i32_0 : i32, i32
  }
  func.func @transform_2(%arg0: i32) -> (i32, i32) {
    %c0_i32 = arith.constant 0 : i32
    %c0_i32_0 = arith.constant 0 : i32
    %c0_i32_1 = arith.constant 0 : i32
    return %c0_i32, %c0_i32_0 : i32, i32
  }
  func.func @transform_3(%arg0: i32) -> (i32, i32) {
    %c0_i32 = arith.constant 0 : i32
    %c0_i32_0 = arith.constant 0 : i32
    return %arg0, %c0_i32 : i32, i32
  }
}

</mosaic_0001>

<llo_original>
// kernel: transformer_forward.58
$region0: #{transformer_forward.58}
  #allocation0 [shape = 'u32[]', space=smem, size = 0x4, offset = 0x4, fixed_abs, tag = 'smem constant byte address 0x4 - core index']
  #allocation1 [shape = 'u32[144,128]{1,0:T(1,128)}', space=vmem, size = 0x12000, scoped, tag = 'internal scratch']
  #allocation2 [shape = 'f32[16,96]{1,0:T(8,128)}', space=vmem, size = 0x2000, scoped, tag = 'scratch operand']
  %s0 = inlined_call_operand.vmem [shape: f32[16,32], index: 0, kind: input, shape index: {}]
  %s1 = inlined_call_operand.vmem [shape: f32[32,96], index: 1, kind: input, shape index: {}]
  %s2 = inlined_call_operand.vmem [shape: f32[1,96], index: 2, kind: input, shape index: {}]
  %s3 = inlined_call_operand.vmem [shape: f32[16,96], index: 3, kind: output, shape index: {}]
  %s4 = sld [smem:[#allocation0]]
  $region30: #{transformer_forward.58} parent=0
    _
  %s6 = ssub.s32 1, %s4
  %s7 = scalar_select 0, %s6, %s4
  // Predicated region
  $region2: #{transformer_forward.58} parent=0 // pred_check
    _
  $region3: #{transformer_forward.58} parent=0 // pred_check_branch
    %9 = sbr.rel (0) target = $region5
  $region4: #{transformer_forward.58} parent=0 // pred_region
    _
  $region5: #{transformer_forward.58} parent=0 // pred_fallthru
    _
  // Predicated region
  $region6: #{transformer_forward.58} parent=0 // pred_check
    _
  $region7: #{transformer_forward.58} parent=0 // pred_check_branch
    %11 = sbr.rel (0) target = $region9
  $region8: #{transformer_forward.58} parent=0 // pred_region
    _
  $region9: #{transformer_forward.58} parent=0 // pred_fallthru
    _
  // Predicated region
  $region10: #{transformer_forward.58} parent=0 // pred_check
    _
  $region11: #{transformer_forward.58} parent=0 // pred_check_branch
    %13 = sbr.rel (0) target = $region13
  $region12: #{transformer_forward.58} parent=0 // pred_region
    _
  $region13: #{transformer_forward.58} parent=0 // pred_fallthru
    _
  %p14 = scmp.eq.s32.totalorder 0, 0
  // Predicated region
  $region14: #{transformer_forward.58} parent=0 // pred_check
    %p15 = pneg %p14
  $region15: #{transformer_forward.58} parent=0 // pred_check_branch
    %17 = sbr.rel (%p15) target = $region17
  $region16: #{transformer_forward.58} parent=0 // pred_region
    %vm18 = vcmask 785408
    %19 = vst.msk [vmem:[#allocation2] sm:$0xff] %vm18, 0.0
    %20 = vst.msk [vmem:[#allocation2 + $0x8] sm:$0xff] %vm18, 0.0
  $region17: #{transformer_forward.58} parent=0 // pred_fallthru
    _
  %v21 = vld [vmem:[#allocation2] sm:$0xff]
  %v22 = vld [vmem:[#allocation2 + $0x8] sm:$0xff]
  %v23 = vld [vmem:[%s0] sm:$0xff]
  %v24 = vld [vmem:[%s0 + $0x8] sm:$0xff]
  %v25 = vld [vmem:[%s1] sm:$0xff]
  %v26 = vld [vmem:[%s1 + $0x8] sm:$0xff]
  %v27 = vld [vmem:[%s1 + $0x10] sm:$0xff]
  %v28 = vld [vmem:[%s1 + $0x18] sm:$0xff]
  %vm29 = vcmask 261120
  %v31 = vsel %vm29, %v23, 0
  %v34 = vsel %vm29, %v24, 0
  %36 = vmatprep.subr.mxu0 0.0
  %37 = vmatpush1.msra.mxu0 %v25
  %38 = vmatprep.subr.mxu0 0.0
  %39 = vmatpush1.msra.mxu0 %v26
  %40 = vmatprep.subr.mxu0 0.0
  %41 = vmatpush1.msra.mxu0 %v27
  %42 = vmatprep.subr.mxu0 0.0
  %43 = vmatpush1.msra.mxu0 %v28
  %44 = vmatprep.subr.mxu0 0.0
  %45 = vmatpush1.msra.mxu0 0.0
  %46 = vmatprep.subr.mxu0 0.0
  %47 = vmatpush1.msra.mxu0 0.0
  %48 = vmatprep.subr.mxu0 0.0
  %49 = vmatpush1.msra.mxu0 0.0
  %50 = vmatprep.subr.mxu0 0.0
  %51 = vmatpush1.msra.mxu0 0.0
  %52 = vmatprep.subr.mxu0 0.0
  %53 = vmatpush1.msra.mxu0 0.0
  %54 = vmatprep.subr.mxu0 0.0
  %55 = vmatpush1.msra.mxu0 0.0
  %56 = vmatprep.subr.mxu0 0.0
  %57 = vmatpush1.msra.mxu0 0.0
  %58 = vmatprep.subr.mxu0 0.0
  %59 = vmatpush1.msra.mxu0 0.0
  %60 = vmatprep.subr.mxu0 0.0
  %61 = vmatpush1.msra.mxu0 0.0
  %62 = vmatprep.subr.mxu0 0.0
  %63 = vmatpush1.msra.mxu0 0.0
  %64 = vmatprep.subr.mxu0 0.0
  %65 = vmatpush1.msra.mxu0 0.0
  %66 = vmatprep.subr.mxu0 0.0
  %67 = vmatpush1.msra.mxu0 0.0
  %68 = vmatprep.subr.mxu0 0.0
  %69 = vmatpush1.msra.mxu0 0.0
  %70 = vmatprep.subr.mxu0 0.0
  %71 = vmatpush1.msra.mxu0 0.0
  %72 = vmatprep.subr.mxu0 0.0
  %73 = vmatpush1.msra.mxu0 0.0
  %74 = vmatprep.subr.mxu0 0.0
  %75 = vmatpush1.msra.mxu0 0.0
  %76 = vmatprep.subr.mxu0 0.0
  %77 = vmatpush1.msra.mxu0 0.0
  %78 = vmatprep.subr.mxu0 0.0
  %79 = vmatpush1.msra.mxu0 0.0
  %80 = vmatprep.subr.mxu0 0.0
  %81 = vmatpush1.msra.mxu0 0.0
  %82 = vmatprep.subr.mxu0 0.0
  %83 = vmatpush1.msra.mxu0 0.0
  %84 = vmatprep.subr.mxu0 0.0
  %85 = vmatpush1.msra.mxu0 0.0
  %86 = vmatprep.subr.mxu0 0.0
  %87 = vmatpush1.msra.mxu0 0.0
  %88 = vmatprep.subr.mxu0 0.0
  %89 = vmatpush1.msra.mxu0 0.0
  %90 = vmatprep.subr.mxu0 0.0
  %91 = vmatpush1.msra.mxu0 0.0
  %92 = vmatprep.subr.mxu0 0.0
  %93 = vmatpush1.msra.mxu0 0.0
  %94 = vmatprep.subr.mxu0 0.0
  %95 = vmatpush1.msra.mxu0 0.0
  %96 = vmatprep.subr.mxu0 0.0
  %97 = vmatpush1.msra.mxu0 0.0
  %98 = vmatprep.subr.mxu0 0.0
  %99 = vmatpush1.msra.mxu0 0.0
  %100 = vmatprep.mubr.f32.mxu0 0.0
  %101 = vmatmul.mubr.f32.gmra.mrb[0].mxu0 %v31
  %v102 = vpop.f32.mrb[0].mxu0
  %v103 = vadd.f32 0.0, %v102
  %v104 = vpop.f32.mrb[0].mxu0
  %105 = vmatprep.mubr.f32.mxu0 0.0
  %106 = vmatmul.mubr.f32.gmra.mrb[0].mxu0 %v34
  %v107 = vpop.f32.mrb[0].mxu0
  %v108 = vadd.f32 0.0, %v107
  %v109 = vpop.f32.mrb[0].mxu0
  %110 = vdwg.mxu0
  %v111 = vadd.f32 %v21, %v103
  %v112 = vadd.f32 %v22, %v108
  %vm113 = vcmask 785408
  %114 = vst.msk [vmem:[#allocation2] sm:$0xff] %vm113, %v111
  %115 = vst.msk [vmem:[#allocation2 + $0x8] sm:$0xff] %vm113, %v112
  // Predicated region
  $region18: #{transformer_forward.58} parent=0 // pred_check
    %p116 = pneg %p14
  $region19: #{transformer_forward.58} parent=0 // pred_check_branch
    %118 = sbr.rel (%p116) target = $region21
  $region20: #{transformer_forward.58} parent=0 // pred_region
    %v119 = vld [vmem:[#allocation2] sm:$0xff]
    %v120 = vld [vmem:[#allocation2 + $0x8] sm:$0xff]
    %v121 = vld [vmem:[%s2] sm:$0x1]
    %v123 = vlaneseq
    %v124 = vshrl.u32 %v123, 7
    %v125 = vsub.s32 0, %v124
    %v126 = vrot.slane %v121, %v125
    %v128 = vadd.f32 %v119, %v126
    %v129 = vadd.f32 %v120, %v126
    %130 = vst.msk [vmem:[%s3] sm:$0xff] %vm113, %v128
    %131 = vst.msk [vmem:[%s3 + $0x8] sm:$0xff] %vm113, %v129
  $region21: #{transformer_forward.58} parent=0 // pred_fallthru
    _
  // Predicated region
  $region22: #{transformer_forward.58} parent=0 // pred_check
    _
  $region23: #{transformer_forward.58} parent=0 // pred_check_branch
    %133 = sbr.rel (0) target = $region25
  $region24: #{transformer_forward.58} parent=0 // pred_region
    _
  $region25: #{transformer_forward.58} parent=0 // pred_fallthru
    _
  // Predicated region
  $region26: #{transformer_forward.58} parent=0 // pred_check
    _
  $region27: #{transformer_forward.58} parent=0 // pred_check_branch
    %135 = sbr.rel (0) target = $region29
  $region28: #{transformer_forward.58} parent=0 // pred_region
    _
  $region29: #{transformer_forward.58} parent=0 // pred_fallthru
    _

// kernel: transformer_forward.60
$region0: #{transformer_forward.60}
  #allocation0 [shape = 'u32[]', space=smem, size = 0x4, offset = 0x4, fixed_abs, tag = 'smem constant byte address 0x4 - core index']
  #allocation1 [shape = 'u32[144,128]{1,0:T(1,128)}', space=vmem, size = 0x12000, scoped, tag = 'internal scratch']
  #allocation2 [shape = 'f32[16,32]{1,0:T(8,128)}', space=vmem, size = 0x2000, scoped, tag = 'scratch operand']
  %s0 = inlined_call_operand.vmem [shape: f32[16,32], index: 0, kind: input, shape index: {}]
  %s1 = inlined_call_operand.vmem [shape: f32[32,32], index: 1, kind: input, shape index: {}]
  %s2 = inlined_call_operand.vmem [shape: f32[1,32], index: 2, kind: input, shape index: {}]
  %s3 = inlined_call_operand.vmem [shape: f32[16,32], index: 3, kind: input, shape index: {}]
  %s4 = inlined_call_operand.vmem [shape: f32[1,32], index: 4, kind: input, shape index: {}]
  %s5 = inlined_call_operand.vmem [shape: f32[1,32], index: 5, kind: input, shape index: {}]
  %s6 = inlined_call_operand.vmem [shape: f32[16,32], index: 6, kind: output, shape index: {}]
  %s7 = sld [smem:[#allocation0]]
  $region42: #{transformer_forward.60} parent=0
    _
  %s9 = ssub.s32 1, %s7
  %s10 = scalar_select 0, %s9, %s7
  // Predicated region
  $region2: #{transformer_forward.60} parent=0 // pred_check
    _
  $region3: #{transformer_forward.60} parent=0 // pred_check_branch
    %12 = sbr.rel (0) target = $region5
  $region4: #{transformer_forward.60} parent=0 // pred_region
    _
  $region5: #{transformer_forward.60} parent=0 // pred_fallthru
    _
  // Predicated region
  $region6: #{transformer_forward.60} parent=0 // pred_check
    _
  $region7: #{transformer_forward.60} parent=0 // pred_check_branch
    %14 = sbr.rel (0) target = $region9
  $region8: #{transformer_forward.60} parent=0 // pred_region
    _
  $region9: #{transformer_forward.60} parent=0 // pred_fallthru
    _
  // Predicated region
  $region10: #{transformer_forward.60} parent=0 // pred_check
    _
  $region11: #{transformer_forward.60} parent=0 // pred_check_branch
    %16 = sbr.rel (0) target = $region13
  $region12: #{transformer_forward.60} parent=0 // pred_region
    _
  $region13: #{transformer_forward.60} parent=0 // pred_fallthru
    _
  // Predicated region
  $region14: #{transformer_forward.60} parent=0 // pred_check
    _
  $region15: #{transformer_forward.60} parent=0 // pred_check_branch
    %18 = sbr.rel (0) target = $region17
  $region16: #{transformer_forward.60} parent=0 // pred_region
    _
  $region17: #{transformer_forward.60} parent=0 // pred_fallthru
    _
  // Predicated region
  $region18: #{transformer_forward.60} parent=0 // pred_check
    _
  $region19: #{transformer_forward.60} parent=0 // pred_check_branch
    %20 = sbr.rel (0) target = $region21
  $region20: #{transformer_forward.60} parent=0 // pred_region
    _
  $region21: #{transformer_forward.60} parent=0 // pred_fallthru
    _
  // Predicated region
  $region22: #{transformer_forward.60} parent=0 // pred_check
    _
  $region23: #{transformer_forward.60} parent=0 // pred_check_branch
    %22 = sbr.rel (0) target = $region25
  $region24: #{transformer_forward.60} parent=0 // pred_region
    _
  $region25: #{transformer_forward.60} parent=0 // pred_fallthru
    _
  %p23 = scmp.eq.s32.totalorder 0, 0
  // Predicated region
  $region26: #{transformer_forward.60} parent=0 // pred_check
    %p24 = pneg %p23
  $region27: #{transformer_forward.60} parent=0 // pred_check_branch
    %26 = sbr.rel (%p24) target = $region29
  $region28: #{transformer_forward.60} parent=0 // pred_region
    %vm27 = vcmask 261120
    %28 = vst.msk [vmem:[#allocation2] sm:$0xff] %vm27, 0.0
    %29 = vst.msk [vmem:[#allocation2 + $0x8] sm:$0xff] %vm27, 0.0
  $region29: #{transformer_forward.60} parent=0 // pred_fallthru
    _
  %v30 = vld [vmem:[#allocation2] sm:$0xff]
  %v31 = vld [vmem:[#allocation2 + $0x8] sm:$0xff]
  %v32 = vld [vmem:[%s0] sm:$0xff]
  %v33 = vld [vmem:[%s0 + $0x8] sm:$0xff]
  %v34 = vld [vmem:[%s1] sm:$0xff]
  %v35 = vld [vmem:[%s1 + $0x8] sm:$0xff]
  %v36 = vld [vmem:[%s1 + $0x10] sm:$0xff]
  %v37 = vld [vmem:[%s1 + $0x18] sm:$0xff]
  %vm38 = vcmask 261120
  %v40 = vsel %vm38, %v32, 0
  %v43 = vsel %vm38, %v33, 0
  %45 = vmatprep.subr.mxu0 0.0
  %46 = vmatpush1.msra.mxu0 %v34
  %47 = vmatprep.subr.mxu0 0.0
  %48 = vmatpush1.msra.mxu0 %v35
  %49 = vmatprep.subr.mxu0 0.0
  %50 = vmatpush1.msra.mxu0 %v36
  %51 = vmatprep.subr.mxu0 0.0
  %52 = vmatpush1.msra.mxu0 %v37
  %53 = vmatprep.subr.mxu0 0.0
  %54 = vmatpush1.msra.mxu0 0.0
  %55 = vmatprep.subr.mxu0 0.0
  %56 = vmatpush1.msra.mxu0 0.0
  %57 = vmatprep.subr.mxu0 0.0
  %58 = vmatpush1.msra.mxu0 0.0
  %59 = vmatprep.subr.mxu0 0.0
  %60 = vmatpush1.msra.mxu0 0.0
  %61 = vmatprep.subr.mxu0 0.0
  %62 = vmatpush1.msra.mxu0 0.0
  %63 = vmatprep.subr.mxu0 0.0
  %64 = vmatpush1.msra.mxu0 0.0
  %65 = vmatprep.subr.mxu0 0.0
  %66 = vmatpush1.msra.mxu0 0.0
  %67 = vmatprep.subr.mxu0 0.0
  %68 = vmatpush1.msra.mxu0 0.0
  %69 = vmatprep.subr.mxu0 0.0
  %70 = vmatpush1.msra.mxu0 0.0
  %71 = vmatprep.subr.mxu0 0.0
  %72 = vmatpush1.msra.mxu0 0.0
  %73 = vmatprep.subr.mxu0 0.0
  %74 = vmatpush1.msra.mxu0 0.0
  %75 = vmatprep.subr.mxu0 0.0
  %76 = vmatpush1.msra.mxu0 0.0
  %77 = vmatprep.subr.mxu0 0.0
  %78 = vmatpush1.msra.mxu0 0.0
  %79 = vmatprep.subr.mxu0 0.0
  %80 = vmatpush1.msra.mxu0 0.0
  %81 = vmatprep.subr.mxu0 0.0
  %82 = vmatpush1.msra.mxu0 0.0
  %83 = vmatprep.subr.mxu0 0.0
  %84 = vmatpush1.msra.mxu0 0.0
  %85 = vmatprep.subr.mxu0 0.0
  %86 = vmatpush1.msra.mxu0 0.0
  %87 = vmatprep.subr.mxu0 0.0
  %88 = vmatpush1.msra.mxu0 0.0
  %89 = vmatprep.subr.mxu0 0.0
  %90 = vmatpush1.msra.mxu0 0.0
  %91 = vmatprep.subr.mxu0 0.0
  %92 = vmatpush1.msra.mxu0 0.0
  %93 = vmatprep.subr.mxu0 0.0
  %94 = vmatpush1.msra.mxu0 0.0
  %95 = vmatprep.subr.mxu0 0.0
  %96 = vmatpush1.msra.mxu0 0.0
  %97 = vmatprep.subr.mxu0 0.0
  %98 = vmatpush1.msra.mxu0 0.0
  %99 = vmatprep.subr.mxu0 0.0
  %100 = vmatpush1.msra.mxu0 0.0
  %101 = vmatprep.subr.mxu0 0.0
  %102 = vmatpush1.msra.mxu0 0.0
  %103 = vmatprep.subr.mxu0 0.0
  %104 = vmatpush1.msra.mxu0 0.0
  %105 = vmatprep.subr.mxu0 0.0
  %106 = vmatpush1.msra.mxu0 0.0
  %107 = vmatprep.subr.mxu0 0.0
  %108 = vmatpush1.msra.mxu0 0.0
  %109 = vmatprep.mubr.f32.mxu0 0.0
  %110 = vmatmul.mubr.f32.gmra.mrb[0].mxu0 %v40
  %v111 = vpop.f32.mrb[0].mxu0
  %v112 = vadd.f32 0.0, %v111
  %v113 = vpop.f32.mrb[0].mxu0
  %114 = vmatprep.mubr.f32.mxu0 0.0
  %115 = vmatmul.mubr.f32.gmra.mrb[0].mxu0 %v43
  %v116 = vpop.f32.mrb[0].mxu0
  %v117 = vadd.f32 0.0, %v116
  %v118 = vpop.f32.mrb[0].mxu0
  %119 = vdwg.mxu0
  %v120 = vadd.f32 %v30, %v112
  %v121 = vadd.f32 %v31, %v117
  %122 = vst.msk [vmem:[#allocation2] sm:$0xff] %vm38, %v120
  %123 = vst.msk [vmem:[#allocation2 + $0x8] sm:$0xff] %vm38, %v121
  // Predicated region
  $region30: #{transformer_forward.60} parent=0 // pred_check
    %p124 = pneg %p23
  $region31: #{transformer_forward.60} parent=0 // pred_check_branch
    %126 = sbr.rel (%p124) target = $region33
  $region32: #{transformer_forward.60} parent=0 // pred_region
    %v127 = vld [vmem:[#allocation2] sm:$0xff]
    %v128 = vld [vmem:[#allocation2 + $0x8] sm:$0xff]
    %v129 = vld [vmem:[%s2] sm:$0x1]
    %v131 = vlaneseq
    %v132 = vshrl.u32 %v131, 7
    %v133 = vsub.s32 0, %v132
    %v134 = vrot.slane %v129, %v133
    %v136 = vadd.f32 %v127, %v134
    %v137 = vadd.f32 %v128, %v134
    %v138 = vld [vmem:[%s3] sm:$0xff]
    %v139 = vld [vmem:[%s3 + $0x8] sm:$0xff]
    %v140 = vadd.f32 %v136, %v138
    %v141 = vadd.f32 %v137, %v139
    %v142 = vsel %vm38, %v140, 0.0
    %143 = vadd.xlane.f32.xlu0 %v142
    %v144 = vpop.xlane.xlu0 %143
    %v145 = vsel %vm38, %v141, 0.0
    %146 = vadd.xlane.f32.xlu0 %v145
    %v147 = vpop.xlane.xlu0 %146
    %v148 = vrcp.pop 32.0
    %v149 = vmul.f32 %v144, %v148
    %v150 = vmul.f32 %v147, %v148
    %v151 = vsub.f32 %v140, %v149
    %v152 = vsub.f32 %v141, %v150
    %v153 = vmul.f32 %v151, %v151
    %v154 = vmul.f32 %v152, %v152
    %v155 = vsel %vm38, %v153, 0.0
    %156 = vadd.xlane.f32.xlu0 %v155
    %v157 = vpop.xlane.xlu0 %156
    %v158 = vsel %vm38, %v154, 0.0
    %159 = vadd.xlane.f32.xlu0 %v158
    %v160 = vpop.xlane.xlu0 %159
    %v161 = vmul.f32 %v157, %v148
    %v162 = vmul.f32 %v160, %v148
    %v163 = vadd.f32 %v161, 1e-05
    %v164 = vadd.f32 %v162, 1e-05
    %v165 = vrsqrt.pop %v163
    %v166 = vrsqrt.pop %v164
    %v167 = vmul.f32 %v151, %v165
    %v168 = vmul.f32 %v152, %v166
    %v169 = vld [vmem:[%s4] sm:$0x1]
    %v171 = vlaneseq
    %v172 = vshrl.u32 %v171, 7
    %v173 = vsub.s32 0, %v172
    %v174 = vrot.slane %v169, %v173
    %v176 = vmul.f32 %v167, %v174
    %v177 = vmul.f32 %v168, %v174
    %v178 = vld [vmem:[%s5] sm:$0x1]
    %v180 = vlaneseq
    %v181 = vshrl.u32 %v180, 7
    %v182 = vsub.s32 0, %v181
    %v183 = vrot.slane %v178, %v182
    %v185 = vadd.f32 %v176, %v183
    %v186 = vadd.f32 %v177, %v183
    %187 = vst.msk [vmem:[%s6] sm:$0xff] %vm38, %v185
    %188 = vst.msk [vmem:[%s6 + $0x8] sm:$0xff] %vm38, %v186
  $region33: #{transformer_forward.60} parent=0 // pred_fallthru
    _
  // Predicated region
  $region34: #{transformer_forward.60} parent=0 // pred_check
    _
  $region35: #{transformer_forward.60} parent=0 // pred_check_branch
    %190 = sbr.rel (0) target = $region37
  $region36: #{transformer_forward.60} parent=0 // pred_region
    _
  $region37: #{transformer_forward.60} parent=0 // pred_fallthru
    _
  // Predicated region
  $region38: #{transformer_forward.60} parent=0 // pred_check
    _
  $region39: #{transformer_forward.60} parent=0 // pred_check_branch
    %192 = sbr.rel (0) target = $region41
  $region40: #{transformer_forward.60} parent=0 // pred_region
    _
  $region41: #{transformer_forward.60} parent=0 // pred_fallthru
    _

// kernel: transformer_forward.59
$region0: #{transformer_forward.59}
  #allocation0 [shape = 'u32[]', space=smem, size = 0x4, offset = 0x4, fixed_abs, tag = 'smem constant byte address 0x4 - core index']
  #allocation1 [shape = 'u32[144,128]{1,0:T(1,128)}', space=vmem, size = 0x12000, scoped, tag = 'internal scratch']
  %s0 = inlined_call_operand.vmem [shape: f32[2,8,96], index: 0, kind: input, shape index: {}]
  %s1 = inlined_call_operand.vmem [shape: f32[2,8,32], index: 1, kind: output, shape index: {}]
  %s2 = sld [smem:[#allocation0]]
  $region37: #{transformer_forward.59} parent=0
    _
  %s4 = ssub.s32 1, %s2
  %s5 = scalar_select 0, %s4, %s2
  loop: start=0, step=1, limit=4
  $region2: #{transformer_forward.59} parent=0 // loop_pre_header
    _
  $region3: #{transformer_forward.59} parent=0 // loop_header
    %s7 = sphi 0, %s11
    %p8 = scmp.ge.s32.totalorder %s7, 4
    %s17 = sphi 0, %s19
    %s20 = sphi 0, %s17
    %s21 = sphi 0, %s20
    %s37 = sphi 0, %s21
    %s43 = sphi 0, %s45
    %s46 = sphi 0, %s43
    %s47 = sphi 0, %s46
    %s63 = sphi 0, %s47
  $region4: #{transformer_forward.59} parent=0 // loop_header_branch
    %10 = sbr.rel (%p8) target = $region8
  $region5: #{transformer_forward.59} parent=0 // loop_body
    %s12 = ssub.s32 %s7, 1
    %s13 = ssub.s32 %s7, 2
    %s14 = sadd.s32 %s7, 1
    %s15 = ssub.s32 %s7, %s14
    %p16 = scmp.eq.s32.totalorder %s15, 0
    %s18 = sadd.s32 %s17, 1
    %s19 = scalar_select %p16, %s17, %s18
    %p22 = pneg %p16
    %p23 = scmp.eq.s32.totalorder %s7, 1
    %p24 = por %p22, %p23
    %p25 = scmp.ne.s32.totalorder %s17, %s20
    %p26 = scmp.eq.s32.totalorder %s7, 0
    %p27 = por %p25, %p26
    %p28 = scmp.ne.s32.totalorder %s17, %s20
    %p29 = scmp.eq.s32.totalorder %s12, 1
    %p30 = por %p28, %p29
    %p31 = scmp.ne.s32.totalorder %s20, %s21
    %p32 = scmp.eq.s32.totalorder %s12, 0
    %p33 = por %p31, %p32
    %p34 = scmp.ne.s32.totalorder %s20, %s21
    %p35 = scmp.eq.s32.totalorder %s13, 1
    %p36 = por %p34, %p35
    %p38 = scmp.ne.s32.totalorder %s21, %s37
    %p39 = scmp.eq.s32.totalorder %s13, 0
    %p40 = por %p38, %p39
    %s41 = ssub.s32 %s7, %s14
    %p42 = scmp.eq.s32.totalorder %s41, 0
    %s44 = sadd.s32 %s43, 1
    %s45 = scalar_select %p42, %s43, %s44
    %p48 = pneg %p42
    %p49 = scmp.eq.s32.totalorder %s7, 1
    %p50 = por %p48, %p49
    %p51 = scmp.ne.s32.totalorder %s43, %s46
    %p52 = scmp.eq.s32.totalorder %s7, 0
    %p53 = por %p51, %p52
    %p54 = scmp.ne.s32.totalorder %s43, %s46
    %p55 = scmp.eq.s32.totalorder %s12, 1
    %p56 = por %p54, %p55
    %p57 = scmp.ne.s32.totalorder %s46, %s47
    %p58 = scmp.eq.s32.totalorder %s12, 0
    %p59 = por %p57, %p58
    %p60 = scmp.ne.s32.totalorder %s46, %s47
    %p61 = scmp.eq.s32.totalorder %s13, 1
    %p62 = por %p60, %p61
    %p64 = scmp.ne.s32.totalorder %s47, %s63
    %p65 = scmp.eq.s32.totalorder %s13, 0
    %p66 = por %p64, %p65
    %p67 = scmp.le.s32.totalorder 1, %s7
    %p68 = scmp.lt.s32.totalorder %s7, 3
    %p69 = pnand %p67, %p68
    %p70 = pneg %p69
    // Predicated region
    $region9: #{transformer_forward.59} parent=5 // pred_check
      _
    $region10: #{transformer_forward.59} parent=5 // pred_check_branch
      %72 = sbr.rel (%p69) target = $region12
    $region11: #{transformer_forward.59} parent=5 // pred_region
      %s73 = ssub.s32 %s7, 1
    $region12: #{transformer_forward.59} parent=5 // pred_fallthru
      _
    %p74 = scmp.lt.s32.totalorder %s7, 2
    // Predicated region
    $region13: #{transformer_forward.59} parent=5 // pred_check
      %p75 = pneg %p74
    $region14: #{transformer_forward.59} parent=5 // pred_check_branch
      %77 = sbr.rel (%p75) target = $region16
    $region15: #{transformer_forward.59} parent=5 // pred_region
      // Predicated region
      $region17: #{transformer_forward.59} parent=15 // pred_check
        %p78 = pneg %p27
      $region18: #{transformer_forward.59} parent=15 // pred_check_branch
        %80 = sbr.rel (%p78) target = $region20
      $region19: #{transformer_forward.59} parent=15 // pred_region
        %p81 = scmp.lt.s32.totalorder %s7, 1
        %s82 = scalar_select %p81, %s7, 1
        %s83 = smul.addr %s82, 8
        %s84 = scalar_lea.vmem %s0, %s83
      $region20: #{transformer_forward.59} parent=15 // pred_fallthru
        _
    $region16: #{transformer_forward.59} parent=5 // pred_fallthru
      _
    %p85 = scmp.le.s32.totalorder 1, %s7
    %p86 = scmp.lt.s32.totalorder %s7, 3
    %p87 = pnand %p85, %p86
    %p88 = pneg %p87
    // Predicated region
    $region21: #{transformer_forward.59} parent=5 // pred_check
      _
    $region22: #{transformer_forward.59} parent=5 // pred_check_branch
      %90 = sbr.rel (%p87) target = $region24
    $region23: #{transformer_forward.59} parent=5 // pred_region
      %s91 = ssub.s32 %s7, 1
      %p92 = scmp.lt.s32.totalorder %s12, 1
      %s93 = scalar_select %p92, %s12, 1
      %s94 = smul.addr %s93, 8
      %s95 = scalar_lea.vmem %s0, %s94
      %p96 = pneg %p33
      %p97 = pneg %p30
      %p98 = pneg %p59
      %p99 = pneg %p56
      %p100 = scmp.lt.s32.totalorder %s12, 1
      %s101 = scalar_select %p100, %s12, 1
      %s102 = smul.addr %s101, 8
      %s103 = scalar_lea.vmem %s1, %s102
      %p104 = scmp.lt.s32.totalorder %s12, 1
      %s105 = scalar_select %p104, %s12, 1
      %s106 = smul.addr %s105, 8
      %s107 = scalar_lea.vmem %s0, %s106
      %p108 = scmp.lt.s32.totalorder %s12, 1
      %s109 = scalar_select %p108, %s12, 1
      %s110 = smul.addr %s109, 8
      %s111 = scalar_lea.vmem %s1, %s110
      %v112 = vld [vmem:[%s107] sm:$0xff]
      %v113 = vmul.f32 %v112, 0.5
      %115 = vrot.lane.b32.xlu0 %v112, 96
      %v116 = vpop.permute.xlu0 %115
      %vm117 = vcmask 31744
      %v119 = vsel %vm117, %v113, 0
      %v121 = vsel %vm117, %v116, 0
      %123 = vmatprep.subr.mxu0 0.0
      %124 = vmatpush1.xpose.msra.mxu0 %v121
      %125 = vmatprep.subr.mxu0 0.0
      %126 = vmatpush1.xpose.msra.mxu0 0.0
      %127 = vmatprep.subr.mxu0 0.0
      %128 = vmatpush1.xpose.msra.mxu0 0.0
      %129 = vmatprep.subr.mxu0 0.0
      %130 = vmatpush1.xpose.msra.mxu0 0.0
      %131 = vmatprep.subr.mxu0 0.0
      %132 = vmatpush1.xpose.msra.mxu0 0.0
      %133 = vmatprep.subr.mxu0 0.0
      %134 = vmatpush1.xpose.msra.mxu0 0.0
      %135 = vmatprep.subr.mxu0 0.0
      %136 = vmatpush1.xpose.msra.mxu0 0.0
      %137 = vmatprep.subr.mxu0 0.0
      %138 = vmatpush1.xpose.msra.mxu0 0.0
      %139 = vmatprep.subr.mxu0 0.0
      %140 = vmatpush1.xpose.msra.mxu0 0.0
      %141 = vmatprep.subr.mxu0 0.0
      %142 = vmatpush1.xpose.msra.mxu0 0.0
      %143 = vmatprep.subr.mxu0 0.0
      %144 = vmatpush1.xpose.msra.mxu0 0.0
      %145 = vmatprep.subr.mxu0 0.0
      %146 = vmatpush1.xpose.msra.mxu0 0.0
      %147 = vmatprep.subr.mxu0 0.0
      %148 = vmatpush1.xpose.msra.mxu0 0.0
      %149 = vmatprep.subr.mxu0 0.0
      %150 = vmatpush1.xpose.msra.mxu0 0.0
      %151 = vmatprep.subr.mxu0 0.0
      %152 = vmatpush1.xpose.msra.mxu0 0.0
      %153 = vmatprep.subr.mxu0 0.0
      %154 = vmatpush1.xpose.msra.mxu0 0.0
      %155 = vmatprep.subr.mxu0 0.0
      %156 = vmatpush1.xpose.msra.mxu0 0.0
      %157 = vmatprep.subr.mxu0 0.0
      %158 = vmatpush1.xpose.msra.mxu0 0.0
      %159 = vmatprep.subr.mxu0 0.0
      %160 = vmatpush1.xpose.msra.mxu0 0.0
      %161 = vmatprep.subr.mxu0 0.0
      %162 = vmatpush1.xpose.msra.mxu0 0.0
      %163 = vmatprep.subr.mxu0 0.0
      %164 = vmatpush1.xpose.msra.mxu0 0.0
      %165 = vmatprep.subr.mxu0 0.0
      %166 = vmatpush1.xpose.msra.mxu0 0.0
      %167 = vmatprep.subr.mxu0 0.0
      %168 = vmatpush1.xpose.msra.mxu0 0.0
      %169 = vmatprep.subr.mxu0 0.0
      %170 = vmatpush1.xpose.msra.mxu0 0.0
      %171 = vmatprep.subr.mxu0 0.0
      %172 = vmatpush1.xpose.msra.mxu0 0.0
      %173 = vmatprep.subr.mxu0 0.0
      %174 = vmatpush1.xpose.msra.mxu0 0.0
      %175 = vmatprep.subr.mxu0 0.0
      %176 = vmatpush1.xpose.msra.mxu0 0.0
      %177 = vmatprep.subr.mxu0 0.0
      %178 = vmatpush1.xpose.msra.mxu0 0.0
      %179 = vmatprep.subr.mxu0 0.0
      %180 = vmatpush1.xpose.msra.mxu0 0.0
      %181 = vmatprep.subr.mxu0 0.0
      %182 = vmatpush1.xpose.msra.mxu0 0.0
      %183 = vmatprep.subr.mxu0 0.0
      %184 = vmatpush1.xpose.msra.mxu0 0.0
      %185 = vmatprep.subr.mxu0 0.0
      %186 = vmatpush1.xpose.msra.mxu0 0.0
      %187 = vmatprep.mubr.f32.mxu0 0.0
      %188 = vmatmul.mubr.f32.gmra.mrb[0].mxu0 %v119
      %v189 = vpop.f32.mrb[0].mxu0
      %v190 = vadd.f32 0.0, %v189
      %v191 = vpop.f32.mrb[0].mxu0
      %192 = vdwg.mxu0
      %vm193 = vcmask 64512
      %v194 = vsel %vm193, %v190, -inf
      %195 = vmax.xlane.f32.xlu0 %v194
      %v196 = vpop.xlane.xlu0 %195
      %v197 = vsub.f32 %v190, %v196
      %v198 = vmul.f32 %v197, 1.442695
      %v199 = vpow.pop %v198
      %v200 = vsel %vm193, %v199, 0.0
      %201 = vadd.xlane.f32.xlu0 %v200
      %v202 = vpop.xlane.xlu0 %201
      %v203 = vrcp.pop %v202
      %v204 = vmul.f32 %v199, %v203
      %205 = vrot.lane.b32.xlu0 %v112, 64
      %v206 = vpop.permute.xlu0 %205
      %v209 = vsel %vm193, %v204, 0
      %211 = vmatprep.subr.mxu0 0.0
      %212 = vmatpush1.msra.mxu0 %v206
      %213 = vmatprep.subr.mxu0 0.0
      %214 = vmatpush1.msra.mxu0 0.0
      %215 = vmatprep.subr.mxu0 0.0
      %216 = vmatpush1.msra.mxu0 0.0
      %217 = vmatprep.subr.mxu0 0.0
      %218 = vmatpush1.msra.mxu0 0.0
      %219 = vmatprep.subr.mxu0 0.0
      %220 = vmatpush1.msra.mxu0 0.0
      %221 = vmatprep.subr.mxu0 0.0
      %222 = vmatpush1.msra.mxu0 0.0
      %223 = vmatprep.subr.mxu0 0.0
      %224 = vmatpush1.msra.mxu0 0.0
      %225 = vmatprep.subr.mxu0 0.0
      %226 = vmatpush1.msra.mxu0 0.0
      %227 = vmatprep.subr.mxu0 0.0
      %228 = vmatpush1.msra.mxu0 0.0
      %229 = vmatprep.subr.mxu0 0.0
      %230 = vmatpush1.msra.mxu0 0.0
      %231 = vmatprep.subr.mxu0 0.0
      %232 = vmatpush1.msra.mxu0 0.0
      %233 = vmatprep.subr.mxu0 0.0
      %234 = vmatpush1.msra.mxu0 0.0
      %235 = vmatprep.subr.mxu0 0.0
      %236 = vmatpush1.msra.mxu0 0.0
      %237 = vmatprep.subr.mxu0 0.0
      %238 = vmatpush1.msra.mxu0 0.0
      %239 = vmatprep.subr.mxu0 0.0
      %240 = vmatpush1.msra.mxu0 0.0
      %241 = vmatprep.subr.mxu0 0.0
      %242 = vmatpush1.msra.mxu0 0.0
      %243 = vmatprep.subr.mxu0 0.0
      %244 = vmatpush1.msra.mxu0 0.0
      %245 = vmatprep.subr.mxu0 0.0
      %246 = vmatpush1.msra.mxu0 0.0
      %247 = vmatprep.subr.mxu0 0.0
      %248 = vmatpush1.msra.mxu0 0.0
      %249 = vmatprep.subr.mxu0 0.0
      %250 = vmatpush1.msra.mxu0 0.0
      %251 = vmatprep.subr.mxu0 0.0
      %252 = vmatpush1.msra.mxu0 0.0
      %253 = vmatprep.subr.mxu0 0.0
      %254 = vmatpush1.msra.mxu0 0.0
      %255 = vmatprep.subr.mxu0 0.0
      %256 = vmatpush1.msra.mxu0 0.0
      %257 = vmatprep.subr.mxu0 0.0
      %258 = vmatpush1.msra.mxu0 0.0
      %259 = vmatprep.subr.mxu0 0.0
      %260 = vmatpush1.msra.mxu0 0.0
      %261 = vmatprep.subr.mxu0 0.0
      %262 = vmatpush1.msra.mxu0 0.0
      %263 = vmatprep.subr.mxu0 0.0
      %264 = vmatpush1.msra.mxu0 0.0
      %265 = vmatprep.subr.mxu0 0.0
      %266 = vmatpush1.msra.mxu0 0.0
      %267 = vmatprep.subr.mxu0 0.0
      %268 = vmatpush1.msra.mxu0 0.0
      %269 = vmatprep.subr.mxu0 0.0
      %270 = vmatpush1.msra.mxu0 0.0
      %271 = vmatprep.subr.mxu0 0.0
      %272 = vmatpush1.msra.mxu0 0.0
      %273 = vmatprep.subr.mxu0 0.0
      %274 = vmatpush1.msra.mxu0 0.0
      %275 = vmatprep.mubr.f32.mxu0 0.0
      %276 = vmatmul.mubr.f32.gmra.mrb[0].mxu0 %v209
      %v277 = vpop.f32.mrb[0].mxu0
      %v278 = vadd.f32 0.0, %v277
      %v279 = vpop.f32.mrb[0].mxu0
      %280 = vdwg.mxu0
      %281 = vst.msk [vmem:[%s111] sm:$0xff] %vm117, %v278
      %282 = vrot.lane.b32.xlu0 %v113, 124
      %v283 = vpop.permute.xlu0 %282
      %284 = vrot.lane.b32.xlu0 %v112, 92
      %v285 = vpop.permute.xlu0 %284
      %v286 = vsel %vm117, %v283, 0
      %v288 = vsel %vm117, %v285, 0
      %290 = vmatprep.subr.mxu0 0.0
      %291 = vmatpush1.xpose.msra.mxu0 %v288
      %292 = vmatprep.subr.mxu0 0.0
      %293 = vmatpush1.xpose.msra.mxu0 0.0
      %294 = vmatprep.subr.mxu0 0.0
      %295 = vmatpush1.xpose.msra.mxu0 0.0
      %296 = vmatprep.subr.mxu0 0.0
      %297 = vmatpush1.xpose.msra.mxu0 0.0
      %298 = vmatprep.subr.mxu0 0.0
      %299 = vmatpush1.xpose.msra.mxu0 0.0
      %300 = vmatprep.subr.mxu0 0.0
      %301 = vmatpush1.xpose.msra.mxu0 0.0
      %302 = vmatprep.subr.mxu0 0.0
      %303 = vmatpush1.xpose.msra.mxu0 0.0
      %304 = vmatprep.subr.mxu0 0.0
      %305 = vmatpush1.xpose.msra.mxu0 0.0
      %306 = vmatprep.subr.mxu0 0.0
      %307 = vmatpush1.xpose.msra.mxu0 0.0
      %308 = vmatprep.subr.mxu0 0.0
      %309 = vmatpush1.xpose.msra.mxu0 0.0
      %310 = vmatprep.subr.mxu0 0.0
      %311 = vmatpush1.xpose.msra.mxu0 0.0
      %312 = vmatprep.subr.mxu0 0.0
      %313 = vmatpush1.xpose.msra.mxu0 0.0
      %314 = vmatprep.subr.mxu0 0.0
      %315 = vmatpush1.xpose.msra.mxu0 0.0
      %316 = vmatprep.subr.mxu0 0.0
      %317 = vmatpush1.xpose.msra.mxu0 0.0
      %318 = vmatprep.subr.mxu0 0.0
      %319 = vmatpush1.xpose.msra.mxu0 0.0
      %320 = vmatprep.subr.mxu0 0.0
      %321 = vmatpush1.xpose.msra.mxu0 0.0
      %322 = vmatprep.subr.mxu0 0.0
      %323 = vmatpush1.xpose.msra.mxu0 0.0
      %324 = vmatprep.subr.mxu0 0.0
      %325 = vmatpush1.xpose.msra.mxu0 0.0
      %326 = vmatprep.subr.mxu0 0.0
      %327 = vmatpush1.xpose.msra.mxu0 0.0
      %328 = vmatprep.subr.mxu0 0.0
      %329 = vmatpush1.xpose.msra.mxu0 0.0
      %330 = vmatprep.subr.mxu0 0.0
      %331 = vmatpush1.xpose.msra.mxu0 0.0
      %332 = vmatprep.subr.mxu0 0.0
      %333 = vmatpush1.xpose.msra.mxu0 0.0
      %334 = vmatprep.subr.mxu0 0.0
      %335 = vmatpush1.xpose.msra.mxu0 0.0
      %336 = vmatprep.subr.mxu0 0.0
      %337 = vmatpush1.xpose.msra.mxu0 0.0
      %338 = vmatprep.subr.mxu0 0.0
      %339 = vmatpush1.xpose.msra.mxu0 0.0
      %340 = vmatprep.subr.mxu0 0.0
      %341 = vmatpush1.xpose.msra.mxu0 0.0
      %342 = vmatprep.subr.mxu0 0.0
      %343 = vmatpush1.xpose.msra.mxu0 0.0
      %344 = vmatprep.subr.mxu0 0.0
      %345 = vmatpush1.xpose.msra.mxu0 0.0
      %346 = vmatprep.subr.mxu0 0.0
      %347 = vmatpush1.xpose.msra.mxu0 0.0
      %348 = vmatprep.subr.mxu0 0.0
      %349 = vmatpush1.xpose.msra.mxu0 0.0
      %350 = vmatprep.subr.mxu0 0.0
      %351 = vmatpush1.xpose.msra.mxu0 0.0
      %352 = vmatprep.subr.mxu0 0.0
      %353 = vmatpush1.xpose.msra.mxu0 0.0
      %354 = vmatprep.mubr.f32.mxu0 0.0
      %355 = vmatmul.mubr.f32.gmra.mrb[0].mxu0 %v286
      %v356 = vpop.f32.mrb[0].mxu0
      %v357 = vadd.f32 0.0, %v356
      %v358 = vpop.f32.mrb[0].mxu0
      %359 = vdwg.mxu0
      %v360 = vsel %vm193, %v357, -inf
      %361 = vmax.xlane.f32.xlu0 %v360
      %v362 = vpop.xlane.xlu0 %361
      %v363 = vsub.f32 %v357, %v362
      %v364 = vmul.f32 %v363, 1.442695
      %v365 = vpow.pop %v364
      %v366 = vsel %vm193, %v365, 0.0
      %367 = vadd.xlane.f32.xlu0 %v366
      %v368 = vpop.xlane.xlu0 %367
      %v369 = vrcp.pop %v368
      %v370 = vmul.f32 %v365, %v369
      %371 = vrot.lane.b32.xlu0 %v112, 60
      %v372 = vpop.permute.xlu0 %371
      %v375 = vsel %vm193, %v370, 0
      %377 = vmatprep.subr.mxu0 0.0
      %378 = vmatpush1.msra.mxu0 %v372
      %379 = vmatprep.subr.mxu0 0.0
      %380 = vmatpush1.msra.mxu0 0.0
      %381 = vmatprep.subr.mxu0 0.0
      %382 = vmatpush1.msra.mxu0 0.0
      %383 = vmatprep.subr.mxu0 0.0
      %384 = vmatpush1.msra.mxu0 0.0
      %385 = vmatprep.subr.mxu0 0.0
      %386 = vmatpush1.msra.mxu0 0.0
      %387 = vmatprep.subr.mxu0 0.0
      %388 = vmatpush1.msra.mxu0 0.0
      %389 = vmatprep.subr.mxu0 0.0
      %390 = vmatpush1.msra.mxu0 0.0
      %391 = vmatprep.subr.mxu0 0.0
      %392 = vmatpush1.msra.mxu0 0.0
      %393 = vmatprep.subr.mxu0 0.0
      %394 = vmatpush1.msra.mxu0 0.0
      %395 = vmatprep.subr.mxu0 0.0
      %396 = vmatpush1.msra.mxu0 0.0
      %397 = vmatprep.subr.mxu0 0.0
      %398 = vmatpush1.msra.mxu0 0.0
      %399 = vmatprep.subr.mxu0 0.0
      %400 = vmatpush1.msra.mxu0 0.0
      %401 = vmatprep.subr.mxu0 0.0
      %402 = vmatpush1.msra.mxu0 0.0
      %403 = vmatprep.subr.mxu0 0.0
      %404 = vmatpush1.msra.mxu0 0.0
      %405 = vmatprep.subr.mxu0 0.0
      %406 = vmatpush1.msra.mxu0 0.0
      %407 = vmatprep.subr.mxu0 0.0
      %408 = vmatpush1.msra.mxu0 0.0
      %409 = vmatprep.subr.mxu0 0.0
      %410 = vmatpush1.msra.mxu0 0.0
      %411 = vmatprep.subr.mxu0 0.0
      %412 = vmatpush1.msra.mxu0 0.0
      %413 = vmatprep.subr.mxu0 0.0
      %414 = vmatpush1.msra.mxu0 0.0
      %415 = vmatprep.subr.mxu0 0.0
      %416 = vmatpush1.msra.mxu0 0.0
      %417 = vmatprep.subr.mxu0 0.0
      %418 = vmatpush1.msra.mxu0 0.0
      %419 = vmatprep.subr.mxu0 0.0
      %420 = vmatpush1.msra.mxu0 0.0
      %421 = vmatprep.subr.mxu0 0.0
      %422 = vmatpush1.msra.mxu0 0.0
      %423 = vmatprep.subr.mxu0 0.0
      %424 = vmatpush1.msra.mxu0 0.0
      %425 = vmatprep.subr.mxu0 0.0
      %426 = vmatpush1.msra.mxu0 0.0
      %427 = vmatprep.subr.mxu0 0.0
      %428 = vmatpush1.msra.mxu0 0.0
      %429 = vmatprep.subr.mxu0 0.0
      %430 = vmatpush1.msra.mxu0 0.0
      %431 = vmatprep.subr.mxu0 0.0
      %432 = vmatpush1.msra.mxu0 0.0
      %433 = vmatprep.subr.mxu0 0.0
      %434 = vmatpush1.msra.mxu0 0.0
      %435 = vmatprep.subr.mxu0 0.0
      %436 = vmatpush1.msra.mxu0 0.0
      %437 = vmatprep.subr.mxu0 0.0
      %438 = vmatpush1.msra.mxu0 0.0
      %439 = vmatprep.subr.mxu0 0.0
      %440 = vmatpush1.msra.mxu0 0.0
      %441 = vmatprep.mubr.f32.mxu0 0.0
      %442 = vmatmul.mubr.f32.gmra.mrb[0].mxu0 %v375
      %v443 = vpop.f32.mrb[0].mxu0
      %v444 = vadd.f32 0.0, %v443
      %v445 = vpop.f32.mrb[0].mxu0
      %446 = vdwg.mxu0
      %448 = vrot.lane.b32.xlu0 %v444, 4
      %v449 = vpop.permute.xlu0 %448
      %vm451 = vcmask 64544
      %452 = vst.msk [vmem:[%s111] sm:$0xff] %vm451, %v449
      %453 = vrot.lane.b32.xlu0 %v113, 120
      %v454 = vpop.permute.xlu0 %453
      %455 = vrot.lane.b32.xlu0 %v112, 88
      %v456 = vpop.permute.xlu0 %455
      %v457 = vsel %vm117, %v454, 0
      %v459 = vsel %vm117, %v456, 0
      %461 = vmatprep.subr.mxu0 0.0
      %462 = vmatpush1.xpose.msra.mxu0 %v459
      %463 = vmatprep.subr.mxu0 0.0
      %464 = vmatpush1.xpose.msra.mxu0 0.0
      %465 = vmatprep.subr.mxu0 0.0
      %466 = vmatpush1.xpose.msra.mxu0 0.0
      %467 = vmatprep.subr.mxu0 0.0
      %468 = vmatpush1.xpose.msra.mxu0 0.0
      %469 = vmatprep.subr.mxu0 0.0
      %470 = vmatpush1.xpose.msra.mxu0 0.0
      %471 = vmatprep.subr.mxu0 0.0
      %472 = vmatpush1.xpose.msra.mxu0 0.0
      %473 = vmatprep.subr.mxu0 0.0
      %474 = vmatpush1.xpose.msra.mxu0 0.0
      %475 = vmatprep.subr.mxu0 0.0
      %476 = vmatpush1.xpose.msra.mxu0 0.0
      %477 = vmatprep.subr.mxu0 0.0
      %478 = vmatpush1.xpose.msra.mxu0 0.0
      %479 = vmatprep.subr.mxu0 0.0
      %480 = vmatpush1.xpose.msra.mxu0 0.0
      %481 = vmatprep.subr.mxu0 0.0
      %482 = vmatpush1.xpose.msra.mxu0 0.0
      %483 = vmatprep.subr.mxu0 0.0
      %484 = vmatpush1.xpose.msra.mxu0 0.0
      %485 = vmatprep.subr.mxu0 0.0
      %486 = vmatpush1.xpose.msra.mxu0 0.0
      %487 = vmatprep.subr.mxu0 0.0
      %488 = vmatpush1.xpose.msra.mxu0 0.0
      %489 = vmatprep.subr.mxu0 0.0
      %490 = vmatpush1.xpose.msra.mxu0 0.0
      %491 = vmatprep.subr.mxu0 0.0
      %492 = vmatpush1.xpose.msra.mxu0 0.0
      %493 = vmatprep.subr.mxu0 0.0
      %494 = vmatpush1.xpose.msra.mxu0 0.0
      %495 = vmatprep.subr.mxu0 0.0
      %496 = vmatpush1.xpose.msra.mxu0 0.0
      %497 = vmatprep.subr.mxu0 0.0
      %498 = vmatpush1.xpose.msra.mxu0 0.0
      %499 = vmatprep.subr.mxu0 0.0
      %500 = vmatpush1.xpose.msra.mxu0 0.0
      %501 = vmatprep.subr.mxu0 0.0
      %502 = vmatpush1.xpose.msra.mxu0 0.0
      %503 = vmatprep.subr.mxu0 0.0
      %504 = vmatpush1.xpose.msra.mxu0 0.0
      %505 = vmatprep.subr.mxu0 0.0
      %506 = vmatpush1.xpose.msra.mxu0 0.0
      %507 = vmatprep.subr.mxu0 0.0
      %508 = vmatpush1.xpose.msra.mxu0 0.0
      %509 = vmatprep.subr.mxu0 0.0
      %510 = vmatpush1.xpose.msra.mxu0 0.0
      %511 = vmatprep.subr.mxu0 0.0
      %512 = vmatpush1.xpose.msra.mxu0 0.0
      %513 = vmatprep.subr.mxu0 0.0
      %514 = vmatpush1.xpose.msra.mxu0 0.0
      %515 = vmatprep.subr.mxu0 0.0
      %516 = vmatpush1.xpose.msra.mxu0 0.0
      %517 = vmatprep.subr.mxu0 0.0
      %518 = vmatpush1.xpose.msra.mxu0 0.0
      %519 = vmatprep.subr.mxu0 0.0
      %520 = vmatpush1.xpose.msra.mxu0 0.0
      %521 = vmatprep.subr.mxu0 0.0
      %522 = vmatpush1.xpose.msra.mxu0 0.0
      %523 = vmatprep.subr.mxu0 0.0
      %524 = vmatpush1.xpose.msra.mxu0 0.0
      %525 = vmatprep.mubr.f32.mxu0 0.0
      %526 = vmatmul.mubr.f32.gmra.mrb[0].mxu0 %v457
      %v527 = vpop.f32.mrb[0].mxu0
      %v528 = vadd.f32 0.0, %v527
      %v529 = vpop.f32.mrb[0].mxu0
      %530 = vdwg.mxu0
      %v531 = vsel %vm193, %v528, -inf
      %532 = vmax.xlane.f32.xlu0 %v531
      %v533 = vpop.xlane.xlu0 %532
      %v534 = vsub.f32 %v528, %v533
      %v535 = vmul.f32 %v534, 1.442695
      %v536 = vpow.pop %v535
      %v537 = vsel %vm193, %v536, 0.0
      %538 = vadd.xlane.f32.xlu0 %v537
      %v539 = vpop.xlane.xlu0 %538
      %v540 = vrcp.pop %v539
      %v541 = vmul.f32 %v536, %v540
      %542 = vrot.lane.b32.xlu0 %v112, 56
      %v543 = vpop.permute.xlu0 %542
      %v546 = vsel %vm193, %v541, 0
      %548 = vmatprep.subr.mxu0 0.0
      %549 = vmatpush1.msra.mxu0 %v543
      %550 = vmatprep.subr.mxu0 0.0
      %551 = vmatpush1.msra.mxu0 0.0
      %552 = vmatprep.subr.mxu0 0.0
      %553 = vmatpush1.msra.mxu0 0.0
      %554 = vmatprep.subr.mxu0 0.0
      %555 = vmatpush1.msra.mxu0 0.0
      %556 = vmatprep.subr.mxu0 0.0
      %557 = vmatpush1.msra.mxu0 0.0
      %558 = vmatprep.subr.mxu0 0.0
      %559 = vmatpush1.msra.mxu0 0.0
      %560 = vmatprep.subr.mxu0 0.0
      %561 = vmatpush1.msra.mxu0 0.0
      %562 = vmatprep.subr.mxu0 0.0
      %563 = vmatpush1.msra.mxu0 0.0
      %564 = vmatprep.subr.mxu0 0.0
      %565 = vmatpush1.msra.mxu0 0.0
      %566 = vmatprep.subr.mxu0 0.0
      %567 = vmatpush1.msra.mxu0 0.0
      %568 = vmatprep.subr.mxu0 0.0
      %569 = vmatpush1.msra.mxu0 0.0
      %570 = vmatprep.subr.mxu0 0.0
      %571 = vmatpush1.msra.mxu0 0.0
      %572 = vmatprep.subr.mxu0 0.0
      %573 = vmatpush1.msra.mxu0 0.0
      %574 = vmatprep.subr.mxu0 0.0
      %575 = vmatpush1.msra.mxu0 0.0
      %576 = vmatprep.subr.mxu0 0.0
      %577 = vmatpush1.msra.mxu0 0.0
      %578 = vmatprep.subr.mxu0 0.0
      %579 = vmatpush1.msra.mxu0 0.0
      %580 = vmatprep.subr.mxu0 0.0
      %581 = vmatpush1.msra.mxu0 0.0
      %582 = vmatprep.subr.mxu0 0.0
      %583 = vmatpush1.msra.mxu0 0.0
      %584 = vmatprep.subr.mxu0 0.0
      %585 = vmatpush1.msra.mxu0 0.0
      %586 = vmatprep.subr.mxu0 0.0
      %587 = vmatpush1.msra.mxu0 0.0
      %588 = vmatprep.subr.mxu0 0.0
      %589 = vmatpush1.msra.mxu0 0.0
      %590 = vmatprep.subr.mxu0 0.0
      %591 = vmatpush1.msra.mxu0 0.0
      %592 = vmatprep.subr.mxu0 0.0
      %593 = vmatpush1.msra.mxu0 0.0
      %594 = vmatprep.subr.mxu0 0.0
      %595 = vmatpush1.msra.mxu0 0.0
      %596 = vmatprep.subr.mxu0 0.0
      %597 = vmatpush1.msra.mxu0 0.0
      %598 = vmatprep.subr.mxu0 0.0
      %599 = vmatpush1.msra.mxu0 0.0
      %600 = vmatprep.subr.mxu0 0.0
      %601 = vmatpush1.msra.mxu0 0.0
      %602 = vmatprep.subr.mxu0 0.0
      %603 = vmatpush1.msra.mxu0 0.0
      %604 = vmatprep.subr.mxu0 0.0
      %605 = vmatpush1.msra.mxu0 0.0
      %606 = vmatprep.subr.mxu0 0.0
      %607 = vmatpush1.msra.mxu0 0.0
      %608 = vmatprep.subr.mxu0 0.0
      %609 = vmatpush1.msra.mxu0 0.0
      %610 = vmatprep.subr.mxu0 0.0
      %611 = vmatpush1.msra.mxu0 0.0
      %612 = vmatprep.mubr.f32.mxu0 0.0
      %613 = vmatmul.mubr.f32.gmra.mrb[0].mxu0 %v546
      %v614 = vpop.f32.mrb[0].mxu0
      %v615 = vadd.f32 0.0, %v614
      %v616 = vpop.f32.mrb[0].mxu0
      %617 = vdwg.mxu0
      %619 = vrot.lane.b32.xlu0 %v615, 8
      %v620 = vpop.permute.xlu0 %619
      %vm622 = vcmask 97344
      %623 = vst.msk [vmem:[%s111] sm:$0xff] %vm622, %v620
      %624 = vrot.lane.b32.xlu0 %v113, 116
      %v625 = vpop.permute.xlu0 %624
      %626 = vrot.lane.b32.xlu0 %v112, 84
      %v627 = vpop.permute.xlu0 %626
      %v628 = vsel %vm117, %v625, 0
      %v630 = vsel %vm117, %v627, 0
      %632 = vmatprep.subr.mxu0 0.0
      %633 = vmatpush1.xpose.msra.mxu0 %v630
      %634 = vmatprep.subr.mxu0 0.0
      %635 = vmatpush1.xpose.msra.mxu0 0.0
      %636 = vmatprep.subr.mxu0 0.0
      %637 = vmatpush1.xpose.msra.mxu0 0.0
      %638 = vmatprep.subr.mxu0 0.0
      %639 = vmatpush1.xpose.msra.mxu0 0.0
      %640 = vmatprep.subr.mxu0 0.0
      %641 = vmatpush1.xpose.msra.mxu0 0.0
      %642 = vmatprep.subr.mxu0 0.0
      %643 = vmatpush1.xpose.msra.mxu0 0.0
      %644 = vmatprep.subr.mxu0 0.0
      %645 = vmatpush1.xpose.msra.mxu0 0.0
      %646 = vmatprep.subr.mxu0 0.0
      %647 = vmatpush1.xpose.msra.mxu0 0.0
      %648 = vmatprep.subr.mxu0 0.0
      %649 = vmatpush1.xpose.msra.mxu0 0.0
      %650 = vmatprep.subr.mxu0 0.0
      %651 = vmatpush1.xpose.msra.mxu0 0.0
      %652 = vmatprep.subr.mxu0 0.0
      %653 = vmatpush1.xpose.msra.mxu0 0.0
      %654 = vmatprep.subr.mxu0 0.0
      %655 = vmatpush1.xpose.msra.mxu0 0.0
      %656 = vmatprep.subr.mxu0 0.0
      %657 = vmatpush1.xpose.msra.mxu0 0.0
      %658 = vmatprep.subr.mxu0 0.0
      %659 = vmatpush1.xpose.msra.mxu0 0.0
      %660 = vmatprep.subr.mxu0 0.0
      %661 = vmatpush1.xpose.msra.mxu0 0.0
      %662 = vmatprep.subr.mxu0 0.0
      %663 = vmatpush1.xpose.msra.mxu0 0.0
      %664 = vmatprep.subr.mxu0 0.0
      %665 = vmatpush1.xpose.msra.mxu0 0.0
      %666 = vmatprep.subr.mxu0 0.0
      %667 = vmatpush1.xpose.msra.mxu0 0.0
      %668 = vmatprep.subr.mxu0 0.0
      %669 = vmatpush1.xpose.msra.mxu0 0.0
      %670 = vmatprep.subr.mxu0 0.0
      %671 = vmatpush1.xpose.msra.mxu0 0.0
      %672 = vmatprep.subr.mxu0 0.0
      %673 = vmatpush1.xpose.msra.mxu0 0.0
      %674 = vmatprep.subr.mxu0 0.0
      %675 = vmatpush1.xpose.msra.mxu0 0.0
      %676 = vmatprep.subr.mxu0 0.0
      %677 = vmatpush1.xpose.msra.mxu0 0.0
      %678 = vmatprep.subr.mxu0 0.0
      %679 = vmatpush1.xpose.msra.mxu0 0.0
      %680 = vmatprep.subr.mxu0 0.0
      %681 = vmatpush1.xpose.msra.mxu0 0.0
      %682 = vmatprep.subr.mxu0 0.0
      %683 = vmatpush1.xpose.msra.mxu0 0.0
      %684 = vmatprep.subr.mxu0 0.0
      %685 = vmatpush1.xpose.msra.mxu0 0.0
      %686 = vmatprep.subr.mxu0 0.0
      %687 = vmatpush1.xpose.msra.mxu0 0.0
      %688 = vmatprep.subr.mxu0 0.0
      %689 = vmatpush1.xpose.msra.mxu0 0.0
      %690 = vmatprep.subr.mxu0 0.0
      %691 = vmatpush1.xpose.msra.mxu0 0.0
      %692 = vmatprep.subr.mxu0 0.0
      %693 = vmatpush1.xpose.msra.mxu0 0.0
      %694 = vmatprep.subr.mxu0 0.0
      %695 = vmatpush1.xpose.msra.mxu0 0.0
      %696 = vmatprep.mubr.f32.mxu0 0.0
      %697 = vmatmul.mubr.f32.gmra.mrb[0].mxu0 %v628
      %v698 = vpop.f32.mrb[0].mxu0
      %v699 = vadd.f32 0.0, %v698
      %v700 = vpop.f32.mrb[0].mxu0
      %701 = vdwg.mxu0
      %v702 = vsel %vm193, %v699, -inf
      %703 = vmax.xlane.f32.xlu0 %v702
      %v704 = vpop.xlane.xlu0 %703
      %v705 = vsub.f32 %v699, %v704
      %v706 = vmul.f32 %v705, 1.442695
      %v707 = vpow.pop %v706
      %v708 = vsel %vm193, %v707, 0.0
      %709 = vadd.xlane.f32.xlu0 %v708
      %v710 = vpop.xlane.xlu0 %709
      %v711 = vrcp.pop %v710
      %v712 = vmul.f32 %v707, %v711
      %713 = vrot.lane.b32.xlu0 %v112, 52
      %v714 = vpop.permute.xlu0 %713
      %v717 = vsel %vm193, %v712, 0
      %719 = vmatprep.subr.mxu0 0.0
      %720 = vmatpush1.msra.mxu0 %v714
      %721 = vmatprep.subr.mxu0 0.0
      %722 = vmatpush1.msra.mxu0 0.0
      %723 = vmatprep.subr.mxu0 0.0
      %724 = vmatpush1.msra.mxu0 0.0
      %725 = vmatprep.subr.mxu0 0.0
      %726 = vmatpush1.msra.mxu0 0.0
      %727 = vmatprep.subr.mxu0 0.0
      %728 = vmatpush1.msra.mxu0 0.0
      %729 = vmatprep.subr.mxu0 0.0
      %730 = vmatpush1.msra.mxu0 0.0
      %731 = vmatprep.subr.mxu0 0.0
      %732 = vmatpush1.msra.mxu0 0.0
      %733 = vmatprep.subr.mxu0 0.0
      %734 = vmatpush1.msra.mxu0 0.0
      %735 = vmatprep.subr.mxu0 0.0
      %736 = vmatpush1.msra.mxu0 0.0
      %737 = vmatprep.subr.mxu0 0.0
      %738 = vmatpush1.msra.mxu0 0.0
      %739 = vmatprep.subr.mxu0 0.0
      %740 = vmatpush1.msra.mxu0 0.0
      %741 = vmatprep.subr.mxu0 0.0
      %742 = vmatpush1.msra.mxu0 0.0
      %743 = vmatprep.subr.mxu0 0.0
      %744 = vmatpush1.msra.mxu0 0.0
      %745 = vmatprep.subr.mxu0 0.0
      %746 = vmatpush1.msra.mxu0 0.0
      %747 = vmatprep.subr.mxu0 0.0
      %748 = vmatpush1.msra.mxu0 0.0
      %749 = vmatprep.subr.mxu0 0.0
      %750 = vmatpush1.msra.mxu0 0.0
      %751 = vmatprep.subr.mxu0 0.0
      %752 = vmatpush1.msra.mxu0 0.0
      %753 = vmatprep.subr.mxu0 0.0
      %754 = vmatpush1.msra.mxu0 0.0
      %755 = vmatprep.subr.mxu0 0.0
      %756 = vmatpush1.msra.mxu0 0.0
      %757 = vmatprep.subr.mxu0 0.0
      %758 = vmatpush1.msra.mxu0 0.0
      %759 = vmatprep.subr.mxu0 0.0
      %760 = vmatpush1.msra.mxu0 0.0
      %761 = vmatprep.subr.mxu0 0.0
      %762 = vmatpush1.msra.mxu0 0.0
      %763 = vmatprep.subr.mxu0 0.0
      %764 = vmatpush1.msra.mxu0 0.0
      %765 = vmatprep.subr.mxu0 0.0
      %766 = vmatpush1.msra.mxu0 0.0
      %767 = vmatprep.subr.mxu0 0.0
      %768 = vmatpush1.msra.mxu0 0.0
      %769 = vmatprep.subr.mxu0 0.0
      %770 = vmatpush1.msra.mxu0 0.0
      %771 = vmatprep.subr.mxu0 0.0
      %772 = vmatpush1.msra.mxu0 0.0
      %773 = vmatprep.subr.mxu0 0.0
      %774 = vmatpush1.msra.mxu0 0.0
      %775 = vmatprep.subr.mxu0 0.0
      %776 = vmatpush1.msra.mxu0 0.0
      %777 = vmatprep.subr.mxu0 0.0
      %778 = vmatpush1.msra.mxu0 0.0
      %779 = vmatprep.subr.mxu0 0.0
      %780 = vmatpush1.msra.mxu0 0.0
      %781 = vmatprep.subr.mxu0 0.0
      %782 = vmatpush1.msra.mxu0 0.0
      %783 = vmatprep.mubr.f32.mxu0 0.0
      %784 = vmatmul.mubr.f32.gmra.mrb[0].mxu0 %v717
      %v785 = vpop.f32.mrb[0].mxu0
      %v786 = vadd.f32 0.0, %v785
      %v787 = vpop.f32.mrb[0].mxu0
      %788 = vdwg.mxu0
      %790 = vrot.lane.b32.xlu0 %v786, 12
      %v791 = vpop.permute.xlu0 %790
      %vm793 = vcmask 130144
      %794 = vst.msk [vmem:[%s111] sm:$0xff] %vm793, %v791
      %795 = vrot.lane.b32.xlu0 %v113, 112
      %v796 = vpop.permute.xlu0 %795
      %797 = vrot.lane.b32.xlu0 %v112, 80
      %v798 = vpop.permute.xlu0 %797
      %v799 = vsel %vm117, %v796, 0
      %v801 = vsel %vm117, %v798, 0
      %803 = vmatprep.subr.mxu0 0.0
      %804 = vmatpush1.xpose.msra.mxu0 %v801
      %805 = vmatprep.subr.mxu0 0.0
      %806 = vmatpush1.xpose.msra.mxu0 0.0
      %807 = vmatprep.subr.mxu0 0.0
      %808 = vmatpush1.xpose.msra.mxu0 0.0
      %809 = vmatprep.subr.mxu0 0.0
      %810 = vmatpush1.xpose.msra.mxu0 0.0
      %811 = vmatprep.subr.mxu0 0.0
      %812 = vmatpush1.xpose.msra.mxu0 0.0
      %813 = vmatprep.subr.mxu0 0.0
      %814 = vmatpush1.xpose.msra.mxu0 0.0
      %815 = vmatprep.subr.mxu0 0.0
      %816 = vmatpush1.xpose.msra.mxu0 0.0
      %817 = vmatprep.subr.mxu0 0.0
      %818 = vmatpush1.xpose.msra.mxu0 0.0
      %819 = vmatprep.subr.mxu0 0.0
      %820 = vmatpush1.xpose.msra.mxu0 0.0
      %821 = vmatprep.subr.mxu0 0.0
      %822 = vmatpush1.xpose.msra.mxu0 0.0
      %823 = vmatprep.subr.mxu0 0.0
      %824 = vmatpush1.xpose.msra.mxu0 0.0
      %825 = vmatprep.subr.mxu0 0.0
      %826 = vmatpush1.xpose.msra.mxu0 0.0
      %827 = vmatprep.subr.mxu0 0.0
      %828 = vmatpush1.xpose.msra.mxu0 0.0
      %829 = vmatprep.subr.mxu0 0.0
      %830 = vmatpush1.xpose.msra.mxu0 0.0
      %831 = vmatprep.subr.mxu0 0.0
      %832 = vmatpush1.xpose.msra.mxu0 0.0
      %833 = vmatprep.subr.mxu0 0.0
      %834 = vmatpush1.xpose.msra.mxu0 0.0
      %835 = vmatprep.subr.mxu0 0.0
      %836 = vmatpush1.xpose.msra.mxu0 0.0
      %837 = vmatprep.subr.mxu0 0.0
      %838 = vmatpush1.xpose.msra.mxu0 0.0
      %839 = vmatprep.subr.mxu0 0.0
      %840 = vmatpush1.xpose.msra.mxu0 0.0
      %841 = vmatprep.subr.mxu0 0.0
      %842 = vmatpush1.xpose.msra.mxu0 0.0
      %843 = vmatprep.subr.mxu0 0.0
      %844 = vmatpush1.xpose.msra.mxu0 0.0
      %845 = vmatprep.subr.mxu0 0.0
      %846 = vmatpush1.xpose.msra.mxu0 0.0
      %847 = vmatprep.subr.mxu0 0.0
      %848 = vmatpush1.xpose.msra.mxu0 0.0
      %849 = vmatprep.subr.mxu0 0.0
      %850 = vmatpush1.xpose.msra.mxu0 0.0
      %851 = vmatprep.subr.mxu0 0.0
      %852 = vmatpush1.xpose.msra.mxu0 0.0
      %853 = vmatprep.subr.mxu0 0.0
      %854 = vmatpush1.xpose.msra.mxu0 0.0
      %855 = vmatprep.subr.mxu0 0.0
      %856 = vmatpush1.xpose.msra.mxu0 0.0
      %857 = vmatprep.subr.mxu0 0.0
      %858 = vmatpush1.xpose.msra.mxu0 0.0
      %859 = vmatprep.subr.mxu0 0.0
      %860 = vmatpush1.xpose.msra.mxu0 0.0
      %861 = vmatprep.subr.mxu0 0.0
      %862 = vmatpush1.xpose.msra.mxu0 0.0
      %863 = vmatprep.subr.mxu0 0.0
      %864 = vmatpush1.xpose.msra.mxu0 0.0
      %865 = vmatprep.subr.mxu0 0.0
      %866 = vmatpush1.xpose.msra.mxu0 0.0
      %867 = vmatprep.mubr.f32.mxu0 0.0
      %868 = vmatmul.mubr.f32.gmra.mrb[0].mxu0 %v799
      %v869 = vpop.f32.mrb[0].mxu0
      %v870 = vadd.f32 0.0, %v869
      %v871 = vpop.f32.mrb[0].mxu0
      %872 = vdwg.mxu0
      %v873 = vsel %vm193, %v870, -inf
      %874 = vmax.xlane.f32.xlu0 %v873
      %v875 = vpop.xlane.xlu0 %874
      %v876 = vsub.f32 %v870, %v875
      %v877 = vmul.f32 %v876, 1.442695
      %v878 = vpow.pop %v877
      %v879 = vsel %vm193, %v878, 0.0
      %880 = vadd.xlane.f32.xlu0 %v879
      %v881 = vpop.xlane.xlu0 %880
      %v882 = vrcp.pop %v881
      %v883 = vmul.f32 %v878, %v882
      %884 = vrot.lane.b32.xlu0 %v112, 48
      %v885 = vpop.permute.xlu0 %884
      %v888 = vsel %vm193, %v883, 0
      %890 = vmatprep.subr.mxu0 0.0
      %891 = vmatpush1.msra.mxu0 %v885
      %892 = vmatprep.subr.mxu0 0.0
      %893 = vmatpush1.msra.mxu0 0.0
      %894 = vmatprep.subr.mxu0 0.0
      %895 = vmatpush1.msra.mxu0 0.0
      %896 = vmatprep.subr.mxu0 0.0
      %897 = vmatpush1.msra.mxu0 0.0
      %898 = vmatprep.subr.mxu0 0.0
      %899 = vmatpush1.msra.mxu0 0.0
      %900 = vmatprep.subr.mxu0 0.0
      %901 = vmatpush1.msra.mxu0 0.0
      %902 = vmatprep.subr.mxu0 0.0
      %903 = vmatpush1.msra.mxu0 0.0
      %904 = vmatprep.subr.mxu0 0.0
      %905 = vmatpush1.msra.mxu0 0.0
      %906 = vmatprep.subr.mxu0 0.0
      %907 = vmatpush1.msra.mxu0 0.0
      %908 = vmatprep.subr.mxu0 0.0
      %909 = vmatpush1.msra.mxu0 0.0
      %910 = vmatprep.subr.mxu0 0.0
      %911 = vmatpush1.msra.mxu0 0.0
      %912 = vmatprep.subr.mxu0 0.0
      %913 = vmatpush1.msra.mxu0 0.0
      %914 = vmatprep.subr.mxu0 0.0
      %915 = vmatpush1.msra.mxu0 0.0
      %916 = vmatprep.subr.mxu0 0.0
      %917 = vmatpush1.msra.mxu0 0.0
      %918 = vmatprep.subr.mxu0 0.0
      %919 = vmatpush1.msra.mxu0 0.0
      %920 = vmatprep.subr.mxu0 0.0
      %921 = vmatpush1.msra.mxu0 0.0
      %922 = vmatprep.subr.mxu0 0.0
      %923 = vmatpush1.msra.mxu0 0.0
      %924 = vmatprep.subr.mxu0 0.0
      %925 = vmatpush1.msra.mxu0 0.0
      %926 = vmatprep.subr.mxu0 0.0
      %927 = vmatpush1.msra.mxu0 0.0
      %928 = vmatprep.subr.mxu0 0.0
      %929 = vmatpush1.msra.mxu0 0.0
      %930 = vmatprep.subr.mxu0 0.0
      %931 = vmatpush1.msra.mxu0 0.0
      %932 = vmatprep.subr.mxu0 0.0
      %933 = vmatpush1.msra.mxu0 0.0
      %934 = vmatprep.subr.mxu0 0.0
      %935 = vmatpush1.msra.mxu0 0.0
      %936 = vmatprep.subr.mxu0 0.0
      %937 = vmatpush1.msra.mxu0 0.0
      %938 = vmatprep.subr.mxu0 0.0
      %939 = vmatpush1.msra.mxu0 0.0
      %940 = vmatprep.subr.mxu0 0.0
      %941 = vmatpush1.msra.mxu0 0.0
      %942 = vmatprep.subr.mxu0 0.0
      %943 = vmatpush1.msra.mxu0 0.0
      %944 = vmatprep.subr.mxu0 0.0
      %945 = vmatpush1.msra.mxu0 0.0
      %946 = vmatprep.subr.mxu0 0.0
      %947 = vmatpush1.msra.mxu0 0.0
      %948 = vmatprep.subr.mxu0 0.0
      %949 = vmatpush1.msra.mxu0 0.0
      %950 = vmatprep.subr.mxu0 0.0
      %951 = vmatpush1.msra.mxu0 0.0
      %952 = vmatprep.subr.mxu0 0.0
      %953 = vmatpush1.msra.mxu0 0.0
      %954 = vmatprep.mubr.f32.mxu0 0.0
      %955 = vmatmul.mubr.f32.gmra.mrb[0].mxu0 %v888
      %v956 = vpop.f32.mrb[0].mxu0
      %v957 = vadd.f32 0.0, %v956
      %v958 = vpop.f32.mrb[0].mxu0
      %959 = vdwg.mxu0
      %961 = vrot.lane.b32.xlu0 %v957, 16
      %v962 = vpop.permute.xlu0 %961
      %vm964 = vcmask 162944
      %965 = vst.msk [vmem:[%s111] sm:$0xff] %vm964, %v962
      %966 = vrot.lane.b32.xlu0 %v113, 108
      %v967 = vpop.permute.xlu0 %966
      %968 = vrot.lane.b32.xlu0 %v112, 76
      %v969 = vpop.permute.xlu0 %968
      %v970 = vsel %vm117, %v967, 0
      %v972 = vsel %vm117, %v969, 0
      %974 = vmatprep.subr.mxu0 0.0
      %975 = vmatpush1.xpose.msra.mxu0 %v972
      %976 = vmatprep.subr.mxu0 0.0
      %977 = vmatpush1.xpose.msra.mxu0 0.0
      %978 = vmatprep.subr.mxu0 0.0
      %979 = vmatpush1.xpose.msra.mxu0 0.0
      %980 = vmatprep.subr.mxu0 0.0
      %981 = vmatpush1.xpose.msra.mxu0 0.0
      %982 = vmatprep.subr.mxu0 0.0
      %983 = vmatpush1.xpose.msra.mxu0 0.0
      %984 = vmatprep.subr.mxu0 0.0
      %985 = vmatpush1.xpose.msra.mxu0 0.0
      %986 = vmatprep.subr.mxu0 0.0
      %987 = vmatpush1.xpose.msra.mxu0 0.0
      %988 = vmatprep.subr.mxu0 0.0
      %989 = vmatpush1.xpose.msra.mxu0 0.0
      %990 = vmatprep.subr.mxu0 0.0
      %991 = vmatpush1.xpose.msra.mxu0 0.0
      %992 = vmatprep.subr.mxu0 0.0
      %993 = vmatpush1.xpose.msra.mxu0 0.0
      %994 = vmatprep.subr.mxu0 0.0
      %995 = vmatpush1.xpose.msra.mxu0 0.0
      %996 = vmatprep.subr.mxu0 0.0
      %997 = vmatpush1.xpose.msra.mxu0 0.0
      %998 = vmatprep.subr.mxu0 0.0
      %999 = vmatpush1.xpose.msra.mxu0 0.0
      %1000 = vmatprep.subr.mxu0 0.0
      %1001 = vmatpush1.xpose.msra.mxu0 0.0
      %1002 = vmatprep.subr.mxu0 0.0
      %1003 = vmatpush1.xpose.msra.mxu0 0.0
      %1004 = vmatprep.subr.mxu0 0.0
      %1005 = vmatpush1.xpose.msra.mxu0 0.0
      %1006 = vmatprep.subr.mxu0 0.0
      %1007 = vmatpush1.xpose.msra.mxu0 0.0
      %1008 = vmatprep.subr.mxu0 0.0
      %1009 = vmatpush1.xpose.msra.mxu0 0.0
      %1010 = vmatprep.subr.mxu0 0.0
      %1011 = vmatpush1.xpose.msra.mxu0 0.0
      %1012 = vmatprep.subr.mxu0 0.0
      %1013 = vmatpush1.xpose.msra.mxu0 0.0
      %1014 = vmatprep.subr.mxu0 0.0
      %1015 = vmatpush1.xpose.msra.mxu0 0.0
      %1016 = vmatprep.subr.mxu0 0.0
      %1017 = vmatpush1.xpose.msra.mxu0 0.0
      %1018 = vmatprep.subr.mxu0 0.0
      %1019 = vmatpush1.xpose.msra.mxu0 0.0
      %1020 = vmatprep.subr.mxu0 0.0
      %1021 = vmatpush1.xpose.msra.mxu0 0.0
      %1022 = vmatprep.subr.mxu0 0.0
      %1023 = vmatpush1.xpose.msra.mxu0 0.0
      %1024 = vmatprep.subr.mxu0 0.0
      %1025 = vmatpush1.xpose.msra.mxu0 0.0
      %1026 = vmatprep.subr.mxu0 0.0
      %1027 = vmatpush1.xpose.msra.mxu0 0.0
      %1028 = vmatprep.subr.mxu0 0.0
      %1029 = vmatpush1.xpose.msra.mxu0 0.0
      %1030 = vmatprep.subr.mxu0 0.0
      %1031 = vmatpush1.xpose.msra.mxu0 0.0
      %1032 = vmatprep.subr.mxu0 0.0
      %1033 = vmatpush1.xpose.msra.mxu0 0.0
      %1034 = vmatprep.subr.mxu0 0.0
      %1035 = vmatpush1.xpose.msra.mxu0 0.0
      %1036 = vmatprep.subr.mxu0 0.0
      %1037 = vmatpush1.xpose.msra.mxu0 0.0
      %1038 = vmatprep.mubr.f32.mxu0 0.0
      %1039 = vmatmul.mubr.f32.gmra.mrb[0].mxu0 %v970
      %v1040 = vpop.f32.mrb[0].mxu0
      %v1041 = vadd.f32 0.0, %v1040
      %v1042 = vpop.f32.mrb[0].mxu0
      %1043 = vdwg.mxu0
      %v1044 = vsel %vm193, %v1041, -inf
      %1045 = vmax.xlane.f32.xlu0 %v1044
      %v1046 = vpop.xlane.xlu0 %1045
      %v1047 = vsub.f32 %v1041, %v1046
      %v1048 = vmul.f32 %v1047, 1.442695
      %v1049 = vpow.pop %v1048
      %v1050 = vsel %vm193, %v1049, 0.0
      %1051 = vadd.xlane.f32.xlu0 %v1050
      %v1052 = vpop.xlane.xlu0 %1051
      %v1053 = vrcp.pop %v1052
      %v1054 = vmul.f32 %v1049, %v1053
      %1055 = vrot.lane.b32.xlu0 %v112, 44
      %v1056 = vpop.permute.xlu0 %1055
      %v1059 = vsel %vm193, %v1054, 0
      %1061 = vmatprep.subr.mxu0 0.0
      %1062 = vmatpush1.msra.mxu0 %v1056
      %1063 = vmatprep.subr.mxu0 0.0
      %1064 = vmatpush1.msra.mxu0 0.0
      %1065 = vmatprep.subr.mxu0 0.0
      %1066 = vmatpush1.msra.mxu0 0.0
      %1067 = vmatprep.subr.mxu0 0.0
      %1068 = vmatpush1.msra.mxu0 0.0
      %1069 = vmatprep.subr.mxu0 0.0
      %1070 = vmatpush1.msra.mxu0 0.0
      %1071 = vmatprep.subr.mxu0 0.0
      %1072 = vmatpush1.msra.mxu0 0.0
      %1073 = vmatprep.subr.mxu0 0.0
      %1074 = vmatpush1.msra.mxu0 0.0
      %1075 = vmatprep.subr.mxu0 0.0
      %1076 = vmatpush1.msra.mxu0 0.0
      %1077 = vmatprep.subr.mxu0 0.0
      %1078 = vmatpush1.msra.mxu0 0.0
      %1079 = vmatprep.subr.mxu0 0.0
      %1080 = vmatpush1.msra.mxu0 0.0
      %1081 = vmatprep.subr.mxu0 0.0
      %1082 = vmatpush1.msra.mxu0 0.0
      %1083 = vmatprep.subr.mxu0 0.0
      %1084 = vmatpush1.msra.mxu0 0.0
      %1085 = vmatprep.subr.mxu0 0.0
      %1086 = vmatpush1.msra.mxu0 0.0
      %1087 = vmatprep.subr.mxu0 0.0
      %1088 = vmatpush1.msra.mxu0 0.0
      %1089 = vmatprep.subr.mxu0 0.0
      %1090 = vmatpush1.msra.mxu0 0.0
      %1091 = vmatprep.subr.mxu0 0.0
      %1092 = vmatpush1.msra.mxu0 0.0
      %1093 = vmatprep.subr.mxu0 0.0
      %1094 = vmatpush1.msra.mxu0 0.0
      %1095 = vmatprep.subr.mxu0 0.0
      %1096 = vmatpush1.msra.mxu0 0.0
      %1097 = vmatprep.subr.mxu0 0.0
      %1098 = vmatpush1.msra.mxu0 0.0
      %1099 = vmatprep.subr.mxu0 0.0
      %1100 = vmatpush1.msra.mxu0 0.0
      %1101 = vmatprep.subr.mxu0 0.0
      %1102 = vmatpush1.msra.mxu0 0.0
      %1103 = vmatprep.subr.mxu0 0.0
      %1104 = vmatpush1.msra.mxu0 0.0
      %1105 = vmatprep.subr.mxu0 0.0
      %1106 = vmatpush1.msra.mxu0 0.0
      %1107 = vmatprep.subr.mxu0 0.0
      %1108 = vmatpush1.msra.mxu0 0.0
      %1109 = vmatprep.subr.mxu0 0.0
      %1110 = vmatpush1.msra.mxu0 0.0
      %1111 = vmatprep.subr.mxu0 0.0
      %1112 = vmatpush1.msra.mxu0 0.0
      %1113 = vmatprep.subr.mxu0 0.0
      %1114 = vmatpush1.msra.mxu0 0.0
      %1115 = vmatprep.subr.mxu0 0.0
      %1116 = vmatpush1.msra.mxu0 0.0
      %1117 = vmatprep.subr.mxu0 0.0
      %1118 = vmatpush1.msra.mxu0 0.0
      %1119 = vmatprep.subr.mxu0 0.0
      %1120 = vmatpush1.msra.mxu0 0.0
      %1121 = vmatprep.subr.mxu0 0.0
      %1122 = vmatpush1.msra.mxu0 0.0
      %1123 = vmatprep.subr.mxu0 0.0
      %1124 = vmatpush1.msra.mxu0 0.0
      %1125 = vmatprep.mubr.f32.mxu0 0.0
      %1126 = vmatmul.mubr.f32.gmra.mrb[0].mxu0 %v1059
      %v1127 = vpop.f32.mrb[0].mxu0
      %v1128 = vadd.f32 0.0, %v1127
      %v1129 = vpop.f32.mrb[0].mxu0
      %1130 = vdwg.mxu0
      %1132 = vrot.lane.b32.xlu0 %v1128, 20
      %v1133 = vpop.permute.xlu0 %1132
      %vm1135 = vcmask 195744
      %1136 = vst.msk [vmem:[%s111] sm:$0xff] %vm1135, %v1133
      %1137 = vrot.lane.b32.xlu0 %v113, 104
      %v1138 = vpop.permute.xlu0 %1137
      %1139 = vrot.lane.b32.xlu0 %v112, 72
      %v1140 = vpop.permute.xlu0 %1139
      %v1141 = vsel %vm117, %v1138, 0
      %v1143 = vsel %vm117, %v1140, 0
      %1145 = vmatprep.subr.mxu0 0.0
      %1146 = vmatpush1.xpose.msra.mxu0 %v1143
      %1147 = vmatprep.subr.mxu0 0.0
      %1148 = vmatpush1.xpose.msra.mxu0 0.0
      %1149 = vmatprep.subr.mxu0 0.0
      %1150 = vmatpush1.xpose.msra.mxu0 0.0
      %1151 = vmatprep.subr.mxu0 0.0
      %1152 = vmatpush1.xpose.msra.mxu0 0.0
      %1153 = vmatprep.subr.mxu0 0.0
      %1154 = vmatpush1.xpose.msra.mxu0 0.0
      %1155 = vmatprep.subr.mxu0 0.0
      %1156 = vmatpush1.xpose.msra.mxu0 0.0
      %1157 = vmatprep.subr.mxu0 0.0
      %1158 = vmatpush1.xpose.msra.mxu0 0.0
      %1159 = vmatprep.subr.mxu0 0.0
      %1160 = vmatpush1.xpose.msra.mxu0 0.0
      %1161 = vmatprep.subr.mxu0 0.0
      %1162 = vmatpush1.xpose.msra.mxu0 0.0
      %1163 = vmatprep.subr.mxu0 0.0
      %1164 = vmatpush1.xpose.msra.mxu0 0.0
      %1165 = vmatprep.subr.mxu0 0.0
      %1166 = vmatpush1.xpose.msra.mxu0 0.0
      %1167 = vmatprep.subr.mxu0 0.0
      %1168 = vmatpush1.xpose.msra.mxu0 0.0
      %1169 = vmatprep.subr.mxu0 0.0
      %1170 = vmatpush1.xpose.msra.mxu0 0.0
      %1171 = vmatprep.subr.mxu0 0.0
      %1172 = vmatpush1.xpose.msra.mxu0 0.0
      %1173 = vmatprep.subr.mxu0 0.0
      %1174 = vmatpush1.xpose.msra.mxu0 0.0
      %1175 = vmatprep.subr.mxu0 0.0
      %1176 = vmatpush1.xpose.msra.mxu0 0.0
      %1177 = vmatprep.subr.mxu0 0.0
      %1178 = vmatpush1.xpose.msra.mxu0 0.0
      %1179 = vmatprep.subr.mxu0 0.0
      %1180 = vmatpush1.xpose.msra.mxu0 0.0
      %1181 = vmatprep.subr.mxu0 0.0
      %1182 = vmatpush1.xpose.msra.mxu0 0.0
      %1183 = vmatprep.subr.mxu0 0.0
      %1184 = vmatpush1.xpose.msra.mxu0 0.0
      %1185 = vmatprep.subr.mxu0 0.0
      %1186 = vmatpush1.xpose.msra.mxu0 0.0
      %1187 = vmatprep.subr.mxu0 0.0
      %1188 = vmatpush1.xpose.msra.mxu0 0.0
      %1189 = vmatprep.subr.mxu0 0.0
      %1190 = vmatpush1.xpose.msra.mxu0 0.0
      %1191 = vmatprep.subr.mxu0 0.0
      %1192 = vmatpush1.xpose.msra.mxu0 0.0
      %1193 = vmatprep.subr.mxu0 0.0
      %1194 = vmatpush1.xpose.msra.mxu0 0.0
      %1195 = vmatprep.subr.mxu0 0.0
      %1196 = vmatpush1.xpose.msra.mxu0 0.0
      %1197 = vmatprep.subr.mxu0 0.0
      %1198 = vmatpush1.xpose.msra.mxu0 0.0
      %1199 = vmatprep.subr.mxu0 0.0
      %1200 = vmatpush1.xpose.msra.mxu0 0.0
      %1201 = vmatprep.subr.mxu0 0.0
      %1202 = vmatpush1.xpose.msra.mxu0 0.0
      %1203 = vmatprep.subr.mxu0 0.0
      %1204 = vmatpush1.xpose.msra.mxu0 0.0
      %1205 = vmatprep.subr.mxu0 0.0
      %1206 = vmatpush1.xpose.msra.mxu0 0.0
      %1207 = vmatprep.subr.mxu0 0.0
      %1208 = vmatpush1.xpose.msra.mxu0 0.0
      %1209 = vmatprep.mubr.f32.mxu0 0.0
      %1210 = vmatmul.mubr.f32.gmra.mrb[0].mxu0 %v1141
      %v1211 = vpop.f32.mrb[0].mxu0
      %v1212 = vadd.f32 0.0, %v1211
      %v1213 = vpop.f32.mrb[0].mxu0
      %1214 = vdwg.mxu0
      %v1215 = vsel %vm193, %v1212, -inf
      %1216 = vmax.xlane.f32.xlu0 %v1215
      %v1217 = vpop.xlane.xlu0 %1216
      %v1218 = vsub.f32 %v1212, %v1217
      %v1219 = vmul.f32 %v1218, 1.442695
      %v1220 = vpow.pop %v1219
      %v1221 = vsel %vm193, %v1220, 0.0
      %1222 = vadd.xlane.f32.xlu0 %v1221
      %v1223 = vpop.xlane.xlu0 %1222
      %v1224 = vrcp.pop %v1223
      %v1225 = vmul.f32 %v1220, %v1224
      %1226 = vrot.lane.b32.xlu0 %v112, 40
      %v1227 = vpop.permute.xlu0 %1226
      %v1230 = vsel %vm193, %v1225, 0
      %1232 = vmatprep.subr.mxu0 0.0
      %1233 = vmatpush1.msra.mxu0 %v1227
      %1234 = vmatprep.subr.mxu0 0.0
      %1235 = vmatpush1.msra.mxu0 0.0
      %1236 = vmatprep.subr.mxu0 0.0
      %1237 = vmatpush1.msra.mxu0 0.0
      %1238 = vmatprep.subr.mxu0 0.0
      %1239 = vmatpush1.msra.mxu0 0.0
      %1240 = vmatprep.subr.mxu0 0.0
      %1241 = vmatpush1.msra.mxu0 0.0
      %1242 = vmatprep.subr.mxu0 0.0
      %1243 = vmatpush1.msra.mxu0 0.0
      %1244 = vmatprep.subr.mxu0 0.0
      %1245 = vmatpush1.msra.mxu0 0.0
      %1246 = vmatprep.subr.mxu0 0.0
      %1247 = vmatpush1.msra.mxu0 0.0
      %1248 = vmatprep.subr.mxu0 0.0
      %1249 = vmatpush1.msra.mxu0 0.0
      %1250 = vmatprep.subr.mxu0 0.0
      %1251 = vmatpush1.msra.mxu0 0.0
      %1252 = vmatprep.subr.mxu0 0.0
      %1253 = vmatpush1.msra.mxu0 0.0
      %1254 = vmatprep.subr.mxu0 0.0
      %1255 = vmatpush1.msra.mxu0 0.0
      %1256 = vmatprep.subr.mxu0 0.0
      %1257 = vmatpush1.msra.mxu0 0.0
      %1258 = vmatprep.subr.mxu0 0.0
      %1259 = vmatpush1.msra.mxu0 0.0
      %1260 = vmatprep.subr.mxu0 0.0
      %1261 = vmatpush1.msra.mxu0 0.0
      %1262 = vmatprep.subr.mxu0 0.0
      %1263 = vmatpush1.msra.mxu0 0.0
      %1264 = vmatprep.subr.mxu0 0.0
      %1265 = vmatpush1.msra.mxu0 0.0
      %1266 = vmatprep.subr.mxu0 0.0
      %1267 = vmatpush1.msra.mxu0 0.0
      %1268 = vmatprep.subr.mxu0 0.0
      %1269 = vmatpush1.msra.mxu0 0.0
      %1270 = vmatprep.subr.mxu0 0.0
      %1271 = vmatpush1.msra.mxu0 0.0
      %1272 = vmatprep.subr.mxu0 0.0
      %1273 = vmatpush1.msra.mxu0 0.0
      %1274 = vmatprep.subr.mxu0 0.0
      %1275 = vmatpush1.msra.mxu0 0.0
      %1276 = vmatprep.subr.mxu0 0.0
      %1277 = vmatpush1.msra.mxu0 0.0
      %1278 = vmatprep.subr.mxu0 0.0
      %1279 = vmatpush1.msra.mxu0 0.0
      %1280 = vmatprep.subr.mxu0 0.0
      %1281 = vmatpush1.msra.mxu0 0.0
      %1282 = vmatprep.subr.mxu0 0.0
      %1283 = vmatpush1.msra.mxu0 0.0
      %1284 = vmatprep.subr.mxu0 0.0
      %1285 = vmatpush1.msra.mxu0 0.0
      %1286 = vmatprep.subr.mxu0 0.0
      %1287 = vmatpush1.msra.mxu0 0.0
      %1288 = vmatprep.subr.mxu0 0.0
      %1289 = vmatpush1.msra.mxu0 0.0
      %1290 = vmatprep.subr.mxu0 0.0
      %1291 = vmatpush1.msra.mxu0 0.0
      %1292 = vmatprep.subr.mxu0 0.0
      %1293 = vmatpush1.msra.mxu0 0.0
      %1294 = vmatprep.subr.mxu0 0.0
      %1295 = vmatpush1.msra.mxu0 0.0
      %1296 = vmatprep.mubr.f32.mxu0 0.0
      %1297 = vmatmul.mubr.f32.gmra.mrb[0].mxu0 %v1230
      %v1298 = vpop.f32.mrb[0].mxu0
      %v1299 = vadd.f32 0.0, %v1298
      %v1300 = vpop.f32.mrb[0].mxu0
      %1301 = vdwg.mxu0
      %1303 = vrot.lane.b32.xlu0 %v1299, 24
      %v1304 = vpop.permute.xlu0 %1303
      %vm1306 = vcmask 228544
      %1307 = vst.msk [vmem:[%s111] sm:$0xff] %vm1306, %v1304
      %1308 = vrot.lane.b32.xlu0 %v113, 100
      %v1309 = vpop.permute.xlu0 %1308
      %1310 = vrot.lane.b32.xlu0 %v112, 68
      %v1311 = vpop.permute.xlu0 %1310
      %v1312 = vsel %vm117, %v1309, 0
      %v1314 = vsel %vm117, %v1311, 0
      %1316 = vmatprep.subr.mxu0 0.0
      %1317 = vmatpush1.xpose.msra.mxu0 %v1314
      %1318 = vmatprep.subr.mxu0 0.0
      %1319 = vmatpush1.xpose.msra.mxu0 0.0
      %1320 = vmatprep.subr.mxu0 0.0
      %1321 = vmatpush1.xpose.msra.mxu0 0.0
      %1322 = vmatprep.subr.mxu0 0.0
      %1323 = vmatpush1.xpose.msra.mxu0 0.0
      %1324 = vmatprep.subr.mxu0 0.0
      %1325 = vmatpush1.xpose.msra.mxu0 0.0
      %1326 = vmatprep.subr.mxu0 0.0
      %1327 = vmatpush1.xpose.msra.mxu0 0.0
      %1328 = vmatprep.subr.mxu0 0.0
      %1329 = vmatpush1.xpose.msra.mxu0 0.0
      %1330 = vmatprep.subr.mxu0 0.0
      %1331 = vmatpush1.xpose.msra.mxu0 0.0
      %1332 = vmatprep.subr.mxu0 0.0
      %1333 = vmatpush1.xpose.msra.mxu0 0.0
      %1334 = vmatprep.subr.mxu0 0.0
      %1335 = vmatpush1.xpose.msra.mxu0 0.0
      %1336 = vmatprep.subr.mxu0 0.0
      %1337 = vmatpush1.xpose.msra.mxu0 0.0
      %1338 = vmatprep.subr.mxu0 0.0
      %1339 = vmatpush1.xpose.msra.mxu0 0.0
      %1340 = vmatprep.subr.mxu0 0.0
      %1341 = vmatpush1.xpose.msra.mxu0 0.0
      %1342 = vmatprep.subr.mxu0 0.0
      %1343 = vmatpush1.xpose.msra.mxu0 0.0
      %1344 = vmatprep.subr.mxu0 0.0
      %1345 = vmatpush1.xpose.msra.mxu0 0.0
      %1346 = vmatprep.subr.mxu0 0.0
      %1347 = vmatpush1.xpose.msra.mxu0 0.0
      %1348 = vmatprep.subr.mxu0 0.0
      %1349 = vmatpush1.xpose.msra.mxu0 0.0
      %1350 = vmatprep.subr.mxu0 0.0
      %1351 = vmatpush1.xpose.msra.mxu0 0.0
      %1352 = vmatprep.subr.mxu0 0.0
      %1353 = vmatpush1.xpose.msra.mxu0 0.0
      %1354 = vmatprep.subr.mxu0 0.0
      %1355 = vmatpush1.xpose.msra.mxu0 0.0
      %1356 = vmatprep.subr.mxu0 0.0
      %1357 = vmatpush1.xpose.msra.mxu0 0.0
      %1358 = vmatprep.subr.mxu0 0.0
      %1359 = vmatpush1.xpose.msra.mxu0 0.0
      %1360 = vmatprep.subr.mxu0 0.0
      %1361 = vmatpush1.xpose.msra.mxu0 0.0
      %1362 = vmatprep.subr.mxu0 0.0
      %1363 = vmatpush1.xpose.msra.mxu0 0.0
      %1364 = vmatprep.subr.mxu0 0.0
      %1365 = vmatpush1.xpose.msra.mxu0 0.0
      %1366 = vmatprep.subr.mxu0 0.0
      %1367 = vmatpush1.xpose.msra.mxu0 0.0
      %1368 = vmatprep.subr.mxu0 0.0
      %1369 = vmatpush1.xpose.msra.mxu0 0.0
      %1370 = vmatprep.subr.mxu0 0.0
      %1371 = vmatpush1.xpose.msra.mxu0 0.0
      %1372 = vmatprep.subr.mxu0 0.0
      %1373 = vmatpush1.xpose.msra.mxu0 0.0
      %1374 = vmatprep.subr.mxu0 0.0
      %1375 = vmatpush1.xpose.msra.mxu0 0.0
      %1376 = vmatprep.subr.mxu0 0.0
      %1377 = vmatpush1.xpose.msra.mxu0 0.0
      %1378 = vmatprep.subr.mxu0 0.0
      %1379 = vmatpush1.xpose.msra.mxu0 0.0
      %1380 = vmatprep.mubr.f32.mxu0 0.0
      %1381 = vmatmul.mubr.f32.gmra.mrb[0].mxu0 %v1312
      %v1382 = vpop.f32.mrb[0].mxu0
      %v1383 = vadd.f32 0.0, %v1382
      %v1384 = vpop.f32.mrb[0].mxu0
      %1385 = vdwg.mxu0
      %v1386 = vsel %vm193, %v1383, -inf
      %1387 = vmax.xlane.f32.xlu0 %v1386
      %v1388 = vpop.xlane.xlu0 %1387
      %v1389 = vsub.f32 %v1383, %v1388
      %v1390 = vmul.f32 %v1389, 1.442695
      %v1391 = vpow.pop %v1390
      %v1392 = vsel %vm193, %v1391, 0.0
      %1393 = vadd.xlane.f32.xlu0 %v1392
      %v1394 = vpop.xlane.xlu0 %1393
      %v1395 = vrcp.pop %v1394
      %v1396 = vmul.f32 %v1391, %v1395
      %1397 = vrot.lane.b32.xlu0 %v112, 36
      %v1398 = vpop.permute.xlu0 %1397
      %v1401 = vsel %vm193, %v1396, 0
      %1403 = vmatprep.subr.mxu0 0.0
      %1404 = vmatpush1.msra.mxu0 %v1398
      %1405 = vmatprep.subr.mxu0 0.0
      %1406 = vmatpush1.msra.mxu0 0.0
      %1407 = vmatprep.subr.mxu0 0.0
      %1408 = vmatpush1.msra.mxu0 0.0
      %1409 = vmatprep.subr.mxu0 0.0
      %1410 = vmatpush1.msra.mxu0 0.0
      %1411 = vmatprep.subr.mxu0 0.0
      %1412 = vmatpush1.msra.mxu0 0.0
      %1413 = vmatprep.subr.mxu0 0.0
      %1414 = vmatpush1.msra.mxu0 0.0
      %1415 = vmatprep.subr.mxu0 0.0
      %1416 = vmatpush1.msra.mxu0 0.0
      %1417 = vmatprep.subr.mxu0 0.0
      %1418 = vmatpush1.msra.mxu0 0.0
      %1419 = vmatprep.subr.mxu0 0.0
      %1420 = vmatpush1.msra.mxu0 0.0
      %1421 = vmatprep.subr.mxu0 0.0
      %1422 = vmatpush1.msra.mxu0 0.0
      %1423 = vmatprep.subr.mxu0 0.0
      %1424 = vmatpush1.msra.mxu0 0.0
      %1425 = vmatprep.subr.mxu0 0.0
      %1426 = vmatpush1.msra.mxu0 0.0
      %1427 = vmatprep.subr.mxu0 0.0
      %1428 = vmatpush1.msra.mxu0 0.0
      %1429 = vmatprep.subr.mxu0 0.0
      %1430 = vmatpush1.msra.mxu0 0.0
      %1431 = vmatprep.subr.mxu0 0.0
      %1432 = vmatpush1.msra.mxu0 0.0
      %1433 = vmatprep.subr.mxu0 0.0
      %1434 = vmatpush1.msra.mxu0 0.0
      %1435 = vmatprep.subr.mxu0 0.0
      %1436 = vmatpush1.msra.mxu0 0.0
      %1437 = vmatprep.subr.mxu0 0.0
      %1438 = vmatpush1.msra.mxu0 0.0
      %1439 = vmatprep.subr.mxu0 0.0
      %1440 = vmatpush1.msra.mxu0 0.0
      %1441 = vmatprep.subr.mxu0 0.0
      %1442 = vmatpush1.msra.mxu0 0.0
      %1443 = vmatprep.subr.mxu0 0.0
      %1444 = vmatpush1.msra.mxu0 0.0
      %1445 = vmatprep.subr.mxu0 0.0
      %1446 = vmatpush1.msra.mxu0 0.0
      %1447 = vmatprep.subr.mxu0 0.0
      %1448 = vmatpush1.msra.mxu0 0.0
      %1449 = vmatprep.subr.mxu0 0.0
      %1450 = vmatpush1.msra.mxu0 0.0
      %1451 = vmatprep.subr.mxu0 0.0
      %1452 = vmatpush1.msra.mxu0 0.0
      %1453 = vmatprep.subr.mxu0 0.0
      %1454 = vmatpush1.msra.mxu0 0.0
      %1455 = vmatprep.subr.mxu0 0.0
      %1456 = vmatpush1.msra.mxu0 0.0
      %1457 = vmatprep.subr.mxu0 0.0
      %1458 = vmatpush1.msra.mxu0 0.0
      %1459 = vmatprep.subr.mxu0 0.0
      %1460 = vmatpush1.msra.mxu0 0.0
      %1461 = vmatprep.subr.mxu0 0.0
      %1462 = vmatpush1.msra.mxu0 0.0
      %1463 = vmatprep.subr.mxu0 0.0
      %1464 = vmatpush1.msra.mxu0 0.0
      %1465 = vmatprep.subr.mxu0 0.0
      %1466 = vmatpush1.msra.mxu0 0.0
      %1467 = vmatprep.mubr.f32.mxu0 0.0
      %1468 = vmatmul.mubr.f32.gmra.mrb[0].mxu0 %v1401
      %v1469 = vpop.f32.mrb[0].mxu0
      %v1470 = vadd.f32 0.0, %v1469
      %v1471 = vpop.f32.mrb[0].mxu0
      %1472 = vdwg.mxu0
      %1474 = vrot.lane.b32.xlu0 %v1470, 28
      %v1475 = vpop.permute.xlu0 %1474
      %vm1477 = vcmask 261344
      %1478 = vst.msk [vmem:[%s111] sm:$0xff] %vm1477, %v1475
      %p1479 = scmp.lt.s32.totalorder %s12, 1
      %s1480 = scalar_select %p1479, %s12, 1
      %s1481 = smul.addr %s1480, 8
      %s1482 = scalar_lea.vmem %s1, %s1481
      // Predicated region
      $region25: #{transformer_forward.59} parent=23 // pred_check
        %p1483 = pneg %p56
      $region26: #{transformer_forward.59} parent=23 // pred_check_branch
        %1485 = sbr.rel (%p1483) target = $region28
      $region27: #{transformer_forward.59} parent=23 // pred_region
        _
      $region28: #{transformer_forward.59} parent=23 // pred_fallthru
        _
    $region24: #{transformer_forward.59} parent=5 // pred_fallthru
      _
    %p1486 = scmp.le.s32.totalorder 2, %s7
    // Predicated region
    $region29: #{transformer_forward.59} parent=5 // pred_check
      %p1487 = pneg %p1486
    $region30: #{transformer_forward.59} parent=5 // pred_check_branch
      %1489 = sbr.rel (%p1487) target = $region32
    $region31: #{transformer_forward.59} parent=5 // pred_region
      %s1490 = ssub.s32 %s7, 2
      // Predicated region
      $region33: #{transformer_forward.59} parent=31 // pred_check
        %p1491 = pneg %p62
      $region34: #{transformer_forward.59} parent=31 // pred_check_branch
        %1493 = sbr.rel (%p1491) target = $region36
      $region35: #{transformer_forward.59} parent=31 // pred_region
        %p1494 = scmp.lt.s32.totalorder %s13, 1
        %s1495 = scalar_select %p1494, %s13, 1
        %s1496 = smul.addr %s1495, 8
        %s1497 = scalar_lea.vmem %s1, %s1496
      $region36: #{transformer_forward.59} parent=31 // pred_fallthru
        _
    $region32: #{transformer_forward.59} parent=5 // pred_fallthru
      _
  $region6: #{transformer_forward.59} parent=0 // loop_footer
    %s11 = sadd.s32 1, %s7
  $region7: #{transformer_forward.59} parent=0 // loop_footer_branch
    %6 = sbr.rel target = $region3
  $region8: #{transformer_forward.59} parent=0 // loop_exit
    _

// kernel: transformer_forward.66
$region0: #{transformer_forward.66}
  #allocation0 [shape = 'u32[]', space=smem, size = 0x4, offset = 0x4, fixed_abs, tag = 'smem constant byte address 0x4 - core index']
  #allocation1 [shape = 'u32[144,128]{1,0:T(1,128)}', space=vmem, size = 0x12000, scoped, tag = 'internal scratch']
  %s0 = inlined_call_operand.vmem [shape: f32[16,32], index: 0, kind: input, shape index: {}]
  %s1 = inlined_call_operand.vmem [shape: f32[1,32], index: 1, kind: input, shape index: {}]
  %s2 = inlined_call_operand.vmem [shape: f32[1,32], index: 2, kind: input, shape index: {}]
  %s3 = inlined_call_operand.vmem [shape: f32[16,32], index: 3, kind: output, shape index: {}]
  %s4 = sld [smem:[#allocation0]]
  $region22: #{transformer_forward.66} parent=0
    _
  %s6 = ssub.s32 1, %s4
  %s7 = scalar_select 0, %s6, %s4
  // Predicated region
  $region2: #{transformer_forward.66} parent=0 // pred_check
    _
  $region3: #{transformer_forward.66} parent=0 // pred_check_branch
    %9 = sbr.rel (0) target = $region5
  $region4: #{transformer_forward.66} parent=0 // pred_region
    _
  $region5: #{transformer_forward.66} parent=0 // pred_fallthru
    _
  // Predicated region
  $region6: #{transformer_forward.66} parent=0 // pred_check
    _
  $region7: #{transformer_forward.66} parent=0 // pred_check_branch
    %11 = sbr.rel (0) target = $region9
  $region8: #{transformer_forward.66} parent=0 // pred_region
    _
  $region9: #{transformer_forward.66} parent=0 // pred_fallthru
    _
  // Predicated region
  $region10: #{transformer_forward.66} parent=0 // pred_check
    _
  $region11: #{transformer_forward.66} parent=0 // pred_check_branch
    %13 = sbr.rel (0) target = $region13
  $region12: #{transformer_forward.66} parent=0 // pred_region
    _
  $region13: #{transformer_forward.66} parent=0 // pred_fallthru
    _
  %v14 = vld [vmem:[%s0] sm:$0xff]
  %v15 = vld [vmem:[%s0 + $0x8] sm:$0xff]
  %vm16 = vcmask 261120
  %v17 = vsel %vm16, %v14, 0.0
  %18 = vadd.xlane.f32.xlu0 %v17
  %v19 = vpop.xlane.xlu0 %18
  %v20 = vsel %vm16, %v15, 0.0
  %21 = vadd.xlane.f32.xlu0 %v20
  %v22 = vpop.xlane.xlu0 %21
  %v23 = vrcp.pop 32.0
  %v24 = vmul.f32 %v19, %v23
  %v25 = vmul.f32 %v22, %v23
  %v26 = vsub.f32 %v14, %v24
  %v27 = vsub.f32 %v15, %v25
  %v28 = vmul.f32 %v26, %v26
  %v29 = vmul.f32 %v27, %v27
  %v30 = vsel %vm16, %v28, 0.0
  %31 = vadd.xlane.f32.xlu0 %v30
  %v32 = vpop.xlane.xlu0 %31
  %v33 = vsel %vm16, %v29, 0.0
  %34 = vadd.xlane.f32.xlu0 %v33
  %v35 = vpop.xlane.xlu0 %34
  %v36 = vmul.f32 %v32, %v23
  %v37 = vmul.f32 %v35, %v23
  %v38 = vadd.f32 %v36, 1e-05
  %v39 = vadd.f32 %v37, 1e-05
  %v40 = vrsqrt.pop %v38
  %v41 = vrsqrt.pop %v39
  %v42 = vmul.f32 %v26, %v40
  %v43 = vmul.f32 %v27, %v41
  %v44 = vld [vmem:[%s1] sm:$0x1]
  %v46 = vlaneseq
  %v47 = vshrl.u32 %v46, 7
  %v48 = vsub.s32 0, %v47
  %v49 = vrot.slane %v44, %v48
  %v51 = vmul.f32 %v42, %v49
  %v52 = vmul.f32 %v43, %v49
  %v53 = vld [vmem:[%s2] sm:$0x1]
  %v55 = vlaneseq
  %v56 = vshrl.u32 %v55, 7
  %v57 = vsub.s32 0, %v56
  %v58 = vrot.slane %v53, %v57
  %v60 = vadd.f32 %v51, %v58
  %v61 = vadd.f32 %v52, %v58
  %62 = vst.msk [vmem:[%s3] sm:$0xff] %vm16, %v60
  %63 = vst.msk [vmem:[%s3 + $0x8] sm:$0xff] %vm16, %v61
  // Predicated region
  $region14: #{transformer_forward.66} parent=0 // pred_check
    _
  $region15: #{transformer_forward.66} parent=0 // pred_check_branch
    %65 = sbr.rel (0) target = $region17
  $region16: #{transformer_forward.66} parent=0 // pred_region
    _
  $region17: #{transformer_forward.66} parent=0 // pred_fallthru
    _
  // Predicated region
  $region18: #{transformer_forward.66} parent=0 // pred_check
    _
  $region19: #{transformer_forward.66} parent=0 // pred_check_branch
    %67 = sbr.rel (0) target = $region21
  $region20: #{transformer_forward.66} parent=0 // pred_region
    _
  $region21: #{transformer_forward.66} parent=0 // pred_fallthru
    _

// kernel: transformer_forward.71
$region0: #{transformer_forward.71}
  #allocation0 [shape = 'u32[]', space=smem, size = 0x4, offset = 0x4, fixed_abs, tag = 'smem constant byte address 0x4 - core index']
  #allocation1 [shape = 'u32[144,128]{1,0:T(1,128)}', space=vmem, size = 0x12000, scoped, tag = 'internal scratch']
  #allocation2 [shape = 'f32[16,64]{1,0:T(8,128)}', space=vmem, size = 0x2000, scoped, tag = 'scratch operand']
  %s0 = inlined_call_operand.vmem [shape: f32[16,32], index: 0, kind: input, shape index: {}]
  %s1 = inlined_call_operand.vmem [shape: f32[32,64], index: 1, kind: input, shape index: {}]
  %s2 = inlined_call_operand.vmem [shape: f32[1,64], index: 2, kind: input, shape index: {}]
  %s3 = inlined_call_operand.vmem [shape: f32[16,64], index: 3, kind: output, shape index: {}]
  %s4 = sld [smem:[#allocation0]]
  $region30: #{transformer_forward.71} parent=0
    _
  %s6 = ssub.s32 1, %s4
  %s7 = scalar_select 0, %s6, %s4
  // Predicated region
  $region2: #{transformer_forward.71} parent=0 // pred_check
    _
  $region3: #{transformer_forward.71} parent=0 // pred_check_branch
    %9 = sbr.rel (0) target = $region5
  $region4: #{transformer_forward.71} parent=0 // pred_region
    _
  $region5: #{transformer_forward.71} parent=0 // pred_fallthru
    _
  // Predicated region
  $region6: #{transformer_forward.71} parent=0 // pred_check
    _
  $region7: #{transformer_forward.71} parent=0 // pred_check_branch
    %11 = sbr.rel (0) target = $region9
  $region8: #{transformer_forward.71} parent=0 // pred_region
    _
  $region9: #{transformer_forward.71} parent=0 // pred_fallthru
    _
  // Predicated region
  $region10: #{transformer_forward.71} parent=0 // pred_check
    _
  $region11: #{transformer_forward.71} parent=0 // pred_check_branch
    %13 = sbr.rel (0) target = $region13
  $region12: #{transformer_forward.71} parent=0 // pred_region
    _
  $region13: #{transformer_forward.71} parent=0 // pred_fallthru
    _
  %p14 = scmp.eq.s32.totalorder 0, 0
  // Predicated region
  $region14: #{transformer_forward.71} parent=0 // pred_check
    %p15 = pneg %p14
  $region15: #{transformer_forward.71} parent=0 // pred_check_branch
    %17 = sbr.rel (%p15) target = $region17
  $region16: #{transformer_forward.71} parent=0 // pred_region
    %vm18 = vcmask 523264
    %19 = vst.msk [vmem:[#allocation2] sm:$0xff] %vm18, 0.0
    %20 = vst.msk [vmem:[#allocation2 + $0x8] sm:$0xff] %vm18, 0.0
  $region17: #{transformer_forward.71} parent=0 // pred_fallthru
    _
  %v21 = vld [vmem:[#allocation2] sm:$0xff]
  %v22 = vld [vmem:[#allocation2 + $0x8] sm:$0xff]
  %v23 = vld [vmem:[%s0] sm:$0xff]
  %v24 = vld [vmem:[%s0 + $0x8] sm:$0xff]
  %v25 = vld [vmem:[%s1] sm:$0xff]
  %v26 = vld [vmem:[%s1 + $0x8] sm:$0xff]
  %v27 = vld [vmem:[%s1 + $0x10] sm:$0xff]
  %v28 = vld [vmem:[%s1 + $0x18] sm:$0xff]
  %vm29 = vcmask 261120
  %v31 = vsel %vm29, %v23, 0
  %v34 = vsel %vm29, %v24, 0
  %36 = vmatprep.subr.mxu0 0.0
  %37 = vmatpush1.msra.mxu0 %v25
  %38 = vmatprep.subr.mxu0 0.0
  %39 = vmatpush1.msra.mxu0 %v26
  %40 = vmatprep.subr.mxu0 0.0
  %41 = vmatpush1.msra.mxu0 %v27
  %42 = vmatprep.subr.mxu0 0.0
  %43 = vmatpush1.msra.mxu0 %v28
  %44 = vmatprep.subr.mxu0 0.0
  %45 = vmatpush1.msra.mxu0 0.0
  %46 = vmatprep.subr.mxu0 0.0
  %47 = vmatpush1.msra.mxu0 0.0
  %48 = vmatprep.subr.mxu0 0.0
  %49 = vmatpush1.msra.mxu0 0.0
  %50 = vmatprep.subr.mxu0 0.0
  %51 = vmatpush1.msra.mxu0 0.0
  %52 = vmatprep.subr.mxu0 0.0
  %53 = vmatpush1.msra.mxu0 0.0
  %54 = vmatprep.subr.mxu0 0.0
  %55 = vmatpush1.msra.mxu0 0.0
  %56 = vmatprep.subr.mxu0 0.0
  %57 = vmatpush1.msra.mxu0 0.0
  %58 = vmatprep.subr.mxu0 0.0
  %59 = vmatpush1.msra.mxu0 0.0
  %60 = vmatprep.subr.mxu0 0.0
  %61 = vmatpush1.msra.mxu0 0.0
  %62 = vmatprep.subr.mxu0 0.0
  %63 = vmatpush1.msra.mxu0 0.0
  %64 = vmatprep.subr.mxu0 0.0
  %65 = vmatpush1.msra.mxu0 0.0
  %66 = vmatprep.subr.mxu0 0.0
  %67 = vmatpush1.msra.mxu0 0.0
  %68 = vmatprep.subr.mxu0 0.0
  %69 = vmatpush1.msra.mxu0 0.0
  %70 = vmatprep.subr.mxu0 0.0
  %71 = vmatpush1.msra.mxu0 0.0
  %72 = vmatprep.subr.mxu0 0.0
  %73 = vmatpush1.msra.mxu0 0.0
  %74 = vmatprep.subr.mxu0 0.0
  %75 = vmatpush1.msra.mxu0 0.0
  %76 = vmatprep.subr.mxu0 0.0
  %77 = vmatpush1.msra.mxu0 0.0
  %78 = vmatprep.subr.mxu0 0.0
  %79 = vmatpush1.msra.mxu0 0.0
  %80 = vmatprep.subr.mxu0 0.0
  %81 = vmatpush1.msra.mxu0 0.0
  %82 = vmatprep.subr.mxu0 0.0
  %83 = vmatpush1.msra.mxu0 0.0
  %84 = vmatprep.subr.mxu0 0.0
  %85 = vmatpush1.msra.mxu0 0.0
  %86 = vmatprep.subr.mxu0 0.0
  %87 = vmatpush1.msra.mxu0 0.0
  %88 = vmatprep.subr.mxu0 0.0
  %89 = vmatpush1.msra.mxu0 0.0
  %90 = vmatprep.subr.mxu0 0.0
  %91 = vmatpush1.msra.mxu0 0.0
  %92 = vmatprep.subr.mxu0 0.0
  %93 = vmatpush1.msra.mxu0 0.0
  %94 = vmatprep.subr.mxu0 0.0
  %95 = vmatpush1.msra.mxu0 0.0
  %96 = vmatprep.subr.mxu0 0.0
  %97 = vmatpush1.msra.mxu0 0.0
  %98 = vmatprep.subr.mxu0 0.0
  %99 = vmatpush1.msra.mxu0 0.0
  %100 = vmatprep.mubr.f32.mxu0 0.0
  %101 = vmatmul.mubr.f32.gmra.mrb[0].mxu0 %v31
  %v102 = vpop.f32.mrb[0].mxu0
  %v103 = vadd.f32 0.0, %v102
  %v104 = vpop.f32.mrb[0].mxu0
  %105 = vmatprep.mubr.f32.mxu0 0.0
  %106 = vmatmul.mubr.f32.gmra.mrb[0].mxu0 %v34
  %v107 = vpop.f32.mrb[0].mxu0
  %v108 = vadd.f32 0.0, %v107
  %v109 = vpop.f32.mrb[0].mxu0
  %110 = vdwg.mxu0
  %v111 = vadd.f32 %v21, %v103
  %v112 = vadd.f32 %v22, %v108
  %vm113 = vcmask 523264
  %114 = vst.msk [vmem:[#allocation2] sm:$0xff] %vm113, %v111
  %115 = vst.msk [vmem:[#allocation2 + $0x8] sm:$0xff] %vm113, %v112
  // Predicated region
  $region18: #{transformer_forward.71} parent=0 // pred_check
    %p116 = pneg %p14
  $region19: #{transformer_forward.71} parent=0 // pred_check_branch
    %118 = sbr.rel (%p116) target = $region21
  $region20: #{transformer_forward.71} parent=0 // pred_region
    %v119 = vld [vmem:[#allocation2] sm:$0xff]
    %v120 = vld [vmem:[#allocation2 + $0x8] sm:$0xff]
    %v121 = vld [vmem:[%s2] sm:$0x1]
    %v123 = vlaneseq
    %v124 = vshrl.u32 %v123, 7
    %v125 = vsub.s32 0, %v124
    %v126 = vrot.slane %v121, %v125
    %v128 = vadd.f32 %v119, %v126
    %v129 = vadd.f32 %v120, %v126
    %130 = vst.msk [vmem:[%s3] sm:$0xff] %vm113, %v128
    %131 = vst.msk [vmem:[%s3 + $0x8] sm:$0xff] %vm113, %v129
  $region21: #{transformer_forward.71} parent=0 // pred_fallthru
    _
  // Predicated region
  $region22: #{transformer_forward.71} parent=0 // pred_check
    _
  $region23: #{transformer_forward.71} parent=0 // pred_check_branch
    %133 = sbr.rel (0) target = $region25
  $region24: #{transformer_forward.71} parent=0 // pred_region
    _
  $region25: #{transformer_forward.71} parent=0 // pred_fallthru
    _
  // Predicated region
  $region26: #{transformer_forward.71} parent=0 // pred_check
    _
  $region27: #{transformer_forward.71} parent=0 // pred_check_branch
    %135 = sbr.rel (0) target = $region29
  $region28: #{transformer_forward.71} parent=0 // pred_region
    _
  $region29: #{transformer_forward.71} parent=0 // pred_fallthru
    _

// kernel: transformer_forward.61
$region0: #{transformer_forward.61}
  #allocation0 [shape = 'u32[]', space=smem, size = 0x4, offset = 0x4, fixed_abs, tag = 'smem constant byte address 0x4 - core index']
  #allocation1 [shape = 'u32[144,128]{1,0:T(1,128)}', space=vmem, size = 0x12000, scoped, tag = 'internal scratch']
  #allocation2 [shape = 'f32[16,32]{1,0:T(8,128)}', space=vmem, size = 0x2000, scoped, tag = 'scratch operand']
  %s0 = inlined_call_operand.vmem [shape: f32[16,32], index: 0, kind: input, shape index: {}]
  %s1 = inlined_call_operand.vmem [shape: f32[32,2048], index: 1, kind: input, shape index: {}]
  %s2 = inlined_call_operand.vmem [shape: f32[1,2048], index: 2, kind: input, shape index: {}]
  %s3 = inlined_call_operand.vmem [shape: f32[2048,32], index: 3, kind: input, shape index: {}]
  %s4 = inlined_call_operand.vmem [shape: f32[1,32], index: 4, kind: input, shape index: {}]
  %s5 = inlined_call_operand.vmem [shape: f32[1,32], index: 5, kind: input, shape index: {}]
  %s6 = inlined_call_operand.vmem [shape: f32[1,32], index: 6, kind: input, shape index: {}]
  %s7 = inlined_call_operand.vmem [shape: f32[16,32], index: 7, kind: output, shape index: {}]
  %s8 = sld [smem:[#allocation0]]
  $region92: #{transformer_forward.61} parent=0
    _
  %s10 = ssub.s32 1, %s8
  %s11 = scalar_select 0, %s10, %s8
  $region1: #{transformer_forward.61} parent=0
    #allocation3 [shape = 'u8[131072]{0}', space=vmem, size = 0x20000, scoped, tag = 'input window, operand 1']
    loop: start=0, step=1, limit=6
    $region2: #{transformer_forward.61} parent=1 // loop_pre_header
      _
    $region3: #{transformer_forward.61} parent=1 // loop_header
      %s13 = sphi 0, %s17
      %p14 = scmp.ge.s32.totalorder %s13, 6
      %s20 = sphi 0, %s32
      %s21 = sphi 0, %s28
      %s22 = sphi 0, %s20
      %s23 = sphi 0, %s21
      %s24 = sphi 0, %s22
      %s25 = sphi 0, %s23
      %s35 = sphi 0, %s37
      %s38 = sphi 0, %s35
      %s39 = sphi 0, %s38
      %s55 = sphi 0, %s39
      %s61 = sphi 0, %s63
      %s64 = sphi 0, %s61
      %s65 = sphi 0, %s64
      %s81 = sphi 0, %s65
      %s87 = sphi 0, %s89
      %s90 = sphi 0, %s87
      %s91 = sphi 0, %s90
      %s107 = sphi 0, %s91
      %s113 = sphi 0, %s115
      %s116 = sphi 0, %s113
      %s117 = sphi 0, %s116
      %s133 = sphi 0, %s117
      %s137 = sphi 0, %s137
      %s139 = sphi 0, %s137
      %s140 = sphi 0, %s139
      %s154 = sphi 0, %s140
      %s158 = sphi 0, %s158
      %s160 = sphi 0, %s158
      %s161 = sphi 0, %s160
      %s175 = sphi 0, %s161
      %s179 = sphi 0, %s179
      %s181 = sphi 0, %s179
      %s182 = sphi 0, %s181
      %s196 = sphi 0, %s182
      %s202 = sphi 0, %s204
      %s205 = sphi 0, %s202
      %s206 = sphi 0, %s205
      %s222 = sphi 0, %s206
    $region4: #{transformer_forward.61} parent=1 // loop_header_branch
      %16 = sbr.rel (%p14) target = $region8
    $region5: #{transformer_forward.61} parent=1 // loop_body
      %s18 = ssub.s32 %s13, 1
      %s19 = ssub.s32 %s13, 2
      %s26 = sadd.s32 1, %s21
      %p27 = scmp.ge.s32.totalorder %s26, 4
      %s28 = scalar_select %p27, 0, %s26
      %s29 = sadd.s32 1, %s20
      %s30 = scalar_select %p27, %s29, %s20
      %p31 = scmp.ge.s32.totalorder %s30, 1
      %s32 = scalar_select %p31, 0, %s30
      %s33 = ssub.s32 %s20, %s32
      %p34 = scmp.eq.s32.totalorder %s33, 0
      %s36 = sadd.s32 %s35, 1
      %s37 = scalar_select %p34, %s35, %s36
      %p40 = pneg %p34
      %p41 = scmp.eq.s32.totalorder %s13, 3
      %p42 = por %p40, %p41
      %p43 = scmp.ne.s32.totalorder %s35, %s38
      %p44 = scmp.eq.s32.totalorder %s13, 0
      %p45 = por %p43, %p44
      %p46 = scmp.ne.s32.totalorder %s35, %s38
      %p47 = scmp.eq.s32.totalorder %s18, 3
      %p48 = por %p46, %p47
      %p49 = scmp.ne.s32.totalorder %s38, %s39
      %p50 = scmp.eq.s32.totalorder %s18, 0
      %p51 = por %p49, %p50
      %p52 = scmp.ne.s32.totalorder %s38, %s39
      %p53 = scmp.eq.s32.totalorder %s19, 3
      %p54 = por %p52, %p53
      %p56 = scmp.ne.s32.totalorder %s39, %s55
      %p57 = scmp.eq.s32.totalorder %s19, 0
      %p58 = por %p56, %p57
      %s59 = ssub.s32 %s21, %s28
      %p60 = scmp.eq.s32.totalorder %s59, 0
      %s62 = sadd.s32 %s61, 1
      %s63 = scalar_select %p60, %s61, %s62
      %p66 = pneg %p60
      %p67 = scmp.eq.s32.totalorder %s13, 3
      %p68 = por %p66, %p67
      %p69 = scmp.ne.s32.totalorder %s61, %s64
      %p70 = scmp.eq.s32.totalorder %s13, 0
      %p71 = por %p69, %p70
      %p72 = scmp.ne.s32.totalorder %s61, %s64
      %p73 = scmp.eq.s32.totalorder %s18, 3
      %p74 = por %p72, %p73
      %p75 = scmp.ne.s32.totalorder %s64, %s65
      %p76 = scmp.eq.s32.totalorder %s18, 0
      %p77 = por %p75, %p76
      %p78 = scmp.ne.s32.totalorder %s64, %s65
      %p79 = scmp.eq.s32.totalorder %s19, 3
      %p80 = por %p78, %p79
      %p82 = scmp.ne.s32.totalorder %s65, %s81
      %p83 = scmp.eq.s32.totalorder %s19, 0
      %p84 = por %p82, %p83
      %s85 = ssub.s32 %s21, %s28
      %p86 = scmp.eq.s32.totalorder %s85, 0
      %s88 = sadd.s32 %s87, 1
      %s89 = scalar_select %p86, %s87, %s88
      %p92 = pneg %p86
      %p93 = scmp.eq.s32.totalorder %s13, 3
      %p94 = por %p92, %p93
      %p95 = scmp.ne.s32.totalorder %s87, %s90
      %p96 = scmp.eq.s32.totalorder %s13, 0
      %p97 = por %p95, %p96
      %p98 = scmp.ne.s32.totalorder %s87, %s90
      %p99 = scmp.eq.s32.totalorder %s18, 3
      %p100 = por %p98, %p99
      %p101 = scmp.ne.s32.totalorder %s90, %s91
      %p102 = scmp.eq.s32.totalorder %s18, 0
      %p103 = por %p101, %p102
      %p104 = scmp.ne.s32.totalorder %s90, %s91
      %p105 = scmp.eq.s32.totalorder %s19, 3
      %p106 = por %p104, %p105
      %p108 = scmp.ne.s32.totalorder %s91, %s107
      %p109 = scmp.eq.s32.totalorder %s19, 0
      %p110 = por %p108, %p109
      %s111 = ssub.s32 %s21, %s28
      %p112 = scmp.eq.s32.totalorder %s111, 0
      %s114 = sadd.s32 %s113, 1
      %s115 = scalar_select %p112, %s113, %s114
      %p118 = pneg %p112
      %p119 = scmp.eq.s32.totalorder %s13, 3
      %p120 = por %p118, %p119
      %p121 = scmp.ne.s32.totalorder %s113, %s116
      %p122 = scmp.eq.s32.totalorder %s13, 0
      %p123 = por %p121, %p122
      %p124 = scmp.ne.s32.totalorder %s113, %s116
      %p125 = scmp.eq.s32.totalorder %s18, 3
      %p126 = por %p124, %p125
      %p127 = scmp.ne.s32.totalorder %s116, %s117
      %p128 = scmp.eq.s32.totalorder %s18, 0
      %p129 = por %p127, %p128
      %p130 = scmp.ne.s32.totalorder %s116, %s117
      %p131 = scmp.eq.s32.totalorder %s19, 3
      %p132 = por %p130, %p131
      %p134 = scmp.ne.s32.totalorder %s117, %s133
      %p135 = scmp.eq.s32.totalorder %s19, 0
      %p136 = por %p134, %p135
      %s138 = sadd.s32 %s137, 1
      %p141 = scmp.eq.s32.totalorder %s13, 3
      %p142 = scmp.ne.s32.totalorder %s137, %s139
      %p143 = scmp.eq.s32.totalorder %s13, 0
      %p144 = por %p142, %p143
      %p145 = scmp.ne.s32.totalorder %s137, %s139
      %p146 = scmp.eq.s32.totalorder %s18, 3
      %p147 = por %p145, %p146
      %p148 = scmp.ne.s32.totalorder %s139, %s140
      %p149 = scmp.eq.s32.totalorder %s18, 0
      %p150 = por %p148, %p149
      %p151 = scmp.ne.s32.totalorder %s139, %s140
      %p152 = scmp.eq.s32.totalorder %s19, 3
      %p153 = por %p151, %p152
      %p155 = scmp.ne.s32.totalorder %s140, %s154
      %p156 = scmp.eq.s32.totalorder %s19, 0
      %p157 = por %p155, %p156
      %s159 = sadd.s32 %s158, 1
      %p162 = scmp.eq.s32.totalorder %s13, 3
      %p163 = scmp.ne.s32.totalorder %s158, %s160
      %p164 = scmp.eq.s32.totalorder %s13, 0
      %p165 = por %p163, %p164
      %p166 = scmp.ne.s32.totalorder %s158, %s160
      %p167 = scmp.eq.s32.totalorder %s18, 3
      %p168 = por %p166, %p167
      %p169 = scmp.ne.s32.totalorder %s160, %s161
      %p170 = scmp.eq.s32.totalorder %s18, 0
      %p171 = por %p169, %p170
      %p172 = scmp.ne.s32.totalorder %s160, %s161
      %p173 = scmp.eq.s32.totalorder %s19, 3
      %p174 = por %p172, %p173
      %p176 = scmp.ne.s32.totalorder %s161, %s175
      %p177 = scmp.eq.s32.totalorder %s19, 0
      %p178 = por %p176, %p177
      %s180 = sadd.s32 %s179, 1
      %p183 = scmp.eq.s32.totalorder %s13, 3
      %p184 = scmp.ne.s32.totalorder %s179, %s181
      %p185 = scmp.eq.s32.totalorder %s13, 0
      %p186 = por %p184, %p185
      %p187 = scmp.ne.s32.totalorder %s179, %s181
      %p188 = scmp.eq.s32.totalorder %s18, 3
      %p189 = por %p187, %p188
      %p190 = scmp.ne.s32.totalorder %s181, %s182
      %p191 = scmp.eq.s32.totalorder %s18, 0
      %p192 = por %p190, %p191
      %p193 = scmp.ne.s32.totalorder %s181, %s182
      %p194 = scmp.eq.s32.totalorder %s19, 3
      %p195 = por %p193, %p194
      %p197 = scmp.ne.s32.totalorder %s182, %s196
      %p198 = scmp.eq.s32.totalorder %s19, 0
      %p199 = por %p197, %p198
      %s200 = ssub.s32 %s20, %s32
      %p201 = scmp.eq.s32.totalorder %s200, 0
      %s203 = sadd.s32 %s202, 1
      %s204 = scalar_select %p201, %s202, %s203
      %p207 = pneg %p201
      %p208 = scmp.eq.s32.totalorder %s13, 3
      %p209 = por %p207, %p208
      %p210 = scmp.ne.s32.totalorder %s202, %s205
      %p211 = scmp.eq.s32.totalorder %s13, 0
      %p212 = por %p210, %p211
      %p213 = scmp.ne.s32.totalorder %s202, %s205
      %p214 = scmp.eq.s32.totalorder %s18, 3
      %p215 = por %p213, %p214
      %p216 = scmp.ne.s32.totalorder %s205, %s206
      %p217 = scmp.eq.s32.totalorder %s18, 0
      %p218 = por %p216, %p217
      %p219 = scmp.ne.s32.totalorder %s205, %s206
      %p220 = scmp.eq.s32.totalorder %s19, 3
      %p221 = por %p219, %p220
      %p223 = scmp.ne.s32.totalorder %s206, %s222
      %p224 = scmp.eq.s32.totalorder %s19, 0
      %p225 = por %p223, %p224
      %p226 = scmp.le.s32.totalorder 1, %s13
      %p227 = scmp.lt.s32.totalorder %s13, 5
      %p228 = pnand %p226, %p227
      %p229 = pneg %p228
      // Predicated region
      $region9: #{transformer_forward.61} parent=5 // pred_check
        _
      $region10: #{transformer_forward.61} parent=5 // pred_check_branch
        %231 = sbr.rel (%p228) target = $region12
      $region11: #{transformer_forward.61} parent=5 // pred_region
        %s232 = ssub.s32 %s13, 1
        // Predicated region
        $region13: #{transformer_forward.61} parent=11 // pred_check
          %p233 = pneg %p51
        $region14: #{transformer_forward.61} parent=11 // pred_check_branch
          %235 = sbr.rel (%p233) target = $region16
        $region15: #{transformer_forward.61} parent=11 // pred_region
          %s236 = smul.u32 2, %s22
          %p237 = scmp.lt.s32.totalorder %s236, 1
          %s238 = scalar_select %p237, %s236, 1
          %s239 = smul.addr %s238, 8
          %s240 = scalar_lea.vmem %s0, %s239
          %s241 = smul.u32 2, %s22
        $region16: #{transformer_forward.61} parent=11 // pred_fallthru
          _
        // Predicated region
        $region17: #{transformer_forward.61} parent=11 // pred_check
          %p242 = pneg %p150
        $region18: #{transformer_forward.61} parent=11 // pred_check_branch
          %244 = sbr.rel (%p242) target = $region20
        $region19: #{transformer_forward.61} parent=11 // pred_region
          _
        $region20: #{transformer_forward.61} parent=11 // pred_fallthru
          _
        // Predicated region
        $region21: #{transformer_forward.61} parent=11 // pred_check
          %p245 = pneg %p171
        $region22: #{transformer_forward.61} parent=11 // pred_check_branch
          %247 = sbr.rel (%p245) target = $region24
        $region23: #{transformer_forward.61} parent=11 // pred_region
          _
        $region24: #{transformer_forward.61} parent=11 // pred_fallthru
          _
        // Predicated region
        $region25: #{transformer_forward.61} parent=11 // pred_check
          %p248 = pneg %p192
        $region26: #{transformer_forward.61} parent=11 // pred_check_branch
          %250 = sbr.rel (%p248) target = $region28
        $region27: #{transformer_forward.61} parent=11 // pred_region
          _
        $region28: #{transformer_forward.61} parent=11 // pred_fallthru
          _
      $region12: #{transformer_forward.61} parent=5 // pred_fallthru
        _
      %p251 = scmp.lt.s32.totalorder %s13, 4
      // Predicated region
      $region29: #{transformer_forward.61} parent=5 // pred_check
        %p252 = pneg %p251
      $region30: #{transformer_forward.61} parent=5 // pred_check_branch
        %254 = sbr.rel (%p252) target = $region32
      $region31: #{transformer_forward.61} parent=5 // pred_region
        // Predicated region
        $region33: #{transformer_forward.61} parent=31 // pred_check
          %p255 = pneg %p71
        $region34: #{transformer_forward.61} parent=31 // pred_check_branch
          %257 = sbr.rel (%p255) target = $region36
        $region35: #{transformer_forward.61} parent=31 // pred_region
          %s258 = sand.u32 %s61, 1
          %s259 = sand.u32 %s61, 1
          %s260 = smul.addr %s259, 128
          %s261 = scalar_lea.vmem [#allocation3], %s260
          %s262 = smul.u32 4, %s21
          %s263 = smul.addr %s262, 8
          %s264 = scalar_lea.vmem %s1, %s263
          // Predicated region
          $region37: #{transformer_forward.61} parent=35 // pred_check
            _
          $region38: #{transformer_forward.61} parent=35 // pred_check_branch
            %266 = sbr.rel (0) target = $region40
          $region39: #{transformer_forward.61} parent=35 // pred_region
            // Predicated region
            $region41: #{transformer_forward.61} parent=39 // pred_check
              _
            $region42: #{transformer_forward.61} parent=39 // pred_check_branch
              %268 = sbr.rel (0) target = $region44
            $region43: #{transformer_forward.61} parent=39 // pred_region
              loop: start=0, step=1, limit=1
              $region45: #{transformer_forward.61} parent=43 // loop_pre_header
                _
              $region46: #{transformer_forward.61} parent=43 // loop_header
                %s270 = sphi 0, %s274
                %p271 = scmp.ge.s32.totalorder %s270, 1
                %s275 = sphi %s264, %s264
                %s276 = sphi %s261, %s261
              $region47: #{transformer_forward.61} parent=43 // loop_header_branch
                %273 = sbr.rel (%p271) target = $region51
              $region48: #{transformer_forward.61} parent=43 // loop_body
                %v277 = vld [vmem:[%s275] sm:$0xff]
                %278 = vst [vmem:[%s276] sm:$0xff] %v277
                %v279 = vld [vmem:[%s275 + $0x8] sm:$0xff]
                %280 = vst [vmem:[%s276 + $0x8] sm:$0xff] %v279
                %v281 = vld [vmem:[%s275 + $0x10] sm:$0xff]
                %282 = vst [vmem:[%s276 + $0x10] sm:$0xff] %v281
                %v283 = vld [vmem:[%s275 + $0x18] sm:$0xff]
                %284 = vst [vmem:[%s276 + $0x18] sm:$0xff] %v283
                %v285 = vld [vmem:[%s275 + $0x80] sm:$0xff]
                %286 = vst [vmem:[%s276 + $0x20] sm:$0xff] %v285
                %v287 = vld [vmem:[%s275 + $0x88] sm:$0xff]
                %288 = vst [vmem:[%s276 + $0x28] sm:$0xff] %v287
                %v289 = vld [vmem:[%s275 + $0x90] sm:$0xff]
                %290 = vst [vmem:[%s276 + $0x30] sm:$0xff] %v289
                %v291 = vld [vmem:[%s275 + $0x98] sm:$0xff]
                %292 = vst [vmem:[%s276 + $0x38] sm:$0xff] %v291
                %v293 = vld [vmem:[%s275 + $0x100] sm:$0xff]
                %294 = vst [vmem:[%s276 + $0x40] sm:$0xff] %v293
                %v295 = vld [vmem:[%s275 + $0x108] sm:$0xff]
                %296 = vst [vmem:[%s276 + $0x48] sm:$0xff] %v295
                %v297 = vld [vmem:[%s275 + $0x110] sm:$0xff]
                %298 = vst [vmem:[%s276 + $0x50] sm:$0xff] %v297
                %v299 = vld [vmem:[%s275 + $0x118] sm:$0xff]
                %300 = vst [vmem:[%s276 + $0x58] sm:$0xff] %v299
                %v301 = vld [vmem:[%s275 + $0x180] sm:$0xff]
                %302 = vst [vmem:[%s276 + $0x60] sm:$0xff] %v301
                %v303 = vld [vmem:[%s275 + $0x188] sm:$0xff]
                %304 = vst [vmem:[%s276 + $0x68] sm:$0xff] %v303
                %v305 = vld [vmem:[%s275 + $0x190] sm:$0xff]
                %306 = vst [vmem:[%s276 + $0x70] sm:$0xff] %v305
                %v307 = vld [vmem:[%s275 + $0x198] sm:$0xff]
                %308 = vst [vmem:[%s276 + $0x78] sm:$0xff] %v307
              $region49: #{transformer_forward.61} parent=43 // loop_footer
                %s274 = sadd.s32 1, %s270
              $region50: #{transformer_forward.61} parent=43 // loop_footer_branch
                %269 = sbr.rel target = $region46
              $region51: #{transformer_forward.61} parent=43 // loop_exit
                _
            $region44: #{transformer_forward.61} parent=39 // pred_fallthru
              _
            // Predicated region
            $region52: #{transformer_forward.61} parent=39 // pred_check
              _
            $region53: #{transformer_forward.61} parent=39 // pred_check_branch
              %310 = sbr.rel target = $region55
            $region54: #{transformer_forward.61} parent=39 // pred_region
              _
            $region55: #{transformer_forward.61} parent=39 // pred_fallthru
              _
          $region40: #{transformer_forward.61} parent=35 // pred_fallthru
            _
          %311 = vnop
        $region36: #{transformer_forward.61} parent=31 // pred_fallthru
          _
        // Predicated region
        $region56: #{transformer_forward.61} parent=31 // pred_check
          %p312 = pneg %p97
        $region57: #{transformer_forward.61} parent=31 // pred_check_branch
          %314 = sbr.rel (%p312) target = $region59
        $region58: #{transformer_forward.61} parent=31 // pred_region
          %s315 = smul.u32 4, %s21
          %p316 = scmp.lt.s32.totalorder %s315, 15
          %s317 = scalar_select %p316, %s315, 15
          %s318 = scalar_lea.vmem %s2, %s317
          %s319 = smul.u32 4, %s21
        $region59: #{transformer_forward.61} parent=31 // pred_fallthru
          _
        // Predicated region
        $region60: #{transformer_forward.61} parent=31 // pred_check
          %p320 = pneg %p123
        $region61: #{transformer_forward.61} parent=31 // pred_check_branch
          %322 = sbr.rel (%p320) target = $region63
        $region62: #{transformer_forward.61} parent=31 // pred_region
          %s323 = smul.u32 64, %s21
          %p324 = scmp.lt.s32.totalorder %s323, 255
          %s325 = scalar_select %p324, %s323, 255
          %s326 = smul.addr %s325, 8
          %s327 = scalar_lea.vmem %s3, %s326
          %s328 = smul.u32 64, %s21
        $region63: #{transformer_forward.61} parent=31 // pred_fallthru
          _
      $region32: #{transformer_forward.61} parent=5 // pred_fallthru
        _
      %p329 = scmp.le.s32.totalorder 1, %s13
      %p330 = scmp.lt.s32.totalorder %s13, 5
      %p331 = pnand %p329, %p330
      %p332 = pneg %p331
      // Predicated region
      $region64: #{transformer_forward.61} parent=5 // pred_check
        _
      $region65: #{transformer_forward.61} parent=5 // pred_check_branch
        %334 = sbr.rel (%p331) target = $region67
      $region66: #{transformer_forward.61} parent=5 // pred_region
        %s335 = ssub.s32 %s13, 1
        %s336 = sand.u32 %s64, 1
        %s337 = sand.u32 %s64, 1
        %s338 = smul.addr %s337, 128
        %s339 = scalar_lea.vmem [#allocation3], %s338
        // Predicated region
        $region68: #{transformer_forward.61} parent=66 // pred_check
          %p340 = pneg %p77
        $region69: #{transformer_forward.61} parent=66 // pred_check_branch
          %342 = sbr.rel (%p340) target = $region71
        $region70: #{transformer_forward.61} parent=66 // pred_region
          _
        $region71: #{transformer_forward.61} parent=66 // pred_fallthru
          _
        %s343 = smul.u32 2, %s22
        %p344 = scmp.lt.s32.totalorder %s343, 1
        %s345 = scalar_select %p344, %s343, 1
        %s346 = smul.addr %s345, 8
        %s347 = scalar_lea.vmem %s0, %s346
        %p348 = pneg %p51
        %p349 = pneg %p48
        %s350 = sand.u32 %s64, 1
        %s351 = sand.u32 %s64, 1
        %s352 = smul.addr %s351, 128
        %s353 = scalar_lea.vmem [#allocation3], %s352
        %p354 = pneg %p77
        %p355 = pneg %p74
        %s356 = smul.u32 4, %s23
        %p357 = scmp.lt.s32.totalorder %s356, 15
        %s358 = scalar_select %p357, %s356, 15
        %s359 = scalar_lea.vmem %s2, %s358
        %p360 = pneg %p103
        %p361 = pneg %p100
        %s362 = smul.u32 64, %s23
        %p363 = scmp.lt.s32.totalorder %s362, 255
        %s364 = scalar_select %p363, %s362, 255
        %s365 = smul.addr %s364, 8
        %s366 = scalar_lea.vmem %s3, %s365
        %p367 = pneg %p129
        %p368 = pneg %p126
        %p369 = pneg %p150
        %p370 = pneg %p147
        %p371 = pneg %p171
        %p372 = pneg %p168
        %p373 = pneg %p192
        %p374 = pneg %p189
        %p375 = pneg %p218
        %p376 = pneg %p215
        %s377 = smul.u32 2, %s22
        %p378 = scmp.lt.s32.totalorder %s377, 1
        %s379 = scalar_select %p378, %s377, 1
        %s380 = smul.addr %s379, 8
        %s381 = scalar_lea.vmem %s7, %s380
        %s382 = smul.u32 2, %s22
        %p383 = scmp.lt.s32.totalorder %s382, 1
        %s384 = scalar_select %p383, %s382, 1
        %s385 = smul.addr %s384, 8
        %s386 = scalar_lea.vmem %s0, %s385
        %s387 = smul.u32 2, %s22
        %s388 = smul.u32 4, %s23
        %s389 = smul.u32 4, %s23
        %p390 = scmp.lt.s32.totalorder %s389, 15
        %s391 = scalar_select %p390, %s389, 15
        %s392 = scalar_lea.vmem %s2, %s391
        %s393 = smul.u32 4, %s23
        %s394 = smul.u32 64, %s23
        %p395 = scmp.lt.s32.totalorder %s394, 255
        %s396 = scalar_select %p395, %s394, 255
        %s397 = smul.addr %s396, 8
        %s398 = scalar_lea.vmem %s3, %s397
        %s399 = smul.u32 64, %s23
        %s400 = smul.u32 2, %s22
        %p401 = scmp.lt.s32.totalorder %s400, 1
        %s402 = scalar_select %p401, %s400, 1
        %s403 = smul.addr %s402, 8
        %s404 = scalar_lea.vmem %s7, %s403
        %s405 = smul.u32 2, %s22
        %p406 = scmp.eq.s32.totalorder %s23, 0
        // Predicated region
        $region72: #{transformer_forward.61} parent=66 // pred_check
          %p407 = pneg %p406
        $region73: #{transformer_forward.61} parent=66 // pred_check_branch
          %409 = sbr.rel (%p407) target = $region75
        $region74: #{transformer_forward.61} parent=66 // pred_region
          %vm410 = vcmask 261120
          %411 = vst.msk [vmem:[#allocation2] sm:$0xff] %vm410, 0.0
          %412 = vst.msk [vmem:[#allocation2 + $0x8] sm:$0xff] %vm410, 0.0
        $region75: #{transformer_forward.61} parent=66 // pred_fallthru
          _
        %v413 = vld [vmem:[%s386] sm:$0xff]
        %v414 = vld [vmem:[%s386 + $0x8] sm:$0xff]
        %v415 = vld [vmem:[%s339] sm:$0xff]
        %v416 = vld [vmem:[%s339 + $0x8] sm:$0xff]
        %v417 = vld [vmem:[%s339 + $0x10] sm:$0xff]
        %v418 = vld [vmem:[%s339 + $0x18] sm:$0xff]
        %v419 = vld [vmem:[%s339 + $0x20] sm:$0xff]
        %v420 = vld [vmem:[%s339 + $0x28] sm:$0xff]
        %v421 = vld [vmem:[%s339 + $0x30] sm:$0xff]
        %v422 = vld [vmem:[%s339 + $0x38] sm:$0xff]
        %v423 = vld [vmem:[%s339 + $0x40] sm:$0xff]
        %v424 = vld [vmem:[%s339 + $0x48] sm:$0xff]
        %v425 = vld [vmem:[%s339 + $0x50] sm:$0xff]
        %v426 = vld [vmem:[%s339 + $0x58] sm:$0xff]
        %v427 = vld [vmem:[%s339 + $0x60] sm:$0xff]
        %v428 = vld [vmem:[%s339 + $0x68] sm:$0xff]
        %v429 = vld [vmem:[%s339 + $0x70] sm:$0xff]
        %v430 = vld [vmem:[%s339 + $0x78] sm:$0xff]
        %v431 = vld [vmem:[%s392] sm:$0xf]
        %v433 = vlaneseq
        %v434 = vshrl.u32 %v433, 7
        %v435 = vsub.s32 0, %v434
        %v436 = vrot.slane %v431, %v435
        %v437 = vlaneseq
        %v438 = vshrl.u32 %v437, 7
        %v439 = vsub.s32 1, %v438
        %v440 = vrot.slane %v431, %v439
        %v441 = vlaneseq
        %v442 = vshrl.u32 %v441, 7
        %v443 = vsub.s32 2, %v442
        %v444 = vrot.slane %v431, %v443
        %v445 = vlaneseq
        %v446 = vshrl.u32 %v445, 7
        %v447 = vsub.s32 3, %v446
        %v448 = vrot.slane %v431, %v447
        %vm453 = vcmask 261120
        %v455 = vsel %vm453, %v413, 0
        %v458 = vsel %vm453, %v414, 0
        %460 = vmatprep.subr.mxu0 %v416
        %461 = vmatpush1.msra.mxu0 %v415
        %462 = vmatprep.subr.mxu0 %v420
        %463 = vmatpush1.msra.mxu0 %v419
        %464 = vmatprep.subr.mxu0 %v424
        %465 = vmatpush1.msra.mxu0 %v423
        %466 = vmatprep.subr.mxu0 %v428
        %467 = vmatpush1.msra.mxu0 %v427
        %468 = vmatprep.subr.mxu0 0.0
        %469 = vmatpush1.msra.mxu0 0.0
        %470 = vmatprep.subr.mxu0 0.0
        %471 = vmatpush1.msra.mxu0 0.0
        %472 = vmatprep.subr.mxu0 0.0
        %473 = vmatpush1.msra.mxu0 0.0
        %474 = vmatprep.subr.mxu0 0.0
        %475 = vmatpush1.msra.mxu0 0.0
        %476 = vmatprep.subr.mxu0 0.0
        %477 = vmatpush1.msra.mxu0 0.0
        %478 = vmatprep.subr.mxu0 0.0
        %479 = vmatpush1.msra.mxu0 0.0
        %480 = vmatprep.subr.mxu0 0.0
        %481 = vmatpush1.msra.mxu0 0.0
        %482 = vmatprep.subr.mxu0 0.0
        %483 = vmatpush1.msra.mxu0 0.0
        %484 = vmatprep.subr.mxu0 0.0
        %485 = vmatpush1.msra.mxu0 0.0
        %486 = vmatprep.subr.mxu0 0.0
        %487 = vmatpush1.msra.mxu0 0.0
        %488 = vmatprep.subr.mxu0 0.0
        %489 = vmatpush1.msra.mxu0 0.0
        %490 = vmatprep.subr.mxu0 0.0
        %491 = vmatpush1.msra.mxu0 0.0
        %492 = vmatprep.subr.mxu0 0.0
        %493 = vmatpush1.msra.mxu0 0.0
        %494 = vmatprep.subr.mxu0 0.0
        %495 = vmatpush1.msra.mxu0 0.0
        %496 = vmatprep.subr.mxu0 0.0
        %497 = vmatpush1.msra.mxu0 0.0
        %498 = vmatprep.subr.mxu0 0.0
        %499 = vmatpush1.msra.mxu0 0.0
        %500 = vmatprep.subr.mxu0 0.0
        %501 = vmatpush1.msra.mxu0 0.0
        %502 = vmatprep.subr.mxu0 0.0
        %503 = vmatpush1.msra.mxu0 0.0
        %504 = vmatprep.subr.mxu0 0.0
        %505 = vmatpush1.msra.mxu0 0.0
        %506 = vmatprep.subr.mxu0 0.0
        %507 = vmatpush1.msra.mxu0 0.0
        %508 = vmatprep.subr.mxu0 0.0
        %509 = vmatpush1.msra.mxu0 0.0
        %510 = vmatprep.subr.mxu0 0.0
        %511 = vmatpush1.msra.mxu0 0.0
        %512 = vmatprep.subr.mxu0 0.0
        %513 = vmatpush1.msra.mxu0 0.0
        %514 = vmatprep.subr.mxu0 0.0
        %515 = vmatpush1.msra.mxu0 0.0
        %516 = vmatprep.subr.mxu0 0.0
        %517 = vmatpush1.msra.mxu0 0.0
        %518 = vmatprep.subr.mxu0 0.0
        %519 = vmatpush1.msra.mxu0 0.0
        %520 = vmatprep.subr.mxu0 0.0
        %521 = vmatpush1.msra.mxu0 0.0
        %522 = vmatprep.subr.mxu0 0.0
        %523 = vmatpush1.msra.mxu0 0.0
        %524 = vmatprep.mubr.f32.mxu0 0.0
        %525 = vmatmul.mubr.f32.gmra.mrb[0].mxu0 %v455
        %v526 = vpop.f32.mrb[0].mxu0
        %v527 = vadd.f32 %v436, %v526
        %v528 = vpop.f32.mrb[0].mxu0
        %v529 = vadd.f32 %v440, %v528
        %530 = vmatprep.mubr.f32.mxu0 0.0
        %531 = vmatmul.mubr.f32.gmra.mrb[0].mxu0 %v458
        %v532 = vpop.f32.mrb[0].mxu0
        %v533 = vadd.f32 %v436, %v532
        %v534 = vpop.f32.mrb[0].mxu0
        %v535 = vadd.f32 %v440, %v534
        %536 = vdwg.mxu0
        %537 = vmatprep.subr.mxu0 %v418
        %538 = vmatpush1.msra.mxu0 %v417
        %539 = vmatprep.subr.mxu0 %v422
        %540 = vmatpush1.msra.mxu0 %v421
        %541 = vmatprep.subr.mxu0 %v426
        %542 = vmatpush1.msra.mxu0 %v425
        %543 = vmatprep.subr.mxu0 %v430
        %544 = vmatpush1.msra.mxu0 %v429
        %545 = vmatprep.subr.mxu0 0.0
        %546 = vmatpush1.msra.mxu0 0.0
        %547 = vmatprep.subr.mxu0 0.0
        %548 = vmatpush1.msra.mxu0 0.0
        %549 = vmatprep.subr.mxu0 0.0
        %550 = vmatpush1.msra.mxu0 0.0
        %551 = vmatprep.subr.mxu0 0.0
        %552 = vmatpush1.msra.mxu0 0.0
        %553 = vmatprep.subr.mxu0 0.0
        %554 = vmatpush1.msra.mxu0 0.0
        %555 = vmatprep.subr.mxu0 0.0
        %556 = vmatpush1.msra.mxu0 0.0
        %557 = vmatprep.subr.mxu0 0.0
        %558 = vmatpush1.msra.mxu0 0.0
        %559 = vmatprep.subr.mxu0 0.0
        %560 = vmatpush1.msra.mxu0 0.0
        %561 = vmatprep.subr.mxu0 0.0
        %562 = vmatpush1.msra.mxu0 0.0
        %563 = vmatprep.subr.mxu0 0.0
        %564 = vmatpush1.msra.mxu0 0.0
        %565 = vmatprep.subr.mxu0 0.0
        %566 = vmatpush1.msra.mxu0 0.0
        %567 = vmatprep.subr.mxu0 0.0
        %568 = vmatpush1.msra.mxu0 0.0
        %569 = vmatprep.subr.mxu0 0.0
        %570 = vmatpush1.msra.mxu0 0.0
        %571 = vmatprep.subr.mxu0 0.0
        %572 = vmatpush1.msra.mxu0 0.0
        %573 = vmatprep.subr.mxu0 0.0
        %574 = vmatpush1.msra.mxu0 0.0
        %575 = vmatprep.subr.mxu0 0.0
        %576 = vmatpush1.msra.mxu0 0.0
        %577 = vmatprep.subr.mxu0 0.0
        %578 = vmatpush1.msra.mxu0 0.0
        %579 = vmatprep.subr.mxu0 0.0
        %580 = vmatpush1.msra.mxu0 0.0
        %581 = vmatprep.subr.mxu0 0.0
        %582 = vmatpush1.msra.mxu0 0.0
        %583 = vmatprep.subr.mxu0 0.0
        %584 = vmatpush1.msra.mxu0 0.0
        %585 = vmatprep.subr.mxu0 0.0
        %586 = vmatpush1.msra.mxu0 0.0
        %587 = vmatprep.subr.mxu0 0.0
        %588 = vmatpush1.msra.mxu0 0.0
        %589 = vmatprep.subr.mxu0 0.0
        %590 = vmatpush1.msra.mxu0 0.0
        %591 = vmatprep.subr.mxu0 0.0
        %592 = vmatpush1.msra.mxu0 0.0
        %593 = vmatprep.subr.mxu0 0.0
        %594 = vmatpush1.msra.mxu0 0.0
        %595 = vmatprep.subr.mxu0 0.0
        %596 = vmatpush1.msra.mxu0 0.0
        %597 = vmatprep.subr.mxu0 0.0
        %598 = vmatpush1.msra.mxu0 0.0
        %599 = vmatprep.subr.mxu0 0.0
        %600 = vmatpush1.msra.mxu0 0.0
        %601 = vmatprep.mubr.f32.mxu0 0.0
        %602 = vmatmul.mubr.f32.gmra.mrb[0].mxu0 %v455
        %v603 = vpop.f32.mrb[0].mxu0
        %v604 = vadd.f32 %v444, %v603
        %v605 = vpop.f32.mrb[0].mxu0
        %v606 = vadd.f32 %v448, %v605
        %607 = vmatprep.mubr.f32.mxu0 0.0
        %608 = vmatmul.mubr.f32.gmra.mrb[0].mxu0 %v458
        %v609 = vpop.f32.mrb[0].mxu0
        %v610 = vadd.f32 %v444, %v609
        %v611 = vpop.f32.mrb[0].mxu0
        %v612 = vadd.f32 %v448, %v611
        %613 = vdwg.mxu0
        %v614 = vmax.f32 %v527, 0.0
        %v615 = vmax.f32 %v529, 0.0
        %v616 = vmax.f32 %v604, 0.0
        %v617 = vmax.f32 %v606, 0.0
        %v618 = vmax.f32 %v533, 0.0
        %v619 = vmax.f32 %v535, 0.0
        %v620 = vmax.f32 %v610, 0.0
        %v621 = vmax.f32 %v612, 0.0
        %v622 = vld [vmem:[#allocation2] sm:$0xff]
        %v623 = vld [vmem:[#allocation2 + $0x8] sm:$0xff]
        %v624 = vld [vmem:[%s398] sm:$0xff]
        %v625 = vld [vmem:[%s398 + $0x8] sm:$0xff]
        %v626 = vld [vmem:[%s398 + $0x10] sm:$0xff]
        %v627 = vld [vmem:[%s398 + $0x18] sm:$0xff]
        %v628 = vld [vmem:[%s398 + $0x20] sm:$0xff]
        %v629 = vld [vmem:[%s398 + $0x28] sm:$0xff]
        %v630 = vld [vmem:[%s398 + $0x30] sm:$0xff]
        %v631 = vld [vmem:[%s398 + $0x38] sm:$0xff]
        %v632 = vld [vmem:[%s398 + $0x40] sm:$0xff]
        %v633 = vld [vmem:[%s398 + $0x48] sm:$0xff]
        %v634 = vld [vmem:[%s398 + $0x50] sm:$0xff]
        %v635 = vld [vmem:[%s398 + $0x58] sm:$0xff]
        %v636 = vld [vmem:[%s398 + $0x60] sm:$0xff]
        %v637 = vld [vmem:[%s398 + $0x68] sm:$0xff]
        %v638 = vld [vmem:[%s398 + $0x70] sm:$0xff]
        %v639 = vld [vmem:[%s398 + $0x78] sm:$0xff]
        %v640 = vld [vmem:[%s398 + $0x80] sm:$0xff]
        %v641 = vld [vmem:[%s398 + $0x88] sm:$0xff]
        %v642 = vld [vmem:[%s398 + $0x90] sm:$0xff]
        %v643 = vld [vmem:[%s398 + $0x98] sm:$0xff]
        %v644 = vld [vmem:[%s398 + $0xa0] sm:$0xff]
        %v645 = vld [vmem:[%s398 + $0xa8] sm:$0xff]
        %v646 = vld [vmem:[%s398 + $0xb0] sm:$0xff]
        %v647 = vld [vmem:[%s398 + $0xb8] sm:$0xff]
        %v648 = vld [vmem:[%s398 + $0xc0] sm:$0xff]
        %v649 = vld [vmem:[%s398 + $0xc8] sm:$0xff]
        %v650 = vld [vmem:[%s398 + $0xd0] sm:$0xff]
        %v651 = vld [vmem:[%s398 + $0xd8] sm:$0xff]
        %v652 = vld [vmem:[%s398 + $0xe0] sm:$0xff]
        %v653 = vld [vmem:[%s398 + $0xe8] sm:$0xff]
        %v654 = vld [vmem:[%s398 + $0xf0] sm:$0xff]
        %v655 = vld [vmem:[%s398 + $0xf8] sm:$0xff]
        %v656 = vld [vmem:[%s398 + $0x100] sm:$0xff]
        %v657 = vld [vmem:[%s398 + $0x108] sm:$0xff]
        %v658 = vld [vmem:[%s398 + $0x110] sm:$0xff]
        %v659 = vld [vmem:[%s398 + $0x118] sm:$0xff]
        %v660 = vld [vmem:[%s398 + $0x120] sm:$0xff]
        %v661 = vld [vmem:[%s398 + $0x128] sm:$0xff]
        %v662 = vld [vmem:[%s398 + $0x130] sm:$0xff]
        %v663 = vld [vmem:[%s398 + $0x138] sm:$0xff]
        %v664 = vld [vmem:[%s398 + $0x140] sm:$0xff]
        %v665 = vld [vmem:[%s398 + $0x148] sm:$0xff]
        %v666 = vld [vmem:[%s398 + $0x150] sm:$0xff]
        %v667 = vld [vmem:[%s398 + $0x158] sm:$0xff]
        %v668 = vld [vmem:[%s398 + $0x160] sm:$0xff]
        %v669 = vld [vmem:[%s398 + $0x168] sm:$0xff]
        %v670 = vld [vmem:[%s398 + $0x170] sm:$0xff]
        %v671 = vld [vmem:[%s398 + $0x178] sm:$0xff]
        %v672 = vld [vmem:[%s398 + $0x180] sm:$0xff]
        %v673 = vld [vmem:[%s398 + $0x188] sm:$0xff]
        %v674 = vld [vmem:[%s398 + $0x190] sm:$0xff]
        %v675 = vld [vmem:[%s398 + $0x198] sm:$0xff]
        %v676 = vld [vmem:[%s398 + $0x1a0] sm:$0xff]
        %v677 = vld [vmem:[%s398 + $0x1a8] sm:$0xff]
        %v678 = vld [vmem:[%s398 + $0x1b0] sm:$0xff]
        %v679 = vld [vmem:[%s398 + $0x1b8] sm:$0xff]
        %v680 = vld [vmem:[%s398 + $0x1c0] sm:$0xff]
        %v681 = vld [vmem:[%s398 + $0x1c8] sm:$0xff]
        %v682 = vld [vmem:[%s398 + $0x1d0] sm:$0xff]
        %v683 = vld [vmem:[%s398 + $0x1d8] sm:$0xff]
        %v684 = vld [vmem:[%s398 + $0x1e0] sm:$0xff]
        %v685 = vld [vmem:[%s398 + $0x1e8] sm:$0xff]
        %v686 = vld [vmem:[%s398 + $0x1f0] sm:$0xff]
        %v687 = vld [vmem:[%s398 + $0x1f8] sm:$0xff]
        %688 = vmatprep.subr.mxu0 0.0
        %689 = vmatpush1.msra.mxu0 %v624
        %690 = vmatprep.subr.mxu0 0.0
        %691 = vmatpush1.msra.mxu0 %v625
        %692 = vmatprep.subr.mxu0 0.0
        %693 = vmatpush1.msra.mxu0 %v626
        %694 = vmatprep.subr.mxu0 0.0
        %695 = vmatpush1.msra.mxu0 %v627
        %696 = vmatprep.subr.mxu0 0.0
        %697 = vmatpush1.msra.mxu0 %v628
        %698 = vmatprep.subr.mxu0 0.0
        %699 = vmatpush1.msra.mxu0 %v629
        %700 = vmatprep.subr.mxu0 0.0
        %701 = vmatpush1.msra.mxu0 %v630
        %702 = vmatprep.subr.mxu0 0.0
        %703 = vmatpush1.msra.mxu0 %v631
        %704 = vmatprep.subr.mxu0 0.0
        %705 = vmatpush1.msra.mxu0 %v632
        %706 = vmatprep.subr.mxu0 0.0
        %707 = vmatpush1.msra.mxu0 %v633
        %708 = vmatprep.subr.mxu0 0.0
        %709 = vmatpush1.msra.mxu0 %v634
        %710 = vmatprep.subr.mxu0 0.0
        %711 = vmatpush1.msra.mxu0 %v635
        %712 = vmatprep.subr.mxu0 0.0
        %713 = vmatpush1.msra.mxu0 %v636
        %714 = vmatprep.subr.mxu0 0.0
        %715 = vmatpush1.msra.mxu0 %v637
        %716 = vmatprep.subr.mxu0 0.0
        %717 = vmatpush1.msra.mxu0 %v638
        %718 = vmatprep.subr.mxu0 0.0
        %719 = vmatpush1.msra.mxu0 %v639
        %720 = vmatprep.subr.mxu0 0.0
        %721 = vmatpush1.msra.mxu0 %v640
        %722 = vmatprep.subr.mxu0 0.0
        %723 = vmatpush1.msra.mxu0 %v641
        %724 = vmatprep.subr.mxu0 0.0
        %725 = vmatpush1.msra.mxu0 %v642
        %726 = vmatprep.subr.mxu0 0.0
        %727 = vmatpush1.msra.mxu0 %v643
        %728 = vmatprep.subr.mxu0 0.0
        %729 = vmatpush1.msra.mxu0 %v644
        %730 = vmatprep.subr.mxu0 0.0
        %731 = vmatpush1.msra.mxu0 %v645
        %732 = vmatprep.subr.mxu0 0.0
        %733 = vmatpush1.msra.mxu0 %v646
        %734 = vmatprep.subr.mxu0 0.0
        %735 = vmatpush1.msra.mxu0 %v647
        %736 = vmatprep.subr.mxu0 0.0
        %737 = vmatpush1.msra.mxu0 %v648
        %738 = vmatprep.subr.mxu0 0.0
        %739 = vmatpush1.msra.mxu0 %v649
        %740 = vmatprep.subr.mxu0 0.0
        %741 = vmatpush1.msra.mxu0 %v650
        %742 = vmatprep.subr.mxu0 0.0
        %743 = vmatpush1.msra.mxu0 %v651
        %744 = vmatprep.subr.mxu0 0.0
        %745 = vmatpush1.msra.mxu0 %v652
        %746 = vmatprep.subr.mxu0 0.0
        %747 = vmatpush1.msra.mxu0 %v653
        %748 = vmatprep.subr.mxu0 0.0
        %749 = vmatpush1.msra.mxu0 %v654
        %750 = vmatprep.subr.mxu0 0.0
        %751 = vmatpush1.msra.mxu0 %v655
        %752 = vmatprep.mubr.f32.mxu0 %v615
        %753 = vmatmul.mubr.f32.gmra.mrb[0].mxu0 %v614
        %v754 = vpop.f32.mrb[0].mxu0
        %v755 = vadd.f32 0.0, %v754
        %v756 = vpop.f32.mrb[0].mxu0
        %757 = vmatprep.mubr.f32.mxu0 %v619
        %758 = vmatmul.mubr.f32.gmra.mrb[0].mxu0 %v618
        %v759 = vpop.f32.mrb[0].mxu0
        %v760 = vadd.f32 0.0, %v759
        %v761 = vpop.f32.mrb[0].mxu0
        %762 = vdwg.mxu0
        %763 = vmatprep.subr.mxu0 0.0
        %764 = vmatpush1.msra.mxu0 %v656
        %765 = vmatprep.subr.mxu0 0.0
        %766 = vmatpush1.msra.mxu0 %v657
        %767 = vmatprep.subr.mxu0 0.0
        %768 = vmatpush1.msra.mxu0 %v658
        %769 = vmatprep.subr.mxu0 0.0
        %770 = vmatpush1.msra.mxu0 %v659
        %771 = vmatprep.subr.mxu0 0.0
        %772 = vmatpush1.msra.mxu0 %v660
        %773 = vmatprep.subr.mxu0 0.0
        %774 = vmatpush1.msra.mxu0 %v661
        %775 = vmatprep.subr.mxu0 0.0
        %776 = vmatpush1.msra.mxu0 %v662
        %777 = vmatprep.subr.mxu0 0.0
        %778 = vmatpush1.msra.mxu0 %v663
        %779 = vmatprep.subr.mxu0 0.0
        %780 = vmatpush1.msra.mxu0 %v664
        %781 = vmatprep.subr.mxu0 0.0
        %782 = vmatpush1.msra.mxu0 %v665
        %783 = vmatprep.subr.mxu0 0.0
        %784 = vmatpush1.msra.mxu0 %v666
        %785 = vmatprep.subr.mxu0 0.0
        %786 = vmatpush1.msra.mxu0 %v667
        %787 = vmatprep.subr.mxu0 0.0
        %788 = vmatpush1.msra.mxu0 %v668
        %789 = vmatprep.subr.mxu0 0.0
        %790 = vmatpush1.msra.mxu0 %v669
        %791 = vmatprep.subr.mxu0 0.0
        %792 = vmatpush1.msra.mxu0 %v670
        %793 = vmatprep.subr.mxu0 0.0
        %794 = vmatpush1.msra.mxu0 %v671
        %795 = vmatprep.subr.mxu0 0.0
        %796 = vmatpush1.msra.mxu0 %v672
        %797 = vmatprep.subr.mxu0 0.0
        %798 = vmatpush1.msra.mxu0 %v673
        %799 = vmatprep.subr.mxu0 0.0
        %800 = vmatpush1.msra.mxu0 %v674
        %801 = vmatprep.subr.mxu0 0.0
        %802 = vmatpush1.msra.mxu0 %v675
        %803 = vmatprep.subr.mxu0 0.0
        %804 = vmatpush1.msra.mxu0 %v676
        %805 = vmatprep.subr.mxu0 0.0
        %806 = vmatpush1.msra.mxu0 %v677
        %807 = vmatprep.subr.mxu0 0.0
        %808 = vmatpush1.msra.mxu0 %v678
        %809 = vmatprep.subr.mxu0 0.0
        %810 = vmatpush1.msra.mxu0 %v679
        %811 = vmatprep.subr.mxu0 0.0
        %812 = vmatpush1.msra.mxu0 %v680
        %813 = vmatprep.subr.mxu0 0.0
        %814 = vmatpush1.msra.mxu0 %v681
        %815 = vmatprep.subr.mxu0 0.0
        %816 = vmatpush1.msra.mxu0 %v682
        %817 = vmatprep.subr.mxu0 0.0
        %818 = vmatpush1.msra.mxu0 %v683
        %819 = vmatprep.subr.mxu0 0.0
        %820 = vmatpush1.msra.mxu0 %v684
        %821 = vmatprep.subr.mxu0 0.0
        %822 = vmatpush1.msra.mxu0 %v685
        %823 = vmatprep.subr.mxu0 0.0
        %824 = vmatpush1.msra.mxu0 %v686
        %825 = vmatprep.subr.mxu0 0.0
        %826 = vmatpush1.msra.mxu0 %v687
        %827 = vmatprep.mubr.f32.mxu0 %v617
        %828 = vmatmul.mubr.f32.gmra.mrb[0].mxu0 %v616
        %v829 = vpop.f32.mrb[0].mxu0
        %v830 = vadd.f32 %v755, %v829
        %v831 = vpop.f32.mrb[0].mxu0
        %832 = vmatprep.mubr.f32.mxu0 %v621
        %833 = vmatmul.mubr.f32.gmra.mrb[0].mxu0 %v620
        %v834 = vpop.f32.mrb[0].mxu0
        %v835 = vadd.f32 %v760, %v834
        %v836 = vpop.f32.mrb[0].mxu0
        %837 = vdwg.mxu0
        %v838 = vadd.f32 %v622, %v830
        %v839 = vadd.f32 %v623, %v835
        %840 = vst.msk [vmem:[#allocation2] sm:$0xff] %vm453, %v838
        %841 = vst.msk [vmem:[#allocation2 + $0x8] sm:$0xff] %vm453, %v839
        %p842 = scmp.eq.s32.totalorder %s23, 3
        // Predicated region
        $region76: #{transformer_forward.61} parent=66 // pred_check
          %p843 = pneg %p842
        $region77: #{transformer_forward.61} parent=66 // pred_check_branch
          %845 = sbr.rel (%p843) target = $region79
        $region78: #{transformer_forward.61} parent=66 // pred_region
          %v846 = vld [vmem:[#allocation2] sm:$0xff]
          %v847 = vld [vmem:[#allocation2 + $0x8] sm:$0xff]
          %v848 = vld [vmem:[%s4] sm:$0x1]
          %v850 = vlaneseq
          %v851 = vshrl.u32 %v850, 7
          %v852 = vsub.s32 0, %v851
          %v853 = vrot.slane %v848, %v852
          %v855 = vadd.f32 %v846, %v853
          %v856 = vadd.f32 %v847, %v853
          %v857 = vadd.f32 %v855, %v413
          %v858 = vadd.f32 %v856, %v414
          %v859 = vsel %vm453, %v857, 0.0
          %860 = vadd.xlane.f32.xlu0 %v859
          %v861 = vpop.xlane.xlu0 %860
          %v862 = vsel %vm453, %v858, 0.0
          %863 = vadd.xlane.f32.xlu0 %v862
          %v864 = vpop.xlane.xlu0 %863
          %v865 = vrcp.pop 32.0
          %v866 = vmul.f32 %v861, %v865
          %v867 = vmul.f32 %v864, %v865
          %v868 = vsub.f32 %v857, %v866
          %v869 = vsub.f32 %v858, %v867
          %v870 = vmul.f32 %v868, %v868
          %v871 = vmul.f32 %v869, %v869
          %v872 = vsel %vm453, %v870, 0.0
          %873 = vadd.xlane.f32.xlu0 %v872
          %v874 = vpop.xlane.xlu0 %873
          %v875 = vsel %vm453, %v871, 0.0
          %876 = vadd.xlane.f32.xlu0 %v875
          %v877 = vpop.xlane.xlu0 %876
          %v878 = vmul.f32 %v874, %v865
          %v879 = vmul.f32 %v877, %v865
          %v880 = vadd.f32 %v878, 1e-05
          %v881 = vadd.f32 %v879, 1e-05
          %v882 = vrsqrt.pop %v880
          %v883 = vrsqrt.pop %v881
          %v884 = vmul.f32 %v868, %v882
          %v885 = vmul.f32 %v869, %v883
          %v886 = vld [vmem:[%s5] sm:$0x1]
          %v888 = vlaneseq
          %v889 = vshrl.u32 %v888, 7
          %v890 = vsub.s32 0, %v889
          %v891 = vrot.slane %v886, %v890
          %v893 = vmul.f32 %v884, %v891
          %v894 = vmul.f32 %v885, %v891
          %v895 = vld [vmem:[%s6] sm:$0x1]
          %v897 = vlaneseq
          %v898 = vshrl.u32 %v897, 7
          %v899 = vsub.s32 0, %v898
          %v900 = vrot.slane %v895, %v899
          %v902 = vadd.f32 %v893, %v900
          %v903 = vadd.f32 %v894, %v900
          %904 = vst.msk [vmem:[%s404] sm:$0xff] %vm453, %v902
          %905 = vst.msk [vmem:[%s404 + $0x8] sm:$0xff] %vm453, %v903
        $region79: #{transformer_forward.61} parent=66 // pred_fallthru
          _
        %s906 = smul.u32 2, %s22
        %p907 = scmp.lt.s32.totalorder %s906, 1
        %s908 = scalar_select %p907, %s906, 1
        %s909 = smul.addr %s908, 8
        %s910 = scalar_lea.vmem %s7, %s909
        // Predicated region
        $region80: #{transformer_forward.61} parent=66 // pred_check
          %p911 = pneg %p215
        $region81: #{transformer_forward.61} parent=66 // pred_check_branch
          %913 = sbr.rel (%p911) target = $region83
        $region82: #{transformer_forward.61} parent=66 // pred_region
          %s914 = smul.u32 2, %s22
        $region83: #{transformer_forward.61} parent=66 // pred_fallthru
          _
        // Predicated region
        $region84: #{transformer_forward.61} parent=66 // pred_check
          %p915 = pneg %p215
        $region85: #{transformer_forward.61} parent=66 // pred_check_branch
          %917 = sbr.rel (%p915) target = $region87
        $region86: #{transformer_forward.61} parent=66 // pred_region
          %s918 = smul.u32 2, %s22
          %p919 = scmp.lt.s32.totalorder %s918, 1
          %s920 = scalar_select %p919, %s918, 1
          %s921 = smul.addr %s920, 8
          %s922 = scalar_lea.vmem %s7, %s921
        $region87: #{transformer_forward.61} parent=66 // pred_fallthru
          _
      $region67: #{transformer_forward.61} parent=5 // pred_fallthru
        _
      %p923 = scmp.le.s32.totalorder 2, %s13
      // Predicated region
      $region88: #{transformer_forward.61} parent=5 // pred_check
        %p924 = pneg %p923
      $region89: #{transformer_forward.61} parent=5 // pred_check_branch
        %926 = sbr.rel (%p924) target = $region91
      $region90: #{transformer_forward.61} parent=5 // pred_region
        %s927 = ssub.s32 %s13, 2
      $region91: #{transformer_forward.61} parent=5 // pred_fallthru
        _
    $region6: #{transformer_forward.61} parent=1 // loop_footer
      %s17 = sadd.s32 1, %s13
    $region7: #{transformer_forward.61} parent=1 // loop_footer_branch
      %12 = sbr.rel target = $region3
    $region8: #{transformer_forward.61} parent=1 // loop_exit
      _

// kernel: transformer_forward.67
$region0: #{transformer_forward.67}
  #allocation0 [shape = 'u32[]', space=smem, size = 0x4, offset = 0x4, fixed_abs, tag = 'smem constant byte address 0x4 - core index']
  #allocation1 [shape = 'u32[144,128]{1,0:T(1,128)}', space=vmem, size = 0x12000, scoped, tag = 'internal scratch']
  #allocation2 [shape = 'f32[12,96]{1,0:T(8,128)}', space=vmem, size = 0x2000, scoped, tag = 'scratch operand']
  %s0 = inlined_call_operand.vmem [shape: f32[12,32], index: 0, kind: input, shape index: {}]
  %s1 = inlined_call_operand.vmem [shape: f32[32,96], index: 1, kind: input, shape index: {}]
  %s2 = inlined_call_operand.vmem [shape: f32[1,96], index: 2, kind: input, shape index: {}]
  %s3 = inlined_call_operand.vmem [shape: f32[12,96], index: 3, kind: output, shape index: {}]
  %s4 = sld [smem:[#allocation0]]
  $region30: #{transformer_forward.67} parent=0
    _
  %s6 = ssub.s32 1, %s4
  %s7 = scalar_select 0, %s6, %s4
  // Predicated region
  $region2: #{transformer_forward.67} parent=0 // pred_check
    _
  $region3: #{transformer_forward.67} parent=0 // pred_check_branch
    %9 = sbr.rel (0) target = $region5
  $region4: #{transformer_forward.67} parent=0 // pred_region
    _
  $region5: #{transformer_forward.67} parent=0 // pred_fallthru
    _
  // Predicated region
  $region6: #{transformer_forward.67} parent=0 // pred_check
    _
  $region7: #{transformer_forward.67} parent=0 // pred_check_branch
    %11 = sbr.rel (0) target = $region9
  $region8: #{transformer_forward.67} parent=0 // pred_region
    _
  $region9: #{transformer_forward.67} parent=0 // pred_fallthru
    _
  // Predicated region
  $region10: #{transformer_forward.67} parent=0 // pred_check
    _
  $region11: #{transformer_forward.67} parent=0 // pred_check_branch
    %13 = sbr.rel (0) target = $region13
  $region12: #{transformer_forward.67} parent=0 // pred_region
    _
  $region13: #{transformer_forward.67} parent=0 // pred_fallthru
    _
  %p14 = scmp.eq.s32.totalorder 0, 0
  // Predicated region
  $region14: #{transformer_forward.67} parent=0 // pred_check
    %p15 = pneg %p14
  $region15: #{transformer_forward.67} parent=0 // pred_check_branch
    %17 = sbr.rel (%p15) target = $region17
  $region16: #{transformer_forward.67} parent=0 // pred_region
    %vm18 = vcmask 785408
    %19 = vst.msk [vmem:[#allocation2] sm:$0xff] %vm18, 0.0
    %vm20 = vcmask 781312
    %21 = vst.msk [vmem:[#allocation2 + $0x8] sm:$0xf] %vm20, 0.0
  $region17: #{transformer_forward.67} parent=0 // pred_fallthru
    _
  %v22 = vld [vmem:[#allocation2] sm:$0xff]
  %v23 = vld [vmem:[#allocation2 + $0x8] sm:$0xf]
  %v24 = vld [vmem:[%s0] sm:$0xff]
  %v25 = vld [vmem:[%s0 + $0x8] sm:$0xf]
  %v26 = vld [vmem:[%s1] sm:$0xff]
  %v27 = vld [vmem:[%s1 + $0x8] sm:$0xff]
  %v28 = vld [vmem:[%s1 + $0x10] sm:$0xff]
  %v29 = vld [vmem:[%s1 + $0x18] sm:$0xff]
  %vm30 = vcmask 261120
  %v32 = vsel %vm30, %v24, 0
  %v35 = vsel %vm30, %v25, 0
  %37 = vmatprep.subr.mxu0 0.0
  %38 = vmatpush1.msra.mxu0 %v26
  %39 = vmatprep.subr.mxu0 0.0
  %40 = vmatpush1.msra.mxu0 %v27
  %41 = vmatprep.subr.mxu0 0.0
  %42 = vmatpush1.msra.mxu0 %v28
  %43 = vmatprep.subr.mxu0 0.0
  %44 = vmatpush1.msra.mxu0 %v29
  %45 = vmatprep.subr.mxu0 0.0
  %46 = vmatpush1.msra.mxu0 0.0
  %47 = vmatprep.subr.mxu0 0.0
  %48 = vmatpush1.msra.mxu0 0.0
  %49 = vmatprep.subr.mxu0 0.0
  %50 = vmatpush1.msra.mxu0 0.0
  %51 = vmatprep.subr.mxu0 0.0
  %52 = vmatpush1.msra.mxu0 0.0
  %53 = vmatprep.subr.mxu0 0.0
  %54 = vmatpush1.msra.mxu0 0.0
  %55 = vmatprep.subr.mxu0 0.0
  %56 = vmatpush1.msra.mxu0 0.0
  %57 = vmatprep.subr.mxu0 0.0
  %58 = vmatpush1.msra.mxu0 0.0
  %59 = vmatprep.subr.mxu0 0.0
  %60 = vmatpush1.msra.mxu0 0.0
  %61 = vmatprep.subr.mxu0 0.0
  %62 = vmatpush1.msra.mxu0 0.0
  %63 = vmatprep.subr.mxu0 0.0
  %64 = vmatpush1.msra.mxu0 0.0
  %65 = vmatprep.subr.mxu0 0.0
  %66 = vmatpush1.msra.mxu0 0.0
  %67 = vmatprep.subr.mxu0 0.0
  %68 = vmatpush1.msra.mxu0 0.0
  %69 = vmatprep.subr.mxu0 0.0
  %70 = vmatpush1.msra.mxu0 0.0
  %71 = vmatprep.subr.mxu0 0.0
  %72 = vmatpush1.msra.mxu0 0.0
  %73 = vmatprep.subr.mxu0 0.0
  %74 = vmatpush1.msra.mxu0 0.0
  %75 = vmatprep.subr.mxu0 0.0
  %76 = vmatpush1.msra.mxu0 0.0
  %77 = vmatprep.subr.mxu0 0.0
  %78 = vmatpush1.msra.mxu0 0.0
  %79 = vmatprep.subr.mxu0 0.0
  %80 = vmatpush1.msra.mxu0 0.0
  %81 = vmatprep.subr.mxu0 0.0
  %82 = vmatpush1.msra.mxu0 0.0
  %83 = vmatprep.subr.mxu0 0.0
  %84 = vmatpush1.msra.mxu0 0.0
  %85 = vmatprep.subr.mxu0 0.0
  %86 = vmatpush1.msra.mxu0 0.0
  %87 = vmatprep.subr.mxu0 0.0
  %88 = vmatpush1.msra.mxu0 0.0
  %89 = vmatprep.subr.mxu0 0.0
  %90 = vmatpush1.msra.mxu0 0.0
  %91 = vmatprep.subr.mxu0 0.0
  %92 = vmatpush1.msra.mxu0 0.0
  %93 = vmatprep.subr.mxu0 0.0
  %94 = vmatpush1.msra.mxu0 0.0
  %95 = vmatprep.subr.mxu0 0.0
  %96 = vmatpush1.msra.mxu0 0.0
  %97 = vmatprep.subr.mxu0 0.0
  %98 = vmatpush1.msra.mxu0 0.0
  %99 = vmatprep.subr.mxu0 0.0
  %100 = vmatpush1.msra.mxu0 0.0
  %101 = vmatprep.mubr.f32.mxu0 0.0
  %102 = vmatmul.mubr.f32.gmra.mrb[0].mxu0 %v32
  %v103 = vpop.f32.mrb[0].mxu0
  %v104 = vadd.f32 0.0, %v103
  %v105 = vpop.f32.mrb[0].mxu0
  %106 = vmatprep.mubr.f32.mxu0 0.0
  %107 = vmatmul.mubr.f32.gmra.mrb[0].mxu0 %v35
  %v108 = vpop.f32.mrb[0].mxu0
  %v109 = vadd.f32 0.0, %v108
  %v110 = vpop.f32.mrb[0].mxu0
  %111 = vdwg.mxu0
  %v112 = vadd.f32 %v22, %v104
  %v113 = vadd.f32 %v23, %v109
  %vm114 = vcmask 785408
  %115 = vst.msk [vmem:[#allocation2] sm:$0xff] %vm114, %v112
  %vm116 = vcmask 781312
  %117 = vst.msk [vmem:[#allocation2 + $0x8] sm:$0xf] %vm116, %v113
  // Predicated region
  $region18: #{transformer_forward.67} parent=0 // pred_check
    %p118 = pneg %p14
  $region19: #{transformer_forward.67} parent=0 // pred_check_branch
    %120 = sbr.rel (%p118) target = $region21
  $region20: #{transformer_forward.67} parent=0 // pred_region
    %v121 = vld [vmem:[#allocation2] sm:$0xff]
    %v122 = vld [vmem:[#allocation2 + $0x8] sm:$0xf]
    %v123 = vld [vmem:[%s2] sm:$0x1]
    %v125 = vlaneseq
    %v126 = vshrl.u32 %v125, 7
    %v127 = vsub.s32 0, %v126
    %v128 = vrot.slane %v123, %v127
    %v130 = vadd.f32 %v121, %v128
    %v131 = vadd.f32 %v122, %v128
    %132 = vst.msk [vmem:[%s3] sm:$0xff] %vm114, %v130
    %133 = vst.msk [vmem:[%s3 + $0x8] sm:$0xf] %vm116, %v131
  $region21: #{transformer_forward.67} parent=0 // pred_fallthru
    _
  // Predicated region
  $region22: #{transformer_forward.67} parent=0 // pred_check
    _
  $region23: #{transformer_forward.67} parent=0 // pred_check_branch
    %135 = sbr.rel (0) target = $region25
  $region24: #{transformer_forward.67} parent=0 // pred_region
    _
  $region25: #{transformer_forward.67} parent=0 // pred_fallthru
    _
  // Predicated region
  $region26: #{transformer_forward.67} parent=0 // pred_check
    _
  $region27: #{transformer_forward.67} parent=0 // pred_check_branch
    %137 = sbr.rel (0) target = $region29
  $region28: #{transformer_forward.67} parent=0 // pred_region
    _
  $region29: #{transformer_forward.67} parent=0 // pred_fallthru
    _

// kernel: transformer_forward.69
$region0: #{transformer_forward.69}
  #allocation0 [shape = 'u32[]', space=smem, size = 0x4, offset = 0x4, fixed_abs, tag = 'smem constant byte address 0x4 - core index']
  #allocation1 [shape = 'u32[144,128]{1,0:T(1,128)}', space=vmem, size = 0x12000, scoped, tag = 'internal scratch']
  #allocation2 [shape = 'f32[12,32]{1,0:T(8,128)}', space=vmem, size = 0x2000, scoped, tag = 'scratch operand']
  %s0 = inlined_call_operand.vmem [shape: f32[12,32], index: 0, kind: input, shape index: {}]
  %s1 = inlined_call_operand.vmem [shape: f32[32,32], index: 1, kind: input, shape index: {}]
  %s2 = inlined_call_operand.vmem [shape: f32[1,32], index: 2, kind: input, shape index: {}]
  %s3 = inlined_call_operand.vmem [shape: f32[12,32], index: 3, kind: input, shape index: {}]
  %s4 = inlined_call_operand.vmem [shape: f32[1,32], index: 4, kind: input, shape index: {}]
  %s5 = inlined_call_operand.vmem [shape: f32[1,32], index: 5, kind: input, shape index: {}]
  %s6 = inlined_call_operand.vmem [shape: f32[12,32], index: 6, kind: output, shape index: {}]
  %s7 = sld [smem:[#allocation0]]
  $region42: #{transformer_forward.69} parent=0
    _
  %s9 = ssub.s32 1, %s7
  %s10 = scalar_select 0, %s9, %s7
  // Predicated region
  $region2: #{transformer_forward.69} parent=0 // pred_check
    _
  $region3: #{transformer_forward.69} parent=0 // pred_check_branch
    %12 = sbr.rel (0) target = $region5
  $region4: #{transformer_forward.69} parent=0 // pred_region
    _
  $region5: #{transformer_forward.69} parent=0 // pred_fallthru
    _
  // Predicated region
  $region6: #{transformer_forward.69} parent=0 // pred_check
    _
  $region7: #{transformer_forward.69} parent=0 // pred_check_branch
    %14 = sbr.rel (0) target = $region9
  $region8: #{transformer_forward.69} parent=0 // pred_region
    _
  $region9: #{transformer_forward.69} parent=0 // pred_fallthru
    _
  // Predicated region
  $region10: #{transformer_forward.69} parent=0 // pred_check
    _
  $region11: #{transformer_forward.69} parent=0 // pred_check_branch
    %16 = sbr.rel (0) target = $region13
  $region12: #{transformer_forward.69} parent=0 // pred_region
    _
  $region13: #{transformer_forward.69} parent=0 // pred_fallthru
    _
  // Predicated region
  $region14: #{transformer_forward.69} parent=0 // pred_check
    _
  $region15: #{transformer_forward.69} parent=0 // pred_check_branch
    %18 = sbr.rel (0) target = $region17
  $region16: #{transformer_forward.69} parent=0 // pred_region
    _
  $region17: #{transformer_forward.69} parent=0 // pred_fallthru
    _
  // Predicated region
  $region18: #{transformer_forward.69} parent=0 // pred_check
    _
  $region19: #{transformer_forward.69} parent=0 // pred_check_branch
    %20 = sbr.rel (0) target = $region21
  $region20: #{transformer_forward.69} parent=0 // pred_region
    _
  $region21: #{transformer_forward.69} parent=0 // pred_fallthru
    _
  // Predicated region
  $region22: #{transformer_forward.69} parent=0 // pred_check
    _
  $region23: #{transformer_forward.69} parent=0 // pred_check_branch
    %22 = sbr.rel (0) target = $region25
  $region24: #{transformer_forward.69} parent=0 // pred_region
    _
  $region25: #{transformer_forward.69} parent=0 // pred_fallthru
    _
  %p23 = scmp.eq.s32.totalorder 0, 0
  // Predicated region
  $region26: #{transformer_forward.69} parent=0 // pred_check
    %p24 = pneg %p23
  $region27: #{transformer_forward.69} parent=0 // pred_check_branch
    %26 = sbr.rel (%p24) target = $region29
  $region28: #{transformer_forward.69} parent=0 // pred_region
    %vm27 = vcmask 261120
    %28 = vst.msk [vmem:[#allocation2] sm:$0xff] %vm27, 0.0
    %vm29 = vcmask 257024
    %30 = vst.msk [vmem:[#allocation2 + $0x8] sm:$0xf] %vm29, 0.0
  $region29: #{transformer_forward.69} parent=0 // pred_fallthru
    _
  %v31 = vld [vmem:[#allocation2] sm:$0xff]
  %v32 = vld [vmem:[#allocation2 + $0x8] sm:$0xf]
  %v33 = vld [vmem:[%s0] sm:$0xff]
  %v34 = vld [vmem:[%s0 + $0x8] sm:$0xf]
  %v35 = vld [vmem:[%s1] sm:$0xff]
  %v36 = vld [vmem:[%s1 + $0x8] sm:$0xff]
  %v37 = vld [vmem:[%s1 + $0x10] sm:$0xff]
  %v38 = vld [vmem:[%s1 + $0x18] sm:$0xff]
  %vm39 = vcmask 261120
  %v41 = vsel %vm39, %v33, 0
  %v44 = vsel %vm39, %v34, 0
  %46 = vmatprep.subr.mxu0 0.0
  %47 = vmatpush1.msra.mxu0 %v35
  %48 = vmatprep.subr.mxu0 0.0
  %49 = vmatpush1.msra.mxu0 %v36
  %50 = vmatprep.subr.mxu0 0.0
  %51 = vmatpush1.msra.mxu0 %v37
  %52 = vmatprep.subr.mxu0 0.0
  %53 = vmatpush1.msra.mxu0 %v38
  %54 = vmatprep.subr.mxu0 0.0
  %55 = vmatpush1.msra.mxu0 0.0
  %56 = vmatprep.subr.mxu0 0.0
  %57 = vmatpush1.msra.mxu0 0.0
  %58 = vmatprep.subr.mxu0 0.0
  %59 = vmatpush1.msra.mxu0 0.0
  %60 = vmatprep.subr.mxu0 0.0
  %61 = vmatpush1.msra.mxu0 0.0
  %62 = vmatprep.subr.mxu0 0.0
  %63 = vmatpush1.msra.mxu0 0.0
  %64 = vmatprep.subr.mxu0 0.0
  %65 = vmatpush1.msra.mxu0 0.0
  %66 = vmatprep.subr.mxu0 0.0
  %67 = vmatpush1.msra.mxu0 0.0
  %68 = vmatprep.subr.mxu0 0.0
  %69 = vmatpush1.msra.mxu0 0.0
  %70 = vmatprep.subr.mxu0 0.0
  %71 = vmatpush1.msra.mxu0 0.0
  %72 = vmatprep.subr.mxu0 0.0
  %73 = vmatpush1.msra.mxu0 0.0
  %74 = vmatprep.subr.mxu0 0.0
  %75 = vmatpush1.msra.mxu0 0.0
  %76 = vmatprep.subr.mxu0 0.0
  %77 = vmatpush1.msra.mxu0 0.0
  %78 = vmatprep.subr.mxu0 0.0
  %79 = vmatpush1.msra.mxu0 0.0
  %80 = vmatprep.subr.mxu0 0.0
  %81 = vmatpush1.msra.mxu0 0.0
  %82 = vmatprep.subr.mxu0 0.0
  %83 = vmatpush1.msra.mxu0 0.0
  %84 = vmatprep.subr.mxu0 0.0
  %85 = vmatpush1.msra.mxu0 0.0
  %86 = vmatprep.subr.mxu0 0.0
  %87 = vmatpush1.msra.mxu0 0.0
  %88 = vmatprep.subr.mxu0 0.0
  %89 = vmatpush1.msra.mxu0 0.0
  %90 = vmatprep.subr.mxu0 0.0
  %91 = vmatpush1.msra.mxu0 0.0
  %92 = vmatprep.subr.mxu0 0.0
  %93 = vmatpush1.msra.mxu0 0.0
  %94 = vmatprep.subr.mxu0 0.0
  %95 = vmatpush1.msra.mxu0 0.0
  %96 = vmatprep.subr.mxu0 0.0
  %97 = vmatpush1.msra.mxu0 0.0
  %98 = vmatprep.subr.mxu0 0.0
  %99 = vmatpush1.msra.mxu0 0.0
  %100 = vmatprep.subr.mxu0 0.0
  %101 = vmatpush1.msra.mxu0 0.0
  %102 = vmatprep.subr.mxu0 0.0
  %103 = vmatpush1.msra.mxu0 0.0
  %104 = vmatprep.subr.mxu0 0.0
  %105 = vmatpush1.msra.mxu0 0.0
  %106 = vmatprep.subr.mxu0 0.0
  %107 = vmatpush1.msra.mxu0 0.0
  %108 = vmatprep.subr.mxu0 0.0
  %109 = vmatpush1.msra.mxu0 0.0
  %110 = vmatprep.mubr.f32.mxu0 0.0
  %111 = vmatmul.mubr.f32.gmra.mrb[0].mxu0 %v41
  %v112 = vpop.f32.mrb[0].mxu0
  %v113 = vadd.f32 0.0, %v112
  %v114 = vpop.f32.mrb[0].mxu0
  %115 = vmatprep.mubr.f32.mxu0 0.0
  %116 = vmatmul.mubr.f32.gmra.mrb[0].mxu0 %v44
  %v117 = vpop.f32.mrb[0].mxu0
  %v118 = vadd.f32 0.0, %v117
  %v119 = vpop.f32.mrb[0].mxu0
  %120 = vdwg.mxu0
  %v121 = vadd.f32 %v31, %v113
  %v122 = vadd.f32 %v32, %v118
  %123 = vst.msk [vmem:[#allocation2] sm:$0xff] %vm39, %v121
  %vm124 = vcmask 257024
  %125 = vst.msk [vmem:[#allocation2 + $0x8] sm:$0xf] %vm124, %v122
  // Predicated region
  $region30: #{transformer_forward.69} parent=0 // pred_check
    %p126 = pneg %p23
  $region31: #{transformer_forward.69} parent=0 // pred_check_branch
    %128 = sbr.rel (%p126) target = $region33
  $region32: #{transformer_forward.69} parent=0 // pred_region
    %v129 = vld [vmem:[#allocation2] sm:$0xff]
    %v130 = vld [vmem:[#allocation2 + $0x8] sm:$0xf]
    %v131 = vld [vmem:[%s2] sm:$0x1]
    %v133 = vlaneseq
    %v134 = vshrl.u32 %v133, 7
    %v135 = vsub.s32 0, %v134
    %v136 = vrot.slane %v131, %v135
    %v138 = vadd.f32 %v129, %v136
    %v139 = vadd.f32 %v130, %v136
    %v140 = vld [vmem:[%s3] sm:$0xff]
    %v141 = vld [vmem:[%s3 + $0x8] sm:$0xf]
    %v142 = vadd.f32 %v138, %v140
    %v143 = vadd.f32 %v139, %v141
    %v144 = vsel %vm39, %v142, 0.0
    %145 = vadd.xlane.f32.xlu0 %v144
    %v146 = vpop.xlane.xlu0 %145
    %v147 = vsel %vm124, %v143, 0.0
    %148 = vadd.xlane.f32.xlu0 %v147
    %v149 = vpop.xlane.xlu0 %148
    %v150 = vrcp.pop 32.0
    %v151 = vmul.f32 %v146, %v150
    %v152 = vmul.f32 %v149, %v150
    %v153 = vsub.f32 %v142, %v151
    %v154 = vsub.f32 %v143, %v152
    %v155 = vmul.f32 %v153, %v153
    %v156 = vmul.f32 %v154, %v154
    %v157 = vsel %vm39, %v155, 0.0
    %158 = vadd.xlane.f32.xlu0 %v157
    %v159 = vpop.xlane.xlu0 %158
    %v160 = vsel %vm124, %v156, 0.0
    %161 = vadd.xlane.f32.xlu0 %v160
    %v162 = vpop.xlane.xlu0 %161
    %v163 = vmul.f32 %v159, %v150
    %v164 = vmul.f32 %v162, %v150
    %v165 = vadd.f32 %v163, 1e-05
    %v166 = vadd.f32 %v164, 1e-05
    %v167 = vrsqrt.pop %v165
    %v168 = vrsqrt.pop %v166
    %v169 = vmul.f32 %v153, %v167
    %v170 = vmul.f32 %v154, %v168
    %v171 = vld [vmem:[%s4] sm:$0x1]
    %v173 = vlaneseq
    %v174 = vshrl.u32 %v173, 7
    %v175 = vsub.s32 0, %v174
    %v176 = vrot.slane %v171, %v175
    %v178 = vmul.f32 %v169, %v176
    %v179 = vmul.f32 %v170, %v176
    %v180 = vld [vmem:[%s5] sm:$0x1]
    %v182 = vlaneseq
    %v183 = vshrl.u32 %v182, 7
    %v184 = vsub.s32 0, %v183
    %v185 = vrot.slane %v180, %v184
    %v187 = vadd.f32 %v178, %v185
    %v188 = vadd.f32 %v179, %v185
    %189 = vst.msk [vmem:[%s6] sm:$0xff] %vm39, %v187
    %190 = vst.msk [vmem:[%s6 + $0x8] sm:$0xf] %vm124, %v188
  $region33: #{transformer_forward.69} parent=0 // pred_fallthru
    _
  // Predicated region
  $region34: #{transformer_forward.69} parent=0 // pred_check
    _
  $region35: #{transformer_forward.69} parent=0 // pred_check_branch
    %192 = sbr.rel (0) target = $region37
  $region36: #{transformer_forward.69} parent=0 // pred_region
    _
  $region37: #{transformer_forward.69} parent=0 // pred_fallthru
    _
  // Predicated region
  $region38: #{transformer_forward.69} parent=0 // pred_check
    _
  $region39: #{transformer_forward.69} parent=0 // pred_check_branch
    %194 = sbr.rel (0) target = $region41
  $region40: #{transformer_forward.69} parent=0 // pred_region
    _
  $region41: #{transformer_forward.69} parent=0 // pred_fallthru
    _

// kernel: transformer_forward.70
$region0: #{transformer_forward.70}
  #allocation0 [shape = 'u32[]', space=smem, size = 0x4, offset = 0x4, fixed_abs, tag = 'smem constant byte address 0x4 - core index']
  #allocation1 [shape = 'u32[144,128]{1,0:T(1,128)}', space=vmem, size = 0x12000, scoped, tag = 'internal scratch']
  #allocation2 [shape = 'f32[12,32]{1,0:T(8,128)}', space=vmem, size = 0x2000, scoped, tag = 'scratch operand']
  %s0 = inlined_call_operand.vmem [shape: f32[12,32], index: 0, kind: input, shape index: {}]
  %s1 = inlined_call_operand.vmem [shape: f32[32,32], index: 1, kind: input, shape index: {}]
  %s2 = inlined_call_operand.vmem [shape: f32[1,32], index: 2, kind: input, shape index: {}]
  %s3 = inlined_call_operand.vmem [shape: f32[12,32], index: 3, kind: output, shape index: {}]
  %s4 = sld [smem:[#allocation0]]
  $region30: #{transformer_forward.70} parent=0
    _
  %s6 = ssub.s32 1, %s4
  %s7 = scalar_select 0, %s6, %s4
  // Predicated region
  $region2: #{transformer_forward.70} parent=0 // pred_check
    _
  $region3: #{transformer_forward.70} parent=0 // pred_check_branch
    %9 = sbr.rel (0) target = $region5
  $region4: #{transformer_forward.70} parent=0 // pred_region
    _
  $region5: #{transformer_forward.70} parent=0 // pred_fallthru
    _
  // Predicated region
  $region6: #{transformer_forward.70} parent=0 // pred_check
    _
  $region7: #{transformer_forward.70} parent=0 // pred_check_branch
    %11 = sbr.rel (0) target = $region9
  $region8: #{transformer_forward.70} parent=0 // pred_region
    _
  $region9: #{transformer_forward.70} parent=0 // pred_fallthru
    _
  // Predicated region
  $region10: #{transformer_forward.70} parent=0 // pred_check
    _
  $region11: #{transformer_forward.70} parent=0 // pred_check_branch
    %13 = sbr.rel (0) target = $region13
  $region12: #{transformer_forward.70} parent=0 // pred_region
    _
  $region13: #{transformer_forward.70} parent=0 // pred_fallthru
    _
  %p14 = scmp.eq.s32.totalorder 0, 0
  // Predicated region
  $region14: #{transformer_forward.70} parent=0 // pred_check
    %p15 = pneg %p14
  $region15: #{transformer_forward.70} parent=0 // pred_check_branch
    %17 = sbr.rel (%p15) target = $region17
  $region16: #{transformer_forward.70} parent=0 // pred_region
    %vm18 = vcmask 261120
    %19 = vst.msk [vmem:[#allocation2] sm:$0xff] %vm18, 0.0
    %vm20 = vcmask 257024
    %21 = vst.msk [vmem:[#allocation2 + $0x8] sm:$0xf] %vm20, 0.0
  $region17: #{transformer_forward.70} parent=0 // pred_fallthru
    _
  %v22 = vld [vmem:[#allocation2] sm:$0xff]
  %v23 = vld [vmem:[#allocation2 + $0x8] sm:$0xf]
  %v24 = vld [vmem:[%s0] sm:$0xff]
  %v25 = vld [vmem:[%s0 + $0x8] sm:$0xf]
  %v26 = vld [vmem:[%s1] sm:$0xff]
  %v27 = vld [vmem:[%s1 + $0x8] sm:$0xff]
  %v28 = vld [vmem:[%s1 + $0x10] sm:$0xff]
  %v29 = vld [vmem:[%s1 + $0x18] sm:$0xff]
  %vm30 = vcmask 261120
  %v32 = vsel %vm30, %v24, 0
  %v35 = vsel %vm30, %v25, 0
  %37 = vmatprep.subr.mxu0 0.0
  %38 = vmatpush1.msra.mxu0 %v26
  %39 = vmatprep.subr.mxu0 0.0
  %40 = vmatpush1.msra.mxu0 %v27
  %41 = vmatprep.subr.mxu0 0.0
  %42 = vmatpush1.msra.mxu0 %v28
  %43 = vmatprep.subr.mxu0 0.0
  %44 = vmatpush1.msra.mxu0 %v29
  %45 = vmatprep.subr.mxu0 0.0
  %46 = vmatpush1.msra.mxu0 0.0
  %47 = vmatprep.subr.mxu0 0.0
  %48 = vmatpush1.msra.mxu0 0.0
  %49 = vmatprep.subr.mxu0 0.0
  %50 = vmatpush1.msra.mxu0 0.0
  %51 = vmatprep.subr.mxu0 0.0
  %52 = vmatpush1.msra.mxu0 0.0
  %53 = vmatprep.subr.mxu0 0.0
  %54 = vmatpush1.msra.mxu0 0.0
  %55 = vmatprep.subr.mxu0 0.0
  %56 = vmatpush1.msra.mxu0 0.0
  %57 = vmatprep.subr.mxu0 0.0
  %58 = vmatpush1.msra.mxu0 0.0
  %59 = vmatprep.subr.mxu0 0.0
  %60 = vmatpush1.msra.mxu0 0.0
  %61 = vmatprep.subr.mxu0 0.0
  %62 = vmatpush1.msra.mxu0 0.0
  %63 = vmatprep.subr.mxu0 0.0
  %64 = vmatpush1.msra.mxu0 0.0
  %65 = vmatprep.subr.mxu0 0.0
  %66 = vmatpush1.msra.mxu0 0.0
  %67 = vmatprep.subr.mxu0 0.0
  %68 = vmatpush1.msra.mxu0 0.0
  %69 = vmatprep.subr.mxu0 0.0
  %70 = vmatpush1.msra.mxu0 0.0
  %71 = vmatprep.subr.mxu0 0.0
  %72 = vmatpush1.msra.mxu0 0.0
  %73 = vmatprep.subr.mxu0 0.0
  %74 = vmatpush1.msra.mxu0 0.0
  %75 = vmatprep.subr.mxu0 0.0
  %76 = vmatpush1.msra.mxu0 0.0
  %77 = vmatprep.subr.mxu0 0.0
  %78 = vmatpush1.msra.mxu0 0.0
  %79 = vmatprep.subr.mxu0 0.0
  %80 = vmatpush1.msra.mxu0 0.0
  %81 = vmatprep.subr.mxu0 0.0
  %82 = vmatpush1.msra.mxu0 0.0
  %83 = vmatprep.subr.mxu0 0.0
  %84 = vmatpush1.msra.mxu0 0.0
  %85 = vmatprep.subr.mxu0 0.0
  %86 = vmatpush1.msra.mxu0 0.0
  %87 = vmatprep.subr.mxu0 0.0
  %88 = vmatpush1.msra.mxu0 0.0
  %89 = vmatprep.subr.mxu0 0.0
  %90 = vmatpush1.msra.mxu0 0.0
  %91 = vmatprep.subr.mxu0 0.0
  %92 = vmatpush1.msra.mxu0 0.0
  %93 = vmatprep.subr.mxu0 0.0
  %94 = vmatpush1.msra.mxu0 0.0
  %95 = vmatprep.subr.mxu0 0.0
  %96 = vmatpush1.msra.mxu0 0.0
  %97 = vmatprep.subr.mxu0 0.0
  %98 = vmatpush1.msra.mxu0 0.0
  %99 = vmatprep.subr.mxu0 0.0
  %100 = vmatpush1.msra.mxu0 0.0
  %101 = vmatprep.mubr.f32.mxu0 0.0
  %102 = vmatmul.mubr.f32.gmra.mrb[0].mxu0 %v32
  %v103 = vpop.f32.mrb[0].mxu0
  %v104 = vadd.f32 0.0, %v103
  %v105 = vpop.f32.mrb[0].mxu0
  %106 = vmatprep.mubr.f32.mxu0 0.0
  %107 = vmatmul.mubr.f32.gmra.mrb[0].mxu0 %v35
  %v108 = vpop.f32.mrb[0].mxu0
  %v109 = vadd.f32 0.0, %v108
  %v110 = vpop.f32.mrb[0].mxu0
  %111 = vdwg.mxu0
  %v112 = vadd.f32 %v22, %v104
  %v113 = vadd.f32 %v23, %v109
  %114 = vst.msk [vmem:[#allocation2] sm:$0xff] %vm30, %v112
  %vm115 = vcmask 257024
  %116 = vst.msk [vmem:[#allocation2 + $0x8] sm:$0xf] %vm115, %v113
  // Predicated region
  $region18: #{transformer_forward.70} parent=0 // pred_check
    %p117 = pneg %p14
  $region19: #{transformer_forward.70} parent=0 // pred_check_branch
    %119 = sbr.rel (%p117) target = $region21
  $region20: #{transformer_forward.70} parent=0 // pred_region
    %v120 = vld [vmem:[#allocation2] sm:$0xff]
    %v121 = vld [vmem:[#allocation2 + $0x8] sm:$0xf]
    %v122 = vld [vmem:[%s2] sm:$0x1]
    %v124 = vlaneseq
    %v125 = vshrl.u32 %v124, 7
    %v126 = vsub.s32 0, %v125
    %v127 = vrot.slane %v122, %v126
    %v129 = vadd.f32 %v120, %v127
    %v130 = vadd.f32 %v121, %v127
    %131 = vst.msk [vmem:[%s3] sm:$0xff] %vm30, %v129
    %132 = vst.msk [vmem:[%s3 + $0x8] sm:$0xf] %vm115, %v130
  $region21: #{transformer_forward.70} parent=0 // pred_fallthru
    _
  // Predicated region
  $region22: #{transformer_forward.70} parent=0 // pred_check
    _
  $region23: #{transformer_forward.70} parent=0 // pred_check_branch
    %134 = sbr.rel (0) target = $region25
  $region24: #{transformer_forward.70} parent=0 // pred_region
    _
  $region25: #{transformer_forward.70} parent=0 // pred_fallthru
    _
  // Predicated region
  $region26: #{transformer_forward.70} parent=0 // pred_check
    _
  $region27: #{transformer_forward.70} parent=0 // pred_check_branch
    %136 = sbr.rel (0) target = $region29
  $region28: #{transformer_forward.70} parent=0 // pred_region
    _
  $region29: #{transformer_forward.70} parent=0 // pred_fallthru
    _

// kernel: transformer_forward.68
$region0: #{transformer_forward.68}
  #allocation0 [shape = 'u32[]', space=smem, size = 0x4, offset = 0x4, fixed_abs, tag = 'smem constant byte address 0x4 - core index']
  #allocation1 [shape = 'u32[144,128]{1,0:T(1,128)}', space=vmem, size = 0x12000, scoped, tag = 'internal scratch']
  %s0 = inlined_call_operand.vmem [shape: f32[2,6,96], index: 0, kind: input, shape index: {}]
  %s1 = inlined_call_operand.vmem [shape: f32[2,6,32], index: 1, kind: output, shape index: {}]
  %s2 = sld [smem:[#allocation0]]
  $region37: #{transformer_forward.68} parent=0
    _
  %s4 = ssub.s32 1, %s2
  %s5 = scalar_select 0, %s4, %s2
  loop: start=0, step=1, limit=4
  $region2: #{transformer_forward.68} parent=0 // loop_pre_header
    _
  $region3: #{transformer_forward.68} parent=0 // loop_header
    %s7 = sphi 0, %s11
    %p8 = scmp.ge.s32.totalorder %s7, 4
    %s17 = sphi 0, %s19
    %s20 = sphi 0, %s17
    %s21 = sphi 0, %s20
    %s37 = sphi 0, %s21
    %s43 = sphi 0, %s45
    %s46 = sphi 0, %s43
    %s47 = sphi 0, %s46
    %s63 = sphi 0, %s47
  $region4: #{transformer_forward.68} parent=0 // loop_header_branch
    %10 = sbr.rel (%p8) target = $region8
  $region5: #{transformer_forward.68} parent=0 // loop_body
    %s12 = ssub.s32 %s7, 1
    %s13 = ssub.s32 %s7, 2
    %s14 = sadd.s32 %s7, 1
    %s15 = ssub.s32 %s7, %s14
    %p16 = scmp.eq.s32.totalorder %s15, 0
    %s18 = sadd.s32 %s17, 1
    %s19 = scalar_select %p16, %s17, %s18
    %p22 = pneg %p16
    %p23 = scmp.eq.s32.totalorder %s7, 1
    %p24 = por %p22, %p23
    %p25 = scmp.ne.s32.totalorder %s17, %s20
    %p26 = scmp.eq.s32.totalorder %s7, 0
    %p27 = por %p25, %p26
    %p28 = scmp.ne.s32.totalorder %s17, %s20
    %p29 = scmp.eq.s32.totalorder %s12, 1
    %p30 = por %p28, %p29
    %p31 = scmp.ne.s32.totalorder %s20, %s21
    %p32 = scmp.eq.s32.totalorder %s12, 0
    %p33 = por %p31, %p32
    %p34 = scmp.ne.s32.totalorder %s20, %s21
    %p35 = scmp.eq.s32.totalorder %s13, 1
    %p36 = por %p34, %p35
    %p38 = scmp.ne.s32.totalorder %s21, %s37
    %p39 = scmp.eq.s32.totalorder %s13, 0
    %p40 = por %p38, %p39
    %s41 = ssub.s32 %s7, %s14
    %p42 = scmp.eq.s32.totalorder %s41, 0
    %s44 = sadd.s32 %s43, 1
    %s45 = scalar_select %p42, %s43, %s44
    %p48 = pneg %p42
    %p49 = scmp.eq.s32.totalorder %s7, 1
    %p50 = por %p48, %p49
    %p51 = scmp.ne.s32.totalorder %s43, %s46
    %p52 = scmp.eq.s32.totalorder %s7, 0
    %p53 = por %p51, %p52
    %p54 = scmp.ne.s32.totalorder %s43, %s46
    %p55 = scmp.eq.s32.totalorder %s12, 1
    %p56 = por %p54, %p55
    %p57 = scmp.ne.s32.totalorder %s46, %s47
    %p58 = scmp.eq.s32.totalorder %s12, 0
    %p59 = por %p57, %p58
    %p60 = scmp.ne.s32.totalorder %s46, %s47
    %p61 = scmp.eq.s32.totalorder %s13, 1
    %p62 = por %p60, %p61
    %p64 = scmp.ne.s32.totalorder %s47, %s63
    %p65 = scmp.eq.s32.totalorder %s13, 0
    %p66 = por %p64, %p65
    %p67 = scmp.le.s32.totalorder 1, %s7
    %p68 = scmp.lt.s32.totalorder %s7, 3
    %p69 = pnand %p67, %p68
    %p70 = pneg %p69
    // Predicated region
    $region9: #{transformer_forward.68} parent=5 // pred_check
      _
    $region10: #{transformer_forward.68} parent=5 // pred_check_branch
      %72 = sbr.rel (%p69) target = $region12
    $region11: #{transformer_forward.68} parent=5 // pred_region
      %s73 = ssub.s32 %s7, 1
    $region12: #{transformer_forward.68} parent=5 // pred_fallthru
      _
    %p74 = scmp.lt.s32.totalorder %s7, 2
    // Predicated region
    $region13: #{transformer_forward.68} parent=5 // pred_check
      %p75 = pneg %p74
    $region14: #{transformer_forward.68} parent=5 // pred_check_branch
      %77 = sbr.rel (%p75) target = $region16
    $region15: #{transformer_forward.68} parent=5 // pred_region
      // Predicated region
      $region17: #{transformer_forward.68} parent=15 // pred_check
        %p78 = pneg %p27
      $region18: #{transformer_forward.68} parent=15 // pred_check_branch
        %80 = sbr.rel (%p78) target = $region20
      $region19: #{transformer_forward.68} parent=15 // pred_region
        %p81 = scmp.lt.s32.totalorder %s7, 1
        %s82 = scalar_select %p81, %s7, 1
        %s83 = smul.addr %s82, 8
        %s84 = scalar_lea.vmem %s0, %s83
      $region20: #{transformer_forward.68} parent=15 // pred_fallthru
        _
    $region16: #{transformer_forward.68} parent=5 // pred_fallthru
      _
    %p85 = scmp.le.s32.totalorder 1, %s7
    %p86 = scmp.lt.s32.totalorder %s7, 3
    %p87 = pnand %p85, %p86
    %p88 = pneg %p87
    // Predicated region
    $region21: #{transformer_forward.68} parent=5 // pred_check
      _
    $region22: #{transformer_forward.68} parent=5 // pred_check_branch
      %90 = sbr.rel (%p87) target = $region24
    $region23: #{transformer_forward.68} parent=5 // pred_region
      %s91 = ssub.s32 %s7, 1
      %p92 = scmp.lt.s32.totalorder %s12, 1
      %s93 = scalar_select %p92, %s12, 1
      %s94 = smul.addr %s93, 8
      %s95 = scalar_lea.vmem %s0, %s94
      %p96 = pneg %p33
      %p97 = pneg %p30
      %p98 = pneg %p59
      %p99 = pneg %p56
      %p100 = scmp.lt.s32.totalorder %s12, 1
      %s101 = scalar_select %p100, %s12, 1
      %s102 = smul.addr %s101, 8
      %s103 = scalar_lea.vmem %s1, %s102
      %p104 = scmp.lt.s32.totalorder %s12, 1
      %s105 = scalar_select %p104, %s12, 1
      %s106 = smul.addr %s105, 8
      %s107 = scalar_lea.vmem %s0, %s106
      %p108 = scmp.lt.s32.totalorder %s12, 1
      %s109 = scalar_select %p108, %s12, 1
      %s110 = smul.addr %s109, 8
      %s111 = scalar_lea.vmem %s1, %s110
      %v112 = vld [vmem:[%s107] sm:$0x3f]
      %v113 = vmul.f32 %v112, 0.5
      %115 = vrot.lane.b32.xlu0 %v112, 96
      %v116 = vpop.permute.xlu0 %115
      %vm117 = vcmask 31744
      %v119 = vsel %vm117, %v113, 0
      %v121 = vsel %vm117, %v116, 0
      %123 = vmatprep.subr.mxu0 0.0
      %124 = vmatpush1.xpose.msra.mxu0 %v121
      %125 = vmatprep.subr.mxu0 0.0
      %126 = vmatpush1.xpose.msra.mxu0 0.0
      %127 = vmatprep.subr.mxu0 0.0
      %128 = vmatpush1.xpose.msra.mxu0 0.0
      %129 = vmatprep.subr.mxu0 0.0
      %130 = vmatpush1.xpose.msra.mxu0 0.0
      %131 = vmatprep.subr.mxu0 0.0
      %132 = vmatpush1.xpose.msra.mxu0 0.0
      %133 = vmatprep.subr.mxu0 0.0
      %134 = vmatpush1.xpose.msra.mxu0 0.0
      %135 = vmatprep.subr.mxu0 0.0
      %136 = vmatpush1.xpose.msra.mxu0 0.0
      %137 = vmatprep.subr.mxu0 0.0
      %138 = vmatpush1.xpose.msra.mxu0 0.0
      %139 = vmatprep.subr.mxu0 0.0
      %140 = vmatpush1.xpose.msra.mxu0 0.0
      %141 = vmatprep.subr.mxu0 0.0
      %142 = vmatpush1.xpose.msra.mxu0 0.0
      %143 = vmatprep.subr.mxu0 0.0
      %144 = vmatpush1.xpose.msra.mxu0 0.0
      %145 = vmatprep.subr.mxu0 0.0
      %146 = vmatpush1.xpose.msra.mxu0 0.0
      %147 = vmatprep.subr.mxu0 0.0
      %148 = vmatpush1.xpose.msra.mxu0 0.0
      %149 = vmatprep.subr.mxu0 0.0
      %150 = vmatpush1.xpose.msra.mxu0 0.0
      %151 = vmatprep.subr.mxu0 0.0
      %152 = vmatpush1.xpose.msra.mxu0 0.0
      %153 = vmatprep.subr.mxu0 0.0
      %154 = vmatpush1.xpose.msra.mxu0 0.0
      %155 = vmatprep.subr.mxu0 0.0
      %156 = vmatpush1.xpose.msra.mxu0 0.0
      %157 = vmatprep.subr.mxu0 0.0
      %158 = vmatpush1.xpose.msra.mxu0 0.0
      %159 = vmatprep.subr.mxu0 0.0
      %160 = vmatpush1.xpose.msra.mxu0 0.0
      %161 = vmatprep.subr.mxu0 0.0
      %162 = vmatpush1.xpose.msra.mxu0 0.0
      %163 = vmatprep.subr.mxu0 0.0
      %164 = vmatpush1.xpose.msra.mxu0 0.0
      %165 = vmatprep.subr.mxu0 0.0
      %166 = vmatpush1.xpose.msra.mxu0 0.0
      %167 = vmatprep.subr.mxu0 0.0
      %168 = vmatpush1.xpose.msra.mxu0 0.0
      %169 = vmatprep.subr.mxu0 0.0
      %170 = vmatpush1.xpose.msra.mxu0 0.0
      %171 = vmatprep.subr.mxu0 0.0
      %172 = vmatpush1.xpose.msra.mxu0 0.0
      %173 = vmatprep.subr.mxu0 0.0
      %174 = vmatpush1.xpose.msra.mxu0 0.0
      %175 = vmatprep.subr.mxu0 0.0
      %176 = vmatpush1.xpose.msra.mxu0 0.0
      %177 = vmatprep.subr.mxu0 0.0
      %178 = vmatpush1.xpose.msra.mxu0 0.0
      %179 = vmatprep.subr.mxu0 0.0
      %180 = vmatpush1.xpose.msra.mxu0 0.0
      %181 = vmatprep.subr.mxu0 0.0
      %182 = vmatpush1.xpose.msra.mxu0 0.0
      %183 = vmatprep.subr.mxu0 0.0
      %184 = vmatpush1.xpose.msra.mxu0 0.0
      %185 = vmatprep.subr.mxu0 0.0
      %186 = vmatpush1.xpose.msra.mxu0 0.0
      %187 = vmatprep.mubr.f32.mxu0 0.0
      %188 = vmatmul.mubr.f32.gmra.mrb[0].mxu0 %v119
      %v189 = vpop.f32.mrb[0].mxu0
      %v190 = vadd.f32 0.0, %v189
      %v191 = vpop.f32.mrb[0].mxu0
      %192 = vdwg.mxu0
      %vm193 = vcmask 46080
      %v194 = vsel %vm193, %v190, -inf
      %195 = vmax.xlane.f32.xlu0 %v194
      %v196 = vpop.xlane.xlu0 %195
      %v197 = vsub.f32 %v190, %v196
      %v198 = vmul.f32 %v197, 1.442695
      %v199 = vpow.pop %v198
      %v200 = vsel %vm193, %v199, 0.0
      %201 = vadd.xlane.f32.xlu0 %v200
      %v202 = vpop.xlane.xlu0 %201
      %v203 = vrcp.pop %v202
      %v204 = vmul.f32 %v199, %v203
      %205 = vrot.lane.b32.xlu0 %v112, 64
      %v206 = vpop.permute.xlu0 %205
      %vm207 = vcmask 48128
      %v209 = vsel %vm207, %v204, 0
      %vm211 = vcmask 1045504
      %v212 = vsel %vm211, %v206, 0
      %214 = vmatprep.subr.mxu0 0.0
      %215 = vmatpush1.msra.mxu0 %v212
      %216 = vmatprep.subr.mxu0 0.0
      %217 = vmatpush1.msra.mxu0 0.0
      %218 = vmatprep.subr.mxu0 0.0
      %219 = vmatpush1.msra.mxu0 0.0
      %220 = vmatprep.subr.mxu0 0.0
      %221 = vmatpush1.msra.mxu0 0.0
      %222 = vmatprep.subr.mxu0 0.0
      %223 = vmatpush1.msra.mxu0 0.0
      %224 = vmatprep.subr.mxu0 0.0
      %225 = vmatpush1.msra.mxu0 0.0
      %226 = vmatprep.subr.mxu0 0.0
      %227 = vmatpush1.msra.mxu0 0.0
      %228 = vmatprep.subr.mxu0 0.0
      %229 = vmatpush1.msra.mxu0 0.0
      %230 = vmatprep.subr.mxu0 0.0
      %231 = vmatpush1.msra.mxu0 0.0
      %232 = vmatprep.subr.mxu0 0.0
      %233 = vmatpush1.msra.mxu0 0.0
      %234 = vmatprep.subr.mxu0 0.0
      %235 = vmatpush1.msra.mxu0 0.0
      %236 = vmatprep.subr.mxu0 0.0
      %237 = vmatpush1.msra.mxu0 0.0
      %238 = vmatprep.subr.mxu0 0.0
      %239 = vmatpush1.msra.mxu0 0.0
      %240 = vmatprep.subr.mxu0 0.0
      %241 = vmatpush1.msra.mxu0 0.0
      %242 = vmatprep.subr.mxu0 0.0
      %243 = vmatpush1.msra.mxu0 0.0
      %244 = vmatprep.subr.mxu0 0.0
      %245 = vmatpush1.msra.mxu0 0.0
      %246 = vmatprep.subr.mxu0 0.0
      %247 = vmatpush1.msra.mxu0 0.0
      %248 = vmatprep.subr.mxu0 0.0
      %249 = vmatpush1.msra.mxu0 0.0
      %250 = vmatprep.subr.mxu0 0.0
      %251 = vmatpush1.msra.mxu0 0.0
      %252 = vmatprep.subr.mxu0 0.0
      %253 = vmatpush1.msra.mxu0 0.0
      %254 = vmatprep.subr.mxu0 0.0
      %255 = vmatpush1.msra.mxu0 0.0
      %256 = vmatprep.subr.mxu0 0.0
      %257 = vmatpush1.msra.mxu0 0.0
      %258 = vmatprep.subr.mxu0 0.0
      %259 = vmatpush1.msra.mxu0 0.0
      %260 = vmatprep.subr.mxu0 0.0
      %261 = vmatpush1.msra.mxu0 0.0
      %262 = vmatprep.subr.mxu0 0.0
      %263 = vmatpush1.msra.mxu0 0.0
      %264 = vmatprep.subr.mxu0 0.0
      %265 = vmatpush1.msra.mxu0 0.0
      %266 = vmatprep.subr.mxu0 0.0
      %267 = vmatpush1.msra.mxu0 0.0
      %268 = vmatprep.subr.mxu0 0.0
      %269 = vmatpush1.msra.mxu0 0.0
      %270 = vmatprep.subr.mxu0 0.0
      %271 = vmatpush1.msra.mxu0 0.0
      %272 = vmatprep.subr.mxu0 0.0
      %273 = vmatpush1.msra.mxu0 0.0
      %274 = vmatprep.subr.mxu0 0.0
      %275 = vmatpush1.msra.mxu0 0.0
      %276 = vmatprep.subr.mxu0 0.0
      %277 = vmatpush1.msra.mxu0 0.0
      %278 = vmatprep.mubr.f32.mxu0 0.0
      %279 = vmatmul.mubr.f32.gmra.mrb[0].mxu0 %v209
      %v280 = vpop.f32.mrb[0].mxu0
      %v281 = vadd.f32 0.0, %v280
      %v282 = vpop.f32.mrb[0].mxu0
      %283 = vdwg.mxu0
      %vm284 = vcmask 29696
      %285 = vst.msk [vmem:[%s111] sm:$0x3f] %vm284, %v281
      %286 = vrot.lane.b32.xlu0 %v113, 124
      %v287 = vpop.permute.xlu0 %286
      %288 = vrot.lane.b32.xlu0 %v112, 92
      %v289 = vpop.permute.xlu0 %288
      %v290 = vsel %vm117, %v287, 0
      %v292 = vsel %vm117, %v289, 0
      %294 = vmatprep.subr.mxu0 0.0
      %295 = vmatpush1.xpose.msra.mxu0 %v292
      %296 = vmatprep.subr.mxu0 0.0
      %297 = vmatpush1.xpose.msra.mxu0 0.0
      %298 = vmatprep.subr.mxu0 0.0
      %299 = vmatpush1.xpose.msra.mxu0 0.0
      %300 = vmatprep.subr.mxu0 0.0
      %301 = vmatpush1.xpose.msra.mxu0 0.0
      %302 = vmatprep.subr.mxu0 0.0
      %303 = vmatpush1.xpose.msra.mxu0 0.0
      %304 = vmatprep.subr.mxu0 0.0
      %305 = vmatpush1.xpose.msra.mxu0 0.0
      %306 = vmatprep.subr.mxu0 0.0
      %307 = vmatpush1.xpose.msra.mxu0 0.0
      %308 = vmatprep.subr.mxu0 0.0
      %309 = vmatpush1.xpose.msra.mxu0 0.0
      %310 = vmatprep.subr.mxu0 0.0
      %311 = vmatpush1.xpose.msra.mxu0 0.0
      %312 = vmatprep.subr.mxu0 0.0
      %313 = vmatpush1.xpose.msra.mxu0 0.0
      %314 = vmatprep.subr.mxu0 0.0
      %315 = vmatpush1.xpose.msra.mxu0 0.0
      %316 = vmatprep.subr.mxu0 0.0
      %317 = vmatpush1.xpose.msra.mxu0 0.0
      %318 = vmatprep.subr.mxu0 0.0
      %319 = vmatpush1.xpose.msra.mxu0 0.0
      %320 = vmatprep.subr.mxu0 0.0
      %321 = vmatpush1.xpose.msra.mxu0 0.0
      %322 = vmatprep.subr.mxu0 0.0
      %323 = vmatpush1.xpose.msra.mxu0 0.0
      %324 = vmatprep.subr.mxu0 0.0
      %325 = vmatpush1.xpose.msra.mxu0 0.0
      %326 = vmatprep.subr.mxu0 0.0
      %327 = vmatpush1.xpose.msra.mxu0 0.0
      %328 = vmatprep.subr.mxu0 0.0
      %329 = vmatpush1.xpose.msra.mxu0 0.0
      %330 = vmatprep.subr.mxu0 0.0
      %331 = vmatpush1.xpose.msra.mxu0 0.0
      %332 = vmatprep.subr.mxu0 0.0
      %333 = vmatpush1.xpose.msra.mxu0 0.0
      %334 = vmatprep.subr.mxu0 0.0
      %335 = vmatpush1.xpose.msra.mxu0 0.0
      %336 = vmatprep.subr.mxu0 0.0
      %337 = vmatpush1.xpose.msra.mxu0 0.0
      %338 = vmatprep.subr.mxu0 0.0
      %339 = vmatpush1.xpose.msra.mxu0 0.0
      %340 = vmatprep.subr.mxu0 0.0
      %341 = vmatpush1.xpose.msra.mxu0 0.0
      %342 = vmatprep.subr.mxu0 0.0
      %343 = vmatpush1.xpose.msra.mxu0 0.0
      %344 = vmatprep.subr.mxu0 0.0
      %345 = vmatpush1.xpose.msra.mxu0 0.0
      %346 = vmatprep.subr.mxu0 0.0
      %347 = vmatpush1.xpose.msra.mxu0 0.0
      %348 = vmatprep.subr.mxu0 0.0
      %349 = vmatpush1.xpose.msra.mxu0 0.0
      %350 = vmatprep.subr.mxu0 0.0
      %351 = vmatpush1.xpose.msra.mxu0 0.0
      %352 = vmatprep.subr.mxu0 0.0
      %353 = vmatpush1.xpose.msra.mxu0 0.0
      %354 = vmatprep.subr.mxu0 0.0
      %355 = vmatpush1.xpose.msra.mxu0 0.0
      %356 = vmatprep.subr.mxu0 0.0
      %357 = vmatpush1.xpose.msra.mxu0 0.0
      %358 = vmatprep.mubr.f32.mxu0 0.0
      %359 = vmatmul.mubr.f32.gmra.mrb[0].mxu0 %v290
      %v360 = vpop.f32.mrb[0].mxu0
      %v361 = vadd.f32 0.0, %v360
      %v362 = vpop.f32.mrb[0].mxu0
      %363 = vdwg.mxu0
      %v364 = vsel %vm193, %v361, -inf
      %365 = vmax.xlane.f32.xlu0 %v364
      %v366 = vpop.xlane.xlu0 %365
      %v367 = vsub.f32 %v361, %v366
      %v368 = vmul.f32 %v367, 1.442695
      %v369 = vpow.pop %v368
      %v370 = vsel %vm193, %v369, 0.0
      %371 = vadd.xlane.f32.xlu0 %v370
      %v372 = vpop.xlane.xlu0 %371
      %v373 = vrcp.pop %v372
      %v374 = vmul.f32 %v369, %v373
      %375 = vrot.lane.b32.xlu0 %v112, 60
      %v376 = vpop.permute.xlu0 %375
      %v378 = vsel %vm207, %v374, 0
      %v380 = vsel %vm211, %v376, 0
      %382 = vmatprep.subr.mxu0 0.0
      %383 = vmatpush1.msra.mxu0 %v380
      %384 = vmatprep.subr.mxu0 0.0
      %385 = vmatpush1.msra.mxu0 0.0
      %386 = vmatprep.subr.mxu0 0.0
      %387 = vmatpush1.msra.mxu0 0.0
      %388 = vmatprep.subr.mxu0 0.0
      %389 = vmatpush1.msra.mxu0 0.0
      %390 = vmatprep.subr.mxu0 0.0
      %391 = vmatpush1.msra.mxu0 0.0
      %392 = vmatprep.subr.mxu0 0.0
      %393 = vmatpush1.msra.mxu0 0.0
      %394 = vmatprep.subr.mxu0 0.0
      %395 = vmatpush1.msra.mxu0 0.0
      %396 = vmatprep.subr.mxu0 0.0
      %397 = vmatpush1.msra.mxu0 0.0
      %398 = vmatprep.subr.mxu0 0.0
      %399 = vmatpush1.msra.mxu0 0.0
      %400 = vmatprep.subr.mxu0 0.0
      %401 = vmatpush1.msra.mxu0 0.0
      %402 = vmatprep.subr.mxu0 0.0
      %403 = vmatpush1.msra.mxu0 0.0
      %404 = vmatprep.subr.mxu0 0.0
      %405 = vmatpush1.msra.mxu0 0.0
      %406 = vmatprep.subr.mxu0 0.0
      %407 = vmatpush1.msra.mxu0 0.0
      %408 = vmatprep.subr.mxu0 0.0
      %409 = vmatpush1.msra.mxu0 0.0
      %410 = vmatprep.subr.mxu0 0.0
      %411 = vmatpush1.msra.mxu0 0.0
      %412 = vmatprep.subr.mxu0 0.0
      %413 = vmatpush1.msra.mxu0 0.0
      %414 = vmatprep.subr.mxu0 0.0
      %415 = vmatpush1.msra.mxu0 0.0
      %416 = vmatprep.subr.mxu0 0.0
      %417 = vmatpush1.msra.mxu0 0.0
      %418 = vmatprep.subr.mxu0 0.0
      %419 = vmatpush1.msra.mxu0 0.0
      %420 = vmatprep.subr.mxu0 0.0
      %421 = vmatpush1.msra.mxu0 0.0
      %422 = vmatprep.subr.mxu0 0.0
      %423 = vmatpush1.msra.mxu0 0.0
      %424 = vmatprep.subr.mxu0 0.0
      %425 = vmatpush1.msra.mxu0 0.0
      %426 = vmatprep.subr.mxu0 0.0
      %427 = vmatpush1.msra.mxu0 0.0
      %428 = vmatprep.subr.mxu0 0.0
      %429 = vmatpush1.msra.mxu0 0.0
      %430 = vmatprep.subr.mxu0 0.0
      %431 = vmatpush1.msra.mxu0 0.0
      %432 = vmatprep.subr.mxu0 0.0
      %433 = vmatpush1.msra.mxu0 0.0
      %434 = vmatprep.subr.mxu0 0.0
      %435 = vmatpush1.msra.mxu0 0.0
      %436 = vmatprep.subr.mxu0 0.0
      %437 = vmatpush1.msra.mxu0 0.0
      %438 = vmatprep.subr.mxu0 0.0
      %439 = vmatpush1.msra.mxu0 0.0
      %440 = vmatprep.subr.mxu0 0.0
      %441 = vmatpush1.msra.mxu0 0.0
      %442 = vmatprep.subr.mxu0 0.0
      %443 = vmatpush1.msra.mxu0 0.0
      %444 = vmatprep.subr.mxu0 0.0
      %445 = vmatpush1.msra.mxu0 0.0
      %446 = vmatprep.mubr.f32.mxu0 0.0
      %447 = vmatmul.mubr.f32.gmra.mrb[0].mxu0 %v378
      %v448 = vpop.f32.mrb[0].mxu0
      %v449 = vadd.f32 0.0, %v448
      %v450 = vpop.f32.mrb[0].mxu0
      %451 = vdwg.mxu0
      %453 = vrot.lane.b32.xlu0 %v449, 4
      %v454 = vpop.permute.xlu0 %453
      %vm456 = vcmask 62496
      %457 = vst.msk [vmem:[%s111] sm:$0x3f] %vm456, %v454
      %458 = vrot.lane.b32.xlu0 %v113, 120
      %v459 = vpop.permute.xlu0 %458
      %460 = vrot.lane.b32.xlu0 %v112, 88
      %v461 = vpop.permute.xlu0 %460
      %v462 = vsel %vm117, %v459, 0
      %v464 = vsel %vm117, %v461, 0
      %466 = vmatprep.subr.mxu0 0.0
      %467 = vmatpush1.xpose.msra.mxu0 %v464
      %468 = vmatprep.subr.mxu0 0.0
      %469 = vmatpush1.xpose.msra.mxu0 0.0
      %470 = vmatprep.subr.mxu0 0.0
      %471 = vmatpush1.xpose.msra.mxu0 0.0
      %472 = vmatprep.subr.mxu0 0.0
      %473 = vmatpush1.xpose.msra.mxu0 0.0
      %474 = vmatprep.subr.mxu0 0.0
      %475 = vmatpush1.xpose.msra.mxu0 0.0
      %476 = vmatprep.subr.mxu0 0.0
      %477 = vmatpush1.xpose.msra.mxu0 0.0
      %478 = vmatprep.subr.mxu0 0.0
      %479 = vmatpush1.xpose.msra.mxu0 0.0
      %480 = vmatprep.subr.mxu0 0.0
      %481 = vmatpush1.xpose.msra.mxu0 0.0
      %482 = vmatprep.subr.mxu0 0.0
      %483 = vmatpush1.xpose.msra.mxu0 0.0
      %484 = vmatprep.subr.mxu0 0.0
      %485 = vmatpush1.xpose.msra.mxu0 0.0
      %486 = vmatprep.subr.mxu0 0.0
      %487 = vmatpush1.xpose.msra.mxu0 0.0
      %488 = vmatprep.subr.mxu0 0.0
      %489 = vmatpush1.xpose.msra.mxu0 0.0
      %490 = vmatprep.subr.mxu0 0.0
      %491 = vmatpush1.xpose.msra.mxu0 0.0
      %492 = vmatprep.subr.mxu0 0.0
      %493 = vmatpush1.xpose.msra.mxu0 0.0
      %494 = vmatprep.subr.mxu0 0.0
      %495 = vmatpush1.xpose.msra.mxu0 0.0
      %496 = vmatprep.subr.mxu0 0.0
      %497 = vmatpush1.xpose.msra.mxu0 0.0
      %498 = vmatprep.subr.mxu0 0.0
      %499 = vmatpush1.xpose.msra.mxu0 0.0
      %500 = vmatprep.subr.mxu0 0.0
      %501 = vmatpush1.xpose.msra.mxu0 0.0
      %502 = vmatprep.subr.mxu0 0.0
      %503 = vmatpush1.xpose.msra.mxu0 0.0
      %504 = vmatprep.subr.mxu0 0.0
      %505 = vmatpush1.xpose.msra.mxu0 0.0
      %506 = vmatprep.subr.mxu0 0.0
      %507 = vmatpush1.xpose.msra.mxu0 0.0
      %508 = vmatprep.subr.mxu0 0.0
      %509 = vmatpush1.xpose.msra.mxu0 0.0
      %510 = vmatprep.subr.mxu0 0.0
      %511 = vmatpush1.xpose.msra.mxu0 0.0
      %512 = vmatprep.subr.mxu0 0.0
      %513 = vmatpush1.xpose.msra.mxu0 0.0
      %514 = vmatprep.subr.mxu0 0.0
      %515 = vmatpush1.xpose.msra.mxu0 0.0
      %516 = vmatprep.subr.mxu0 0.0
      %517 = vmatpush1.xpose.msra.mxu0 0.0
      %518 = vmatprep.subr.mxu0 0.0
      %519 = vmatpush1.xpose.msra.mxu0 0.0
      %520 = vmatprep.subr.mxu0 0.0
      %521 = vmatpush1.xpose.msra.mxu0 0.0
      %522 = vmatprep.subr.mxu0 0.0
      %523 = vmatpush1.xpose.msra.mxu0 0.0
      %524 = vmatprep.subr.mxu0 0.0
      %525 = vmatpush1.xpose.msra.mxu0 0.0
      %526 = vmatprep.subr.mxu0 0.0
      %527 = vmatpush1.xpose.msra.mxu0 0.0
      %528 = vmatprep.subr.mxu0 0.0
      %529 = vmatpush1.xpose.msra.mxu0 0.0
      %530 = vmatprep.mubr.f32.mxu0 0.0
      %531 = vmatmul.mubr.f32.gmra.mrb[0].mxu0 %v462
      %v532 = vpop.f32.mrb[0].mxu0
      %v533 = vadd.f32 0.0, %v532
      %v534 = vpop.f32.mrb[0].mxu0
      %535 = vdwg.mxu0
      %v536 = vsel %vm193, %v533, -inf
      %537 = vmax.xlane.f32.xlu0 %v536
      %v538 = vpop.xlane.xlu0 %537
      %v539 = vsub.f32 %v533, %v538
      %v540 = vmul.f32 %v539, 1.442695
      %v541 = vpow.pop %v540
      %v542 = vsel %vm193, %v541, 0.0
      %543 = vadd.xlane.f32.xlu0 %v542
      %v544 = vpop.xlane.xlu0 %543
      %v545 = vrcp.pop %v544
      %v546 = vmul.f32 %v541, %v545
      %547 = vrot.lane.b32.xlu0 %v112, 56
      %v548 = vpop.permute.xlu0 %547
      %v550 = vsel %vm207, %v546, 0
      %v552 = vsel %vm211, %v548, 0
      %554 = vmatprep.subr.mxu0 0.0
      %555 = vmatpush1.msra.mxu0 %v552
      %556 = vmatprep.subr.mxu0 0.0
      %557 = vmatpush1.msra.mxu0 0.0
      %558 = vmatprep.subr.mxu0 0.0
      %559 = vmatpush1.msra.mxu0 0.0
      %560 = vmatprep.subr.mxu0 0.0
      %561 = vmatpush1.msra.mxu0 0.0
      %562 = vmatprep.subr.mxu0 0.0
      %563 = vmatpush1.msra.mxu0 0.0
      %564 = vmatprep.subr.mxu0 0.0
      %565 = vmatpush1.msra.mxu0 0.0
      %566 = vmatprep.subr.mxu0 0.0
      %567 = vmatpush1.msra.mxu0 0.0
      %568 = vmatprep.subr.mxu0 0.0
      %569 = vmatpush1.msra.mxu0 0.0
      %570 = vmatprep.subr.mxu0 0.0
      %571 = vmatpush1.msra.mxu0 0.0
      %572 = vmatprep.subr.mxu0 0.0
      %573 = vmatpush1.msra.mxu0 0.0
      %574 = vmatprep.subr.mxu0 0.0
      %575 = vmatpush1.msra.mxu0 0.0
      %576 = vmatprep.subr.mxu0 0.0
      %577 = vmatpush1.msra.mxu0 0.0
      %578 = vmatprep.subr.mxu0 0.0
      %579 = vmatpush1.msra.mxu0 0.0
      %580 = vmatprep.subr.mxu0 0.0
      %581 = vmatpush1.msra.mxu0 0.0
      %582 = vmatprep.subr.mxu0 0.0
      %583 = vmatpush1.msra.mxu0 0.0
      %584 = vmatprep.subr.mxu0 0.0
      %585 = vmatpush1.msra.mxu0 0.0
      %586 = vmatprep.subr.mxu0 0.0
      %587 = vmatpush1.msra.mxu0 0.0
      %588 = vmatprep.subr.mxu0 0.0
      %589 = vmatpush1.msra.mxu0 0.0
      %590 = vmatprep.subr.mxu0 0.0
      %591 = vmatpush1.msra.mxu0 0.0
      %592 = vmatprep.subr.mxu0 0.0
      %593 = vmatpush1.msra.mxu0 0.0
      %594 = vmatprep.subr.mxu0 0.0
      %595 = vmatpush1.msra.mxu0 0.0
      %596 = vmatprep.subr.mxu0 0.0
      %597 = vmatpush1.msra.mxu0 0.0
      %598 = vmatprep.subr.mxu0 0.0
      %599 = vmatpush1.msra.mxu0 0.0
      %600 = vmatprep.subr.mxu0 0.0
      %601 = vmatpush1.msra.mxu0 0.0
      %602 = vmatprep.subr.mxu0 0.0
      %603 = vmatpush1.msra.mxu0 0.0
      %604 = vmatprep.subr.mxu0 0.0
      %605 = vmatpush1.msra.mxu0 0.0
      %606 = vmatprep.subr.mxu0 0.0
      %607 = vmatpush1.msra.mxu0 0.0
      %608 = vmatprep.subr.mxu0 0.0
      %609 = vmatpush1.msra.mxu0 0.0
      %610 = vmatprep.subr.mxu0 0.0
      %611 = vmatpush1.msra.mxu0 0.0
      %612 = vmatprep.subr.mxu0 0.0
      %613 = vmatpush1.msra.mxu0 0.0
      %614 = vmatprep.subr.mxu0 0.0
      %615 = vmatpush1.msra.mxu0 0.0
      %616 = vmatprep.subr.mxu0 0.0
      %617 = vmatpush1.msra.mxu0 0.0
      %618 = vmatprep.mubr.f32.mxu0 0.0
      %619 = vmatmul.mubr.f32.gmra.mrb[0].mxu0 %v550
      %v620 = vpop.f32.mrb[0].mxu0
      %v621 = vadd.f32 0.0, %v620
      %v622 = vpop.f32.mrb[0].mxu0
      %623 = vdwg.mxu0
      %625 = vrot.lane.b32.xlu0 %v621, 8
      %v626 = vpop.permute.xlu0 %625
      %vm628 = vcmask 95296
      %629 = vst.msk [vmem:[%s111] sm:$0x3f] %vm628, %v626
      %630 = vrot.lane.b32.xlu0 %v113, 116
      %v631 = vpop.permute.xlu0 %630
      %632 = vrot.lane.b32.xlu0 %v112, 84
      %v633 = vpop.permute.xlu0 %632
      %v634 = vsel %vm117, %v631, 0
      %v636 = vsel %vm117, %v633, 0
      %638 = vmatprep.subr.mxu0 0.0
      %639 = vmatpush1.xpose.msra.mxu0 %v636
      %640 = vmatprep.subr.mxu0 0.0
      %641 = vmatpush1.xpose.msra.mxu0 0.0
      %642 = vmatprep.subr.mxu0 0.0
      %643 = vmatpush1.xpose.msra.mxu0 0.0
      %644 = vmatprep.subr.mxu0 0.0
      %645 = vmatpush1.xpose.msra.mxu0 0.0
      %646 = vmatprep.subr.mxu0 0.0
      %647 = vmatpush1.xpose.msra.mxu0 0.0
      %648 = vmatprep.subr.mxu0 0.0
      %649 = vmatpush1.xpose.msra.mxu0 0.0
      %650 = vmatprep.subr.mxu0 0.0
      %651 = vmatpush1.xpose.msra.mxu0 0.0
      %652 = vmatprep.subr.mxu0 0.0
      %653 = vmatpush1.xpose.msra.mxu0 0.0
      %654 = vmatprep.subr.mxu0 0.0
      %655 = vmatpush1.xpose.msra.mxu0 0.0
      %656 = vmatprep.subr.mxu0 0.0
      %657 = vmatpush1.xpose.msra.mxu0 0.0
      %658 = vmatprep.subr.mxu0 0.0
      %659 = vmatpush1.xpose.msra.mxu0 0.0
      %660 = vmatprep.subr.mxu0 0.0
      %661 = vmatpush1.xpose.msra.mxu0 0.0
      %662 = vmatprep.subr.mxu0 0.0
      %663 = vmatpush1.xpose.msra.mxu0 0.0
      %664 = vmatprep.subr.mxu0 0.0
      %665 = vmatpush1.xpose.msra.mxu0 0.0
      %666 = vmatprep.subr.mxu0 0.0
      %667 = vmatpush1.xpose.msra.mxu0 0.0
      %668 = vmatprep.subr.mxu0 0.0
      %669 = vmatpush1.xpose.msra.mxu0 0.0
      %670 = vmatprep.subr.mxu0 0.0
      %671 = vmatpush1.xpose.msra.mxu0 0.0
      %672 = vmatprep.subr.mxu0 0.0
      %673 = vmatpush1.xpose.msra.mxu0 0.0
      %674 = vmatprep.subr.mxu0 0.0
      %675 = vmatpush1.xpose.msra.mxu0 0.0
      %676 = vmatprep.subr.mxu0 0.0
      %677 = vmatpush1.xpose.msra.mxu0 0.0
      %678 = vmatprep.subr.mxu0 0.0
      %679 = vmatpush1.xpose.msra.mxu0 0.0
      %680 = vmatprep.subr.mxu0 0.0
      %681 = vmatpush1.xpose.msra.mxu0 0.0
      %682 = vmatprep.subr.mxu0 0.0
      %683 = vmatpush1.xpose.msra.mxu0 0.0
      %684 = vmatprep.subr.mxu0 0.0
      %685 = vmatpush1.xpose.msra.mxu0 0.0
      %686 = vmatprep.subr.mxu0 0.0
      %687 = vmatpush1.xpose.msra.mxu0 0.0
      %688 = vmatprep.subr.mxu0 0.0
      %689 = vmatpush1.xpose.msra.mxu0 0.0
      %690 = vmatprep.subr.mxu0 0.0
      %691 = vmatpush1.xpose.msra.mxu0 0.0
      %692 = vmatprep.subr.mxu0 0.0
      %693 = vmatpush1.xpose.msra.mxu0 0.0
      %694 = vmatprep.subr.mxu0 0.0
      %695 = vmatpush1.xpose.msra.mxu0 0.0
      %696 = vmatprep.subr.mxu0 0.0
      %697 = vmatpush1.xpose.msra.mxu0 0.0
      %698 = vmatprep.subr.mxu0 0.0
      %699 = vmatpush1.xpose.msra.mxu0 0.0
      %700 = vmatprep.subr.mxu0 0.0
      %701 = vmatpush1.xpose.msra.mxu0 0.0
      %702 = vmatprep.mubr.f32.mxu0 0.0
      %703 = vmatmul.mubr.f32.gmra.mrb[0].mxu0 %v634
      %v704 = vpop.f32.mrb[0].mxu0
      %v705 = vadd.f32 0.0, %v704
      %v706 = vpop.f32.mrb[0].mxu0
      %707 = vdwg.mxu0
      %v708 = vsel %vm193, %v705, -inf
      %709 = vmax.xlane.f32.xlu0 %v708
      %v710 = vpop.xlane.xlu0 %709
      %v711 = vsub.f32 %v705, %v710
      %v712 = vmul.f32 %v711, 1.442695
      %v713 = vpow.pop %v712
      %v714 = vsel %vm193, %v713, 0.0
      %715 = vadd.xlane.f32.xlu0 %v714
      %v716 = vpop.xlane.xlu0 %715
      %v717 = vrcp.pop %v716
      %v718 = vmul.f32 %v713, %v717
      %719 = vrot.lane.b32.xlu0 %v112, 52
      %v720 = vpop.permute.xlu0 %719
      %v722 = vsel %vm207, %v718, 0
      %v724 = vsel %vm211, %v720, 0
      %726 = vmatprep.subr.mxu0 0.0
      %727 = vmatpush1.msra.mxu0 %v724
      %728 = vmatprep.subr.mxu0 0.0
      %729 = vmatpush1.msra.mxu0 0.0
      %730 = vmatprep.subr.mxu0 0.0
      %731 = vmatpush1.msra.mxu0 0.0
      %732 = vmatprep.subr.mxu0 0.0
      %733 = vmatpush1.msra.mxu0 0.0
      %734 = vmatprep.subr.mxu0 0.0
      %735 = vmatpush1.msra.mxu0 0.0
      %736 = vmatprep.subr.mxu0 0.0
      %737 = vmatpush1.msra.mxu0 0.0
      %738 = vmatprep.subr.mxu0 0.0
      %739 = vmatpush1.msra.mxu0 0.0
      %740 = vmatprep.subr.mxu0 0.0
      %741 = vmatpush1.msra.mxu0 0.0
      %742 = vmatprep.subr.mxu0 0.0
      %743 = vmatpush1.msra.mxu0 0.0
      %744 = vmatprep.subr.mxu0 0.0
      %745 = vmatpush1.msra.mxu0 0.0
      %746 = vmatprep.subr.mxu0 0.0
      %747 = vmatpush1.msra.mxu0 0.0
      %748 = vmatprep.subr.mxu0 0.0
      %749 = vmatpush1.msra.mxu0 0.0
      %750 = vmatprep.subr.mxu0 0.0
      %751 = vmatpush1.msra.mxu0 0.0
      %752 = vmatprep.subr.mxu0 0.0
      %753 = vmatpush1.msra.mxu0 0.0
      %754 = vmatprep.subr.mxu0 0.0
      %755 = vmatpush1.msra.mxu0 0.0
      %756 = vmatprep.subr.mxu0 0.0
      %757 = vmatpush1.msra.mxu0 0.0
      %758 = vmatprep.subr.mxu0 0.0
      %759 = vmatpush1.msra.mxu0 0.0
      %760 = vmatprep.subr.mxu0 0.0
      %761 = vmatpush1.msra.mxu0 0.0
      %762 = vmatprep.subr.mxu0 0.0
      %763 = vmatpush1.msra.mxu0 0.0
      %764 = vmatprep.subr.mxu0 0.0
      %765 = vmatpush1.msra.mxu0 0.0
      %766 = vmatprep.subr.mxu0 0.0
      %767 = vmatpush1.msra.mxu0 0.0
      %768 = vmatprep.subr.mxu0 0.0
      %769 = vmatpush1.msra.mxu0 0.0
      %770 = vmatprep.subr.mxu0 0.0
      %771 = vmatpush1.msra.mxu0 0.0
      %772 = vmatprep.subr.mxu0 0.0
      %773 = vmatpush1.msra.mxu0 0.0
      %774 = vmatprep.subr.mxu0 0.0
      %775 = vmatpush1.msra.mxu0 0.0
      %776 = vmatprep.subr.mxu0 0.0
      %777 = vmatpush1.msra.mxu0 0.0
      %778 = vmatprep.subr.mxu0 0.0
      %779 = vmatpush1.msra.mxu0 0.0
      %780 = vmatprep.subr.mxu0 0.0
      %781 = vmatpush1.msra.mxu0 0.0
      %782 = vmatprep.subr.mxu0 0.0
      %783 = vmatpush1.msra.mxu0 0.0
      %784 = vmatprep.subr.mxu0 0.0
      %785 = vmatpush1.msra.mxu0 0.0
      %786 = vmatprep.subr.mxu0 0.0
      %787 = vmatpush1.msra.mxu0 0.0
      %788 = vmatprep.subr.mxu0 0.0
      %789 = vmatpush1.msra.mxu0 0.0
      %790 = vmatprep.mubr.f32.mxu0 0.0
      %791 = vmatmul.mubr.f32.gmra.mrb[0].mxu0 %v722
      %v792 = vpop.f32.mrb[0].mxu0
      %v793 = vadd.f32 0.0, %v792
      %v794 = vpop.f32.mrb[0].mxu0
      %795 = vdwg.mxu0
      %797 = vrot.lane.b32.xlu0 %v793, 12
      %v798 = vpop.permute.xlu0 %797
      %vm800 = vcmask 128096
      %801 = vst.msk [vmem:[%s111] sm:$0x3f] %vm800, %v798
      %802 = vrot.lane.b32.xlu0 %v113, 112
      %v803 = vpop.permute.xlu0 %802
      %804 = vrot.lane.b32.xlu0 %v112, 80
      %v805 = vpop.permute.xlu0 %804
      %v806 = vsel %vm117, %v803, 0
      %v808 = vsel %vm117, %v805, 0
      %810 = vmatprep.subr.mxu0 0.0
      %811 = vmatpush1.xpose.msra.mxu0 %v808
      %812 = vmatprep.subr.mxu0 0.0
      %813 = vmatpush1.xpose.msra.mxu0 0.0
      %814 = vmatprep.subr.mxu0 0.0
      %815 = vmatpush1.xpose.msra.mxu0 0.0
      %816 = vmatprep.subr.mxu0 0.0
      %817 = vmatpush1.xpose.msra.mxu0 0.0
      %818 = vmatprep.subr.mxu0 0.0
      %819 = vmatpush1.xpose.msra.mxu0 0.0
      %820 = vmatprep.subr.mxu0 0.0
      %821 = vmatpush1.xpose.msra.mxu0 0.0
      %822 = vmatprep.subr.mxu0 0.0
      %823 = vmatpush1.xpose.msra.mxu0 0.0
      %824 = vmatprep.subr.mxu0 0.0
      %825 = vmatpush1.xpose.msra.mxu0 0.0
      %826 = vmatprep.subr.mxu0 0.0
      %827 = vmatpush1.xpose.msra.mxu0 0.0
      %828 = vmatprep.subr.mxu0 0.0
      %829 = vmatpush1.xpose.msra.mxu0 0.0
      %830 = vmatprep.subr.mxu0 0.0
      %831 = vmatpush1.xpose.msra.mxu0 0.0
      %832 = vmatprep.subr.mxu0 0.0
      %833 = vmatpush1.xpose.msra.mxu0 0.0
      %834 = vmatprep.subr.mxu0 0.0
      %835 = vmatpush1.xpose.msra.mxu0 0.0
      %836 = vmatprep.subr.mxu0 0.0
      %837 = vmatpush1.xpose.msra.mxu0 0.0
      %838 = vmatprep.subr.mxu0 0.0
      %839 = vmatpush1.xpose.msra.mxu0 0.0
      %840 = vmatprep.subr.mxu0 0.0
      %841 = vmatpush1.xpose.msra.mxu0 0.0
      %842 = vmatprep.subr.mxu0 0.0
      %843 = vmatpush1.xpose.msra.mxu0 0.0
      %844 = vmatprep.subr.mxu0 0.0
      %845 = vmatpush1.xpose.msra.mxu0 0.0
      %846 = vmatprep.subr.mxu0 0.0
      %847 = vmatpush1.xpose.msra.mxu0 0.0
      %848 = vmatprep.subr.mxu0 0.0
      %849 = vmatpush1.xpose.msra.mxu0 0.0
      %850 = vmatprep.subr.mxu0 0.0
      %851 = vmatpush1.xpose.msra.mxu0 0.0
      %852 = vmatprep.subr.mxu0 0.0
      %853 = vmatpush1.xpose.msra.mxu0 0.0
      %854 = vmatprep.subr.mxu0 0.0
      %855 = vmatpush1.xpose.msra.mxu0 0.0
      %856 = vmatprep.subr.mxu0 0.0
      %857 = vmatpush1.xpose.msra.mxu0 0.0
      %858 = vmatprep.subr.mxu0 0.0
      %859 = vmatpush1.xpose.msra.mxu0 0.0
      %860 = vmatprep.subr.mxu0 0.0
      %861 = vmatpush1.xpose.msra.mxu0 0.0
      %862 = vmatprep.subr.mxu0 0.0
      %863 = vmatpush1.xpose.msra.mxu0 0.0
      %864 = vmatprep.subr.mxu0 0.0
      %865 = vmatpush1.xpose.msra.mxu0 0.0
      %866 = vmatprep.subr.mxu0 0.0
      %867 = vmatpush1.xpose.msra.mxu0 0.0
      %868 = vmatprep.subr.mxu0 0.0
      %869 = vmatpush1.xpose.msra.mxu0 0.0
      %870 = vmatprep.subr.mxu0 0.0
      %871 = vmatpush1.xpose.msra.mxu0 0.0
      %872 = vmatprep.subr.mxu0 0.0
      %873 = vmatpush1.xpose.msra.mxu0 0.0
      %874 = vmatprep.mubr.f32.mxu0 0.0
      %875 = vmatmul.mubr.f32.gmra.mrb[0].mxu0 %v806
      %v876 = vpop.f32.mrb[0].mxu0
      %v877 = vadd.f32 0.0, %v876
      %v878 = vpop.f32.mrb[0].mxu0
      %879 = vdwg.mxu0
      %v880 = vsel %vm193, %v877, -inf
      %881 = vmax.xlane.f32.xlu0 %v880
      %v882 = vpop.xlane.xlu0 %881
      %v883 = vsub.f32 %v877, %v882
      %v884 = vmul.f32 %v883, 1.442695
      %v885 = vpow.pop %v884
      %v886 = vsel %vm193, %v885, 0.0
      %887 = vadd.xlane.f32.xlu0 %v886
      %v888 = vpop.xlane.xlu0 %887
      %v889 = vrcp.pop %v888
      %v890 = vmul.f32 %v885, %v889
      %891 = vrot.lane.b32.xlu0 %v112, 48
      %v892 = vpop.permute.xlu0 %891
      %v894 = vsel %vm207, %v890, 0
      %v896 = vsel %vm211, %v892, 0
      %898 = vmatprep.subr.mxu0 0.0
      %899 = vmatpush1.msra.mxu0 %v896
      %900 = vmatprep.subr.mxu0 0.0
      %901 = vmatpush1.msra.mxu0 0.0
      %902 = vmatprep.subr.mxu0 0.0
      %903 = vmatpush1.msra.mxu0 0.0
      %904 = vmatprep.subr.mxu0 0.0
      %905 = vmatpush1.msra.mxu0 0.0
      %906 = vmatprep.subr.mxu0 0.0
      %907 = vmatpush1.msra.mxu0 0.0
      %908 = vmatprep.subr.mxu0 0.0
      %909 = vmatpush1.msra.mxu0 0.0
      %910 = vmatprep.subr.mxu0 0.0
      %911 = vmatpush1.msra.mxu0 0.0
      %912 = vmatprep.subr.mxu0 0.0
      %913 = vmatpush1.msra.mxu0 0.0
      %914 = vmatprep.subr.mxu0 0.0
      %915 = vmatpush1.msra.mxu0 0.0
      %916 = vmatprep.subr.mxu0 0.0
      %917 = vmatpush1.msra.mxu0 0.0
      %918 = vmatprep.subr.mxu0 0.0
      %919 = vmatpush1.msra.mxu0 0.0
      %920 = vmatprep.subr.mxu0 0.0
      %921 = vmatpush1.msra.mxu0 0.0
      %922 = vmatprep.subr.mxu0 0.0
      %923 = vmatpush1.msra.mxu0 0.0
      %924 = vmatprep.subr.mxu0 0.0
      %925 = vmatpush1.msra.mxu0 0.0
      %926 = vmatprep.subr.mxu0 0.0
      %927 = vmatpush1.msra.mxu0 0.0
      %928 = vmatprep.subr.mxu0 0.0
      %929 = vmatpush1.msra.mxu0 0.0
      %930 = vmatprep.subr.mxu0 0.0
      %931 = vmatpush1.msra.mxu0 0.0
      %932 = vmatprep.subr.mxu0 0.0
      %933 = vmatpush1.msra.mxu0 0.0
      %934 = vmatprep.subr.mxu0 0.0
      %935 = vmatpush1.msra.mxu0 0.0
      %936 = vmatprep.subr.mxu0 0.0
      %937 = vmatpush1.msra.mxu0 0.0
      %938 = vmatprep.subr.mxu0 0.0
      %939 = vmatpush1.msra.mxu0 0.0
      %940 = vmatprep.subr.mxu0 0.0
      %941 = vmatpush1.msra.mxu0 0.0
      %942 = vmatprep.subr.mxu0 0.0
      %943 = vmatpush1.msra.mxu0 0.0
      %944 = vmatprep.subr.mxu0 0.0
      %945 = vmatpush1.msra.mxu0 0.0
      %946 = vmatprep.subr.mxu0 0.0
      %947 = vmatpush1.msra.mxu0 0.0
      %948 = vmatprep.subr.mxu0 0.0
      %949 = vmatpush1.msra.mxu0 0.0
      %950 = vmatprep.subr.mxu0 0.0
      %951 = vmatpush1.msra.mxu0 0.0
      %952 = vmatprep.subr.mxu0 0.0
      %953 = vmatpush1.msra.mxu0 0.0
      %954 = vmatprep.subr.mxu0 0.0
      %955 = vmatpush1.msra.mxu0 0.0
      %956 = vmatprep.subr.mxu0 0.0
      %957 = vmatpush1.msra.mxu0 0.0
      %958 = vmatprep.subr.mxu0 0.0
      %959 = vmatpush1.msra.mxu0 0.0
      %960 = vmatprep.subr.mxu0 0.0
      %961 = vmatpush1.msra.mxu0 0.0
      %962 = vmatprep.mubr.f32.mxu0 0.0
      %963 = vmatmul.mubr.f32.gmra.mrb[0].mxu0 %v894
      %v964 = vpop.f32.mrb[0].mxu0
      %v965 = vadd.f32 0.0, %v964
      %v966 = vpop.f32.mrb[0].mxu0
      %967 = vdwg.mxu0
      %969 = vrot.lane.b32.xlu0 %v965, 16
      %v970 = vpop.permute.xlu0 %969
      %vm972 = vcmask 160896
      %973 = vst.msk [vmem:[%s111] sm:$0x3f] %vm972, %v970
      %974 = vrot.lane.b32.xlu0 %v113, 108
      %v975 = vpop.permute.xlu0 %974
      %976 = vrot.lane.b32.xlu0 %v112, 76
      %v977 = vpop.permute.xlu0 %976
      %v978 = vsel %vm117, %v975, 0
      %v980 = vsel %vm117, %v977, 0
      %982 = vmatprep.subr.mxu0 0.0
      %983 = vmatpush1.xpose.msra.mxu0 %v980
      %984 = vmatprep.subr.mxu0 0.0
      %985 = vmatpush1.xpose.msra.mxu0 0.0
      %986 = vmatprep.subr.mxu0 0.0
      %987 = vmatpush1.xpose.msra.mxu0 0.0
      %988 = vmatprep.subr.mxu0 0.0
      %989 = vmatpush1.xpose.msra.mxu0 0.0
      %990 = vmatprep.subr.mxu0 0.0
      %991 = vmatpush1.xpose.msra.mxu0 0.0
      %992 = vmatprep.subr.mxu0 0.0
      %993 = vmatpush1.xpose.msra.mxu0 0.0
      %994 = vmatprep.subr.mxu0 0.0
      %995 = vmatpush1.xpose.msra.mxu0 0.0
      %996 = vmatprep.subr.mxu0 0.0
      %997 = vmatpush1.xpose.msra.mxu0 0.0
      %998 = vmatprep.subr.mxu0 0.0
      %999 = vmatpush1.xpose.msra.mxu0 0.0
      %1000 = vmatprep.subr.mxu0 0.0
      %1001 = vmatpush1.xpose.msra.mxu0 0.0
      %1002 = vmatprep.subr.mxu0 0.0
      %1003 = vmatpush1.xpose.msra.mxu0 0.0
      %1004 = vmatprep.subr.mxu0 0.0
      %1005 = vmatpush1.xpose.msra.mxu0 0.0
      %1006 = vmatprep.subr.mxu0 0.0
      %1007 = vmatpush1.xpose.msra.mxu0 0.0
      %1008 = vmatprep.subr.mxu0 0.0
      %1009 = vmatpush1.xpose.msra.mxu0 0.0
      %1010 = vmatprep.subr.mxu0 0.0
      %1011 = vmatpush1.xpose.msra.mxu0 0.0
      %1012 = vmatprep.subr.mxu0 0.0
      %1013 = vmatpush1.xpose.msra.mxu0 0.0
      %1014 = vmatprep.subr.mxu0 0.0
      %1015 = vmatpush1.xpose.msra.mxu0 0.0
      %1016 = vmatprep.subr.mxu0 0.0
      %1017 = vmatpush1.xpose.msra.mxu0 0.0
      %1018 = vmatprep.subr.mxu0 0.0
      %1019 = vmatpush1.xpose.msra.mxu0 0.0
      %1020 = vmatprep.subr.mxu0 0.0
      %1021 = vmatpush1.xpose.msra.mxu0 0.0
      %1022 = vmatprep.subr.mxu0 0.0
      %1023 = vmatpush1.xpose.msra.mxu0 0.0
      %1024 = vmatprep.subr.mxu0 0.0
      %1025 = vmatpush1.xpose.msra.mxu0 0.0
      %1026 = vmatprep.subr.mxu0 0.0
      %1027 = vmatpush1.xpose.msra.mxu0 0.0
      %1028 = vmatprep.subr.mxu0 0.0
      %1029 = vmatpush1.xpose.msra.mxu0 0.0
      %1030 = vmatprep.subr.mxu0 0.0
      %1031 = vmatpush1.xpose.msra.mxu0 0.0
      %1032 = vmatprep.subr.mxu0 0.0
      %1033 = vmatpush1.xpose.msra.mxu0 0.0
      %1034 = vmatprep.subr.mxu0 0.0
      %1035 = vmatpush1.xpose.msra.mxu0 0.0
      %1036 = vmatprep.subr.mxu0 0.0
      %1037 = vmatpush1.xpose.msra.mxu0 0.0
      %1038 = vmatprep.subr.mxu0 0.0
      %1039 = vmatpush1.xpose.msra.mxu0 0.0
      %1040 = vmatprep.subr.mxu0 0.0
      %1041 = vmatpush1.xpose.msra.mxu0 0.0
      %1042 = vmatprep.subr.mxu0 0.0
      %1043 = vmatpush1.xpose.msra.mxu0 0.0
      %1044 = vmatprep.subr.mxu0 0.0
      %1045 = vmatpush1.xpose.msra.mxu0 0.0
      %1046 = vmatprep.mubr.f32.mxu0 0.0
      %1047 = vmatmul.mubr.f32.gmra.mrb[0].mxu0 %v978
      %v1048 = vpop.f32.mrb[0].mxu0
      %v1049 = vadd.f32 0.0, %v1048
      %v1050 = vpop.f32.mrb[0].mxu0
      %1051 = vdwg.mxu0
      %v1052 = vsel %vm193, %v1049, -inf
      %1053 = vmax.xlane.f32.xlu0 %v1052
      %v1054 = vpop.xlane.xlu0 %1053
      %v1055 = vsub.f32 %v1049, %v1054
      %v1056 = vmul.f32 %v1055, 1.442695
      %v1057 = vpow.pop %v1056
      %v1058 = vsel %vm193, %v1057, 0.0
      %1059 = vadd.xlane.f32.xlu0 %v1058
      %v1060 = vpop.xlane.xlu0 %1059
      %v1061 = vrcp.pop %v1060
      %v1062 = vmul.f32 %v1057, %v1061
      %1063 = vrot.lane.b32.xlu0 %v112, 44
      %v1064 = vpop.permute.xlu0 %1063
      %v1066 = vsel %vm207, %v1062, 0
      %v1068 = vsel %vm211, %v1064, 0
      %1070 = vmatprep.subr.mxu0 0.0
      %1071 = vmatpush1.msra.mxu0 %v1068
      %1072 = vmatprep.subr.mxu0 0.0
      %1073 = vmatpush1.msra.mxu0 0.0
      %1074 = vmatprep.subr.mxu0 0.0
      %1075 = vmatpush1.msra.mxu0 0.0
      %1076 = vmatprep.subr.mxu0 0.0
      %1077 = vmatpush1.msra.mxu0 0.0
      %1078 = vmatprep.subr.mxu0 0.0
      %1079 = vmatpush1.msra.mxu0 0.0
      %1080 = vmatprep.subr.mxu0 0.0
      %1081 = vmatpush1.msra.mxu0 0.0
      %1082 = vmatprep.subr.mxu0 0.0
      %1083 = vmatpush1.msra.mxu0 0.0
      %1084 = vmatprep.subr.mxu0 0.0
      %1085 = vmatpush1.msra.mxu0 0.0
      %1086 = vmatprep.subr.mxu0 0.0
      %1087 = vmatpush1.msra.mxu0 0.0
      %1088 = vmatprep.subr.mxu0 0.0
      %1089 = vmatpush1.msra.mxu0 0.0
      %1090 = vmatprep.subr.mxu0 0.0
      %1091 = vmatpush1.msra.mxu0 0.0
      %1092 = vmatprep.subr.mxu0 0.0
      %1093 = vmatpush1.msra.mxu0 0.0
      %1094 = vmatprep.subr.mxu0 0.0
      %1095 = vmatpush1.msra.mxu0 0.0
      %1096 = vmatprep.subr.mxu0 0.0
      %1097 = vmatpush1.msra.mxu0 0.0
      %1098 = vmatprep.subr.mxu0 0.0
      %1099 = vmatpush1.msra.mxu0 0.0
      %1100 = vmatprep.subr.mxu0 0.0
      %1101 = vmatpush1.msra.mxu0 0.0
      %1102 = vmatprep.subr.mxu0 0.0
      %1103 = vmatpush1.msra.mxu0 0.0
      %1104 = vmatprep.subr.mxu0 0.0
      %1105 = vmatpush1.msra.mxu0 0.0
      %1106 = vmatprep.subr.mxu0 0.0
      %1107 = vmatpush1.msra.mxu0 0.0
      %1108 = vmatprep.subr.mxu0 0.0
      %1109 = vmatpush1.msra.mxu0 0.0
      %1110 = vmatprep.subr.mxu0 0.0
      %1111 = vmatpush1.msra.mxu0 0.0
      %1112 = vmatprep.subr.mxu0 0.0
      %1113 = vmatpush1.msra.mxu0 0.0
      %1114 = vmatprep.subr.mxu0 0.0
      %1115 = vmatpush1.msra.mxu0 0.0
      %1116 = vmatprep.subr.mxu0 0.0
      %1117 = vmatpush1.msra.mxu0 0.0
      %1118 = vmatprep.subr.mxu0 0.0
      %1119 = vmatpush1.msra.mxu0 0.0
      %1120 = vmatprep.subr.mxu0 0.0
      %1121 = vmatpush1.msra.mxu0 0.0
      %1122 = vmatprep.subr.mxu0 0.0
      %1123 = vmatpush1.msra.mxu0 0.0
      %1124 = vmatprep.subr.mxu0 0.0
      %1125 = vmatpush1.msra.mxu0 0.0
      %1126 = vmatprep.subr.mxu0 0.0
      %1127 = vmatpush1.msra.mxu0 0.0
      %1128 = vmatprep.subr.mxu0 0.0
      %1129 = vmatpush1.msra.mxu0 0.0
      %1130 = vmatprep.subr.mxu0 0.0
      %1131 = vmatpush1.msra.mxu0 0.0
      %1132 = vmatprep.subr.mxu0 0.0
      %1133 = vmatpush1.msra.mxu0 0.0
      %1134 = vmatprep.mubr.f32.mxu0 0.0
      %1135 = vmatmul.mubr.f32.gmra.mrb[0].mxu0 %v1066
      %v1136 = vpop.f32.mrb[0].mxu0
      %v1137 = vadd.f32 0.0, %v1136
      %v1138 = vpop.f32.mrb[0].mxu0
      %1139 = vdwg.mxu0
      %1141 = vrot.lane.b32.xlu0 %v1137, 20
      %v1142 = vpop.permute.xlu0 %1141
      %vm1144 = vcmask 193696
      %1145 = vst.msk [vmem:[%s111] sm:$0x3f] %vm1144, %v1142
      %1146 = vrot.lane.b32.xlu0 %v113, 104
      %v1147 = vpop.permute.xlu0 %1146
      %1148 = vrot.lane.b32.xlu0 %v112, 72
      %v1149 = vpop.permute.xlu0 %1148
      %v1150 = vsel %vm117, %v1147, 0
      %v1152 = vsel %vm117, %v1149, 0
      %1154 = vmatprep.subr.mxu0 0.0
      %1155 = vmatpush1.xpose.msra.mxu0 %v1152
      %1156 = vmatprep.subr.mxu0 0.0
      %1157 = vmatpush1.xpose.msra.mxu0 0.0
      %1158 = vmatprep.subr.mxu0 0.0
      %1159 = vmatpush1.xpose.msra.mxu0 0.0
      %1160 = vmatprep.subr.mxu0 0.0
      %1161 = vmatpush1.xpose.msra.mxu0 0.0
      %1162 = vmatprep.subr.mxu0 0.0
      %1163 = vmatpush1.xpose.msra.mxu0 0.0
      %1164 = vmatprep.subr.mxu0 0.0
      %1165 = vmatpush1.xpose.msra.mxu0 0.0
      %1166 = vmatprep.subr.mxu0 0.0
      %1167 = vmatpush1.xpose.msra.mxu0 0.0
      %1168 = vmatprep.subr.mxu0 0.0
      %1169 = vmatpush1.xpose.msra.mxu0 0.0
      %1170 = vmatprep.subr.mxu0 0.0
      %1171 = vmatpush1.xpose.msra.mxu0 0.0
      %1172 = vmatprep.subr.mxu0 0.0
      %1173 = vmatpush1.xpose.msra.mxu0 0.0
      %1174 = vmatprep.subr.mxu0 0.0
      %1175 = vmatpush1.xpose.msra.mxu0 0.0
      %1176 = vmatprep.subr.mxu0 0.0
      %1177 = vmatpush1.xpose.msra.mxu0 0.0
      %1178 = vmatprep.subr.mxu0 0.0
      %1179 = vmatpush1.xpose.msra.mxu0 0.0
      %1180 = vmatprep.subr.mxu0 0.0
      %1181 = vmatpush1.xpose.msra.mxu0 0.0
      %1182 = vmatprep.subr.mxu0 0.0
      %1183 = vmatpush1.xpose.msra.mxu0 0.0
      %1184 = vmatprep.subr.mxu0 0.0
      %1185 = vmatpush1.xpose.msra.mxu0 0.0
      %1186 = vmatprep.subr.mxu0 0.0
      %1187 = vmatpush1.xpose.msra.mxu0 0.0
      %1188 = vmatprep.subr.mxu0 0.0
      %1189 = vmatpush1.xpose.msra.mxu0 0.0
      %1190 = vmatprep.subr.mxu0 0.0
      %1191 = vmatpush1.xpose.msra.mxu0 0.0
      %1192 = vmatprep.subr.mxu0 0.0
      %1193 = vmatpush1.xpose.msra.mxu0 0.0
      %1194 = vmatprep.subr.mxu0 0.0
      %1195 = vmatpush1.xpose.msra.mxu0 0.0
      %1196 = vmatprep.subr.mxu0 0.0
      %1197 = vmatpush1.xpose.msra.mxu0 0.0
      %1198 = vmatprep.subr.mxu0 0.0
      %1199 = vmatpush1.xpose.msra.mxu0 0.0
      %1200 = vmatprep.subr.mxu0 0.0
      %1201 = vmatpush1.xpose.msra.mxu0 0.0
      %1202 = vmatprep.subr.mxu0 0.0
      %1203 = vmatpush1.xpose.msra.mxu0 0.0
      %1204 = vmatprep.subr.mxu0 0.0
      %1205 = vmatpush1.xpose.msra.mxu0 0.0
      %1206 = vmatprep.subr.mxu0 0.0
      %1207 = vmatpush1.xpose.msra.mxu0 0.0
      %1208 = vmatprep.subr.mxu0 0.0
      %1209 = vmatpush1.xpose.msra.mxu0 0.0
      %1210 = vmatprep.subr.mxu0 0.0
      %1211 = vmatpush1.xpose.msra.mxu0 0.0
      %1212 = vmatprep.subr.mxu0 0.0
      %1213 = vmatpush1.xpose.msra.mxu0 0.0
      %1214 = vmatprep.subr.mxu0 0.0
      %1215 = vmatpush1.xpose.msra.mxu0 0.0
      %1216 = vmatprep.subr.mxu0 0.0
      %1217 = vmatpush1.xpose.msra.mxu0 0.0
      %1218 = vmatprep.mubr.f32.mxu0 0.0
      %1219 = vmatmul.mubr.f32.gmra.mrb[0].mxu0 %v1150
      %v1220 = vpop.f32.mrb[0].mxu0
      %v1221 = vadd.f32 0.0, %v1220
      %v1222 = vpop.f32.mrb[0].mxu0
      %1223 = vdwg.mxu0
      %v1224 = vsel %vm193, %v1221, -inf
      %1225 = vmax.xlane.f32.xlu0 %v1224
      %v1226 = vpop.xlane.xlu0 %1225
      %v1227 = vsub.f32 %v1221, %v1226
      %v1228 = vmul.f32 %v1227, 1.442695
      %v1229 = vpow.pop %v1228
      %v1230 = vsel %vm193, %v1229, 0.0
      %1231 = vadd.xlane.f32.xlu0 %v1230
      %v1232 = vpop.xlane.xlu0 %1231
      %v1233 = vrcp.pop %v1232
      %v1234 = vmul.f32 %v1229, %v1233
      %1235 = vrot.lane.b32.xlu0 %v112, 40
      %v1236 = vpop.permute.xlu0 %1235
      %v1238 = vsel %vm207, %v1234, 0
      %v1240 = vsel %vm211, %v1236, 0
      %1242 = vmatprep.subr.mxu0 0.0
      %1243 = vmatpush1.msra.mxu0 %v1240
      %1244 = vmatprep.subr.mxu0 0.0
      %1245 = vmatpush1.msra.mxu0 0.0
      %1246 = vmatprep.subr.mxu0 0.0
      %1247 = vmatpush1.msra.mxu0 0.0
      %1248 = vmatprep.subr.mxu0 0.0
      %1249 = vmatpush1.msra.mxu0 0.0
      %1250 = vmatprep.subr.mxu0 0.0
      %1251 = vmatpush1.msra.mxu0 0.0
      %1252 = vmatprep.subr.mxu0 0.0
      %1253 = vmatpush1.msra.mxu0 0.0
      %1254 = vmatprep.subr.mxu0 0.0
      %1255 = vmatpush1.msra.mxu0 0.0
      %1256 = vmatprep.subr.mxu0 0.0
      %1257 = vmatpush1.msra.mxu0 0.0
      %1258 = vmatprep.subr.mxu0 0.0
      %1259 = vmatpush1.msra.mxu0 0.0
      %1260 = vmatprep.subr.mxu0 0.0
      %1261 = vmatpush1.msra.mxu0 0.0
      %1262 = vmatprep.subr.mxu0 0.0
      %1263 = vmatpush1.msra.mxu0 0.0
      %1264 = vmatprep.subr.mxu0 0.0
      %1265 = vmatpush1.msra.mxu0 0.0
      %1266 = vmatprep.subr.mxu0 0.0
      %1267 = vmatpush1.msra.mxu0 0.0
      %1268 = vmatprep.subr.mxu0 0.0
      %1269 = vmatpush1.msra.mxu0 0.0
      %1270 = vmatprep.subr.mxu0 0.0
      %1271 = vmatpush1.msra.mxu0 0.0
      %1272 = vmatprep.subr.mxu0 0.0
      %1273 = vmatpush1.msra.mxu0 0.0
      %1274 = vmatprep.subr.mxu0 0.0
      %1275 = vmatpush1.msra.mxu0 0.0
      %1276 = vmatprep.subr.mxu0 0.0
      %1277 = vmatpush1.msra.mxu0 0.0
      %1278 = vmatprep.subr.mxu0 0.0
      %1279 = vmatpush1.msra.mxu0 0.0
      %1280 = vmatprep.subr.mxu0 0.0
      %1281 = vmatpush1.msra.mxu0 0.0
      %1282 = vmatprep.subr.mxu0 0.0
      %1283 = vmatpush1.msra.mxu0 0.0
      %1284 = vmatprep.subr.mxu0 0.0
      %1285 = vmatpush1.msra.mxu0 0.0
      %1286 = vmatprep.subr.mxu0 0.0
      %1287 = vmatpush1.msra.mxu0 0.0
      %1288 = vmatprep.subr.mxu0 0.0
      %1289 = vmatpush1.msra.mxu0 0.0
      %1290 = vmatprep.subr.mxu0 0.0
      %1291 = vmatpush1.msra.mxu0 0.0
      %1292 = vmatprep.subr.mxu0 0.0
      %1293 = vmatpush1.msra.mxu0 0.0
      %1294 = vmatprep.subr.mxu0 0.0
      %1295 = vmatpush1.msra.mxu0 0.0
      %1296 = vmatprep.subr.mxu0 0.0
      %1297 = vmatpush1.msra.mxu0 0.0
      %1298 = vmatprep.subr.mxu0 0.0
      %1299 = vmatpush1.msra.mxu0 0.0
      %1300 = vmatprep.subr.mxu0 0.0
      %1301 = vmatpush1.msra.mxu0 0.0
      %1302 = vmatprep.subr.mxu0 0.0
      %1303 = vmatpush1.msra.mxu0 0.0
      %1304 = vmatprep.subr.mxu0 0.0
      %1305 = vmatpush1.msra.mxu0 0.0
      %1306 = vmatprep.mubr.f32.mxu0 0.0
      %1307 = vmatmul.mubr.f32.gmra.mrb[0].mxu0 %v1238
      %v1308 = vpop.f32.mrb[0].mxu0
      %v1309 = vadd.f32 0.0, %v1308
      %v1310 = vpop.f32.mrb[0].mxu0
      %1311 = vdwg.mxu0
      %1313 = vrot.lane.b32.xlu0 %v1309, 24
      %v1314 = vpop.permute.xlu0 %1313
      %vm1316 = vcmask 226496
      %1317 = vst.msk [vmem:[%s111] sm:$0x3f] %vm1316, %v1314
      %1318 = vrot.lane.b32.xlu0 %v113, 100
      %v1319 = vpop.permute.xlu0 %1318
      %1320 = vrot.lane.b32.xlu0 %v112, 68
      %v1321 = vpop.permute.xlu0 %1320
      %v1322 = vsel %vm117, %v1319, 0
      %v1324 = vsel %vm117, %v1321, 0
      %1326 = vmatprep.subr.mxu0 0.0
      %1327 = vmatpush1.xpose.msra.mxu0 %v1324
      %1328 = vmatprep.subr.mxu0 0.0
      %1329 = vmatpush1.xpose.msra.mxu0 0.0
      %1330 = vmatprep.subr.mxu0 0.0
      %1331 = vmatpush1.xpose.msra.mxu0 0.0
      %1332 = vmatprep.subr.mxu0 0.0
      %1333 = vmatpush1.xpose.msra.mxu0 0.0
      %1334 = vmatprep.subr.mxu0 0.0
      %1335 = vmatpush1.xpose.msra.mxu0 0.0
      %1336 = vmatprep.subr.mxu0 0.0
      %1337 = vmatpush1.xpose.msra.mxu0 0.0
      %1338 = vmatprep.subr.mxu0 0.0
      %1339 = vmatpush1.xpose.msra.mxu0 0.0
      %1340 = vmatprep.subr.mxu0 0.0
      %1341 = vmatpush1.xpose.msra.mxu0 0.0
      %1342 = vmatprep.subr.mxu0 0.0
      %1343 = vmatpush1.xpose.msra.mxu0 0.0
      %1344 = vmatprep.subr.mxu0 0.0
      %1345 = vmatpush1.xpose.msra.mxu0 0.0
      %1346 = vmatprep.subr.mxu0 0.0
      %1347 = vmatpush1.xpose.msra.mxu0 0.0
      %1348 = vmatprep.subr.mxu0 0.0
      %1349 = vmatpush1.xpose.msra.mxu0 0.0
      %1350 = vmatprep.subr.mxu0 0.0
      %1351 = vmatpush1.xpose.msra.mxu0 0.0
      %1352 = vmatprep.subr.mxu0 0.0
      %1353 = vmatpush1.xpose.msra.mxu0 0.0
      %1354 = vmatprep.subr.mxu0 0.0
      %1355 = vmatpush1.xpose.msra.mxu0 0.0
      %1356 = vmatprep.subr.mxu0 0.0
      %1357 = vmatpush1.xpose.msra.mxu0 0.0
      %1358 = vmatprep.subr.mxu0 0.0
      %1359 = vmatpush1.xpose.msra.mxu0 0.0
      %1360 = vmatprep.subr.mxu0 0.0
      %1361 = vmatpush1.xpose.msra.mxu0 0.0
      %1362 = vmatprep.subr.mxu0 0.0
      %1363 = vmatpush1.xpose.msra.mxu0 0.0
      %1364 = vmatprep.subr.mxu0 0.0
      %1365 = vmatpush1.xpose.msra.mxu0 0.0
      %1366 = vmatprep.subr.mxu0 0.0
      %1367 = vmatpush1.xpose.msra.mxu0 0.0
      %1368 = vmatprep.subr.mxu0 0.0
      %1369 = vmatpush1.xpose.msra.mxu0 0.0
      %1370 = vmatprep.subr.mxu0 0.0
      %1371 = vmatpush1.xpose.msra.mxu0 0.0
      %1372 = vmatprep.subr.mxu0 0.0
      %1373 = vmatpush1.xpose.msra.mxu0 0.0
      %1374 = vmatprep.subr.mxu0 0.0
      %1375 = vmatpush1.xpose.msra.mxu0 0.0
      %1376 = vmatprep.subr.mxu0 0.0
      %1377 = vmatpush1.xpose.msra.mxu0 0.0
      %1378 = vmatprep.subr.mxu0 0.0
      %1379 = vmatpush1.xpose.msra.mxu0 0.0
      %1380 = vmatprep.subr.mxu0 0.0
      %1381 = vmatpush1.xpose.msra.mxu0 0.0
      %1382 = vmatprep.subr.mxu0 0.0
      %1383 = vmatpush1.xpose.msra.mxu0 0.0
      %1384 = vmatprep.subr.mxu0 0.0
      %1385 = vmatpush1.xpose.msra.mxu0 0.0
      %1386 = vmatprep.subr.mxu0 0.0
      %1387 = vmatpush1.xpose.msra.mxu0 0.0
      %1388 = vmatprep.subr.mxu0 0.0
      %1389 = vmatpush1.xpose.msra.mxu0 0.0
      %1390 = vmatprep.mubr.f32.mxu0 0.0
      %1391 = vmatmul.mubr.f32.gmra.mrb[0].mxu0 %v1322
      %v1392 = vpop.f32.mrb[0].mxu0
      %v1393 = vadd.f32 0.0, %v1392
      %v1394 = vpop.f32.mrb[0].mxu0
      %1395 = vdwg.mxu0
      %v1396 = vsel %vm193, %v1393, -inf
      %1397 = vmax.xlane.f32.xlu0 %v1396
      %v1398 = vpop.xlane.xlu0 %1397
      %v1399 = vsub.f32 %v1393, %v1398
      %v1400 = vmul.f32 %v1399, 1.442695
      %v1401 = vpow.pop %v1400
      %v1402 = vsel %vm193, %v1401, 0.0
      %1403 = vadd.xlane.f32.xlu0 %v1402
      %v1404 = vpop.xlane.xlu0 %1403
      %v1405 = vrcp.pop %v1404
      %v1406 = vmul.f32 %v1401, %v1405
      %1407 = vrot.lane.b32.xlu0 %v112, 36
      %v1408 = vpop.permute.xlu0 %1407
      %v1410 = vsel %vm207, %v1406, 0
      %v1412 = vsel %vm211, %v1408, 0
      %1414 = vmatprep.subr.mxu0 0.0
      %1415 = vmatpush1.msra.mxu0 %v1412
      %1416 = vmatprep.subr.mxu0 0.0
      %1417 = vmatpush1.msra.mxu0 0.0
      %1418 = vmatprep.subr.mxu0 0.0
      %1419 = vmatpush1.msra.mxu0 0.0
      %1420 = vmatprep.subr.mxu0 0.0
      %1421 = vmatpush1.msra.mxu0 0.0
      %1422 = vmatprep.subr.mxu0 0.0
      %1423 = vmatpush1.msra.mxu0 0.0
      %1424 = vmatprep.subr.mxu0 0.0
      %1425 = vmatpush1.msra.mxu0 0.0
      %1426 = vmatprep.subr.mxu0 0.0
      %1427 = vmatpush1.msra.mxu0 0.0
      %1428 = vmatprep.subr.mxu0 0.0
      %1429 = vmatpush1.msra.mxu0 0.0
      %1430 = vmatprep.subr.mxu0 0.0
      %1431 = vmatpush1.msra.mxu0 0.0
      %1432 = vmatprep.subr.mxu0 0.0
      %1433 = vmatpush1.msra.mxu0 0.0
      %1434 = vmatprep.subr.mxu0 0.0
      %1435 = vmatpush1.msra.mxu0 0.0
      %1436 = vmatprep.subr.mxu0 0.0
      %1437 = vmatpush1.msra.mxu0 0.0
      %1438 = vmatprep.subr.mxu0 0.0
      %1439 = vmatpush1.msra.mxu0 0.0
      %1440 = vmatprep.subr.mxu0 0.0
      %1441 = vmatpush1.msra.mxu0 0.0
      %1442 = vmatprep.subr.mxu0 0.0
      %1443 = vmatpush1.msra.mxu0 0.0
      %1444 = vmatprep.subr.mxu0 0.0
      %1445 = vmatpush1.msra.mxu0 0.0
      %1446 = vmatprep.subr.mxu0 0.0
      %1447 = vmatpush1.msra.mxu0 0.0
      %1448 = vmatprep.subr.mxu0 0.0
      %1449 = vmatpush1.msra.mxu0 0.0
      %1450 = vmatprep.subr.mxu0 0.0
      %1451 = vmatpush1.msra.mxu0 0.0
      %1452 = vmatprep.subr.mxu0 0.0
      %1453 = vmatpush1.msra.mxu0 0.0
      %1454 = vmatprep.subr.mxu0 0.0
      %1455 = vmatpush1.msra.mxu0 0.0
      %1456 = vmatprep.subr.mxu0 0.0
      %1457 = vmatpush1.msra.mxu0 0.0
      %1458 = vmatprep.subr.mxu0 0.0
      %1459 = vmatpush1.msra.mxu0 0.0
      %1460 = vmatprep.subr.mxu0 0.0
      %1461 = vmatpush1.msra.mxu0 0.0
      %1462 = vmatprep.subr.mxu0 0.0
      %1463 = vmatpush1.msra.mxu0 0.0
      %1464 = vmatprep.subr.mxu0 0.0
      %1465 = vmatpush1.msra.mxu0 0.0
      %1466 = vmatprep.subr.mxu0 0.0
      %1467 = vmatpush1.msra.mxu0 0.0
      %1468 = vmatprep.subr.mxu0 0.0
      %1469 = vmatpush1.msra.mxu0 0.0
      %1470 = vmatprep.subr.mxu0 0.0
      %1471 = vmatpush1.msra.mxu0 0.0
      %1472 = vmatprep.subr.mxu0 0.0
      %1473 = vmatpush1.msra.mxu0 0.0
      %1474 = vmatprep.subr.mxu0 0.0
      %1475 = vmatpush1.msra.mxu0 0.0
      %1476 = vmatprep.subr.mxu0 0.0
      %1477 = vmatpush1.msra.mxu0 0.0
      %1478 = vmatprep.mubr.f32.mxu0 0.0
      %1479 = vmatmul.mubr.f32.gmra.mrb[0].mxu0 %v1410
      %v1480 = vpop.f32.mrb[0].mxu0
      %v1481 = vadd.f32 0.0, %v1480
      %v1482 = vpop.f32.mrb[0].mxu0
      %1483 = vdwg.mxu0
      %1485 = vrot.lane.b32.xlu0 %v1481, 28
      %v1486 = vpop.permute.xlu0 %1485
      %vm1488 = vcmask 259296
      %1489 = vst.msk [vmem:[%s111] sm:$0x3f] %vm1488, %v1486
      %p1490 = scmp.lt.s32.totalorder %s12, 1
      %s1491 = scalar_select %p1490, %s12, 1
      %s1492 = smul.addr %s1491, 8
      %s1493 = scalar_lea.vmem %s1, %s1492
      // Predicated region
      $region25: #{transformer_forward.68} parent=23 // pred_check
        %p1494 = pneg %p56
      $region26: #{transformer_forward.68} parent=23 // pred_check_branch
        %1496 = sbr.rel (%p1494) target = $region28
      $region27: #{transformer_forward.68} parent=23 // pred_region
        _
      $region28: #{transformer_forward.68} parent=23 // pred_fallthru
        _
    $region24: #{transformer_forward.68} parent=5 // pred_fallthru
      _
    %p1497 = scmp.le.s32.totalorder 2, %s7
    // Predicated region
    $region29: #{transformer_forward.68} parent=5 // pred_check
      %p1498 = pneg %p1497
    $region30: #{transformer_forward.68} parent=5 // pred_check_branch
      %1500 = sbr.rel (%p1498) target = $region32
    $region31: #{transformer_forward.68} parent=5 // pred_region
      %s1501 = ssub.s32 %s7, 2
      // Predicated region
      $region33: #{transformer_forward.68} parent=31 // pred_check
        %p1502 = pneg %p62
      $region34: #{transformer_forward.68} parent=31 // pred_check_branch
        %1504 = sbr.rel (%p1502) target = $region36
      $region35: #{transformer_forward.68} parent=31 // pred_region
        %p1505 = scmp.lt.s32.totalorder %s13, 1
        %s1506 = scalar_select %p1505, %s13, 1
        %s1507 = smul.addr %s1506, 8
        %s1508 = scalar_lea.vmem %s1, %s1507
      $region36: #{transformer_forward.68} parent=31 // pred_fallthru
        _
    $region32: #{transformer_forward.68} parent=5 // pred_fallthru
      _
  $region6: #{transformer_forward.68} parent=0 // loop_footer
    %s11 = sadd.s32 1, %s7
  $region7: #{transformer_forward.68} parent=0 // loop_footer_branch
    %6 = sbr.rel target = $region3
  $region8: #{transformer_forward.68} parent=0 // loop_exit
    _

// kernel: transformer_forward.115
$region0: #{transformer_forward.115}
  #allocation0 [shape = 'u32[]', space=smem, size = 0x4, offset = 0x4, fixed_abs, tag = 'smem constant byte address 0x4 - core index']
  #allocation1 [shape = 'u32[144,128]{1,0:T(1,128)}', space=vmem, size = 0x12000, scoped, tag = 'internal scratch']
  %s0 = inlined_call_operand.vmem [shape: f32[12,32], index: 0, kind: input, shape index: {}]
  %s1 = inlined_call_operand.vmem [shape: f32[1,32], index: 1, kind: input, shape index: {}]
  %s2 = inlined_call_operand.vmem [shape: f32[1,32], index: 2, kind: input, shape index: {}]
  %s3 = inlined_call_operand.vmem [shape: f32[12,32], index: 3, kind: output, shape index: {}]
  %s4 = sld [smem:[#allocation0]]
  $region22: #{transformer_forward.115} parent=0
    _
  %s6 = ssub.s32 1, %s4
  %s7 = scalar_select 0, %s6, %s4
  // Predicated region
  $region2: #{transformer_forward.115} parent=0 // pred_check
    _
  $region3: #{transformer_forward.115} parent=0 // pred_check_branch
    %9 = sbr.rel (0) target = $region5
  $region4: #{transformer_forward.115} parent=0 // pred_region
    _
  $region5: #{transformer_forward.115} parent=0 // pred_fallthru
    _
  // Predicated region
  $region6: #{transformer_forward.115} parent=0 // pred_check
    _
  $region7: #{transformer_forward.115} parent=0 // pred_check_branch
    %11 = sbr.rel (0) target = $region9
  $region8: #{transformer_forward.115} parent=0 // pred_region
    _
  $region9: #{transformer_forward.115} parent=0 // pred_fallthru
    _
  // Predicated region
  $region10: #{transformer_forward.115} parent=0 // pred_check
    _
  $region11: #{transformer_forward.115} parent=0 // pred_check_branch
    %13 = sbr.rel (0) target = $region13
  $region12: #{transformer_forward.115} parent=0 // pred_region
    _
  $region13: #{transformer_forward.115} parent=0 // pred_fallthru
    _
  %v14 = vld [vmem:[%s0] sm:$0xff]
  %v15 = vld [vmem:[%s0 + $0x8] sm:$0xf]
  %vm16 = vcmask 261120
  %v17 = vsel %vm16, %v14, 0.0
  %18 = vadd.xlane.f32.xlu0 %v17
  %v19 = vpop.xlane.xlu0 %18
  %vm20 = vcmask 257024
  %v21 = vsel %vm20, %v15, 0.0
  %22 = vadd.xlane.f32.xlu0 %v21
  %v23 = vpop.xlane.xlu0 %22
  %v24 = vrcp.pop 32.0
  %v25 = vmul.f32 %v19, %v24
  %v26 = vmul.f32 %v23, %v24
  %v27 = vsub.f32 %v14, %v25
  %v28 = vsub.f32 %v15, %v26
  %v29 = vmul.f32 %v27, %v27
  %v30 = vmul.f32 %v28, %v28
  %v31 = vsel %vm16, %v29, 0.0
  %32 = vadd.xlane.f32.xlu0 %v31
  %v33 = vpop.xlane.xlu0 %32
  %v34 = vsel %vm20, %v30, 0.0
  %35 = vadd.xlane.f32.xlu0 %v34
  %v36 = vpop.xlane.xlu0 %35
  %v37 = vmul.f32 %v33, %v24
  %v38 = vmul.f32 %v36, %v24
  %v39 = vadd.f32 %v37, 1e-05
  %v40 = vadd.f32 %v38, 1e-05
  %v41 = vrsqrt.pop %v39
  %v42 = vrsqrt.pop %v40
  %v43 = vmul.f32 %v27, %v41
  %v44 = vmul.f32 %v28, %v42
  %v45 = vld [vmem:[%s1] sm:$0x1]
  %v47 = vlaneseq
  %v48 = vshrl.u32 %v47, 7
  %v49 = vsub.s32 0, %v48
  %v50 = vrot.slane %v45, %v49
  %v52 = vmul.f32 %v43, %v50
  %v53 = vmul.f32 %v44, %v50
  %v54 = vld [vmem:[%s2] sm:$0x1]
  %v56 = vlaneseq
  %v57 = vshrl.u32 %v56, 7
  %v58 = vsub.s32 0, %v57
  %v59 = vrot.slane %v54, %v58
  %v61 = vadd.f32 %v52, %v59
  %v62 = vadd.f32 %v53, %v59
  %63 = vst.msk [vmem:[%s3] sm:$0xff] %vm16, %v61
  %64 = vst.msk [vmem:[%s3 + $0x8] sm:$0xf] %vm20, %v62
  // Predicated region
  $region14: #{transformer_forward.115} parent=0 // pred_check
    _
  $region15: #{transformer_forward.115} parent=0 // pred_check_branch
    %66 = sbr.rel (0) target = $region17
  $region16: #{transformer_forward.115} parent=0 // pred_region
    _
  $region17: #{transformer_forward.115} parent=0 // pred_fallthru
    _
  // Predicated region
  $region18: #{transformer_forward.115} parent=0 // pred_check
    _
  $region19: #{transformer_forward.115} parent=0 // pred_check_branch
    %68 = sbr.rel (0) target = $region21
  $region20: #{transformer_forward.115} parent=0 // pred_region
    _
  $region21: #{transformer_forward.115} parent=0 // pred_fallthru
    _

// kernel: transformer_forward.74
$region0: #{transformer_forward.74}
  #allocation0 [shape = 'u32[]', space=smem, size = 0x4, offset = 0x4, fixed_abs, tag = 'smem constant byte address 0x4 - core index']
  #allocation1 [shape = 'u32[144,128]{1,0:T(1,128)}', space=vmem, size = 0x12000, scoped, tag = 'internal scratch']
  #allocation2 [shape = 'f32[12,32]{1,0:T(8,128)}', space=vmem, size = 0x2000, scoped, tag = 'scratch operand']
  %s0 = inlined_call_operand.vmem [shape: f32[12,32], index: 0, kind: input, shape index: {}]
  %s1 = inlined_call_operand.vmem [shape: f32[32,2048], index: 1, kind: input, shape index: {}]
  %s2 = inlined_call_operand.vmem [shape: f32[1,2048], index: 2, kind: input, shape index: {}]
  %s3 = inlined_call_operand.vmem [shape: f32[2048,32], index: 3, kind: input, shape index: {}]
  %s4 = inlined_call_operand.vmem [shape: f32[1,32], index: 4, kind: input, shape index: {}]
  %s5 = inlined_call_operand.vmem [shape: f32[1,32], index: 5, kind: input, shape index: {}]
  %s6 = inlined_call_operand.vmem [shape: f32[1,32], index: 6, kind: input, shape index: {}]
  %s7 = inlined_call_operand.vmem [shape: f32[12,32], index: 7, kind: output, shape index: {}]
  %s8 = sld [smem:[#allocation0]]
  $region92: #{transformer_forward.74} parent=0
    _
  %s10 = ssub.s32 1, %s8
  %s11 = scalar_select 0, %s10, %s8
  $region1: #{transformer_forward.74} parent=0
    #allocation3 [shape = 'u8[131072]{0}', space=vmem, size = 0x20000, scoped, tag = 'input window, operand 1']
    loop: start=0, step=1, limit=6
    $region2: #{transformer_forward.74} parent=1 // loop_pre_header
      _
    $region3: #{transformer_forward.74} parent=1 // loop_header
      %s13 = sphi 0, %s17
      %p14 = scmp.ge.s32.totalorder %s13, 6
      %s20 = sphi 0, %s32
      %s21 = sphi 0, %s28
      %s22 = sphi 0, %s20
      %s23 = sphi 0, %s21
      %s24 = sphi 0, %s22
      %s25 = sphi 0, %s23
      %s35 = sphi 0, %s37
      %s38 = sphi 0, %s35
      %s39 = sphi 0, %s38
      %s55 = sphi 0, %s39
      %s61 = sphi 0, %s63
      %s64 = sphi 0, %s61
      %s65 = sphi 0, %s64
      %s81 = sphi 0, %s65
      %s87 = sphi 0, %s89
      %s90 = sphi 0, %s87
      %s91 = sphi 0, %s90
      %s107 = sphi 0, %s91
      %s113 = sphi 0, %s115
      %s116 = sphi 0, %s113
      %s117 = sphi 0, %s116
      %s133 = sphi 0, %s117
      %s137 = sphi 0, %s137
      %s139 = sphi 0, %s137
      %s140 = sphi 0, %s139
      %s154 = sphi 0, %s140
      %s158 = sphi 0, %s158
      %s160 = sphi 0, %s158
      %s161 = sphi 0, %s160
      %s175 = sphi 0, %s161
      %s179 = sphi 0, %s179
      %s181 = sphi 0, %s179
      %s182 = sphi 0, %s181
      %s196 = sphi 0, %s182
      %s202 = sphi 0, %s204
      %s205 = sphi 0, %s202
      %s206 = sphi 0, %s205
      %s222 = sphi 0, %s206
    $region4: #{transformer_forward.74} parent=1 // loop_header_branch
      %16 = sbr.rel (%p14) target = $region8
    $region5: #{transformer_forward.74} parent=1 // loop_body
      %s18 = ssub.s32 %s13, 1
      %s19 = ssub.s32 %s13, 2
      %s26 = sadd.s32 1, %s21
      %p27 = scmp.ge.s32.totalorder %s26, 4
      %s28 = scalar_select %p27, 0, %s26
      %s29 = sadd.s32 1, %s20
      %s30 = scalar_select %p27, %s29, %s20
      %p31 = scmp.ge.s32.totalorder %s30, 1
      %s32 = scalar_select %p31, 0, %s30
      %s33 = ssub.s32 %s20, %s32
      %p34 = scmp.eq.s32.totalorder %s33, 0
      %s36 = sadd.s32 %s35, 1
      %s37 = scalar_select %p34, %s35, %s36
      %p40 = pneg %p34
      %p41 = scmp.eq.s32.totalorder %s13, 3
      %p42 = por %p40, %p41
      %p43 = scmp.ne.s32.totalorder %s35, %s38
      %p44 = scmp.eq.s32.totalorder %s13, 0
      %p45 = por %p43, %p44
      %p46 = scmp.ne.s32.totalorder %s35, %s38
      %p47 = scmp.eq.s32.totalorder %s18, 3
      %p48 = por %p46, %p47
      %p49 = scmp.ne.s32.totalorder %s38, %s39
      %p50 = scmp.eq.s32.totalorder %s18, 0
      %p51 = por %p49, %p50
      %p52 = scmp.ne.s32.totalorder %s38, %s39
      %p53 = scmp.eq.s32.totalorder %s19, 3
      %p54 = por %p52, %p53
      %p56 = scmp.ne.s32.totalorder %s39, %s55
      %p57 = scmp.eq.s32.totalorder %s19, 0
      %p58 = por %p56, %p57
      %s59 = ssub.s32 %s21, %s28
      %p60 = scmp.eq.s32.totalorder %s59, 0
      %s62 = sadd.s32 %s61, 1
      %s63 = scalar_select %p60, %s61, %s62
      %p66 = pneg %p60
      %p67 = scmp.eq.s32.totalorder %s13, 3
      %p68 = por %p66, %p67
      %p69 = scmp.ne.s32.totalorder %s61, %s64
      %p70 = scmp.eq.s32.totalorder %s13, 0
      %p71 = por %p69, %p70
      %p72 = scmp.ne.s32.totalorder %s61, %s64
      %p73 = scmp.eq.s32.totalorder %s18, 3
      %p74 = por %p72, %p73
      %p75 = scmp.ne.s32.totalorder %s64, %s65
      %p76 = scmp.eq.s32.totalorder %s18, 0
      %p77 = por %p75, %p76
      %p78 = scmp.ne.s32.totalorder %s64, %s65
      %p79 = scmp.eq.s32.totalorder %s19, 3
      %p80 = por %p78, %p79
      %p82 = scmp.ne.s32.totalorder %s65, %s81
      %p83 = scmp.eq.s32.totalorder %s19, 0
      %p84 = por %p82, %p83
      %s85 = ssub.s32 %s21, %s28
      %p86 = scmp.eq.s32.totalorder %s85, 0
      %s88 = sadd.s32 %s87, 1
      %s89 = scalar_select %p86, %s87, %s88
      %p92 = pneg %p86
      %p93 = scmp.eq.s32.totalorder %s13, 3
      %p94 = por %p92, %p93
      %p95 = scmp.ne.s32.totalorder %s87, %s90
      %p96 = scmp.eq.s32.totalorder %s13, 0
      %p97 = por %p95, %p96
      %p98 = scmp.ne.s32.totalorder %s87, %s90
      %p99 = scmp.eq.s32.totalorder %s18, 3
      %p100 = por %p98, %p99
      %p101 = scmp.ne.s32.totalorder %s90, %s91
      %p102 = scmp.eq.s32.totalorder %s18, 0
      %p103 = por %p101, %p102
      %p104 = scmp.ne.s32.totalorder %s90, %s91
      %p105 = scmp.eq.s32.totalorder %s19, 3
      %p106 = por %p104, %p105
      %p108 = scmp.ne.s32.totalorder %s91, %s107
      %p109 = scmp.eq.s32.totalorder %s19, 0
      %p110 = por %p108, %p109
      %s111 = ssub.s32 %s21, %s28
      %p112 = scmp.eq.s32.totalorder %s111, 0
      %s114 = sadd.s32 %s113, 1
      %s115 = scalar_select %p112, %s113, %s114
      %p118 = pneg %p112
      %p119 = scmp.eq.s32.totalorder %s13, 3
      %p120 = por %p118, %p119
      %p121 = scmp.ne.s32.totalorder %s113, %s116
      %p122 = scmp.eq.s32.totalorder %s13, 0
      %p123 = por %p121, %p122
      %p124 = scmp.ne.s32.totalorder %s113, %s116
      %p125 = scmp.eq.s32.totalorder %s18, 3
      %p126 = por %p124, %p125
      %p127 = scmp.ne.s32.totalorder %s116, %s117
      %p128 = scmp.eq.s32.totalorder %s18, 0
      %p129 = por %p127, %p128
      %p130 = scmp.ne.s32.totalorder %s116, %s117
      %p131 = scmp.eq.s32.totalorder %s19, 3
      %p132 = por %p130, %p131
      %p134 = scmp.ne.s32.totalorder %s117, %s133
      %p135 = scmp.eq.s32.totalorder %s19, 0
      %p136 = por %p134, %p135
      %s138 = sadd.s32 %s137, 1
      %p141 = scmp.eq.s32.totalorder %s13, 3
      %p142 = scmp.ne.s32.totalorder %s137, %s139
      %p143 = scmp.eq.s32.totalorder %s13, 0
      %p144 = por %p142, %p143
      %p145 = scmp.ne.s32.totalorder %s137, %s139
      %p146 = scmp.eq.s32.totalorder %s18, 3
      %p147 = por %p145, %p146
      %p148 = scmp.ne.s32.totalorder %s139, %s140
      %p149 = scmp.eq.s32.totalorder %s18, 0
      %p150 = por %p148, %p149
      %p151 = scmp.ne.s32.totalorder %s139, %s140
      %p152 = scmp.eq.s32.totalorder %s19, 3
      %p153 = por %p151, %p152
      %p155 = scmp.ne.s32.totalorder %s140, %s154
      %p156 = scmp.eq.s32.totalorder %s19, 0
      %p157 = por %p155, %p156
      %s159 = sadd.s32 %s158, 1
      %p162 = scmp.eq.s32.totalorder %s13, 3
      %p163 = scmp.ne.s32.totalorder %s158, %s160
      %p164 = scmp.eq.s32.totalorder %s13, 0
      %p165 = por %p163, %p164
      %p166 = scmp.ne.s32.totalorder %s158, %s160
      %p167 = scmp.eq.s32.totalorder %s18, 3
      %p168 = por %p166, %p167
      %p169 = scmp.ne.s32.totalorder %s160, %s161
      %p170 = scmp.eq.s32.totalorder %s18, 0
      %p171 = por %p169, %p170
      %p172 = scmp.ne.s32.totalorder %s160, %s161
      %p173 = scmp.eq.s32.totalorder %s19, 3
      %p174 = por %p172, %p173
      %p176 = scmp.ne.s32.totalorder %s161, %s175
      %p177 = scmp.eq.s32.totalorder %s19, 0
      %p178 = por %p176, %p177
      %s180 = sadd.s32 %s179, 1
      %p183 = scmp.eq.s32.totalorder %s13, 3
      %p184 = scmp.ne.s32.totalorder %s179, %s181
      %p185 = scmp.eq.s32.totalorder %s13, 0
      %p186 = por %p184, %p185
      %p187 = scmp.ne.s32.totalorder %s179, %s181
      %p188 = scmp.eq.s32.totalorder %s18, 3
      %p189 = por %p187, %p188
      %p190 = scmp.ne.s32.totalorder %s181, %s182
      %p191 = scmp.eq.s32.totalorder %s18, 0
      %p192 = por %p190, %p191
      %p193 = scmp.ne.s32.totalorder %s181, %s182
      %p194 = scmp.eq.s32.totalorder %s19, 3
      %p195 = por %p193, %p194
      %p197 = scmp.ne.s32.totalorder %s182, %s196
      %p198 = scmp.eq.s32.totalorder %s19, 0
      %p199 = por %p197, %p198
      %s200 = ssub.s32 %s20, %s32
      %p201 = scmp.eq.s32.totalorder %s200, 0
      %s203 = sadd.s32 %s202, 1
      %s204 = scalar_select %p201, %s202, %s203
      %p207 = pneg %p201
      %p208 = scmp.eq.s32.totalorder %s13, 3
      %p209 = por %p207, %p208
      %p210 = scmp.ne.s32.totalorder %s202, %s205
      %p211 = scmp.eq.s32.totalorder %s13, 0
      %p212 = por %p210, %p211
      %p213 = scmp.ne.s32.totalorder %s202, %s205
      %p214 = scmp.eq.s32.totalorder %s18, 3
      %p215 = por %p213, %p214
      %p216 = scmp.ne.s32.totalorder %s205, %s206
      %p217 = scmp.eq.s32.totalorder %s18, 0
      %p218 = por %p216, %p217
      %p219 = scmp.ne.s32.totalorder %s205, %s206
      %p220 = scmp.eq.s32.totalorder %s19, 3
      %p221 = por %p219, %p220
      %p223 = scmp.ne.s32.totalorder %s206, %s222
      %p224 = scmp.eq.s32.totalorder %s19, 0
      %p225 = por %p223, %p224
      %p226 = scmp.le.s32.totalorder 1, %s13
      %p227 = scmp.lt.s32.totalorder %s13, 5
      %p228 = pnand %p226, %p227
      %p229 = pneg %p228
      // Predicated region
      $region9: #{transformer_forward.74} parent=5 // pred_check
        _
      $region10: #{transformer_forward.74} parent=5 // pred_check_branch
        %231 = sbr.rel (%p228) target = $region12
      $region11: #{transformer_forward.74} parent=5 // pred_region
        %s232 = ssub.s32 %s13, 1
        // Predicated region
        $region13: #{transformer_forward.74} parent=11 // pred_check
          %p233 = pneg %p51
        $region14: #{transformer_forward.74} parent=11 // pred_check_branch
          %235 = sbr.rel (%p233) target = $region16
        $region15: #{transformer_forward.74} parent=11 // pred_region
          %s236 = smul.u32 2, %s22
          %p237 = scmp.lt.s32.totalorder %s236, 1
          %s238 = scalar_select %p237, %s236, 1
          %s239 = smul.addr %s238, 8
          %s240 = scalar_lea.vmem %s0, %s239
          %s241 = smul.u32 2, %s22
        $region16: #{transformer_forward.74} parent=11 // pred_fallthru
          _
        // Predicated region
        $region17: #{transformer_forward.74} parent=11 // pred_check
          %p242 = pneg %p150
        $region18: #{transformer_forward.74} parent=11 // pred_check_branch
          %244 = sbr.rel (%p242) target = $region20
        $region19: #{transformer_forward.74} parent=11 // pred_region
          _
        $region20: #{transformer_forward.74} parent=11 // pred_fallthru
          _
        // Predicated region
        $region21: #{transformer_forward.74} parent=11 // pred_check
          %p245 = pneg %p171
        $region22: #{transformer_forward.74} parent=11 // pred_check_branch
          %247 = sbr.rel (%p245) target = $region24
        $region23: #{transformer_forward.74} parent=11 // pred_region
          _
        $region24: #{transformer_forward.74} parent=11 // pred_fallthru
          _
        // Predicated region
        $region25: #{transformer_forward.74} parent=11 // pred_check
          %p248 = pneg %p192
        $region26: #{transformer_forward.74} parent=11 // pred_check_branch
          %250 = sbr.rel (%p248) target = $region28
        $region27: #{transformer_forward.74} parent=11 // pred_region
          _
        $region28: #{transformer_forward.74} parent=11 // pred_fallthru
          _
      $region12: #{transformer_forward.74} parent=5 // pred_fallthru
        _
      %p251 = scmp.lt.s32.totalorder %s13, 4
      // Predicated region
      $region29: #{transformer_forward.74} parent=5 // pred_check
        %p252 = pneg %p251
      $region30: #{transformer_forward.74} parent=5 // pred_check_branch
        %254 = sbr.rel (%p252) target = $region32
      $region31: #{transformer_forward.74} parent=5 // pred_region
        // Predicated region
        $region33: #{transformer_forward.74} parent=31 // pred_check
          %p255 = pneg %p71
        $region34: #{transformer_forward.74} parent=31 // pred_check_branch
          %257 = sbr.rel (%p255) target = $region36
        $region35: #{transformer_forward.74} parent=31 // pred_region
          %s258 = sand.u32 %s61, 1
          %s259 = sand.u32 %s61, 1
          %s260 = smul.addr %s259, 128
          %s261 = scalar_lea.vmem [#allocation3], %s260
          %s262 = smul.u32 4, %s21
          %s263 = smul.addr %s262, 8
          %s264 = scalar_lea.vmem %s1, %s263
          // Predicated region
          $region37: #{transformer_forward.74} parent=35 // pred_check
            _
          $region38: #{transformer_forward.74} parent=35 // pred_check_branch
            %266 = sbr.rel (0) target = $region40
          $region39: #{transformer_forward.74} parent=35 // pred_region
            // Predicated region
            $region41: #{transformer_forward.74} parent=39 // pred_check
              _
            $region42: #{transformer_forward.74} parent=39 // pred_check_branch
              %268 = sbr.rel (0) target = $region44
            $region43: #{transformer_forward.74} parent=39 // pred_region
              loop: start=0, step=1, limit=1
              $region45: #{transformer_forward.74} parent=43 // loop_pre_header
                _
              $region46: #{transformer_forward.74} parent=43 // loop_header
                %s270 = sphi 0, %s274
                %p271 = scmp.ge.s32.totalorder %s270, 1
                %s275 = sphi %s264, %s264
                %s276 = sphi %s261, %s261
              $region47: #{transformer_forward.74} parent=43 // loop_header_branch
                %273 = sbr.rel (%p271) target = $region51
              $region48: #{transformer_forward.74} parent=43 // loop_body
                %v277 = vld [vmem:[%s275] sm:$0xff]
                %278 = vst [vmem:[%s276] sm:$0xff] %v277
                %v279 = vld [vmem:[%s275 + $0x8] sm:$0xff]
                %280 = vst [vmem:[%s276 + $0x8] sm:$0xff] %v279
                %v281 = vld [vmem:[%s275 + $0x10] sm:$0xff]
                %282 = vst [vmem:[%s276 + $0x10] sm:$0xff] %v281
                %v283 = vld [vmem:[%s275 + $0x18] sm:$0xff]
                %284 = vst [vmem:[%s276 + $0x18] sm:$0xff] %v283
                %v285 = vld [vmem:[%s275 + $0x80] sm:$0xff]
                %286 = vst [vmem:[%s276 + $0x20] sm:$0xff] %v285
                %v287 = vld [vmem:[%s275 + $0x88] sm:$0xff]
                %288 = vst [vmem:[%s276 + $0x28] sm:$0xff] %v287
                %v289 = vld [vmem:[%s275 + $0x90] sm:$0xff]
                %290 = vst [vmem:[%s276 + $0x30] sm:$0xff] %v289
                %v291 = vld [vmem:[%s275 + $0x98] sm:$0xff]
                %292 = vst [vmem:[%s276 + $0x38] sm:$0xff] %v291
                %v293 = vld [vmem:[%s275 + $0x100] sm:$0xff]
                %294 = vst [vmem:[%s276 + $0x40] sm:$0xff] %v293
                %v295 = vld [vmem:[%s275 + $0x108] sm:$0xff]
                %296 = vst [vmem:[%s276 + $0x48] sm:$0xff] %v295
                %v297 = vld [vmem:[%s275 + $0x110] sm:$0xff]
                %298 = vst [vmem:[%s276 + $0x50] sm:$0xff] %v297
                %v299 = vld [vmem:[%s275 + $0x118] sm:$0xff]
                %300 = vst [vmem:[%s276 + $0x58] sm:$0xff] %v299
                %v301 = vld [vmem:[%s275 + $0x180] sm:$0xff]
                %302 = vst [vmem:[%s276 + $0x60] sm:$0xff] %v301
                %v303 = vld [vmem:[%s275 + $0x188] sm:$0xff]
                %304 = vst [vmem:[%s276 + $0x68] sm:$0xff] %v303
                %v305 = vld [vmem:[%s275 + $0x190] sm:$0xff]
                %306 = vst [vmem:[%s276 + $0x70] sm:$0xff] %v305
                %v307 = vld [vmem:[%s275 + $0x198] sm:$0xff]
                %308 = vst [vmem:[%s276 + $0x78] sm:$0xff] %v307
              $region49: #{transformer_forward.74} parent=43 // loop_footer
                %s274 = sadd.s32 1, %s270
              $region50: #{transformer_forward.74} parent=43 // loop_footer_branch
                %269 = sbr.rel target = $region46
              $region51: #{transformer_forward.74} parent=43 // loop_exit
                _
            $region44: #{transformer_forward.74} parent=39 // pred_fallthru
              _
            // Predicated region
            $region52: #{transformer_forward.74} parent=39 // pred_check
              _
            $region53: #{transformer_forward.74} parent=39 // pred_check_branch
              %310 = sbr.rel target = $region55
            $region54: #{transformer_forward.74} parent=39 // pred_region
              _
            $region55: #{transformer_forward.74} parent=39 // pred_fallthru
              _
          $region40: #{transformer_forward.74} parent=35 // pred_fallthru
            _
          %311 = vnop
        $region36: #{transformer_forward.74} parent=31 // pred_fallthru
          _
        // Predicated region
        $region56: #{transformer_forward.74} parent=31 // pred_check
          %p312 = pneg %p97
        $region57: #{transformer_forward.74} parent=31 // pred_check_branch
          %314 = sbr.rel (%p312) target = $region59
        $region58: #{transformer_forward.74} parent=31 // pred_region
          %s315 = smul.u32 4, %s21
          %p316 = scmp.lt.s32.totalorder %s315, 15
          %s317 = scalar_select %p316, %s315, 15
          %s318 = scalar_lea.vmem %s2, %s317
          %s319 = smul.u32 4, %s21
        $region59: #{transformer_forward.74} parent=31 // pred_fallthru
          _
        // Predicated region
        $region60: #{transformer_forward.74} parent=31 // pred_check
          %p320 = pneg %p123
        $region61: #{transformer_forward.74} parent=31 // pred_check_branch
          %322 = sbr.rel (%p320) target = $region63
        $region62: #{transformer_forward.74} parent=31 // pred_region
          %s323 = smul.u32 64, %s21
          %p324 = scmp.lt.s32.totalorder %s323, 255
          %s325 = scalar_select %p324, %s323, 255
          %s326 = smul.addr %s325, 8
          %s327 = scalar_lea.vmem %s3, %s326
          %s328 = smul.u32 64, %s21
        $region63: #{transformer_forward.74} parent=31 // pred_fallthru
          _
      $region32: #{transformer_forward.74} parent=5 // pred_fallthru
        _
      %p329 = scmp.le.s32.totalorder 1, %s13
      %p330 = scmp.lt.s32.totalorder %s13, 5
      %p331 = pnand %p329, %p330
      %p332 = pneg %p331
      // Predicated region
      $region64: #{transformer_forward.74} parent=5 // pred_check
        _
      $region65: #{transformer_forward.74} parent=5 // pred_check_branch
        %334 = sbr.rel (%p331) target = $region67
      $region66: #{transformer_forward.74} parent=5 // pred_region
        %s335 = ssub.s32 %s13, 1
        %s336 = sand.u32 %s64, 1
        %s337 = sand.u32 %s64, 1
        %s338 = smul.addr %s337, 128
        %s339 = scalar_lea.vmem [#allocation3], %s338
        // Predicated region
        $region68: #{transformer_forward.74} parent=66 // pred_check
          %p340 = pneg %p77
        $region69: #{transformer_forward.74} parent=66 // pred_check_branch
          %342 = sbr.rel (%p340) target = $region71
        $region70: #{transformer_forward.74} parent=66 // pred_region
          _
        $region71: #{transformer_forward.74} parent=66 // pred_fallthru
          _
        %s343 = smul.u32 2, %s22
        %p344 = scmp.lt.s32.totalorder %s343, 1
        %s345 = scalar_select %p344, %s343, 1
        %s346 = smul.addr %s345, 8
        %s347 = scalar_lea.vmem %s0, %s346
        %p348 = pneg %p51
        %p349 = pneg %p48
        %s350 = sand.u32 %s64, 1
        %s351 = sand.u32 %s64, 1
        %s352 = smul.addr %s351, 128
        %s353 = scalar_lea.vmem [#allocation3], %s352
        %p354 = pneg %p77
        %p355 = pneg %p74
        %s356 = smul.u32 4, %s23
        %p357 = scmp.lt.s32.totalorder %s356, 15
        %s358 = scalar_select %p357, %s356, 15
        %s359 = scalar_lea.vmem %s2, %s358
        %p360 = pneg %p103
        %p361 = pneg %p100
        %s362 = smul.u32 64, %s23
        %p363 = scmp.lt.s32.totalorder %s362, 255
        %s364 = scalar_select %p363, %s362, 255
        %s365 = smul.addr %s364, 8
        %s366 = scalar_lea.vmem %s3, %s365
        %p367 = pneg %p129
        %p368 = pneg %p126
        %p369 = pneg %p150
        %p370 = pneg %p147
        %p371 = pneg %p171
        %p372 = pneg %p168
        %p373 = pneg %p192
        %p374 = pneg %p189
        %p375 = pneg %p218
        %p376 = pneg %p215
        %s377 = smul.u32 2, %s22
        %p378 = scmp.lt.s32.totalorder %s377, 1
        %s379 = scalar_select %p378, %s377, 1
        %s380 = smul.addr %s379, 8
        %s381 = scalar_lea.vmem %s7, %s380
        %s382 = smul.u32 2, %s22
        %p383 = scmp.lt.s32.totalorder %s382, 1
        %s384 = scalar_select %p383, %s382, 1
        %s385 = smul.addr %s384, 8
        %s386 = scalar_lea.vmem %s0, %s385
        %s387 = smul.u32 2, %s22
        %s388 = smul.u32 4, %s23
        %s389 = smul.u32 4, %s23
        %p390 = scmp.lt.s32.totalorder %s389, 15
        %s391 = scalar_select %p390, %s389, 15
        %s392 = scalar_lea.vmem %s2, %s391
        %s393 = smul.u32 4, %s23
        %s394 = smul.u32 64, %s23
        %p395 = scmp.lt.s32.totalorder %s394, 255
        %s396 = scalar_select %p395, %s394, 255
        %s397 = smul.addr %s396, 8
        %s398 = scalar_lea.vmem %s3, %s397
        %s399 = smul.u32 64, %s23
        %s400 = smul.u32 2, %s22
        %p401 = scmp.lt.s32.totalorder %s400, 1
        %s402 = scalar_select %p401, %s400, 1
        %s403 = smul.addr %s402, 8
        %s404 = scalar_lea.vmem %s7, %s403
        %s405 = smul.u32 2, %s22
        %p406 = scmp.eq.s32.totalorder %s23, 0
        // Predicated region
        $region72: #{transformer_forward.74} parent=66 // pred_check
          %p407 = pneg %p406
        $region73: #{transformer_forward.74} parent=66 // pred_check_branch
          %409 = sbr.rel (%p407) target = $region75
        $region74: #{transformer_forward.74} parent=66 // pred_region
          %vm410 = vcmask 261120
          %411 = vst.msk [vmem:[#allocation2] sm:$0xff] %vm410, 0.0
          %vm412 = vcmask 257024
          %413 = vst.msk [vmem:[#allocation2 + $0x8] sm:$0xf] %vm412, 0.0
        $region75: #{transformer_forward.74} parent=66 // pred_fallthru
          _
        %v414 = vld [vmem:[%s386] sm:$0xff]
        %v415 = vld [vmem:[%s386 + $0x8] sm:$0xf]
        %v416 = vld [vmem:[%s339] sm:$0xff]
        %v417 = vld [vmem:[%s339 + $0x8] sm:$0xff]
        %v418 = vld [vmem:[%s339 + $0x10] sm:$0xff]
        %v419 = vld [vmem:[%s339 + $0x18] sm:$0xff]
        %v420 = vld [vmem:[%s339 + $0x20] sm:$0xff]
        %v421 = vld [vmem:[%s339 + $0x28] sm:$0xff]
        %v422 = vld [vmem:[%s339 + $0x30] sm:$0xff]
        %v423 = vld [vmem:[%s339 + $0x38] sm:$0xff]
        %v424 = vld [vmem:[%s339 + $0x40] sm:$0xff]
        %v425 = vld [vmem:[%s339 + $0x48] sm:$0xff]
        %v426 = vld [vmem:[%s339 + $0x50] sm:$0xff]
        %v427 = vld [vmem:[%s339 + $0x58] sm:$0xff]
        %v428 = vld [vmem:[%s339 + $0x60] sm:$0xff]
        %v429 = vld [vmem:[%s339 + $0x68] sm:$0xff]
        %v430 = vld [vmem:[%s339 + $0x70] sm:$0xff]
        %v431 = vld [vmem:[%s339 + $0x78] sm:$0xff]
        %v432 = vld [vmem:[%s392] sm:$0xf]
        %v434 = vlaneseq
        %v435 = vshrl.u32 %v434, 7
        %v436 = vsub.s32 0, %v435
        %v437 = vrot.slane %v432, %v436
        %v438 = vlaneseq
        %v439 = vshrl.u32 %v438, 7
        %v440 = vsub.s32 1, %v439
        %v441 = vrot.slane %v432, %v440
        %v442 = vlaneseq
        %v443 = vshrl.u32 %v442, 7
        %v444 = vsub.s32 2, %v443
        %v445 = vrot.slane %v432, %v444
        %v446 = vlaneseq
        %v447 = vshrl.u32 %v446, 7
        %v448 = vsub.s32 3, %v447
        %v449 = vrot.slane %v432, %v448
        %vm454 = vcmask 261120
        %v456 = vsel %vm454, %v414, 0
        %v459 = vsel %vm454, %v415, 0
        %461 = vmatprep.subr.mxu0 %v417
        %462 = vmatpush1.msra.mxu0 %v416
        %463 = vmatprep.subr.mxu0 %v421
        %464 = vmatpush1.msra.mxu0 %v420
        %465 = vmatprep.subr.mxu0 %v425
        %466 = vmatpush1.msra.mxu0 %v424
        %467 = vmatprep.subr.mxu0 %v429
        %468 = vmatpush1.msra.mxu0 %v428
        %469 = vmatprep.subr.mxu0 0.0
        %470 = vmatpush1.msra.mxu0 0.0
        %471 = vmatprep.subr.mxu0 0.0
        %472 = vmatpush1.msra.mxu0 0.0
        %473 = vmatprep.subr.mxu0 0.0
        %474 = vmatpush1.msra.mxu0 0.0
        %475 = vmatprep.subr.mxu0 0.0
        %476 = vmatpush1.msra.mxu0 0.0
        %477 = vmatprep.subr.mxu0 0.0
        %478 = vmatpush1.msra.mxu0 0.0
        %479 = vmatprep.subr.mxu0 0.0
        %480 = vmatpush1.msra.mxu0 0.0
        %481 = vmatprep.subr.mxu0 0.0
        %482 = vmatpush1.msra.mxu0 0.0
        %483 = vmatprep.subr.mxu0 0.0
        %484 = vmatpush1.msra.mxu0 0.0
        %485 = vmatprep.subr.mxu0 0.0
        %486 = vmatpush1.msra.mxu0 0.0
        %487 = vmatprep.subr.mxu0 0.0
        %488 = vmatpush1.msra.mxu0 0.0
        %489 = vmatprep.subr.mxu0 0.0
        %490 = vmatpush1.msra.mxu0 0.0
        %491 = vmatprep.subr.mxu0 0.0
        %492 = vmatpush1.msra.mxu0 0.0
        %493 = vmatprep.subr.mxu0 0.0
        %494 = vmatpush1.msra.mxu0 0.0
        %495 = vmatprep.subr.mxu0 0.0
        %496 = vmatpush1.msra.mxu0 0.0
        %497 = vmatprep.subr.mxu0 0.0
        %498 = vmatpush1.msra.mxu0 0.0
        %499 = vmatprep.subr.mxu0 0.0
        %500 = vmatpush1.msra.mxu0 0.0
        %501 = vmatprep.subr.mxu0 0.0
        %502 = vmatpush1.msra.mxu0 0.0
        %503 = vmatprep.subr.mxu0 0.0
        %504 = vmatpush1.msra.mxu0 0.0
        %505 = vmatprep.subr.mxu0 0.0
        %506 = vmatpush1.msra.mxu0 0.0
        %507 = vmatprep.subr.mxu0 0.0
        %508 = vmatpush1.msra.mxu0 0.0
        %509 = vmatprep.subr.mxu0 0.0
        %510 = vmatpush1.msra.mxu0 0.0
        %511 = vmatprep.subr.mxu0 0.0
        %512 = vmatpush1.msra.mxu0 0.0
        %513 = vmatprep.subr.mxu0 0.0
        %514 = vmatpush1.msra.mxu0 0.0
        %515 = vmatprep.subr.mxu0 0.0
        %516 = vmatpush1.msra.mxu0 0.0
        %517 = vmatprep.subr.mxu0 0.0
        %518 = vmatpush1.msra.mxu0 0.0
        %519 = vmatprep.subr.mxu0 0.0
        %520 = vmatpush1.msra.mxu0 0.0
        %521 = vmatprep.subr.mxu0 0.0
        %522 = vmatpush1.msra.mxu0 0.0
        %523 = vmatprep.subr.mxu0 0.0
        %524 = vmatpush1.msra.mxu0 0.0
        %525 = vmatprep.mubr.f32.mxu0 0.0
        %526 = vmatmul.mubr.f32.gmra.mrb[0].mxu0 %v456
        %v527 = vpop.f32.mrb[0].mxu0
        %v528 = vadd.f32 %v437, %v527
        %v529 = vpop.f32.mrb[0].mxu0
        %v530 = vadd.f32 %v441, %v529
        %531 = vmatprep.mubr.f32.mxu0 0.0
        %532 = vmatmul.mubr.f32.gmra.mrb[0].mxu0 %v459
        %v533 = vpop.f32.mrb[0].mxu0
        %v534 = vadd.f32 %v437, %v533
        %v535 = vpop.f32.mrb[0].mxu0
        %v536 = vadd.f32 %v441, %v535
        %537 = vdwg.mxu0
        %538 = vmatprep.subr.mxu0 %v419
        %539 = vmatpush1.msra.mxu0 %v418
        %540 = vmatprep.subr.mxu0 %v423
        %541 = vmatpush1.msra.mxu0 %v422
        %542 = vmatprep.subr.mxu0 %v427
        %543 = vmatpush1.msra.mxu0 %v426
        %544 = vmatprep.subr.mxu0 %v431
        %545 = vmatpush1.msra.mxu0 %v430
        %546 = vmatprep.subr.mxu0 0.0
        %547 = vmatpush1.msra.mxu0 0.0
        %548 = vmatprep.subr.mxu0 0.0
        %549 = vmatpush1.msra.mxu0 0.0
        %550 = vmatprep.subr.mxu0 0.0
        %551 = vmatpush1.msra.mxu0 0.0
        %552 = vmatprep.subr.mxu0 0.0
        %553 = vmatpush1.msra.mxu0 0.0
        %554 = vmatprep.subr.mxu0 0.0
        %555 = vmatpush1.msra.mxu0 0.0
        %556 = vmatprep.subr.mxu0 0.0
        %557 = vmatpush1.msra.mxu0 0.0
        %558 = vmatprep.subr.mxu0 0.0
        %559 = vmatpush1.msra.mxu0 0.0
        %560 = vmatprep.subr.mxu0 0.0
        %561 = vmatpush1.msra.mxu0 0.0
        %562 = vmatprep.subr.mxu0 0.0
        %563 = vmatpush1.msra.mxu0 0.0
        %564 = vmatprep.subr.mxu0 0.0
        %565 = vmatpush1.msra.mxu0 0.0
        %566 = vmatprep.subr.mxu0 0.0
        %567 = vmatpush1.msra.mxu0 0.0
        %568 = vmatprep.subr.mxu0 0.0
        %569 = vmatpush1.msra.mxu0 0.0
        %570 = vmatprep.subr.mxu0 0.0
        %571 = vmatpush1.msra.mxu0 0.0
        %572 = vmatprep.subr.mxu0 0.0
        %573 = vmatpush1.msra.mxu0 0.0
        %574 = vmatprep.subr.mxu0 0.0
        %575 = vmatpush1.msra.mxu0 0.0
        %576 = vmatprep.subr.mxu0 0.0
        %577 = vmatpush1.msra.mxu0 0.0
        %578 = vmatprep.subr.mxu0 0.0
        %579 = vmatpush1.msra.mxu0 0.0
        %580 = vmatprep.subr.mxu0 0.0
        %581 = vmatpush1.msra.mxu0 0.0
        %582 = vmatprep.subr.mxu0 0.0
        %583 = vmatpush1.msra.mxu0 0.0
        %584 = vmatprep.subr.mxu0 0.0
        %585 = vmatpush1.msra.mxu0 0.0
        %586 = vmatprep.subr.mxu0 0.0
        %587 = vmatpush1.msra.mxu0 0.0
        %588 = vmatprep.subr.mxu0 0.0
        %589 = vmatpush1.msra.mxu0 0.0
        %590 = vmatprep.subr.mxu0 0.0
        %591 = vmatpush1.msra.mxu0 0.0
        %592 = vmatprep.subr.mxu0 0.0
        %593 = vmatpush1.msra.mxu0 0.0
        %594 = vmatprep.subr.mxu0 0.0
        %595 = vmatpush1.msra.mxu0 0.0
        %596 = vmatprep.subr.mxu0 0.0
        %597 = vmatpush1.msra.mxu0 0.0
        %598 = vmatprep.subr.mxu0 0.0
        %599 = vmatpush1.msra.mxu0 0.0
        %600 = vmatprep.subr.mxu0 0.0
        %601 = vmatpush1.msra.mxu0 0.0
        %602 = vmatprep.mubr.f32.mxu0 0.0
        %603 = vmatmul.mubr.f32.gmra.mrb[0].mxu0 %v456
        %v604 = vpop.f32.mrb[0].mxu0
        %v605 = vadd.f32 %v445, %v604
        %v606 = vpop.f32.mrb[0].mxu0
        %v607 = vadd.f32 %v449, %v606
        %608 = vmatprep.mubr.f32.mxu0 0.0
        %609 = vmatmul.mubr.f32.gmra.mrb[0].mxu0 %v459
        %v610 = vpop.f32.mrb[0].mxu0
        %v611 = vadd.f32 %v445, %v610
        %v612 = vpop.f32.mrb[0].mxu0
        %v613 = vadd.f32 %v449, %v612
        %614 = vdwg.mxu0
        %v615 = vmax.f32 %v528, 0.0
        %v616 = vmax.f32 %v530, 0.0
        %v617 = vmax.f32 %v605, 0.0
        %v618 = vmax.f32 %v607, 0.0
        %v619 = vmax.f32 %v534, 0.0
        %v620 = vmax.f32 %v536, 0.0
        %v621 = vmax.f32 %v611, 0.0
        %v622 = vmax.f32 %v613, 0.0
        %v623 = vld [vmem:[#allocation2] sm:$0xff]
        %v624 = vld [vmem:[#allocation2 + $0x8] sm:$0xf]
        %v625 = vld [vmem:[%s398] sm:$0xff]
        %v626 = vld [vmem:[%s398 + $0x8] sm:$0xff]
        %v627 = vld [vmem:[%s398 + $0x10] sm:$0xff]
        %v628 = vld [vmem:[%s398 + $0x18] sm:$0xff]
        %v629 = vld [vmem:[%s398 + $0x20] sm:$0xff]
        %v630 = vld [vmem:[%s398 + $0x28] sm:$0xff]
        %v631 = vld [vmem:[%s398 + $0x30] sm:$0xff]
        %v632 = vld [vmem:[%s398 + $0x38] sm:$0xff]
        %v633 = vld [vmem:[%s398 + $0x40] sm:$0xff]
        %v634 = vld [vmem:[%s398 + $0x48] sm:$0xff]
        %v635 = vld [vmem:[%s398 + $0x50] sm:$0xff]
        %v636 = vld [vmem:[%s398 + $0x58] sm:$0xff]
        %v637 = vld [vmem:[%s398 + $0x60] sm:$0xff]
        %v638 = vld [vmem:[%s398 + $0x68] sm:$0xff]
        %v639 = vld [vmem:[%s398 + $0x70] sm:$0xff]
        %v640 = vld [vmem:[%s398 + $0x78] sm:$0xff]
        %v641 = vld [vmem:[%s398 + $0x80] sm:$0xff]
        %v642 = vld [vmem:[%s398 + $0x88] sm:$0xff]
        %v643 = vld [vmem:[%s398 + $0x90] sm:$0xff]
        %v644 = vld [vmem:[%s398 + $0x98] sm:$0xff]
        %v645 = vld [vmem:[%s398 + $0xa0] sm:$0xff]
        %v646 = vld [vmem:[%s398 + $0xa8] sm:$0xff]
        %v647 = vld [vmem:[%s398 + $0xb0] sm:$0xff]
        %v648 = vld [vmem:[%s398 + $0xb8] sm:$0xff]
        %v649 = vld [vmem:[%s398 + $0xc0] sm:$0xff]
        %v650 = vld [vmem:[%s398 + $0xc8] sm:$0xff]
        %v651 = vld [vmem:[%s398 + $0xd0] sm:$0xff]
        %v652 = vld [vmem:[%s398 + $0xd8] sm:$0xff]
        %v653 = vld [vmem:[%s398 + $0xe0] sm:$0xff]
        %v654 = vld [vmem:[%s398 + $0xe8] sm:$0xff]
        %v655 = vld [vmem:[%s398 + $0xf0] sm:$0xff]
        %v656 = vld [vmem:[%s398 + $0xf8] sm:$0xff]
        %v657 = vld [vmem:[%s398 + $0x100] sm:$0xff]
        %v658 = vld [vmem:[%s398 + $0x108] sm:$0xff]
        %v659 = vld [vmem:[%s398 + $0x110] sm:$0xff]
        %v660 = vld [vmem:[%s398 + $0x118] sm:$0xff]
        %v661 = vld [vmem:[%s398 + $0x120] sm:$0xff]
        %v662 = vld [vmem:[%s398 + $0x128] sm:$0xff]
        %v663 = vld [vmem:[%s398 + $0x130] sm:$0xff]
        %v664 = vld [vmem:[%s398 + $0x138] sm:$0xff]
        %v665 = vld [vmem:[%s398 + $0x140] sm:$0xff]
        %v666 = vld [vmem:[%s398 + $0x148] sm:$0xff]
        %v667 = vld [vmem:[%s398 + $0x150] sm:$0xff]
        %v668 = vld [vmem:[%s398 + $0x158] sm:$0xff]
        %v669 = vld [vmem:[%s398 + $0x160] sm:$0xff]
        %v670 = vld [vmem:[%s398 + $0x168] sm:$0xff]
        %v671 = vld [vmem:[%s398 + $0x170] sm:$0xff]
        %v672 = vld [vmem:[%s398 + $0x178] sm:$0xff]
        %v673 = vld [vmem:[%s398 + $0x180] sm:$0xff]
        %v674 = vld [vmem:[%s398 + $0x188] sm:$0xff]
        %v675 = vld [vmem:[%s398 + $0x190] sm:$0xff]
        %v676 = vld [vmem:[%s398 + $0x198] sm:$0xff]
        %v677 = vld [vmem:[%s398 + $0x1a0] sm:$0xff]
        %v678 = vld [vmem:[%s398 + $0x1a8] sm:$0xff]
        %v679 = vld [vmem:[%s398 + $0x1b0] sm:$0xff]
        %v680 = vld [vmem:[%s398 + $0x1b8] sm:$0xff]
        %v681 = vld [vmem:[%s398 + $0x1c0] sm:$0xff]
        %v682 = vld [vmem:[%s398 + $0x1c8] sm:$0xff]
        %v683 = vld [vmem:[%s398 + $0x1d0] sm:$0xff]
        %v684 = vld [vmem:[%s398 + $0x1d8] sm:$0xff]
        %v685 = vld [vmem:[%s398 + $0x1e0] sm:$0xff]
        %v686 = vld [vmem:[%s398 + $0x1e8] sm:$0xff]
        %v687 = vld [vmem:[%s398 + $0x1f0] sm:$0xff]
        %v688 = vld [vmem:[%s398 + $0x1f8] sm:$0xff]
        %689 = vmatprep.subr.mxu0 0.0
        %690 = vmatpush1.msra.mxu0 %v625
        %691 = vmatprep.subr.mxu0 0.0
        %692 = vmatpush1.msra.mxu0 %v626
        %693 = vmatprep.subr.mxu0 0.0
        %694 = vmatpush1.msra.mxu0 %v627
        %695 = vmatprep.subr.mxu0 0.0
        %696 = vmatpush1.msra.mxu0 %v628
        %697 = vmatprep.subr.mxu0 0.0
        %698 = vmatpush1.msra.mxu0 %v629
        %699 = vmatprep.subr.mxu0 0.0
        %700 = vmatpush1.msra.mxu0 %v630
        %701 = vmatprep.subr.mxu0 0.0
        %702 = vmatpush1.msra.mxu0 %v631
        %703 = vmatprep.subr.mxu0 0.0
        %704 = vmatpush1.msra.mxu0 %v632
        %705 = vmatprep.subr.mxu0 0.0
        %706 = vmatpush1.msra.mxu0 %v633
        %707 = vmatprep.subr.mxu0 0.0
        %708 = vmatpush1.msra.mxu0 %v634
        %709 = vmatprep.subr.mxu0 0.0
        %710 = vmatpush1.msra.mxu0 %v635
        %711 = vmatprep.subr.mxu0 0.0
        %712 = vmatpush1.msra.mxu0 %v636
        %713 = vmatprep.subr.mxu0 0.0
        %714 = vmatpush1.msra.mxu0 %v637
        %715 = vmatprep.subr.mxu0 0.0
        %716 = vmatpush1.msra.mxu0 %v638
        %717 = vmatprep.subr.mxu0 0.0
        %718 = vmatpush1.msra.mxu0 %v639
        %719 = vmatprep.subr.mxu0 0.0
        %720 = vmatpush1.msra.mxu0 %v640
        %721 = vmatprep.subr.mxu0 0.0
        %722 = vmatpush1.msra.mxu0 %v641
        %723 = vmatprep.subr.mxu0 0.0
        %724 = vmatpush1.msra.mxu0 %v642
        %725 = vmatprep.subr.mxu0 0.0
        %726 = vmatpush1.msra.mxu0 %v643
        %727 = vmatprep.subr.mxu0 0.0
        %728 = vmatpush1.msra.mxu0 %v644
        %729 = vmatprep.subr.mxu0 0.0
        %730 = vmatpush1.msra.mxu0 %v645
        %731 = vmatprep.subr.mxu0 0.0
        %732 = vmatpush1.msra.mxu0 %v646
        %733 = vmatprep.subr.mxu0 0.0
        %734 = vmatpush1.msra.mxu0 %v647
        %735 = vmatprep.subr.mxu0 0.0
        %736 = vmatpush1.msra.mxu0 %v648
        %737 = vmatprep.subr.mxu0 0.0
        %738 = vmatpush1.msra.mxu0 %v649
        %739 = vmatprep.subr.mxu0 0.0
        %740 = vmatpush1.msra.mxu0 %v650
        %741 = vmatprep.subr.mxu0 0.0
        %742 = vmatpush1.msra.mxu0 %v651
        %743 = vmatprep.subr.mxu0 0.0
        %744 = vmatpush1.msra.mxu0 %v652
        %745 = vmatprep.subr.mxu0 0.0
        %746 = vmatpush1.msra.mxu0 %v653
        %747 = vmatprep.subr.mxu0 0.0
        %748 = vmatpush1.msra.mxu0 %v654
        %749 = vmatprep.subr.mxu0 0.0
        %750 = vmatpush1.msra.mxu0 %v655
        %751 = vmatprep.subr.mxu0 0.0
        %752 = vmatpush1.msra.mxu0 %v656
        %753 = vmatprep.mubr.f32.mxu0 %v616
        %754 = vmatmul.mubr.f32.gmra.mrb[0].mxu0 %v615
        %v755 = vpop.f32.mrb[0].mxu0
        %v756 = vadd.f32 0.0, %v755
        %v757 = vpop.f32.mrb[0].mxu0
        %758 = vmatprep.mubr.f32.mxu0 %v620
        %759 = vmatmul.mubr.f32.gmra.mrb[0].mxu0 %v619
        %v760 = vpop.f32.mrb[0].mxu0
        %v761 = vadd.f32 0.0, %v760
        %v762 = vpop.f32.mrb[0].mxu0
        %763 = vdwg.mxu0
        %764 = vmatprep.subr.mxu0 0.0
        %765 = vmatpush1.msra.mxu0 %v657
        %766 = vmatprep.subr.mxu0 0.0
        %767 = vmatpush1.msra.mxu0 %v658
        %768 = vmatprep.subr.mxu0 0.0
        %769 = vmatpush1.msra.mxu0 %v659
        %770 = vmatprep.subr.mxu0 0.0
        %771 = vmatpush1.msra.mxu0 %v660
        %772 = vmatprep.subr.mxu0 0.0
        %773 = vmatpush1.msra.mxu0 %v661
        %774 = vmatprep.subr.mxu0 0.0
        %775 = vmatpush1.msra.mxu0 %v662
        %776 = vmatprep.subr.mxu0 0.0
        %777 = vmatpush1.msra.mxu0 %v663
        %778 = vmatprep.subr.mxu0 0.0
        %779 = vmatpush1.msra.mxu0 %v664
        %780 = vmatprep.subr.mxu0 0.0
        %781 = vmatpush1.msra.mxu0 %v665
        %782 = vmatprep.subr.mxu0 0.0
        %783 = vmatpush1.msra.mxu0 %v666
        %784 = vmatprep.subr.mxu0 0.0
        %785 = vmatpush1.msra.mxu0 %v667
        %786 = vmatprep.subr.mxu0 0.0
        %787 = vmatpush1.msra.mxu0 %v668
        %788 = vmatprep.subr.mxu0 0.0
        %789 = vmatpush1.msra.mxu0 %v669
        %790 = vmatprep.subr.mxu0 0.0
        %791 = vmatpush1.msra.mxu0 %v670
        %792 = vmatprep.subr.mxu0 0.0
        %793 = vmatpush1.msra.mxu0 %v671
        %794 = vmatprep.subr.mxu0 0.0
        %795 = vmatpush1.msra.mxu0 %v672
        %796 = vmatprep.subr.mxu0 0.0
        %797 = vmatpush1.msra.mxu0 %v673
        %798 = vmatprep.subr.mxu0 0.0
        %799 = vmatpush1.msra.mxu0 %v674
        %800 = vmatprep.subr.mxu0 0.0
        %801 = vmatpush1.msra.mxu0 %v675
        %802 = vmatprep.subr.mxu0 0.0
        %803 = vmatpush1.msra.mxu0 %v676
        %804 = vmatprep.subr.mxu0 0.0
        %805 = vmatpush1.msra.mxu0 %v677
        %806 = vmatprep.subr.mxu0 0.0
        %807 = vmatpush1.msra.mxu0 %v678
        %808 = vmatprep.subr.mxu0 0.0
        %809 = vmatpush1.msra.mxu0 %v679
        %810 = vmatprep.subr.mxu0 0.0
        %811 = vmatpush1.msra.mxu0 %v680
        %812 = vmatprep.subr.mxu0 0.0
        %813 = vmatpush1.msra.mxu0 %v681
        %814 = vmatprep.subr.mxu0 0.0
        %815 = vmatpush1.msra.mxu0 %v682
        %816 = vmatprep.subr.mxu0 0.0
        %817 = vmatpush1.msra.mxu0 %v683
        %818 = vmatprep.subr.mxu0 0.0
        %819 = vmatpush1.msra.mxu0 %v684
        %820 = vmatprep.subr.mxu0 0.0
        %821 = vmatpush1.msra.mxu0 %v685
        %822 = vmatprep.subr.mxu0 0.0
        %823 = vmatpush1.msra.mxu0 %v686
        %824 = vmatprep.subr.mxu0 0.0
        %825 = vmatpush1.msra.mxu0 %v687
        %826 = vmatprep.subr.mxu0 0.0
        %827 = vmatpush1.msra.mxu0 %v688
        %828 = vmatprep.mubr.f32.mxu0 %v618
        %829 = vmatmul.mubr.f32.gmra.mrb[0].mxu0 %v617
        %v830 = vpop.f32.mrb[0].mxu0
        %v831 = vadd.f32 %v756, %v830
        %v832 = vpop.f32.mrb[0].mxu0
        %833 = vmatprep.mubr.f32.mxu0 %v622
        %834 = vmatmul.mubr.f32.gmra.mrb[0].mxu0 %v621
        %v835 = vpop.f32.mrb[0].mxu0
        %v836 = vadd.f32 %v761, %v835
        %v837 = vpop.f32.mrb[0].mxu0
        %838 = vdwg.mxu0
        %v839 = vadd.f32 %v623, %v831
        %v840 = vadd.f32 %v624, %v836
        %841 = vst.msk [vmem:[#allocation2] sm:$0xff] %vm454, %v839
        %vm842 = vcmask 257024
        %843 = vst.msk [vmem:[#allocation2 + $0x8] sm:$0xf] %vm842, %v840
        %p844 = scmp.eq.s32.totalorder %s23, 3
        // Predicated region
        $region76: #{transformer_forward.74} parent=66 // pred_check
          %p845 = pneg %p844
        $region77: #{transformer_forward.74} parent=66 // pred_check_branch
          %847 = sbr.rel (%p845) target = $region79
        $region78: #{transformer_forward.74} parent=66 // pred_region
          %v848 = vld [vmem:[#allocation2] sm:$0xff]
          %v849 = vld [vmem:[#allocation2 + $0x8] sm:$0xf]
          %v850 = vld [vmem:[%s4] sm:$0x1]
          %v852 = vlaneseq
          %v853 = vshrl.u32 %v852, 7
          %v854 = vsub.s32 0, %v853
          %v855 = vrot.slane %v850, %v854
          %v857 = vadd.f32 %v848, %v855
          %v858 = vadd.f32 %v849, %v855
          %v859 = vadd.f32 %v857, %v414
          %v860 = vadd.f32 %v858, %v415
          %v861 = vsel %vm454, %v859, 0.0
          %862 = vadd.xlane.f32.xlu0 %v861
          %v863 = vpop.xlane.xlu0 %862
          %v864 = vsel %vm842, %v860, 0.0
          %865 = vadd.xlane.f32.xlu0 %v864
          %v866 = vpop.xlane.xlu0 %865
          %v867 = vrcp.pop 32.0
          %v868 = vmul.f32 %v863, %v867
          %v869 = vmul.f32 %v866, %v867
          %v870 = vsub.f32 %v859, %v868
          %v871 = vsub.f32 %v860, %v869
          %v872 = vmul.f32 %v870, %v870
          %v873 = vmul.f32 %v871, %v871
          %v874 = vsel %vm454, %v872, 0.0
          %875 = vadd.xlane.f32.xlu0 %v874
          %v876 = vpop.xlane.xlu0 %875
          %v877 = vsel %vm842, %v873, 0.0
          %878 = vadd.xlane.f32.xlu0 %v877
          %v879 = vpop.xlane.xlu0 %878
          %v880 = vmul.f32 %v876, %v867
          %v881 = vmul.f32 %v879, %v867
          %v882 = vadd.f32 %v880, 1e-05
          %v883 = vadd.f32 %v881, 1e-05
          %v884 = vrsqrt.pop %v882
          %v885 = vrsqrt.pop %v883
          %v886 = vmul.f32 %v870, %v884
          %v887 = vmul.f32 %v871, %v885
          %v888 = vld [vmem:[%s5] sm:$0x1]
          %v890 = vlaneseq
          %v891 = vshrl.u32 %v890, 7
          %v892 = vsub.s32 0, %v891
          %v893 = vrot.slane %v888, %v892
          %v895 = vmul.f32 %v886, %v893
          %v896 = vmul.f32 %v887, %v893
          %v897 = vld [vmem:[%s6] sm:$0x1]
          %v899 = vlaneseq
          %v900 = vshrl.u32 %v899, 7
          %v901 = vsub.s32 0, %v900
          %v902 = vrot.slane %v897, %v901
          %v904 = vadd.f32 %v895, %v902
          %v905 = vadd.f32 %v896, %v902
          %906 = vst.msk [vmem:[%s404] sm:$0xff] %vm454, %v904
          %907 = vst.msk [vmem:[%s404 + $0x8] sm:$0xf] %vm842, %v905
        $region79: #{transformer_forward.74} parent=66 // pred_fallthru
          _
        %s908 = smul.u32 2, %s22
        %p909 = scmp.lt.s32.totalorder %s908, 1
        %s910 = scalar_select %p909, %s908, 1
        %s911 = smul.addr %s910, 8
        %s912 = scalar_lea.vmem %s7, %s911
        // Predicated region
        $region80: #{transformer_forward.74} parent=66 // pred_check
          %p913 = pneg %p215
        $region81: #{transformer_forward.74} parent=66 // pred_check_branch
          %915 = sbr.rel (%p913) target = $region83
        $region82: #{transformer_forward.74} parent=66 // pred_region
          %s916 = smul.u32 2, %s22
        $region83: #{transformer_forward.74} parent=66 // pred_fallthru
          _
        // Predicated region
        $region84: #{transformer_forward.74} parent=66 // pred_check
          %p917 = pneg %p215
        $region85: #{transformer_forward.74} parent=66 // pred_check_branch
          %919 = sbr.rel (%p917) target = $region87
        $region86: #{transformer_forward.74} parent=66 // pred_region
          %s920 = smul.u32 2, %s22
          %p921 = scmp.lt.s32.totalorder %s920, 1
          %s922 = scalar_select %p921, %s920, 1
          %s923 = smul.addr %s922, 8
          %s924 = scalar_lea.vmem %s7, %s923
        $region87: #{transformer_forward.74} parent=66 // pred_fallthru
          _
      $region67: #{transformer_forward.74} parent=5 // pred_fallthru
        _
      %p925 = scmp.le.s32.totalorder 2, %s13
      // Predicated region
      $region88: #{transformer_forward.74} parent=5 // pred_check
        %p926 = pneg %p925
      $region89: #{transformer_forward.74} parent=5 // pred_check_branch
        %928 = sbr.rel (%p926) target = $region91
      $region90: #{transformer_forward.74} parent=5 // pred_region
        %s929 = ssub.s32 %s13, 2
      $region91: #{transformer_forward.74} parent=5 // pred_fallthru
        _
    $region6: #{transformer_forward.74} parent=1 // loop_footer
      %s17 = sadd.s32 1, %s13
    $region7: #{transformer_forward.74} parent=1 // loop_footer_branch
      %12 = sbr.rel target = $region3
    $region8: #{transformer_forward.74} parent=1 // loop_exit
      _

// kernel: transformer_forward.72
$region0: #{transformer_forward.72}
  #allocation0 [shape = 'u32[]', space=smem, size = 0x4, offset = 0x4, fixed_abs, tag = 'smem constant byte address 0x4 - core index']
  #allocation1 [shape = 'u32[144,128]{1,0:T(1,128)}', space=vmem, size = 0x12000, scoped, tag = 'internal scratch']
  %s0 = inlined_call_operand.vmem [shape: f32[2,6,32], index: 0, kind: input, shape index: {}]
  %s1 = inlined_call_operand.vmem [shape: f32[2,8,64], index: 1, kind: input, shape index: {}]
  %s2 = inlined_call_operand.vmem [shape: f32[2,6,32], index: 2, kind: output, shape index: {}]
  %s3 = sld [smem:[#allocation0]]
  $region41: #{transformer_forward.72} parent=0
    _
  %s5 = ssub.s32 1, %s3
  %s6 = scalar_select 0, %s5, %s3
  loop: start=0, step=1, limit=4
  $region2: #{transformer_forward.72} parent=0 // loop_pre_header
    _
  $region3: #{transformer_forward.72} parent=0 // loop_header
    %s8 = sphi 0, %s12
    %p9 = scmp.ge.s32.totalorder %s8, 4
    %s18 = sphi 0, %s20
    %s21 = sphi 0, %s18
    %s22 = sphi 0, %s21
    %s38 = sphi 0, %s22
    %s44 = sphi 0, %s46
    %s47 = sphi 0, %s44
    %s48 = sphi 0, %s47
    %s64 = sphi 0, %s48
    %s70 = sphi 0, %s72
    %s73 = sphi 0, %s70
    %s74 = sphi 0, %s73
    %s90 = sphi 0, %s74
  $region4: #{transformer_forward.72} parent=0 // loop_header_branch
    %11 = sbr.rel (%p9) target = $region8
  $region5: #{transformer_forward.72} parent=0 // loop_body
    %s13 = ssub.s32 %s8, 1
    %s14 = ssub.s32 %s8, 2
    %s15 = sadd.s32 %s8, 1
    %s16 = ssub.s32 %s8, %s15
    %p17 = scmp.eq.s32.totalorder %s16, 0
    %s19 = sadd.s32 %s18, 1
    %s20 = scalar_select %p17, %s18, %s19
    %p23 = pneg %p17
    %p24 = scmp.eq.s32.totalorder %s8, 1
    %p25 = por %p23, %p24
    %p26 = scmp.ne.s32.totalorder %s18, %s21
    %p27 = scmp.eq.s32.totalorder %s8, 0
    %p28 = por %p26, %p27
    %p29 = scmp.ne.s32.totalorder %s18, %s21
    %p30 = scmp.eq.s32.totalorder %s13, 1
    %p31 = por %p29, %p30
    %p32 = scmp.ne.s32.totalorder %s21, %s22
    %p33 = scmp.eq.s32.totalorder %s13, 0
    %p34 = por %p32, %p33
    %p35 = scmp.ne.s32.totalorder %s21, %s22
    %p36 = scmp.eq.s32.totalorder %s14, 1
    %p37 = por %p35, %p36
    %p39 = scmp.ne.s32.totalorder %s22, %s38
    %p40 = scmp.eq.s32.totalorder %s14, 0
    %p41 = por %p39, %p40
    %s42 = ssub.s32 %s8, %s15
    %p43 = scmp.eq.s32.totalorder %s42, 0
    %s45 = sadd.s32 %s44, 1
    %s46 = scalar_select %p43, %s44, %s45
    %p49 = pneg %p43
    %p50 = scmp.eq.s32.totalorder %s8, 1
    %p51 = por %p49, %p50
    %p52 = scmp.ne.s32.totalorder %s44, %s47
    %p53 = scmp.eq.s32.totalorder %s8, 0
    %p54 = por %p52, %p53
    %p55 = scmp.ne.s32.totalorder %s44, %s47
    %p56 = scmp.eq.s32.totalorder %s13, 1
    %p57 = por %p55, %p56
    %p58 = scmp.ne.s32.totalorder %s47, %s48
    %p59 = scmp.eq.s32.totalorder %s13, 0
    %p60 = por %p58, %p59
    %p61 = scmp.ne.s32.totalorder %s47, %s48
    %p62 = scmp.eq.s32.totalorder %s14, 1
    %p63 = por %p61, %p62
    %p65 = scmp.ne.s32.totalorder %s48, %s64
    %p66 = scmp.eq.s32.totalorder %s14, 0
    %p67 = por %p65, %p66
    %s68 = ssub.s32 %s8, %s15
    %p69 = scmp.eq.s32.totalorder %s68, 0
    %s71 = sadd.s32 %s70, 1
    %s72 = scalar_select %p69, %s70, %s71
    %p75 = pneg %p69
    %p76 = scmp.eq.s32.totalorder %s8, 1
    %p77 = por %p75, %p76
    %p78 = scmp.ne.s32.totalorder %s70, %s73
    %p79 = scmp.eq.s32.totalorder %s8, 0
    %p80 = por %p78, %p79
    %p81 = scmp.ne.s32.totalorder %s70, %s73
    %p82 = scmp.eq.s32.totalorder %s13, 1
    %p83 = por %p81, %p82
    %p84 = scmp.ne.s32.totalorder %s73, %s74
    %p85 = scmp.eq.s32.totalorder %s13, 0
    %p86 = por %p84, %p85
    %p87 = scmp.ne.s32.totalorder %s73, %s74
    %p88 = scmp.eq.s32.totalorder %s14, 1
    %p89 = por %p87, %p88
    %p91 = scmp.ne.s32.totalorder %s74, %s90
    %p92 = scmp.eq.s32.totalorder %s14, 0
    %p93 = por %p91, %p92
    %p94 = scmp.le.s32.totalorder 1, %s8
    %p95 = scmp.lt.s32.totalorder %s8, 3
    %p96 = pnand %p94, %p95
    %p97 = pneg %p96
    // Predicated region
    $region9: #{transformer_forward.72} parent=5 // pred_check
      _
    $region10: #{transformer_forward.72} parent=5 // pred_check_branch
      %99 = sbr.rel (%p96) target = $region12
    $region11: #{transformer_forward.72} parent=5 // pred_region
      %s100 = ssub.s32 %s8, 1
    $region12: #{transformer_forward.72} parent=5 // pred_fallthru
      _
    %p101 = scmp.lt.s32.totalorder %s8, 2
    // Predicated region
    $region13: #{transformer_forward.72} parent=5 // pred_check
      %p102 = pneg %p101
    $region14: #{transformer_forward.72} parent=5 // pred_check_branch
      %104 = sbr.rel (%p102) target = $region16
    $region15: #{transformer_forward.72} parent=5 // pred_region
      // Predicated region
      $region17: #{transformer_forward.72} parent=15 // pred_check
        %p105 = pneg %p28
      $region18: #{transformer_forward.72} parent=15 // pred_check_branch
        %107 = sbr.rel (%p105) target = $region20
      $region19: #{transformer_forward.72} parent=15 // pred_region
        %p108 = scmp.lt.s32.totalorder %s8, 1
        %s109 = scalar_select %p108, %s8, 1
        %s110 = smul.addr %s109, 8
        %s111 = scalar_lea.vmem %s0, %s110
      $region20: #{transformer_forward.72} parent=15 // pred_fallthru
        _
      // Predicated region
      $region21: #{transformer_forward.72} parent=15 // pred_check
        %p112 = pneg %p54
      $region22: #{transformer_forward.72} parent=15 // pred_check_branch
        %114 = sbr.rel (%p112) target = $region24
      $region23: #{transformer_forward.72} parent=15 // pred_region
        %p115 = scmp.lt.s32.totalorder %s8, 1
        %s116 = scalar_select %p115, %s8, 1
        %s117 = smul.addr %s116, 8
        %s118 = scalar_lea.vmem %s1, %s117
      $region24: #{transformer_forward.72} parent=15 // pred_fallthru
        _
    $region16: #{transformer_forward.72} parent=5 // pred_fallthru
      _
    %p119 = scmp.le.s32.totalorder 1, %s8
    %p120 = scmp.lt.s32.totalorder %s8, 3
    %p121 = pnand %p119, %p120
    %p122 = pneg %p121
    // Predicated region
    $region25: #{transformer_forward.72} parent=5 // pred_check
      _
    $region26: #{transformer_forward.72} parent=5 // pred_check_branch
      %124 = sbr.rel (%p121) target = $region28
    $region27: #{transformer_forward.72} parent=5 // pred_region
      %s125 = ssub.s32 %s8, 1
      %p126 = scmp.lt.s32.totalorder %s13, 1
      %s127 = scalar_select %p126, %s13, 1
      %s128 = smul.addr %s127, 8
      %s129 = scalar_lea.vmem %s0, %s128
      %p130 = pneg %p34
      %p131 = pneg %p31
      %p132 = scmp.lt.s32.totalorder %s13, 1
      %s133 = scalar_select %p132, %s13, 1
      %s134 = smul.addr %s133, 8
      %s135 = scalar_lea.vmem %s1, %s134
      %p136 = pneg %p60
      %p137 = pneg %p57
      %p138 = pneg %p86
      %p139 = pneg %p83
      %p140 = scmp.lt.s32.totalorder %s13, 1
      %s141 = scalar_select %p140, %s13, 1
      %s142 = smul.addr %s141, 8
      %s143 = scalar_lea.vmem %s2, %s142
      %p144 = scmp.lt.s32.totalorder %s13, 1
      %s145 = scalar_select %p144, %s13, 1
      %s146 = smul.addr %s145, 8
      %s147 = scalar_lea.vmem %s0, %s146
      %p148 = scmp.lt.s32.totalorder %s13, 1
      %s149 = scalar_select %p148, %s13, 1
      %s150 = smul.addr %s149, 8
      %s151 = scalar_lea.vmem %s1, %s150
      %p152 = scmp.lt.s32.totalorder %s13, 1
      %s153 = scalar_select %p152, %s13, 1
      %s154 = smul.addr %s153, 8
      %s155 = scalar_lea.vmem %s2, %s154
      %v156 = vld [vmem:[%s147] sm:$0x3f]
      %v157 = vld [vmem:[%s151] sm:$0xff]
      %v158 = vmul.f32 %v156, 0.5
      %vm159 = vcmask 31744
      %v161 = vsel %vm159, %v158, 0
      %v164 = vsel %vm159, %v157, 0
      %166 = vmatprep.subr.mxu0 0.0
      %167 = vmatpush1.xpose.msra.mxu0 %v164
      %168 = vmatprep.subr.mxu0 0.0
      %169 = vmatpush1.xpose.msra.mxu0 0.0
      %170 = vmatprep.subr.mxu0 0.0
      %171 = vmatpush1.xpose.msra.mxu0 0.0
      %172 = vmatprep.subr.mxu0 0.0
      %173 = vmatpush1.xpose.msra.mxu0 0.0
      %174 = vmatprep.subr.mxu0 0.0
      %175 = vmatpush1.xpose.msra.mxu0 0.0
      %176 = vmatprep.subr.mxu0 0.0
      %177 = vmatpush1.xpose.msra.mxu0 0.0
      %178 = vmatprep.subr.mxu0 0.0
      %179 = vmatpush1.xpose.msra.mxu0 0.0
      %180 = vmatprep.subr.mxu0 0.0
      %181 = vmatpush1.xpose.msra.mxu0 0.0
      %182 = vmatprep.subr.mxu0 0.0
      %183 = vmatpush1.xpose.msra.mxu0 0.0
      %184 = vmatprep.subr.mxu0 0.0
      %185 = vmatpush1.xpose.msra.mxu0 0.0
      %186 = vmatprep.subr.mxu0 0.0
      %187 = vmatpush1.xpose.msra.mxu0 0.0
      %188 = vmatprep.subr.mxu0 0.0
      %189 = vmatpush1.xpose.msra.mxu0 0.0
      %190 = vmatprep.subr.mxu0 0.0
      %191 = vmatpush1.xpose.msra.mxu0 0.0
      %192 = vmatprep.subr.mxu0 0.0
      %193 = vmatpush1.xpose.msra.mxu0 0.0
      %194 = vmatprep.subr.mxu0 0.0
      %195 = vmatpush1.xpose.msra.mxu0 0.0
      %196 = vmatprep.subr.mxu0 0.0
      %197 = vmatpush1.xpose.msra.mxu0 0.0
      %198 = vmatprep.subr.mxu0 0.0
      %199 = vmatpush1.xpose.msra.mxu0 0.0
      %200 = vmatprep.subr.mxu0 0.0
      %201 = vmatpush1.xpose.msra.mxu0 0.0
      %202 = vmatprep.subr.mxu0 0.0
      %203 = vmatpush1.xpose.msra.mxu0 0.0
      %204 = vmatprep.subr.mxu0 0.0
      %205 = vmatpush1.xpose.msra.mxu0 0.0
      %206 = vmatprep.subr.mxu0 0.0
      %207 = vmatpush1.xpose.msra.mxu0 0.0
      %208 = vmatprep.subr.mxu0 0.0
      %209 = vmatpush1.xpose.msra.mxu0 0.0
      %210 = vmatprep.subr.mxu0 0.0
      %211 = vmatpush1.xpose.msra.mxu0 0.0
      %212 = vmatprep.subr.mxu0 0.0
      %213 = vmatpush1.xpose.msra.mxu0 0.0
      %214 = vmatprep.subr.mxu0 0.0
      %215 = vmatpush1.xpose.msra.mxu0 0.0
      %216 = vmatprep.subr.mxu0 0.0
      %217 = vmatpush1.xpose.msra.mxu0 0.0
      %218 = vmatprep.subr.mxu0 0.0
      %219 = vmatpush1.xpose.msra.mxu0 0.0
      %220 = vmatprep.subr.mxu0 0.0
      %221 = vmatpush1.xpose.msra.mxu0 0.0
      %222 = vmatprep.subr.mxu0 0.0
      %223 = vmatpush1.xpose.msra.mxu0 0.0
      %224 = vmatprep.subr.mxu0 0.0
      %225 = vmatpush1.xpose.msra.mxu0 0.0
      %226 = vmatprep.subr.mxu0 0.0
      %227 = vmatpush1.xpose.msra.mxu0 0.0
      %228 = vmatprep.subr.mxu0 0.0
      %229 = vmatpush1.xpose.msra.mxu0 0.0
      %230 = vmatprep.mubr.f32.mxu0 0.0
      %231 = vmatmul.mubr.f32.gmra.mrb[0].mxu0 %v161
      %v232 = vpop.f32.mrb[0].mxu0
      %v233 = vadd.f32 0.0, %v232
      %v234 = vpop.f32.mrb[0].mxu0
      %235 = vdwg.mxu0
      %vm236 = vcmask 62464
      %v237 = vsel %vm236, %v233, -inf
      %238 = vmax.xlane.f32.xlu0 %v237
      %v239 = vpop.xlane.xlu0 %238
      %v240 = vsub.f32 %v233, %v239
      %v241 = vmul.f32 %v240, 1.442695
      %v242 = vpow.pop %v241
      %v243 = vsel %vm236, %v242, 0.0
      %244 = vadd.xlane.f32.xlu0 %v243
      %v245 = vpop.xlane.xlu0 %244
      %v246 = vrcp.pop %v245
      %v247 = vmul.f32 %v242, %v246
      %248 = vrot.lane.b32.xlu0 %v157, 96
      %v249 = vpop.permute.xlu0 %248
      %vm251 = vcmask 64512
      %v253 = vsel %vm251, %v247, 0
      %255 = vmatprep.subr.mxu0 0.0
      %256 = vmatpush1.msra.mxu0 %v249
      %257 = vmatprep.subr.mxu0 0.0
      %258 = vmatpush1.msra.mxu0 0.0
      %259 = vmatprep.subr.mxu0 0.0
      %260 = vmatpush1.msra.mxu0 0.0
      %261 = vmatprep.subr.mxu0 0.0
      %262 = vmatpush1.msra.mxu0 0.0
      %263 = vmatprep.subr.mxu0 0.0
      %264 = vmatpush1.msra.mxu0 0.0
      %265 = vmatprep.subr.mxu0 0.0
      %266 = vmatpush1.msra.mxu0 0.0
      %267 = vmatprep.subr.mxu0 0.0
      %268 = vmatpush1.msra.mxu0 0.0
      %269 = vmatprep.subr.mxu0 0.0
      %270 = vmatpush1.msra.mxu0 0.0
      %271 = vmatprep.subr.mxu0 0.0
      %272 = vmatpush1.msra.mxu0 0.0
      %273 = vmatprep.subr.mxu0 0.0
      %274 = vmatpush1.msra.mxu0 0.0
      %275 = vmatprep.subr.mxu0 0.0
      %276 = vmatpush1.msra.mxu0 0.0
      %277 = vmatprep.subr.mxu0 0.0
      %278 = vmatpush1.msra.mxu0 0.0
      %279 = vmatprep.subr.mxu0 0.0
      %280 = vmatpush1.msra.mxu0 0.0
      %281 = vmatprep.subr.mxu0 0.0
      %282 = vmatpush1.msra.mxu0 0.0
      %283 = vmatprep.subr.mxu0 0.0
      %284 = vmatpush1.msra.mxu0 0.0
      %285 = vmatprep.subr.mxu0 0.0
      %286 = vmatpush1.msra.mxu0 0.0
      %287 = vmatprep.subr.mxu0 0.0
      %288 = vmatpush1.msra.mxu0 0.0
      %289 = vmatprep.subr.mxu0 0.0
      %290 = vmatpush1.msra.mxu0 0.0
      %291 = vmatprep.subr.mxu0 0.0
      %292 = vmatpush1.msra.mxu0 0.0
      %293 = vmatprep.subr.mxu0 0.0
      %294 = vmatpush1.msra.mxu0 0.0
      %295 = vmatprep.subr.mxu0 0.0
      %296 = vmatpush1.msra.mxu0 0.0
      %297 = vmatprep.subr.mxu0 0.0
      %298 = vmatpush1.msra.mxu0 0.0
      %299 = vmatprep.subr.mxu0 0.0
      %300 = vmatpush1.msra.mxu0 0.0
      %301 = vmatprep.subr.mxu0 0.0
      %302 = vmatpush1.msra.mxu0 0.0
      %303 = vmatprep.subr.mxu0 0.0
      %304 = vmatpush1.msra.mxu0 0.0
      %305 = vmatprep.subr.mxu0 0.0
      %306 = vmatpush1.msra.mxu0 0.0
      %307 = vmatprep.subr.mxu0 0.0
      %308 = vmatpush1.msra.mxu0 0.0
      %309 = vmatprep.subr.mxu0 0.0
      %310 = vmatpush1.msra.mxu0 0.0
      %311 = vmatprep.subr.mxu0 0.0
      %312 = vmatpush1.msra.mxu0 0.0
      %313 = vmatprep.subr.mxu0 0.0
      %314 = vmatpush1.msra.mxu0 0.0
      %315 = vmatprep.subr.mxu0 0.0
      %316 = vmatpush1.msra.mxu0 0.0
      %317 = vmatprep.subr.mxu0 0.0
      %318 = vmatpush1.msra.mxu0 0.0
      %319 = vmatprep.mubr.f32.mxu0 0.0
      %320 = vmatmul.mubr.f32.gmra.mrb[0].mxu0 %v253
      %v321 = vpop.f32.mrb[0].mxu0
      %v322 = vadd.f32 0.0, %v321
      %v323 = vpop.f32.mrb[0].mxu0
      %324 = vdwg.mxu0
      %vm325 = vcmask 29696
      %326 = vst.msk [vmem:[%s155] sm:$0x3f] %vm325, %v322
      %327 = vrot.lane.b32.xlu0 %v158, 124
      %v328 = vpop.permute.xlu0 %327
      %329 = vrot.lane.b32.xlu0 %v157, 124
      %v330 = vpop.permute.xlu0 %329
      %v331 = vsel %vm159, %v328, 0
      %v333 = vsel %vm159, %v330, 0
      %335 = vmatprep.subr.mxu0 0.0
      %336 = vmatpush1.xpose.msra.mxu0 %v333
      %337 = vmatprep.subr.mxu0 0.0
      %338 = vmatpush1.xpose.msra.mxu0 0.0
      %339 = vmatprep.subr.mxu0 0.0
      %340 = vmatpush1.xpose.msra.mxu0 0.0
      %341 = vmatprep.subr.mxu0 0.0
      %342 = vmatpush1.xpose.msra.mxu0 0.0
      %343 = vmatprep.subr.mxu0 0.0
      %344 = vmatpush1.xpose.msra.mxu0 0.0
      %345 = vmatprep.subr.mxu0 0.0
      %346 = vmatpush1.xpose.msra.mxu0 0.0
      %347 = vmatprep.subr.mxu0 0.0
      %348 = vmatpush1.xpose.msra.mxu0 0.0
      %349 = vmatprep.subr.mxu0 0.0
      %350 = vmatpush1.xpose.msra.mxu0 0.0
      %351 = vmatprep.subr.mxu0 0.0
      %352 = vmatpush1.xpose.msra.mxu0 0.0
      %353 = vmatprep.subr.mxu0 0.0
      %354 = vmatpush1.xpose.msra.mxu0 0.0
      %355 = vmatprep.subr.mxu0 0.0
      %356 = vmatpush1.xpose.msra.mxu0 0.0
      %357 = vmatprep.subr.mxu0 0.0
      %358 = vmatpush1.xpose.msra.mxu0 0.0
      %359 = vmatprep.subr.mxu0 0.0
      %360 = vmatpush1.xpose.msra.mxu0 0.0
      %361 = vmatprep.subr.mxu0 0.0
      %362 = vmatpush1.xpose.msra.mxu0 0.0
      %363 = vmatprep.subr.mxu0 0.0
      %364 = vmatpush1.xpose.msra.mxu0 0.0
      %365 = vmatprep.subr.mxu0 0.0
      %366 = vmatpush1.xpose.msra.mxu0 0.0
      %367 = vmatprep.subr.mxu0 0.0
      %368 = vmatpush1.xpose.msra.mxu0 0.0
      %369 = vmatprep.subr.mxu0 0.0
      %370 = vmatpush1.xpose.msra.mxu0 0.0
      %371 = vmatprep.subr.mxu0 0.0
      %372 = vmatpush1.xpose.msra.mxu0 0.0
      %373 = vmatprep.subr.mxu0 0.0
      %374 = vmatpush1.xpose.msra.mxu0 0.0
      %375 = vmatprep.subr.mxu0 0.0
      %376 = vmatpush1.xpose.msra.mxu0 0.0
      %377 = vmatprep.subr.mxu0 0.0
      %378 = vmatpush1.xpose.msra.mxu0 0.0
      %379 = vmatprep.subr.mxu0 0.0
      %380 = vmatpush1.xpose.msra.mxu0 0.0
      %381 = vmatprep.subr.mxu0 0.0
      %382 = vmatpush1.xpose.msra.mxu0 0.0
      %383 = vmatprep.subr.mxu0 0.0
      %384 = vmatpush1.xpose.msra.mxu0 0.0
      %385 = vmatprep.subr.mxu0 0.0
      %386 = vmatpush1.xpose.msra.mxu0 0.0
      %387 = vmatprep.subr.mxu0 0.0
      %388 = vmatpush1.xpose.msra.mxu0 0.0
      %389 = vmatprep.subr.mxu0 0.0
      %390 = vmatpush1.xpose.msra.mxu0 0.0
      %391 = vmatprep.subr.mxu0 0.0
      %392 = vmatpush1.xpose.msra.mxu0 0.0
      %393 = vmatprep.subr.mxu0 0.0
      %394 = vmatpush1.xpose.msra.mxu0 0.0
      %395 = vmatprep.subr.mxu0 0.0
      %396 = vmatpush1.xpose.msra.mxu0 0.0
      %397 = vmatprep.subr.mxu0 0.0
      %398 = vmatpush1.xpose.msra.mxu0 0.0
      %399 = vmatprep.mubr.f32.mxu0 0.0
      %400 = vmatmul.mubr.f32.gmra.mrb[0].mxu0 %v331
      %v401 = vpop.f32.mrb[0].mxu0
      %v402 = vadd.f32 0.0, %v401
      %v403 = vpop.f32.mrb[0].mxu0
      %404 = vdwg.mxu0
      %v405 = vsel %vm236, %v402, -inf
      %406 = vmax.xlane.f32.xlu0 %v405
      %v407 = vpop.xlane.xlu0 %406
      %v408 = vsub.f32 %v402, %v407
      %v409 = vmul.f32 %v408, 1.442695
      %v410 = vpow.pop %v409
      %v411 = vsel %vm236, %v410, 0.0
      %412 = vadd.xlane.f32.xlu0 %v411
      %v413 = vpop.xlane.xlu0 %412
      %v414 = vrcp.pop %v413
      %v415 = vmul.f32 %v410, %v414
      %416 = vrot.lane.b32.xlu0 %v157, 92
      %v417 = vpop.permute.xlu0 %416
      %v420 = vsel %vm251, %v415, 0
      %422 = vmatprep.subr.mxu0 0.0
      %423 = vmatpush1.msra.mxu0 %v417
      %424 = vmatprep.subr.mxu0 0.0
      %425 = vmatpush1.msra.mxu0 0.0
      %426 = vmatprep.subr.mxu0 0.0
      %427 = vmatpush1.msra.mxu0 0.0
      %428 = vmatprep.subr.mxu0 0.0
      %429 = vmatpush1.msra.mxu0 0.0
      %430 = vmatprep.subr.mxu0 0.0
      %431 = vmatpush1.msra.mxu0 0.0
      %432 = vmatprep.subr.mxu0 0.0
      %433 = vmatpush1.msra.mxu0 0.0
      %434 = vmatprep.subr.mxu0 0.0
      %435 = vmatpush1.msra.mxu0 0.0
      %436 = vmatprep.subr.mxu0 0.0
      %437 = vmatpush1.msra.mxu0 0.0
      %438 = vmatprep.subr.mxu0 0.0
      %439 = vmatpush1.msra.mxu0 0.0
      %440 = vmatprep.subr.mxu0 0.0
      %441 = vmatpush1.msra.mxu0 0.0
      %442 = vmatprep.subr.mxu0 0.0
      %443 = vmatpush1.msra.mxu0 0.0
      %444 = vmatprep.subr.mxu0 0.0
      %445 = vmatpush1.msra.mxu0 0.0
      %446 = vmatprep.subr.mxu0 0.0
      %447 = vmatpush1.msra.mxu0 0.0
      %448 = vmatprep.subr.mxu0 0.0
      %449 = vmatpush1.msra.mxu0 0.0
      %450 = vmatprep.subr.mxu0 0.0
      %451 = vmatpush1.msra.mxu0 0.0
      %452 = vmatprep.subr.mxu0 0.0
      %453 = vmatpush1.msra.mxu0 0.0
      %454 = vmatprep.subr.mxu0 0.0
      %455 = vmatpush1.msra.mxu0 0.0
      %456 = vmatprep.subr.mxu0 0.0
      %457 = vmatpush1.msra.mxu0 0.0
      %458 = vmatprep.subr.mxu0 0.0
      %459 = vmatpush1.msra.mxu0 0.0
      %460 = vmatprep.subr.mxu0 0.0
      %461 = vmatpush1.msra.mxu0 0.0
      %462 = vmatprep.subr.mxu0 0.0
      %463 = vmatpush1.msra.mxu0 0.0
      %464 = vmatprep.subr.mxu0 0.0
      %465 = vmatpush1.msra.mxu0 0.0
      %466 = vmatprep.subr.mxu0 0.0
      %467 = vmatpush1.msra.mxu0 0.0
      %468 = vmatprep.subr.mxu0 0.0
      %469 = vmatpush1.msra.mxu0 0.0
      %470 = vmatprep.subr.mxu0 0.0
      %471 = vmatpush1.msra.mxu0 0.0
      %472 = vmatprep.subr.mxu0 0.0
      %473 = vmatpush1.msra.mxu0 0.0
      %474 = vmatprep.subr.mxu0 0.0
      %475 = vmatpush1.msra.mxu0 0.0
      %476 = vmatprep.subr.mxu0 0.0
      %477 = vmatpush1.msra.mxu0 0.0
      %478 = vmatprep.subr.mxu0 0.0
      %479 = vmatpush1.msra.mxu0 0.0
      %480 = vmatprep.subr.mxu0 0.0
      %481 = vmatpush1.msra.mxu0 0.0
      %482 = vmatprep.subr.mxu0 0.0
      %483 = vmatpush1.msra.mxu0 0.0
      %484 = vmatprep.subr.mxu0 0.0
      %485 = vmatpush1.msra.mxu0 0.0
      %486 = vmatprep.mubr.f32.mxu0 0.0
      %487 = vmatmul.mubr.f32.gmra.mrb[0].mxu0 %v420
      %v488 = vpop.f32.mrb[0].mxu0
      %v489 = vadd.f32 0.0, %v488
      %v490 = vpop.f32.mrb[0].mxu0
      %491 = vdwg.mxu0
      %493 = vrot.lane.b32.xlu0 %v489, 4
      %v494 = vpop.permute.xlu0 %493
      %vm496 = vcmask 62496
      %497 = vst.msk [vmem:[%s155] sm:$0x3f] %vm496, %v494
      %498 = vrot.lane.b32.xlu0 %v158, 120
      %v499 = vpop.permute.xlu0 %498
      %500 = vrot.lane.b32.xlu0 %v157, 120
      %v501 = vpop.permute.xlu0 %500
      %v502 = vsel %vm159, %v499, 0
      %v504 = vsel %vm159, %v501, 0
      %506 = vmatprep.subr.mxu0 0.0
      %507 = vmatpush1.xpose.msra.mxu0 %v504
      %508 = vmatprep.subr.mxu0 0.0
      %509 = vmatpush1.xpose.msra.mxu0 0.0
      %510 = vmatprep.subr.mxu0 0.0
      %511 = vmatpush1.xpose.msra.mxu0 0.0
      %512 = vmatprep.subr.mxu0 0.0
      %513 = vmatpush1.xpose.msra.mxu0 0.0
      %514 = vmatprep.subr.mxu0 0.0
      %515 = vmatpush1.xpose.msra.mxu0 0.0
      %516 = vmatprep.subr.mxu0 0.0
      %517 = vmatpush1.xpose.msra.mxu0 0.0
      %518 = vmatprep.subr.mxu0 0.0
      %519 = vmatpush1.xpose.msra.mxu0 0.0
      %520 = vmatprep.subr.mxu0 0.0
      %521 = vmatpush1.xpose.msra.mxu0 0.0
      %522 = vmatprep.subr.mxu0 0.0
      %523 = vmatpush1.xpose.msra.mxu0 0.0
      %524 = vmatprep.subr.mxu0 0.0
      %525 = vmatpush1.xpose.msra.mxu0 0.0
      %526 = vmatprep.subr.mxu0 0.0
      %527 = vmatpush1.xpose.msra.mxu0 0.0
      %528 = vmatprep.subr.mxu0 0.0
      %529 = vmatpush1.xpose.msra.mxu0 0.0
      %530 = vmatprep.subr.mxu0 0.0
      %531 = vmatpush1.xpose.msra.mxu0 0.0
      %532 = vmatprep.subr.mxu0 0.0
      %533 = vmatpush1.xpose.msra.mxu0 0.0
      %534 = vmatprep.subr.mxu0 0.0
      %535 = vmatpush1.xpose.msra.mxu0 0.0
      %536 = vmatprep.subr.mxu0 0.0
      %537 = vmatpush1.xpose.msra.mxu0 0.0
      %538 = vmatprep.subr.mxu0 0.0
      %539 = vmatpush1.xpose.msra.mxu0 0.0
      %540 = vmatprep.subr.mxu0 0.0
      %541 = vmatpush1.xpose.msra.mxu0 0.0
      %542 = vmatprep.subr.mxu0 0.0
      %543 = vmatpush1.xpose.msra.mxu0 0.0
      %544 = vmatprep.subr.mxu0 0.0
      %545 = vmatpush1.xpose.msra.mxu0 0.0
      %546 = vmatprep.subr.mxu0 0.0
      %547 = vmatpush1.xpose.msra.mxu0 0.0
      %548 = vmatprep.subr.mxu0 0.0
      %549 = vmatpush1.xpose.msra.mxu0 0.0
      %550 = vmatprep.subr.mxu0 0.0
      %551 = vmatpush1.xpose.msra.mxu0 0.0
      %552 = vmatprep.subr.mxu0 0.0
      %553 = vmatpush1.xpose.msra.mxu0 0.0
      %554 = vmatprep.subr.mxu0 0.0
      %555 = vmatpush1.xpose.msra.mxu0 0.0
      %556 = vmatprep.subr.mxu0 0.0
      %557 = vmatpush1.xpose.msra.mxu0 0.0
      %558 = vmatprep.subr.mxu0 0.0
      %559 = vmatpush1.xpose.msra.mxu0 0.0
      %560 = vmatprep.subr.mxu0 0.0
      %561 = vmatpush1.xpose.msra.mxu0 0.0
      %562 = vmatprep.subr.mxu0 0.0
      %563 = vmatpush1.xpose.msra.mxu0 0.0
      %564 = vmatprep.subr.mxu0 0.0
      %565 = vmatpush1.xpose.msra.mxu0 0.0
      %566 = vmatprep.subr.mxu0 0.0
      %567 = vmatpush1.xpose.msra.mxu0 0.0
      %568 = vmatprep.subr.mxu0 0.0
      %569 = vmatpush1.xpose.msra.mxu0 0.0
      %570 = vmatprep.mubr.f32.mxu0 0.0
      %571 = vmatmul.mubr.f32.gmra.mrb[0].mxu0 %v502
      %v572 = vpop.f32.mrb[0].mxu0
      %v573 = vadd.f32 0.0, %v572
      %v574 = vpop.f32.mrb[0].mxu0
      %575 = vdwg.mxu0
      %v576 = vsel %vm236, %v573, -inf
      %577 = vmax.xlane.f32.xlu0 %v576
      %v578 = vpop.xlane.xlu0 %577
      %v579 = vsub.f32 %v573, %v578
      %v580 = vmul.f32 %v579, 1.442695
      %v581 = vpow.pop %v580
      %v582 = vsel %vm236, %v581, 0.0
      %583 = vadd.xlane.f32.xlu0 %v582
      %v584 = vpop.xlane.xlu0 %583
      %v585 = vrcp.pop %v584
      %v586 = vmul.f32 %v581, %v585
      %587 = vrot.lane.b32.xlu0 %v157, 88
      %v588 = vpop.permute.xlu0 %587
      %v591 = vsel %vm251, %v586, 0
      %593 = vmatprep.subr.mxu0 0.0
      %594 = vmatpush1.msra.mxu0 %v588
      %595 = vmatprep.subr.mxu0 0.0
      %596 = vmatpush1.msra.mxu0 0.0
      %597 = vmatprep.subr.mxu0 0.0
      %598 = vmatpush1.msra.mxu0 0.0
      %599 = vmatprep.subr.mxu0 0.0
      %600 = vmatpush1.msra.mxu0 0.0
      %601 = vmatprep.subr.mxu0 0.0
      %602 = vmatpush1.msra.mxu0 0.0
      %603 = vmatprep.subr.mxu0 0.0
      %604 = vmatpush1.msra.mxu0 0.0
      %605 = vmatprep.subr.mxu0 0.0
      %606 = vmatpush1.msra.mxu0 0.0
      %607 = vmatprep.subr.mxu0 0.0
      %608 = vmatpush1.msra.mxu0 0.0
      %609 = vmatprep.subr.mxu0 0.0
      %610 = vmatpush1.msra.mxu0 0.0
      %611 = vmatprep.subr.mxu0 0.0
      %612 = vmatpush1.msra.mxu0 0.0
      %613 = vmatprep.subr.mxu0 0.0
      %614 = vmatpush1.msra.mxu0 0.0
      %615 = vmatprep.subr.mxu0 0.0
      %616 = vmatpush1.msra.mxu0 0.0
      %617 = vmatprep.subr.mxu0 0.0
      %618 = vmatpush1.msra.mxu0 0.0
      %619 = vmatprep.subr.mxu0 0.0
      %620 = vmatpush1.msra.mxu0 0.0
      %621 = vmatprep.subr.mxu0 0.0
      %622 = vmatpush1.msra.mxu0 0.0
      %623 = vmatprep.subr.mxu0 0.0
      %624 = vmatpush1.msra.mxu0 0.0
      %625 = vmatprep.subr.mxu0 0.0
      %626 = vmatpush1.msra.mxu0 0.0
      %627 = vmatprep.subr.mxu0 0.0
      %628 = vmatpush1.msra.mxu0 0.0
      %629 = vmatprep.subr.mxu0 0.0
      %630 = vmatpush1.msra.mxu0 0.0
      %631 = vmatprep.subr.mxu0 0.0
      %632 = vmatpush1.msra.mxu0 0.0
      %633 = vmatprep.subr.mxu0 0.0
      %634 = vmatpush1.msra.mxu0 0.0
      %635 = vmatprep.subr.mxu0 0.0
      %636 = vmatpush1.msra.mxu0 0.0
      %637 = vmatprep.subr.mxu0 0.0
      %638 = vmatpush1.msra.mxu0 0.0
      %639 = vmatprep.subr.mxu0 0.0
      %640 = vmatpush1.msra.mxu0 0.0
      %641 = vmatprep.subr.mxu0 0.0
      %642 = vmatpush1.msra.mxu0 0.0
      %643 = vmatprep.subr.mxu0 0.0
      %644 = vmatpush1.msra.mxu0 0.0
      %645 = vmatprep.subr.mxu0 0.0
      %646 = vmatpush1.msra.mxu0 0.0
      %647 = vmatprep.subr.mxu0 0.0
      %648 = vmatpush1.msra.mxu0 0.0
      %649 = vmatprep.subr.mxu0 0.0
      %650 = vmatpush1.msra.mxu0 0.0
      %651 = vmatprep.subr.mxu0 0.0
      %652 = vmatpush1.msra.mxu0 0.0
      %653 = vmatprep.subr.mxu0 0.0
      %654 = vmatpush1.msra.mxu0 0.0
      %655 = vmatprep.subr.mxu0 0.0
      %656 = vmatpush1.msra.mxu0 0.0
      %657 = vmatprep.mubr.f32.mxu0 0.0
      %658 = vmatmul.mubr.f32.gmra.mrb[0].mxu0 %v591
      %v659 = vpop.f32.mrb[0].mxu0
      %v660 = vadd.f32 0.0, %v659
      %v661 = vpop.f32.mrb[0].mxu0
      %662 = vdwg.mxu0
      %664 = vrot.lane.b32.xlu0 %v660, 8
      %v665 = vpop.permute.xlu0 %664
      %vm667 = vcmask 95296
      %668 = vst.msk [vmem:[%s155] sm:$0x3f] %vm667, %v665
      %669 = vrot.lane.b32.xlu0 %v158, 116
      %v670 = vpop.permute.xlu0 %669
      %671 = vrot.lane.b32.xlu0 %v157, 116
      %v672 = vpop.permute.xlu0 %671
      %v673 = vsel %vm159, %v670, 0
      %v675 = vsel %vm159, %v672, 0
      %677 = vmatprep.subr.mxu0 0.0
      %678 = vmatpush1.xpose.msra.mxu0 %v675
      %679 = vmatprep.subr.mxu0 0.0
      %680 = vmatpush1.xpose.msra.mxu0 0.0
      %681 = vmatprep.subr.mxu0 0.0
      %682 = vmatpush1.xpose.msra.mxu0 0.0
      %683 = vmatprep.subr.mxu0 0.0
      %684 = vmatpush1.xpose.msra.mxu0 0.0
      %685 = vmatprep.subr.mxu0 0.0
      %686 = vmatpush1.xpose.msra.mxu0 0.0
      %687 = vmatprep.subr.mxu0 0.0
      %688 = vmatpush1.xpose.msra.mxu0 0.0
      %689 = vmatprep.subr.mxu0 0.0
      %690 = vmatpush1.xpose.msra.mxu0 0.0
      %691 = vmatprep.subr.mxu0 0.0
      %692 = vmatpush1.xpose.msra.mxu0 0.0
      %693 = vmatprep.subr.mxu0 0.0
      %694 = vmatpush1.xpose.msra.mxu0 0.0
      %695 = vmatprep.subr.mxu0 0.0
      %696 = vmatpush1.xpose.msra.mxu0 0.0
      %697 = vmatprep.subr.mxu0 0.0
      %698 = vmatpush1.xpose.msra.mxu0 0.0
      %699 = vmatprep.subr.mxu0 0.0
      %700 = vmatpush1.xpose.msra.mxu0 0.0
      %701 = vmatprep.subr.mxu0 0.0
      %702 = vmatpush1.xpose.msra.mxu0 0.0
      %703 = vmatprep.subr.mxu0 0.0
      %704 = vmatpush1.xpose.msra.mxu0 0.0
      %705 = vmatprep.subr.mxu0 0.0
      %706 = vmatpush1.xpose.msra.mxu0 0.0
      %707 = vmatprep.subr.mxu0 0.0
      %708 = vmatpush1.xpose.msra.mxu0 0.0
      %709 = vmatprep.subr.mxu0 0.0
      %710 = vmatpush1.xpose.msra.mxu0 0.0
      %711 = vmatprep.subr.mxu0 0.0
      %712 = vmatpush1.xpose.msra.mxu0 0.0
      %713 = vmatprep.subr.mxu0 0.0
      %714 = vmatpush1.xpose.msra.mxu0 0.0
      %715 = vmatprep.subr.mxu0 0.0
      %716 = vmatpush1.xpose.msra.mxu0 0.0
      %717 = vmatprep.subr.mxu0 0.0
      %718 = vmatpush1.xpose.msra.mxu0 0.0
      %719 = vmatprep.subr.mxu0 0.0
      %720 = vmatpush1.xpose.msra.mxu0 0.0
      %721 = vmatprep.subr.mxu0 0.0
      %722 = vmatpush1.xpose.msra.mxu0 0.0
      %723 = vmatprep.subr.mxu0 0.0
      %724 = vmatpush1.xpose.msra.mxu0 0.0
      %725 = vmatprep.subr.mxu0 0.0
      %726 = vmatpush1.xpose.msra.mxu0 0.0
      %727 = vmatprep.subr.mxu0 0.0
      %728 = vmatpush1.xpose.msra.mxu0 0.0
      %729 = vmatprep.subr.mxu0 0.0
      %730 = vmatpush1.xpose.msra.mxu0 0.0
      %731 = vmatprep.subr.mxu0 0.0
      %732 = vmatpush1.xpose.msra.mxu0 0.0
      %733 = vmatprep.subr.mxu0 0.0
      %734 = vmatpush1.xpose.msra.mxu0 0.0
      %735 = vmatprep.subr.mxu0 0.0
      %736 = vmatpush1.xpose.msra.mxu0 0.0
      %737 = vmatprep.subr.mxu0 0.0
      %738 = vmatpush1.xpose.msra.mxu0 0.0
      %739 = vmatprep.subr.mxu0 0.0
      %740 = vmatpush1.xpose.msra.mxu0 0.0
      %741 = vmatprep.mubr.f32.mxu0 0.0
      %742 = vmatmul.mubr.f32.gmra.mrb[0].mxu0 %v673
      %v743 = vpop.f32.mrb[0].mxu0
      %v744 = vadd.f32 0.0, %v743
      %v745 = vpop.f32.mrb[0].mxu0
      %746 = vdwg.mxu0
      %v747 = vsel %vm236, %v744, -inf
      %748 = vmax.xlane.f32.xlu0 %v747
      %v749 = vpop.xlane.xlu0 %748
      %v750 = vsub.f32 %v744, %v749
      %v751 = vmul.f32 %v750, 1.442695
      %v752 = vpow.pop %v751
      %v753 = vsel %vm236, %v752, 0.0
      %754 = vadd.xlane.f32.xlu0 %v753
      %v755 = vpop.xlane.xlu0 %754
      %v756 = vrcp.pop %v755
      %v757 = vmul.f32 %v752, %v756
      %758 = vrot.lane.b32.xlu0 %v157, 84
      %v759 = vpop.permute.xlu0 %758
      %v762 = vsel %vm251, %v757, 0
      %764 = vmatprep.subr.mxu0 0.0
      %765 = vmatpush1.msra.mxu0 %v759
      %766 = vmatprep.subr.mxu0 0.0
      %767 = vmatpush1.msra.mxu0 0.0
      %768 = vmatprep.subr.mxu0 0.0
      %769 = vmatpush1.msra.mxu0 0.0
      %770 = vmatprep.subr.mxu0 0.0
      %771 = vmatpush1.msra.mxu0 0.0
      %772 = vmatprep.subr.mxu0 0.0
      %773 = vmatpush1.msra.mxu0 0.0
      %774 = vmatprep.subr.mxu0 0.0
      %775 = vmatpush1.msra.mxu0 0.0
      %776 = vmatprep.subr.mxu0 0.0
      %777 = vmatpush1.msra.mxu0 0.0
      %778 = vmatprep.subr.mxu0 0.0
      %779 = vmatpush1.msra.mxu0 0.0
      %780 = vmatprep.subr.mxu0 0.0
      %781 = vmatpush1.msra.mxu0 0.0
      %782 = vmatprep.subr.mxu0 0.0
      %783 = vmatpush1.msra.mxu0 0.0
      %784 = vmatprep.subr.mxu0 0.0
      %785 = vmatpush1.msra.mxu0 0.0
      %786 = vmatprep.subr.mxu0 0.0
      %787 = vmatpush1.msra.mxu0 0.0
      %788 = vmatprep.subr.mxu0 0.0
      %789 = vmatpush1.msra.mxu0 0.0
      %790 = vmatprep.subr.mxu0 0.0
      %791 = vmatpush1.msra.mxu0 0.0
      %792 = vmatprep.subr.mxu0 0.0
      %793 = vmatpush1.msra.mxu0 0.0
      %794 = vmatprep.subr.mxu0 0.0
      %795 = vmatpush1.msra.mxu0 0.0
      %796 = vmatprep.subr.mxu0 0.0
      %797 = vmatpush1.msra.mxu0 0.0
      %798 = vmatprep.subr.mxu0 0.0
      %799 = vmatpush1.msra.mxu0 0.0
      %800 = vmatprep.subr.mxu0 0.0
      %801 = vmatpush1.msra.mxu0 0.0
      %802 = vmatprep.subr.mxu0 0.0
      %803 = vmatpush1.msra.mxu0 0.0
      %804 = vmatprep.subr.mxu0 0.0
      %805 = vmatpush1.msra.mxu0 0.0
      %806 = vmatprep.subr.mxu0 0.0
      %807 = vmatpush1.msra.mxu0 0.0
      %808 = vmatprep.subr.mxu0 0.0
      %809 = vmatpush1.msra.mxu0 0.0
      %810 = vmatprep.subr.mxu0 0.0
      %811 = vmatpush1.msra.mxu0 0.0
      %812 = vmatprep.subr.mxu0 0.0
      %813 = vmatpush1.msra.mxu0 0.0
      %814 = vmatprep.subr.mxu0 0.0
      %815 = vmatpush1.msra.mxu0 0.0
      %816 = vmatprep.subr.mxu0 0.0
      %817 = vmatpush1.msra.mxu0 0.0
      %818 = vmatprep.subr.mxu0 0.0
      %819 = vmatpush1.msra.mxu0 0.0
      %820 = vmatprep.subr.mxu0 0.0
      %821 = vmatpush1.msra.mxu0 0.0
      %822 = vmatprep.subr.mxu0 0.0
      %823 = vmatpush1.msra.mxu0 0.0
      %824 = vmatprep.subr.mxu0 0.0
      %825 = vmatpush1.msra.mxu0 0.0
      %826 = vmatprep.subr.mxu0 0.0
      %827 = vmatpush1.msra.mxu0 0.0
      %828 = vmatprep.mubr.f32.mxu0 0.0
      %829 = vmatmul.mubr.f32.gmra.mrb[0].mxu0 %v762
      %v830 = vpop.f32.mrb[0].mxu0
      %v831 = vadd.f32 0.0, %v830
      %v832 = vpop.f32.mrb[0].mxu0
      %833 = vdwg.mxu0
      %835 = vrot.lane.b32.xlu0 %v831, 12
      %v836 = vpop.permute.xlu0 %835
      %vm838 = vcmask 128096
      %839 = vst.msk [vmem:[%s155] sm:$0x3f] %vm838, %v836
      %840 = vrot.lane.b32.xlu0 %v158, 112
      %v841 = vpop.permute.xlu0 %840
      %842 = vrot.lane.b32.xlu0 %v157, 112
      %v843 = vpop.permute.xlu0 %842
      %v844 = vsel %vm159, %v841, 0
      %v846 = vsel %vm159, %v843, 0
      %848 = vmatprep.subr.mxu0 0.0
      %849 = vmatpush1.xpose.msra.mxu0 %v846
      %850 = vmatprep.subr.mxu0 0.0
      %851 = vmatpush1.xpose.msra.mxu0 0.0
      %852 = vmatprep.subr.mxu0 0.0
      %853 = vmatpush1.xpose.msra.mxu0 0.0
      %854 = vmatprep.subr.mxu0 0.0
      %855 = vmatpush1.xpose.msra.mxu0 0.0
      %856 = vmatprep.subr.mxu0 0.0
      %857 = vmatpush1.xpose.msra.mxu0 0.0
      %858 = vmatprep.subr.mxu0 0.0
      %859 = vmatpush1.xpose.msra.mxu0 0.0
      %860 = vmatprep.subr.mxu0 0.0
      %861 = vmatpush1.xpose.msra.mxu0 0.0
      %862 = vmatprep.subr.mxu0 0.0
      %863 = vmatpush1.xpose.msra.mxu0 0.0
      %864 = vmatprep.subr.mxu0 0.0
      %865 = vmatpush1.xpose.msra.mxu0 0.0
      %866 = vmatprep.subr.mxu0 0.0
      %867 = vmatpush1.xpose.msra.mxu0 0.0
      %868 = vmatprep.subr.mxu0 0.0
      %869 = vmatpush1.xpose.msra.mxu0 0.0
      %870 = vmatprep.subr.mxu0 0.0
      %871 = vmatpush1.xpose.msra.mxu0 0.0
      %872 = vmatprep.subr.mxu0 0.0
      %873 = vmatpush1.xpose.msra.mxu0 0.0
      %874 = vmatprep.subr.mxu0 0.0
      %875 = vmatpush1.xpose.msra.mxu0 0.0
      %876 = vmatprep.subr.mxu0 0.0
      %877 = vmatpush1.xpose.msra.mxu0 0.0
      %878 = vmatprep.subr.mxu0 0.0
      %879 = vmatpush1.xpose.msra.mxu0 0.0
      %880 = vmatprep.subr.mxu0 0.0
      %881 = vmatpush1.xpose.msra.mxu0 0.0
      %882 = vmatprep.subr.mxu0 0.0
      %883 = vmatpush1.xpose.msra.mxu0 0.0
      %884 = vmatprep.subr.mxu0 0.0
      %885 = vmatpush1.xpose.msra.mxu0 0.0
      %886 = vmatprep.subr.mxu0 0.0
      %887 = vmatpush1.xpose.msra.mxu0 0.0
      %888 = vmatprep.subr.mxu0 0.0
      %889 = vmatpush1.xpose.msra.mxu0 0.0
      %890 = vmatprep.subr.mxu0 0.0
      %891 = vmatpush1.xpose.msra.mxu0 0.0
      %892 = vmatprep.subr.mxu0 0.0
      %893 = vmatpush1.xpose.msra.mxu0 0.0
      %894 = vmatprep.subr.mxu0 0.0
      %895 = vmatpush1.xpose.msra.mxu0 0.0
      %896 = vmatprep.subr.mxu0 0.0
      %897 = vmatpush1.xpose.msra.mxu0 0.0
      %898 = vmatprep.subr.mxu0 0.0
      %899 = vmatpush1.xpose.msra.mxu0 0.0
      %900 = vmatprep.subr.mxu0 0.0
      %901 = vmatpush1.xpose.msra.mxu0 0.0
      %902 = vmatprep.subr.mxu0 0.0
      %903 = vmatpush1.xpose.msra.mxu0 0.0
      %904 = vmatprep.subr.mxu0 0.0
      %905 = vmatpush1.xpose.msra.mxu0 0.0
      %906 = vmatprep.subr.mxu0 0.0
      %907 = vmatpush1.xpose.msra.mxu0 0.0
      %908 = vmatprep.subr.mxu0 0.0
      %909 = vmatpush1.xpose.msra.mxu0 0.0
      %910 = vmatprep.subr.mxu0 0.0
      %911 = vmatpush1.xpose.msra.mxu0 0.0
      %912 = vmatprep.mubr.f32.mxu0 0.0
      %913 = vmatmul.mubr.f32.gmra.mrb[0].mxu0 %v844
      %v914 = vpop.f32.mrb[0].mxu0
      %v915 = vadd.f32 0.0, %v914
      %v916 = vpop.f32.mrb[0].mxu0
      %917 = vdwg.mxu0
      %v918 = vsel %vm236, %v915, -inf
      %919 = vmax.xlane.f32.xlu0 %v918
      %v920 = vpop.xlane.xlu0 %919
      %v921 = vsub.f32 %v915, %v920
      %v922 = vmul.f32 %v921, 1.442695
      %v923 = vpow.pop %v922
      %v924 = vsel %vm236, %v923, 0.0
      %925 = vadd.xlane.f32.xlu0 %v924
      %v926 = vpop.xlane.xlu0 %925
      %v927 = vrcp.pop %v926
      %v928 = vmul.f32 %v923, %v927
      %929 = vrot.lane.b32.xlu0 %v157, 80
      %v930 = vpop.permute.xlu0 %929
      %v933 = vsel %vm251, %v928, 0
      %935 = vmatprep.subr.mxu0 0.0
      %936 = vmatpush1.msra.mxu0 %v930
      %937 = vmatprep.subr.mxu0 0.0
      %938 = vmatpush1.msra.mxu0 0.0
      %939 = vmatprep.subr.mxu0 0.0
      %940 = vmatpush1.msra.mxu0 0.0
      %941 = vmatprep.subr.mxu0 0.0
      %942 = vmatpush1.msra.mxu0 0.0
      %943 = vmatprep.subr.mxu0 0.0
      %944 = vmatpush1.msra.mxu0 0.0
      %945 = vmatprep.subr.mxu0 0.0
      %946 = vmatpush1.msra.mxu0 0.0
      %947 = vmatprep.subr.mxu0 0.0
      %948 = vmatpush1.msra.mxu0 0.0
      %949 = vmatprep.subr.mxu0 0.0
      %950 = vmatpush1.msra.mxu0 0.0
      %951 = vmatprep.subr.mxu0 0.0
      %952 = vmatpush1.msra.mxu0 0.0
      %953 = vmatprep.subr.mxu0 0.0
      %954 = vmatpush1.msra.mxu0 0.0
      %955 = vmatprep.subr.mxu0 0.0
      %956 = vmatpush1.msra.mxu0 0.0
      %957 = vmatprep.subr.mxu0 0.0
      %958 = vmatpush1.msra.mxu0 0.0
      %959 = vmatprep.subr.mxu0 0.0
      %960 = vmatpush1.msra.mxu0 0.0
      %961 = vmatprep.subr.mxu0 0.0
      %962 = vmatpush1.msra.mxu0 0.0
      %963 = vmatprep.subr.mxu0 0.0
      %964 = vmatpush1.msra.mxu0 0.0
      %965 = vmatprep.subr.mxu0 0.0
      %966 = vmatpush1.msra.mxu0 0.0
      %967 = vmatprep.subr.mxu0 0.0
      %968 = vmatpush1.msra.mxu0 0.0
      %969 = vmatprep.subr.mxu0 0.0
      %970 = vmatpush1.msra.mxu0 0.0
      %971 = vmatprep.subr.mxu0 0.0
      %972 = vmatpush1.msra.mxu0 0.0
      %973 = vmatprep.subr.mxu0 0.0
      %974 = vmatpush1.msra.mxu0 0.0
      %975 = vmatprep.subr.mxu0 0.0
      %976 = vmatpush1.msra.mxu0 0.0
      %977 = vmatprep.subr.mxu0 0.0
      %978 = vmatpush1.msra.mxu0 0.0
      %979 = vmatprep.subr.mxu0 0.0
      %980 = vmatpush1.msra.mxu0 0.0
      %981 = vmatprep.subr.mxu0 0.0
      %982 = vmatpush1.msra.mxu0 0.0
      %983 = vmatprep.subr.mxu0 0.0
      %984 = vmatpush1.msra.mxu0 0.0
      %985 = vmatprep.subr.mxu0 0.0
      %986 = vmatpush1.msra.mxu0 0.0
      %987 = vmatprep.subr.mxu0 0.0
      %988 = vmatpush1.msra.mxu0 0.0
      %989 = vmatprep.subr.mxu0 0.0
      %990 = vmatpush1.msra.mxu0 0.0
      %991 = vmatprep.subr.mxu0 0.0
      %992 = vmatpush1.msra.mxu0 0.0
      %993 = vmatprep.subr.mxu0 0.0
      %994 = vmatpush1.msra.mxu0 0.0
      %995 = vmatprep.subr.mxu0 0.0
      %996 = vmatpush1.msra.mxu0 0.0
      %997 = vmatprep.subr.mxu0 0.0
      %998 = vmatpush1.msra.mxu0 0.0
      %999 = vmatprep.mubr.f32.mxu0 0.0
      %1000 = vmatmul.mubr.f32.gmra.mrb[0].mxu0 %v933
      %v1001 = vpop.f32.mrb[0].mxu0
      %v1002 = vadd.f32 0.0, %v1001
      %v1003 = vpop.f32.mrb[0].mxu0
      %1004 = vdwg.mxu0
      %1006 = vrot.lane.b32.xlu0 %v1002, 16
      %v1007 = vpop.permute.xlu0 %1006
      %vm1009 = vcmask 160896
      %1010 = vst.msk [vmem:[%s155] sm:$0x3f] %vm1009, %v1007
      %1011 = vrot.lane.b32.xlu0 %v158, 108
      %v1012 = vpop.permute.xlu0 %1011
      %1013 = vrot.lane.b32.xlu0 %v157, 108
      %v1014 = vpop.permute.xlu0 %1013
      %v1015 = vsel %vm159, %v1012, 0
      %v1017 = vsel %vm159, %v1014, 0
      %1019 = vmatprep.subr.mxu0 0.0
      %1020 = vmatpush1.xpose.msra.mxu0 %v1017
      %1021 = vmatprep.subr.mxu0 0.0
      %1022 = vmatpush1.xpose.msra.mxu0 0.0
      %1023 = vmatprep.subr.mxu0 0.0
      %1024 = vmatpush1.xpose.msra.mxu0 0.0
      %1025 = vmatprep.subr.mxu0 0.0
      %1026 = vmatpush1.xpose.msra.mxu0 0.0
      %1027 = vmatprep.subr.mxu0 0.0
      %1028 = vmatpush1.xpose.msra.mxu0 0.0
      %1029 = vmatprep.subr.mxu0 0.0
      %1030 = vmatpush1.xpose.msra.mxu0 0.0
      %1031 = vmatprep.subr.mxu0 0.0
      %1032 = vmatpush1.xpose.msra.mxu0 0.0
      %1033 = vmatprep.subr.mxu0 0.0
      %1034 = vmatpush1.xpose.msra.mxu0 0.0
      %1035 = vmatprep.subr.mxu0 0.0
      %1036 = vmatpush1.xpose.msra.mxu0 0.0
      %1037 = vmatprep.subr.mxu0 0.0
      %1038 = vmatpush1.xpose.msra.mxu0 0.0
      %1039 = vmatprep.subr.mxu0 0.0
      %1040 = vmatpush1.xpose.msra.mxu0 0.0
      %1041 = vmatprep.subr.mxu0 0.0
      %1042 = vmatpush1.xpose.msra.mxu0 0.0
      %1043 = vmatprep.subr.mxu0 0.0
      %1044 = vmatpush1.xpose.msra.mxu0 0.0
      %1045 = vmatprep.subr.mxu0 0.0
      %1046 = vmatpush1.xpose.msra.mxu0 0.0
      %1047 = vmatprep.subr.mxu0 0.0
      %1048 = vmatpush1.xpose.msra.mxu0 0.0
      %1049 = vmatprep.subr.mxu0 0.0
      %1050 = vmatpush1.xpose.msra.mxu0 0.0
      %1051 = vmatprep.subr.mxu0 0.0
      %1052 = vmatpush1.xpose.msra.mxu0 0.0
      %1053 = vmatprep.subr.mxu0 0.0
      %1054 = vmatpush1.xpose.msra.mxu0 0.0
      %1055 = vmatprep.subr.mxu0 0.0
      %1056 = vmatpush1.xpose.msra.mxu0 0.0
      %1057 = vmatprep.subr.mxu0 0.0
      %1058 = vmatpush1.xpose.msra.mxu0 0.0
      %1059 = vmatprep.subr.mxu0 0.0
      %1060 = vmatpush1.xpose.msra.mxu0 0.0
      %1061 = vmatprep.subr.mxu0 0.0
      %1062 = vmatpush1.xpose.msra.mxu0 0.0
      %1063 = vmatprep.subr.mxu0 0.0
      %1064 = vmatpush1.xpose.msra.mxu0 0.0
      %1065 = vmatprep.subr.mxu0 0.0
      %1066 = vmatpush1.xpose.msra.mxu0 0.0
      %1067 = vmatprep.subr.mxu0 0.0
      %1068 = vmatpush1.xpose.msra.mxu0 0.0
      %1069 = vmatprep.subr.mxu0 0.0
      %1070 = vmatpush1.xpose.msra.mxu0 0.0
      %1071 = vmatprep.subr.mxu0 0.0
      %1072 = vmatpush1.xpose.msra.mxu0 0.0
      %1073 = vmatprep.subr.mxu0 0.0
      %1074 = vmatpush1.xpose.msra.mxu0 0.0
      %1075 = vmatprep.subr.mxu0 0.0
      %1076 = vmatpush1.xpose.msra.mxu0 0.0
      %1077 = vmatprep.subr.mxu0 0.0
      %1078 = vmatpush1.xpose.msra.mxu0 0.0
      %1079 = vmatprep.subr.mxu0 0.0
      %1080 = vmatpush1.xpose.msra.mxu0 0.0
      %1081 = vmatprep.subr.mxu0 0.0
      %1082 = vmatpush1.xpose.msra.mxu0 0.0
      %1083 = vmatprep.mubr.f32.mxu0 0.0
      %1084 = vmatmul.mubr.f32.gmra.mrb[0].mxu0 %v1015
      %v1085 = vpop.f32.mrb[0].mxu0
      %v1086 = vadd.f32 0.0, %v1085
      %v1087 = vpop.f32.mrb[0].mxu0
      %1088 = vdwg.mxu0
      %v1089 = vsel %vm236, %v1086, -inf
      %1090 = vmax.xlane.f32.xlu0 %v1089
      %v1091 = vpop.xlane.xlu0 %1090
      %v1092 = vsub.f32 %v1086, %v1091
      %v1093 = vmul.f32 %v1092, 1.442695
      %v1094 = vpow.pop %v1093
      %v1095 = vsel %vm236, %v1094, 0.0
      %1096 = vadd.xlane.f32.xlu0 %v1095
      %v1097 = vpop.xlane.xlu0 %1096
      %v1098 = vrcp.pop %v1097
      %v1099 = vmul.f32 %v1094, %v1098
      %1100 = vrot.lane.b32.xlu0 %v157, 76
      %v1101 = vpop.permute.xlu0 %1100
      %v1104 = vsel %vm251, %v1099, 0
      %1106 = vmatprep.subr.mxu0 0.0
      %1107 = vmatpush1.msra.mxu0 %v1101
      %1108 = vmatprep.subr.mxu0 0.0
      %1109 = vmatpush1.msra.mxu0 0.0
      %1110 = vmatprep.subr.mxu0 0.0
      %1111 = vmatpush1.msra.mxu0 0.0
      %1112 = vmatprep.subr.mxu0 0.0
      %1113 = vmatpush1.msra.mxu0 0.0
      %1114 = vmatprep.subr.mxu0 0.0
      %1115 = vmatpush1.msra.mxu0 0.0
      %1116 = vmatprep.subr.mxu0 0.0
      %1117 = vmatpush1.msra.mxu0 0.0
      %1118 = vmatprep.subr.mxu0 0.0
      %1119 = vmatpush1.msra.mxu0 0.0
      %1120 = vmatprep.subr.mxu0 0.0
      %1121 = vmatpush1.msra.mxu0 0.0
      %1122 = vmatprep.subr.mxu0 0.0
      %1123 = vmatpush1.msra.mxu0 0.0
      %1124 = vmatprep.subr.mxu0 0.0
      %1125 = vmatpush1.msra.mxu0 0.0
      %1126 = vmatprep.subr.mxu0 0.0
      %1127 = vmatpush1.msra.mxu0 0.0
      %1128 = vmatprep.subr.mxu0 0.0
      %1129 = vmatpush1.msra.mxu0 0.0
      %1130 = vmatprep.subr.mxu0 0.0
      %1131 = vmatpush1.msra.mxu0 0.0
      %1132 = vmatprep.subr.mxu0 0.0
      %1133 = vmatpush1.msra.mxu0 0.0
      %1134 = vmatprep.subr.mxu0 0.0
      %1135 = vmatpush1.msra.mxu0 0.0
      %1136 = vmatprep.subr.mxu0 0.0
      %1137 = vmatpush1.msra.mxu0 0.0
      %1138 = vmatprep.subr.mxu0 0.0
      %1139 = vmatpush1.msra.mxu0 0.0
      %1140 = vmatprep.subr.mxu0 0.0
      %1141 = vmatpush1.msra.mxu0 0.0
      %1142 = vmatprep.subr.mxu0 0.0
      %1143 = vmatpush1.msra.mxu0 0.0
      %1144 = vmatprep.subr.mxu0 0.0
      %1145 = vmatpush1.msra.mxu0 0.0
      %1146 = vmatprep.subr.mxu0 0.0
      %1147 = vmatpush1.msra.mxu0 0.0
      %1148 = vmatprep.subr.mxu0 0.0
      %1149 = vmatpush1.msra.mxu0 0.0
      %1150 = vmatprep.subr.mxu0 0.0
      %1151 = vmatpush1.msra.mxu0 0.0
      %1152 = vmatprep.subr.mxu0 0.0
      %1153 = vmatpush1.msra.mxu0 0.0
      %1154 = vmatprep.subr.mxu0 0.0
      %1155 = vmatpush1.msra.mxu0 0.0
      %1156 = vmatprep.subr.mxu0 0.0
      %1157 = vmatpush1.msra.mxu0 0.0
      %1158 = vmatprep.subr.mxu0 0.0
      %1159 = vmatpush1.msra.mxu0 0.0
      %1160 = vmatprep.subr.mxu0 0.0
      %1161 = vmatpush1.msra.mxu0 0.0
      %1162 = vmatprep.subr.mxu0 0.0
      %1163 = vmatpush1.msra.mxu0 0.0
      %1164 = vmatprep.subr.mxu0 0.0
      %1165 = vmatpush1.msra.mxu0 0.0
      %1166 = vmatprep.subr.mxu0 0.0
      %1167 = vmatpush1.msra.mxu0 0.0
      %1168 = vmatprep.subr.mxu0 0.0
      %1169 = vmatpush1.msra.mxu0 0.0
      %1170 = vmatprep.mubr.f32.mxu0 0.0
      %1171 = vmatmul.mubr.f32.gmra.mrb[0].mxu0 %v1104
      %v1172 = vpop.f32.mrb[0].mxu0
      %v1173 = vadd.f32 0.0, %v1172
      %v1174 = vpop.f32.mrb[0].mxu0
      %1175 = vdwg.mxu0
      %1177 = vrot.lane.b32.xlu0 %v1173, 20
      %v1178 = vpop.permute.xlu0 %1177
      %vm1180 = vcmask 193696
      %1181 = vst.msk [vmem:[%s155] sm:$0x3f] %vm1180, %v1178
      %1182 = vrot.lane.b32.xlu0 %v158, 104
      %v1183 = vpop.permute.xlu0 %1182
      %1184 = vrot.lane.b32.xlu0 %v157, 104
      %v1185 = vpop.permute.xlu0 %1184
      %v1186 = vsel %vm159, %v1183, 0
      %v1188 = vsel %vm159, %v1185, 0
      %1190 = vmatprep.subr.mxu0 0.0
      %1191 = vmatpush1.xpose.msra.mxu0 %v1188
      %1192 = vmatprep.subr.mxu0 0.0
      %1193 = vmatpush1.xpose.msra.mxu0 0.0
      %1194 = vmatprep.subr.mxu0 0.0
      %1195 = vmatpush1.xpose.msra.mxu0 0.0
      %1196 = vmatprep.subr.mxu0 0.0
      %1197 = vmatpush1.xpose.msra.mxu0 0.0
      %1198 = vmatprep.subr.mxu0 0.0
      %1199 = vmatpush1.xpose.msra.mxu0 0.0
      %1200 = vmatprep.subr.mxu0 0.0
      %1201 = vmatpush1.xpose.msra.mxu0 0.0
      %1202 = vmatprep.subr.mxu0 0.0
      %1203 = vmatpush1.xpose.msra.mxu0 0.0
      %1204 = vmatprep.subr.mxu0 0.0
      %1205 = vmatpush1.xpose.msra.mxu0 0.0
      %1206 = vmatprep.subr.mxu0 0.0
      %1207 = vmatpush1.xpose.msra.mxu0 0.0
      %1208 = vmatprep.subr.mxu0 0.0
      %1209 = vmatpush1.xpose.msra.mxu0 0.0
      %1210 = vmatprep.subr.mxu0 0.0
      %1211 = vmatpush1.xpose.msra.mxu0 0.0
      %1212 = vmatprep.subr.mxu0 0.0
      %1213 = vmatpush1.xpose.msra.mxu0 0.0
      %1214 = vmatprep.subr.mxu0 0.0
      %1215 = vmatpush1.xpose.msra.mxu0 0.0
      %1216 = vmatprep.subr.mxu0 0.0
      %1217 = vmatpush1.xpose.msra.mxu0 0.0
      %1218 = vmatprep.subr.mxu0 0.0
      %1219 = vmatpush1.xpose.msra.mxu0 0.0
      %1220 = vmatprep.subr.mxu0 0.0
      %1221 = vmatpush1.xpose.msra.mxu0 0.0
      %1222 = vmatprep.subr.mxu0 0.0
      %1223 = vmatpush1.xpose.msra.mxu0 0.0
      %1224 = vmatprep.subr.mxu0 0.0
      %1225 = vmatpush1.xpose.msra.mxu0 0.0
      %1226 = vmatprep.subr.mxu0 0.0
      %1227 = vmatpush1.xpose.msra.mxu0 0.0
      %1228 = vmatprep.subr.mxu0 0.0
      %1229 = vmatpush1.xpose.msra.mxu0 0.0
      %1230 = vmatprep.subr.mxu0 0.0
      %1231 = vmatpush1.xpose.msra.mxu0 0.0
      %1232 = vmatprep.subr.mxu0 0.0
      %1233 = vmatpush1.xpose.msra.mxu0 0.0
      %1234 = vmatprep.subr.mxu0 0.0
      %1235 = vmatpush1.xpose.msra.mxu0 0.0
      %1236 = vmatprep.subr.mxu0 0.0
      %1237 = vmatpush1.xpose.msra.mxu0 0.0
      %1238 = vmatprep.subr.mxu0 0.0
      %1239 = vmatpush1.xpose.msra.mxu0 0.0
      %1240 = vmatprep.subr.mxu0 0.0
      %1241 = vmatpush1.xpose.msra.mxu0 0.0
      %1242 = vmatprep.subr.mxu0 0.0
      %1243 = vmatpush1.xpose.msra.mxu0 0.0
      %1244 = vmatprep.subr.mxu0 0.0
      %1245 = vmatpush1.xpose.msra.mxu0 0.0
      %1246 = vmatprep.subr.mxu0 0.0
      %1247 = vmatpush1.xpose.msra.mxu0 0.0
      %1248 = vmatprep.subr.mxu0 0.0
      %1249 = vmatpush1.xpose.msra.mxu0 0.0
      %1250 = vmatprep.subr.mxu0 0.0
      %1251 = vmatpush1.xpose.msra.mxu0 0.0
      %1252 = vmatprep.subr.mxu0 0.0
      %1253 = vmatpush1.xpose.msra.mxu0 0.0
      %1254 = vmatprep.mubr.f32.mxu0 0.0
      %1255 = vmatmul.mubr.f32.gmra.mrb[0].mxu0 %v1186
      %v1256 = vpop.f32.mrb[0].mxu0
      %v1257 = vadd.f32 0.0, %v1256
      %v1258 = vpop.f32.mrb[0].mxu0
      %1259 = vdwg.mxu0
      %v1260 = vsel %vm236, %v1257, -inf
      %1261 = vmax.xlane.f32.xlu0 %v1260
      %v1262 = vpop.xlane.xlu0 %1261
      %v1263 = vsub.f32 %v1257, %v1262
      %v1264 = vmul.f32 %v1263, 1.442695
      %v1265 = vpow.pop %v1264
      %v1266 = vsel %vm236, %v1265, 0.0
      %1267 = vadd.xlane.f32.xlu0 %v1266
      %v1268 = vpop.xlane.xlu0 %1267
      %v1269 = vrcp.pop %v1268
      %v1270 = vmul.f32 %v1265, %v1269
      %1271 = vrot.lane.b32.xlu0 %v157, 72
      %v1272 = vpop.permute.xlu0 %1271
      %v1275 = vsel %vm251, %v1270, 0
      %1277 = vmatprep.subr.mxu0 0.0
      %1278 = vmatpush1.msra.mxu0 %v1272
      %1279 = vmatprep.subr.mxu0 0.0
      %1280 = vmatpush1.msra.mxu0 0.0
      %1281 = vmatprep.subr.mxu0 0.0
      %1282 = vmatpush1.msra.mxu0 0.0
      %1283 = vmatprep.subr.mxu0 0.0
      %1284 = vmatpush1.msra.mxu0 0.0
      %1285 = vmatprep.subr.mxu0 0.0
      %1286 = vmatpush1.msra.mxu0 0.0
      %1287 = vmatprep.subr.mxu0 0.0
      %1288 = vmatpush1.msra.mxu0 0.0
      %1289 = vmatprep.subr.mxu0 0.0
      %1290 = vmatpush1.msra.mxu0 0.0
      %1291 = vmatprep.subr.mxu0 0.0
      %1292 = vmatpush1.msra.mxu0 0.0
      %1293 = vmatprep.subr.mxu0 0.0
      %1294 = vmatpush1.msra.mxu0 0.0
      %1295 = vmatprep.subr.mxu0 0.0
      %1296 = vmatpush1.msra.mxu0 0.0
      %1297 = vmatprep.subr.mxu0 0.0
      %1298 = vmatpush1.msra.mxu0 0.0
      %1299 = vmatprep.subr.mxu0 0.0
      %1300 = vmatpush1.msra.mxu0 0.0
      %1301 = vmatprep.subr.mxu0 0.0
      %1302 = vmatpush1.msra.mxu0 0.0
      %1303 = vmatprep.subr.mxu0 0.0
      %1304 = vmatpush1.msra.mxu0 0.0
      %1305 = vmatprep.subr.mxu0 0.0
      %1306 = vmatpush1.msra.mxu0 0.0
      %1307 = vmatprep.subr.mxu0 0.0
      %1308 = vmatpush1.msra.mxu0 0.0
      %1309 = vmatprep.subr.mxu0 0.0
      %1310 = vmatpush1.msra.mxu0 0.0
      %1311 = vmatprep.subr.mxu0 0.0
      %1312 = vmatpush1.msra.mxu0 0.0
      %1313 = vmatprep.subr.mxu0 0.0
      %1314 = vmatpush1.msra.mxu0 0.0
      %1315 = vmatprep.subr.mxu0 0.0
      %1316 = vmatpush1.msra.mxu0 0.0
      %1317 = vmatprep.subr.mxu0 0.0
      %1318 = vmatpush1.msra.mxu0 0.0
      %1319 = vmatprep.subr.mxu0 0.0
      %1320 = vmatpush1.msra.mxu0 0.0
      %1321 = vmatprep.subr.mxu0 0.0
      %1322 = vmatpush1.msra.mxu0 0.0
      %1323 = vmatprep.subr.mxu0 0.0
      %1324 = vmatpush1.msra.mxu0 0.0
      %1325 = vmatprep.subr.mxu0 0.0
      %1326 = vmatpush1.msra.mxu0 0.0
      %1327 = vmatprep.subr.mxu0 0.0
      %1328 = vmatpush1.msra.mxu0 0.0
      %1329 = vmatprep.subr.mxu0 0.0
      %1330 = vmatpush1.msra.mxu0 0.0
      %1331 = vmatprep.subr.mxu0 0.0
      %1332 = vmatpush1.msra.mxu0 0.0
      %1333 = vmatprep.subr.mxu0 0.0
      %1334 = vmatpush1.msra.mxu0 0.0
      %1335 = vmatprep.subr.mxu0 0.0
      %1336 = vmatpush1.msra.mxu0 0.0
      %1337 = vmatprep.subr.mxu0 0.0
      %1338 = vmatpush1.msra.mxu0 0.0
      %1339 = vmatprep.subr.mxu0 0.0
      %1340 = vmatpush1.msra.mxu0 0.0
      %1341 = vmatprep.mubr.f32.mxu0 0.0
      %1342 = vmatmul.mubr.f32.gmra.mrb[0].mxu0 %v1275
      %v1343 = vpop.f32.mrb[0].mxu0
      %v1344 = vadd.f32 0.0, %v1343
      %v1345 = vpop.f32.mrb[0].mxu0
      %1346 = vdwg.mxu0
      %1348 = vrot.lane.b32.xlu0 %v1344, 24
      %v1349 = vpop.permute.xlu0 %1348
      %vm1351 = vcmask 226496
      %1352 = vst.msk [vmem:[%s155] sm:$0x3f] %vm1351, %v1349
      %1353 = vrot.lane.b32.xlu0 %v158, 100
      %v1354 = vpop.permute.xlu0 %1353
      %1355 = vrot.lane.b32.xlu0 %v157, 100
      %v1356 = vpop.permute.xlu0 %1355
      %v1357 = vsel %vm159, %v1354, 0
      %v1359 = vsel %vm159, %v1356, 0
      %1361 = vmatprep.subr.mxu0 0.0
      %1362 = vmatpush1.xpose.msra.mxu0 %v1359
      %1363 = vmatprep.subr.mxu0 0.0
      %1364 = vmatpush1.xpose.msra.mxu0 0.0
      %1365 = vmatprep.subr.mxu0 0.0
      %1366 = vmatpush1.xpose.msra.mxu0 0.0
      %1367 = vmatprep.subr.mxu0 0.0
      %1368 = vmatpush1.xpose.msra.mxu0 0.0
      %1369 = vmatprep.subr.mxu0 0.0
      %1370 = vmatpush1.xpose.msra.mxu0 0.0
      %1371 = vmatprep.subr.mxu0 0.0
      %1372 = vmatpush1.xpose.msra.mxu0 0.0
      %1373 = vmatprep.subr.mxu0 0.0
      %1374 = vmatpush1.xpose.msra.mxu0 0.0
      %1375 = vmatprep.subr.mxu0 0.0
      %1376 = vmatpush1.xpose.msra.mxu0 0.0
      %1377 = vmatprep.subr.mxu0 0.0
      %1378 = vmatpush1.xpose.msra.mxu0 0.0
      %1379 = vmatprep.subr.mxu0 0.0
      %1380 = vmatpush1.xpose.msra.mxu0 0.0
      %1381 = vmatprep.subr.mxu0 0.0
      %1382 = vmatpush1.xpose.msra.mxu0 0.0
      %1383 = vmatprep.subr.mxu0 0.0
      %1384 = vmatpush1.xpose.msra.mxu0 0.0
      %1385 = vmatprep.subr.mxu0 0.0
      %1386 = vmatpush1.xpose.msra.mxu0 0.0
      %1387 = vmatprep.subr.mxu0 0.0
      %1388 = vmatpush1.xpose.msra.mxu0 0.0
      %1389 = vmatprep.subr.mxu0 0.0
      %1390 = vmatpush1.xpose.msra.mxu0 0.0
      %1391 = vmatprep.subr.mxu0 0.0
      %1392 = vmatpush1.xpose.msra.mxu0 0.0
      %1393 = vmatprep.subr.mxu0 0.0
      %1394 = vmatpush1.xpose.msra.mxu0 0.0
      %1395 = vmatprep.subr.mxu0 0.0
      %1396 = vmatpush1.xpose.msra.mxu0 0.0
      %1397 = vmatprep.subr.mxu0 0.0
      %1398 = vmatpush1.xpose.msra.mxu0 0.0
      %1399 = vmatprep.subr.mxu0 0.0
      %1400 = vmatpush1.xpose.msra.mxu0 0.0
      %1401 = vmatprep.subr.mxu0 0.0
      %1402 = vmatpush1.xpose.msra.mxu0 0.0
      %1403 = vmatprep.subr.mxu0 0.0
      %1404 = vmatpush1.xpose.msra.mxu0 0.0
      %1405 = vmatprep.subr.mxu0 0.0
      %1406 = vmatpush1.xpose.msra.mxu0 0.0
      %1407 = vmatprep.subr.mxu0 0.0
      %1408 = vmatpush1.xpose.msra.mxu0 0.0
      %1409 = vmatprep.subr.mxu0 0.0
      %1410 = vmatpush1.xpose.msra.mxu0 0.0
      %1411 = vmatprep.subr.mxu0 0.0
      %1412 = vmatpush1.xpose.msra.mxu0 0.0
      %1413 = vmatprep.subr.mxu0 0.0
      %1414 = vmatpush1.xpose.msra.mxu0 0.0
      %1415 = vmatprep.subr.mxu0 0.0
      %1416 = vmatpush1.xpose.msra.mxu0 0.0
      %1417 = vmatprep.subr.mxu0 0.0
      %1418 = vmatpush1.xpose.msra.mxu0 0.0
      %1419 = vmatprep.subr.mxu0 0.0
      %1420 = vmatpush1.xpose.msra.mxu0 0.0
      %1421 = vmatprep.subr.mxu0 0.0
      %1422 = vmatpush1.xpose.msra.mxu0 0.0
      %1423 = vmatprep.subr.mxu0 0.0
      %1424 = vmatpush1.xpose.msra.mxu0 0.0
      %1425 = vmatprep.mubr.f32.mxu0 0.0
      %1426 = vmatmul.mubr.f32.gmra.mrb[0].mxu0 %v1357
      %v1427 = vpop.f32.mrb[0].mxu0
      %v1428 = vadd.f32 0.0, %v1427
      %v1429 = vpop.f32.mrb[0].mxu0
      %1430 = vdwg.mxu0
      %v1431 = vsel %vm236, %v1428, -inf
      %1432 = vmax.xlane.f32.xlu0 %v1431
      %v1433 = vpop.xlane.xlu0 %1432
      %v1434 = vsub.f32 %v1428, %v1433
      %v1435 = vmul.f32 %v1434, 1.442695
      %v1436 = vpow.pop %v1435
      %v1437 = vsel %vm236, %v1436, 0.0
      %1438 = vadd.xlane.f32.xlu0 %v1437
      %v1439 = vpop.xlane.xlu0 %1438
      %v1440 = vrcp.pop %v1439
      %v1441 = vmul.f32 %v1436, %v1440
      %1442 = vrot.lane.b32.xlu0 %v157, 68
      %v1443 = vpop.permute.xlu0 %1442
      %v1446 = vsel %vm251, %v1441, 0
      %1448 = vmatprep.subr.mxu0 0.0
      %1449 = vmatpush1.msra.mxu0 %v1443
      %1450 = vmatprep.subr.mxu0 0.0
      %1451 = vmatpush1.msra.mxu0 0.0
      %1452 = vmatprep.subr.mxu0 0.0
      %1453 = vmatpush1.msra.mxu0 0.0
      %1454 = vmatprep.subr.mxu0 0.0
      %1455 = vmatpush1.msra.mxu0 0.0
      %1456 = vmatprep.subr.mxu0 0.0
      %1457 = vmatpush1.msra.mxu0 0.0
      %1458 = vmatprep.subr.mxu0 0.0
      %1459 = vmatpush1.msra.mxu0 0.0
      %1460 = vmatprep.subr.mxu0 0.0
      %1461 = vmatpush1.msra.mxu0 0.0
      %1462 = vmatprep.subr.mxu0 0.0
      %1463 = vmatpush1.msra.mxu0 0.0
      %1464 = vmatprep.subr.mxu0 0.0
      %1465 = vmatpush1.msra.mxu0 0.0
      %1466 = vmatprep.subr.mxu0 0.0
      %1467 = vmatpush1.msra.mxu0 0.0
      %1468 = vmatprep.subr.mxu0 0.0
      %1469 = vmatpush1.msra.mxu0 0.0
      %1470 = vmatprep.subr.mxu0 0.0
      %1471 = vmatpush1.msra.mxu0 0.0
      %1472 = vmatprep.subr.mxu0 0.0
      %1473 = vmatpush1.msra.mxu0 0.0
      %1474 = vmatprep.subr.mxu0 0.0
      %1475 = vmatpush1.msra.mxu0 0.0
      %1476 = vmatprep.subr.mxu0 0.0
      %1477 = vmatpush1.msra.mxu0 0.0
      %1478 = vmatprep.subr.mxu0 0.0
      %1479 = vmatpush1.msra.mxu0 0.0
      %1480 = vmatprep.subr.mxu0 0.0
      %1481 = vmatpush1.msra.mxu0 0.0
      %1482 = vmatprep.subr.mxu0 0.0
      %1483 = vmatpush1.msra.mxu0 0.0
      %1484 = vmatprep.subr.mxu0 0.0
      %1485 = vmatpush1.msra.mxu0 0.0
      %1486 = vmatprep.subr.mxu0 0.0
      %1487 = vmatpush1.msra.mxu0 0.0
      %1488 = vmatprep.subr.mxu0 0.0
      %1489 = vmatpush1.msra.mxu0 0.0
      %1490 = vmatprep.subr.mxu0 0.0
      %1491 = vmatpush1.msra.mxu0 0.0
      %1492 = vmatprep.subr.mxu0 0.0
      %1493 = vmatpush1.msra.mxu0 0.0
      %1494 = vmatprep.subr.mxu0 0.0
      %1495 = vmatpush1.msra.mxu0 0.0
      %1496 = vmatprep.subr.mxu0 0.0
      %1497 = vmatpush1.msra.mxu0 0.0
      %1498 = vmatprep.subr.mxu0 0.0
      %1499 = vmatpush1.msra.mxu0 0.0
      %1500 = vmatprep.subr.mxu0 0.0
      %1501 = vmatpush1.msra.mxu0 0.0
      %1502 = vmatprep.subr.mxu0 0.0
      %1503 = vmatpush1.msra.mxu0 0.0
      %1504 = vmatprep.subr.mxu0 0.0
      %1505 = vmatpush1.msra.mxu0 0.0
      %1506 = vmatprep.subr.mxu0 0.0
      %1507 = vmatpush1.msra.mxu0 0.0
      %1508 = vmatprep.subr.mxu0 0.0
      %1509 = vmatpush1.msra.mxu0 0.0
      %1510 = vmatprep.subr.mxu0 0.0
      %1511 = vmatpush1.msra.mxu0 0.0
      %1512 = vmatprep.mubr.f32.mxu0 0.0
      %1513 = vmatmul.mubr.f32.gmra.mrb[0].mxu0 %v1446
      %v1514 = vpop.f32.mrb[0].mxu0
      %v1515 = vadd.f32 0.0, %v1514
      %v1516 = vpop.f32.mrb[0].mxu0
      %1517 = vdwg.mxu0
      %1519 = vrot.lane.b32.xlu0 %v1515, 28
      %v1520 = vpop.permute.xlu0 %1519
      %vm1522 = vcmask 259296
      %1523 = vst.msk [vmem:[%s155] sm:$0x3f] %vm1522, %v1520
      %p1524 = scmp.lt.s32.totalorder %s13, 1
      %s1525 = scalar_select %p1524, %s13, 1
      %s1526 = smul.addr %s1525, 8
      %s1527 = scalar_lea.vmem %s2, %s1526
      // Predicated region
      $region29: #{transformer_forward.72} parent=27 // pred_check
        %p1528 = pneg %p83
      $region30: #{transformer_forward.72} parent=27 // pred_check_branch
        %1530 = sbr.rel (%p1528) target = $region32
      $region31: #{transformer_forward.72} parent=27 // pred_region
        _
      $region32: #{transformer_forward.72} parent=27 // pred_fallthru
        _
    $region28: #{transformer_forward.72} parent=5 // pred_fallthru
      _
    %p1531 = scmp.le.s32.totalorder 2, %s8
    // Predicated region
    $region33: #{transformer_forward.72} parent=5 // pred_check
      %p1532 = pneg %p1531
    $region34: #{transformer_forward.72} parent=5 // pred_check_branch
      %1534 = sbr.rel (%p1532) target = $region36
    $region35: #{transformer_forward.72} parent=5 // pred_region
      %s1535 = ssub.s32 %s8, 2
      // Predicated region
      $region37: #{transformer_forward.72} parent=35 // pred_check
        %p1536 = pneg %p89
      $region38: #{transformer_forward.72} parent=35 // pred_check_branch
        %1538 = sbr.rel (%p1536) target = $region40
      $region39: #{transformer_forward.72} parent=35 // pred_region
        %p1539 = scmp.lt.s32.totalorder %s14, 1
        %s1540 = scalar_select %p1539, %s14, 1
        %s1541 = smul.addr %s1540, 8
        %s1542 = scalar_lea.vmem %s2, %s1541
      $region40: #{transformer_forward.72} parent=35 // pred_fallthru
        _
    $region36: #{transformer_forward.72} parent=5 // pred_fallthru
      _
  $region6: #{transformer_forward.72} parent=0 // loop_footer
    %s12 = sadd.s32 1, %s8
  $region7: #{transformer_forward.72} parent=0 // loop_footer_branch
    %7 = sbr.rel target = $region3
  $region8: #{transformer_forward.72} parent=0 // loop_exit
    _

</llo_original>
